<compile_context>
chip_gen: v7x
topology: tpu7x:2x2x1
jax: 0.10.0
libtpu: 0.0.40
codegen_flags: <defaults>
</compile_context>

<pallas_src>
import math

import jax
import jax.numpy as jnp
from jax.experimental import pallas as pl
from jax.experimental.pallas import tpu as pltpu


def _round_up(x, m):
    return (x + m - 1) // m * m


def _default_band_rows(h, w, c):
    """Pick an H row-band size with a conservative (~6 MiB) per-step working set so the
    same choice is safe on v7x (64 MiB physical VMEM) and v5e/v6e (128 MiB), leaving room
    for the pipeline's double buffers.  Must be even and divide H."""
    budget = 6 * 1024 * 1024
    wp = _round_up(w + 2, 8)
    per_row = (2 * wp * c * 2            # padded input + intermediate scratch rows (bf16)
               + 2 * w * c * 4           # conv accumulators (f32)
               + 2 * (w * c * 2 + w * c * 4))   # double-buffered in/out block rows
    th = max(2, min(h, budget // max(per_row, 1)))
    for cand in range(th - (th % 2), 1, -2):
        if h % cand == 0:
            return cand
    return h


def resblock_pallas_nhwc(x_nhwc, w1_hwio, b1, w2_hwio, b2, *, band_rows=None):
    """ResBlock forward on NHWC input.

    x_nhwc : (N, H, W, C) float
    w*_hwio: (3, 3, C, C) post-weight-norm conv weights (HWIO; cross-correlation like
             torch.nn.Conv2d, no kernel flip)
    b*     : (C,) biases
    Returns (N, H, W, C) float32.
    """
    n, h, w, c = x_nhwc.shape
    th = band_rows if band_rows is not None else _default_band_rows(h, w, c)
    assert h % 2 == 0 and th % 2 == 0 and h % th == 0, (h, th)
    nb = h // th
    wp = _round_up(w + 2, 8)          # zero-padded scratch width, 8-aligned sublanes
    hh = th // 2                      # halo blocks are 2 rows -> block-index unit

    cdt = jnp.bfloat16                # MXU operand dtype: single-pass matmul, f32 accum
    xb = x_nhwc.astype(cdt)
    w1 = w1_hwio.reshape(9, c, c).astype(cdt)    # tap k = ky*3 + kx -> (Cin, Cout)
    w2 = w2_hwio.reshape(9, c, c).astype(cdt)
    b1r = b1.reshape(1, c).astype(jnp.float32)
    b2r = b2.reshape(1, c).astype(jnp.float32)

    dims = (((1,), (0,)), ((), ()))   # plain (M,K)x(K,N) channel contraction

    def kernel(xc_ref, xt_ref, xbt_ref, w1_ref, b1_ref, w2_ref, b2_ref,
               o_ref, xs_ref, ms_ref):
        # xc_ref : (1, TH, W, C)  band rows                         [bf16]
        # xt_ref : (1, 2,  W, C)  2-row top halo (clamped at j==0)  [bf16]
        # xbt_ref: (1, 2,  W, C)  2-row bottom halo (clamped)       [bf16]
        # w*_ref : (9, C, C)      per-tap (Cin, Cout)               [bf16]
        # b*_ref : (1, C)         biases                            [f32]
        # o_ref  : (1, TH, W, C)  output band                       [f32]
        # xs_ref : (TH+4, Wp, C)  zero-padded input tile   (scratch, bf16)
        # ms_ref : (TH+2, Wp, C)  zero-padded ReLU interm. (scratch, bf16)
        j = pl.program_id(1)
        last = pl.num_programs(1) - 1

        # ---- assemble the zero-padded input tile (border ring only is zero-filled;
        # ---- the interior is rewritten every step) ------------------------------
        xs_ref[:, 0:1, :] = jnp.zeros((th + 4, 1, c), cdt)
        xs_ref[:, 1 + w:wp, :] = jnp.zeros((th + 4, wp - w - 1, c), cdt)
        xs_ref[2:2 + th, 1:1 + w, :] = xc_ref[0]
        xs_ref[0:2, 1:1 + w, :] = xt_ref[0]
        xs_ref[th + 2:th + 4, 1:1 + w, :] = xbt_ref[0]

        @pl.when(j == 0)          # image rows -2, -1 are SAME zero padding
        def _():
            xs_ref[0:2, 1:1 + w, :] = jnp.zeros((2, w, c), cdt)

        @pl.when(j == last)       # image rows H, H+1 are SAME zero padding
        def _():
            xs_ref[th + 2:th + 4, 1:1 + w, :] = jnp.zeros((2, w, c), cdt)

        # ---- conv1 (SAME 3x3) + bias + ReLU over TH+2 rows (1-row recompute overlap
        # ---- so conv2 has its halo).  9 accumulated per-tap matmuls; no im2col. ----
        m1 = (th + 2) * w
        acc1 = jnp.zeros((m1, c), jnp.float32)
        for dy in range(3):
            for dx in range(3):
                tap = xs_ref[dy:dy + th + 2, dx:dx + w, :].reshape(m1, c)
                acc1 = acc1 + jax.lax.dot_general(
                    tap, w1_ref[dy * 3 + dx], dims,
                    preferred_element_type=jnp.float32)
        mid = jnp.maximum(acc1 + b1_ref[...], 0.0).astype(cdt).reshape(th + 2, w, c)

        # ---- zero-padded ReLU intermediate (conv2 must see SAME zeros) -------------
        ms_ref[:, 0:1, :] = jnp.zeros((th + 2, 1, c), cdt)
        ms_ref[:, 1 + w:wp, :] = jnp.zeros((th + 2, wp - w - 1, c), cdt)
        ms_ref[0:th + 2, 1:1 + w, :] = mid

        @pl.when(j == 0)          # intermediate row -1 is zero padding
        def _():
            ms_ref[0:1, 1:1 + w, :] = jnp.zeros((1, w, c), cdt)

        @pl.when(j == last)       # intermediate row H is zero padding
        def _():
            ms_ref[th + 1:th + 2, 1:1 + w, :] = jnp.zeros((1, w, c), cdt)

        # ---- conv2 (SAME 3x3) + bias + residual ------------------------------------
        m2 = th * w
        acc2 = jnp.zeros((m2, c), jnp.float32)
        for dy in range(3):
            for dx in range(3):
                tap = ms_ref[dy:dy + th, dx:dx + w, :].reshape(m2, c)
                acc2 = acc2 + jax.lax.dot_general(
                    tap, w2_ref[dy * 3 + dx], dims,
                    preferred_element_type=jnp.float32)

        res = xs_ref[2:2 + th, 1:1 + w, :].astype(jnp.float32)      # residual, 3-D add
        out = acc2.reshape(th, w, c) + b2_ref[...] + res
        o_ref[0] = out.astype(o_ref.dtype)

    grid_spec = pltpu.PrefetchScalarGridSpec(
        num_scalar_prefetch=0,
        grid=(n, nb),
        in_specs=[
            # band rows [j*TH, j*TH + TH)
            pl.BlockSpec((1, th, w, c), lambda b, j: (b, j, 0, 0)),
            # 2-row top halo: image rows [j*TH-2, j*TH); clamped at j==0, zeroed in-kernel
            pl.BlockSpec((1, 2, w, c),
                         lambda b, j: (b, jnp.maximum(j * hh - 1, 0), 0, 0)),
            # 2-row bottom halo: image rows [j*TH+TH, j*TH+TH+2); clamped at the last band
            pl.BlockSpec((1, 2, w, c),
                         lambda b, j: (b, jnp.minimum((j + 1) * hh, h // 2 - 1), 0, 0)),
            pl.BlockSpec((9, c, c), lambda b, j: (0, 0, 0)),
            pl.BlockSpec((1, c), lambda b, j: (0, 0)),
            pl.BlockSpec((9, c, c), lambda b, j: (0, 0, 0)),
            pl.BlockSpec((1, c), lambda b, j: (0, 0)),
        ],
        out_specs=pl.BlockSpec((1, th, w, c), lambda b, j: (b, j, 0, 0)),
        scratch_shapes=[
            pltpu.VMEM((th + 4, wp, c), cdt),
            pltpu.VMEM((th + 2, wp, c), cdt),
        ],
    )

    return pl.pallas_call(
        kernel,
        out_shape=jax.ShapeDtypeStruct((n, h, w, c), jnp.float32),
        grid_spec=grid_spec,
        compiler_params=pltpu.CompilerParams(
            # bands and batch elements are independent -> both shardable across v7x's 2 TCs
            dimension_semantics=("parallel", "parallel"),
            # safe on every generation (<= v6e/v7x default, raises v5e's 16 MiB default);
            # retune together with band_rows per generation
            vmem_limit_bytes=32 * 1024 * 1024,
        ),
    )(xb, xb, xb, w1, b1r, w2, b2r)


# ----------------------------- parameter setup / reference -----------------------------

def weight_norm(v_oihw, g):
    # nn.utils.weight_norm (dim=0): w = g * v / ||v||, norm over (in, kh, kw) per out-chan
    norm = jnp.sqrt(jnp.sum(v_oihw * v_oihw, axis=(1, 2, 3), keepdims=True))
    return g.reshape(-1, 1, 1, 1) * v_oihw / norm


def make_params(key, n_feats, k=3):
    ks = jax.random.split(key, 6)
    fan_in = n_feats * k * k
    bound = 1.0 / math.sqrt(fan_in)
    v1 = jax.random.uniform(ks[0], (n_feats, n_feats, k, k), jnp.float32, -bound, bound)
    g1 = jax.random.uniform(ks[1], (n_feats,), jnp.float32, 0.5, 1.5)
    b1 = jax.random.uniform(ks[2], (n_feats,), jnp.float32, -bound, bound)
    v2 = jax.random.uniform(ks[3], (n_feats, n_feats, k, k), jnp.float32, -bound, bound)
    g2 = jax.random.uniform(ks[4], (n_feats,), jnp.float32, 0.5, 1.5)
    b2 = jax.random.uniform(ks[5], (n_feats,), jnp.float32, -bound, bound)
    return weight_norm(v1, g1), b1, weight_norm(v2, g2), b2


def ref_forward(x_nchw, w1_oihw, b1, w2_oihw, b2, quantize_mid=False):
    """Pure-JAX reference matching the PyTorch forward (NCHW, SAME padding)."""
    dn = jax.lax.conv_dimension_numbers(
        x_nchw.shape, w1_oihw.shape, ('NCHW', 'OIHW', 'NCHW'))
    hi = jax.lax.Precision.HIGHEST
    y = jax.lax.conv_general_dilated(x_nchw, w1_oihw, (1, 1), 'SAME',
                                     dimension_numbers=dn, precision=hi)
    y = jnp.maximum(y + b1.reshape(1, -1, 1, 1), 0.0)
    if quantize_mid:                       # mimic the kernel's bf16 intermediate
        y = y.astype(jnp.bfloat16).astype(jnp.float32)
    y = jax.lax.conv_general_dilated(y, w2_oihw, (1, 1), 'SAME',
                                     dimension_numbers=dn, precision=hi)
    y = y + b2.reshape(1, -1, 1, 1)
    return y + x_nchw


if __name__ == "__main__":
    key = jax.random.PRNGKey(0)
    k_x, k_p = jax.random.split(key)

    N, C, H, W = 2, 4, 16, 16
    x = jax.random.normal(k_x, (N, C, H, W), jnp.float32)
    w1_oihw, b1, w2_oihw, b2 = make_params(k_p, C)

    # One-time layout plumbing at the model boundary (kernel is NHWC end-to-end):
    # OIHW -> HWIO (PyTorch conv == cross-correlation, no flip), NCHW -> NHWC.
    w1_hwio = jnp.transpose(w1_oihw, (2, 3, 1, 0))
    w2_hwio = jnp.transpose(w2_oihw, (2, 3, 1, 0))
    x_nhwc = jnp.transpose(x, (0, 2, 3, 1))

    out_nhwc = resblock_pallas_nhwc(x_nhwc, w1_hwio, b1, w2_hwio, b2, band_rows=8)
    out = jax.block_until_ready(jnp.transpose(out_nhwc, (0, 3, 1, 2)))
    assert out.shape == (N, C, H, W)

    # Tight check vs a reference using the same bf16 operand quantization the kernel uses
    # (bf16 x / weights / intermediate, f32 accumulation).
    q = lambda a: a.astype(jnp.bfloat16).astype(jnp.float32)
    ref_q = ref_forward(q(x), q(w1_oihw), b1, q(w2_oihw), b2, quantize_mid=True)
    err_q = float(jnp.max(jnp.abs(out - ref_q)))
    assert jnp.allclose(out, ref_q, atol=2e-3, rtol=2e-3), f"bf16-ref max abs err = {err_q}"

    # Loose sanity check vs the full-f32 reference (bf16 MXU operands are a deliberate
    # perf trade; see review notes).
    ref = ref_forward(x, w1_oihw, b1, w2_oihw, b2)
    err = float(jnp.max(jnp.abs(out - ref)))
    assert jnp.allclose(out, ref, atol=1e-1, rtol=1e-1), f"f32-ref max abs err = {err}"

    print("KERNEL_OK")
</pallas_src>

<mosaic_0001>
module attributes {stable_mosaic.version = 11 : i64} {
  func.func @kernel(%arg0: i32, %arg1: i32, %arg2: memref<1x8x16x4xbf16, #tpu.memory_space<vmem>>, %arg3: memref<1x2x16x4xbf16, #tpu.memory_space<vmem>>, %arg4: memref<1x2x16x4xbf16, #tpu.memory_space<vmem>>, %arg5: memref<9x4x4xbf16, #tpu.memory_space<vmem>>, %arg6: memref<1x4xf32, #tpu.memory_space<vmem>>, %arg7: memref<9x4x4xbf16, #tpu.memory_space<vmem>>, %arg8: memref<1x4xf32, #tpu.memory_space<vmem>>, %arg9: memref<1x8x16x4xf32, #tpu.memory_space<vmem>>, %arg10: memref<12x24x4xbf16, #tpu.memory_space<vmem>>, %arg11: memref<10x24x4xbf16, #tpu.memory_space<vmem>>) attributes {dimension_semantics = [#tpu.dimension_semantics<parallel>, #tpu.dimension_semantics<parallel>], iteration_bounds = array<i64: 2, 2>, scalar_prefetch = 0 : i64, scratch_operands = 2 : i64, tpu.core_type = #tpu.core_type<tc>, window_params = [{transform_indices = @transform_0, window_bounds = array<i64: 1, 8, 16, 4>}, {transform_indices = @transform_1, window_bounds = array<i64: 1, 2, 16, 4>}, {transform_indices = @transform_2, window_bounds = array<i64: 1, 2, 16, 4>}, {pipeline_mode = #tpu.pipeline_mode<synchronous>, transform_indices = @transform_3, window_bounds = array<i64: 9, 4, 4>}, {pipeline_mode = #tpu.pipeline_mode<synchronous>, transform_indices = @transform_4, window_bounds = array<i64: 1, 4>}, {pipeline_mode = #tpu.pipeline_mode<synchronous>, transform_indices = @transform_5, window_bounds = array<i64: 9, 4, 4>}, {pipeline_mode = #tpu.pipeline_mode<synchronous>, transform_indices = @transform_6, window_bounds = array<i64: 1, 4>}, {transform_indices = @transform_7, window_bounds = array<i64: 1, 8, 16, 4>}]} {
    %cst = arith.constant 0.000000e+00 : bf16
    %0 = vector.broadcast %cst : bf16 to vector<12x1x4xbf16>
    %c0 = arith.constant 0 : index
    %c0_0 = arith.constant 0 : index
    %c0_1 = arith.constant 0 : index
    %1 = vector.load %arg10[%c0, %c0_0, %c0_1] : memref<12x24x4xbf16, #tpu.memory_space<vmem>>, vector<12x1x4xbf16>
    tpu.vector_store %arg10[%c0, %c0_0, %c0_1], %0 {strides = array<i32>} : memref<12x24x4xbf16, #tpu.memory_space<vmem>>, vector<12x1x4xbf16>,
    %cst_2 = arith.constant 0.000000e+00 : bf16
    %2 = vector.broadcast %cst_2 : bf16 to vector<12x7x4xbf16>
    %c0_3 = arith.constant 0 : index
    %c17 = arith.constant 17 : index
    %c0_4 = arith.constant 0 : index
    %3 = vector.load %arg10[%c0_3, %c17, %c0_4] : memref<12x24x4xbf16, #tpu.memory_space<vmem>>, vector<12x7x4xbf16>
    tpu.vector_store %arg10[%c0_3, %c17, %c0_4], %2 {strides = array<i32>} : memref<12x24x4xbf16, #tpu.memory_space<vmem>>, vector<12x7x4xbf16>,
    %c0_5 = arith.constant 0 : index
    %c0_6 = arith.constant 0 : index
    %c0_7 = arith.constant 0 : index
    %c0_8 = arith.constant 0 : index
    %4 = vector.load %arg2[%c0_5, %c0_6, %c0_7, %c0_8] : memref<1x8x16x4xbf16, #tpu.memory_space<vmem>>, vector<1x8x16x4xbf16>
    %5 = vector.shape_cast %4 : vector<1x8x16x4xbf16> to vector<8x16x4xbf16>
    %c2 = arith.constant 2 : index
    %c1 = arith.constant 1 : index
    %c0_9 = arith.constant 0 : index
    %6 = vector.load %arg10[%c2, %c1, %c0_9] : memref<12x24x4xbf16, #tpu.memory_space<vmem>>, vector<8x16x4xbf16>
    tpu.vector_store %arg10[%c2, %c1, %c0_9], %5 {strides = array<i32>} : memref<12x24x4xbf16, #tpu.memory_space<vmem>>, vector<8x16x4xbf16>,
    %c0_10 = arith.constant 0 : index
    %c0_11 = arith.constant 0 : index
    %c0_12 = arith.constant 0 : index
    %c0_13 = arith.constant 0 : index
    %7 = vector.load %arg3[%c0_10, %c0_11, %c0_12, %c0_13] : memref<1x2x16x4xbf16, #tpu.memory_space<vmem>>, vector<1x2x16x4xbf16>
    %8 = vector.shape_cast %7 : vector<1x2x16x4xbf16> to vector<2x16x4xbf16>
    %c0_14 = arith.constant 0 : index
    %c1_15 = arith.constant 1 : index
    %c0_16 = arith.constant 0 : index
    %9 = vector.load %arg10[%c0_14, %c1_15, %c0_16] : memref<12x24x4xbf16, #tpu.memory_space<vmem>>, vector<2x16x4xbf16>
    tpu.vector_store %arg10[%c0_14, %c1_15, %c0_16], %8 {strides = array<i32>} : memref<12x24x4xbf16, #tpu.memory_space<vmem>>, vector<2x16x4xbf16>,
    %c0_17 = arith.constant 0 : index
    %c0_18 = arith.constant 0 : index
    %c0_19 = arith.constant 0 : index
    %c0_20 = arith.constant 0 : index
    %10 = vector.load %arg4[%c0_17, %c0_18, %c0_19, %c0_20] : memref<1x2x16x4xbf16, #tpu.memory_space<vmem>>, vector<1x2x16x4xbf16>
    %11 = vector.shape_cast %10 : vector<1x2x16x4xbf16> to vector<2x16x4xbf16>
    %c10 = arith.constant 10 : index
    %c1_21 = arith.constant 1 : index
    %c0_22 = arith.constant 0 : index
    %12 = vector.load %arg10[%c10, %c1_21, %c0_22] : memref<12x24x4xbf16, #tpu.memory_space<vmem>>, vector<2x16x4xbf16>
    tpu.vector_store %arg10[%c10, %c1_21, %c0_22], %11 {strides = array<i32>} : memref<12x24x4xbf16, #tpu.memory_space<vmem>>, vector<2x16x4xbf16>,
    %c0_i32 = arith.constant 0 : i32
    %13 = arith.cmpi eq, %arg1, %c0_i32 : i32
    %14 = arith.extui %13 : i1 to i32
    %c0_i32_23 = arith.constant 0 : i32
    %15 = arith.cmpi ne, %14, %c0_i32_23 : i32
    scf.if %15 {
      %cst_174 = arith.constant 0.000000e+00 : bf16
      %158 = vector.broadcast %cst_174 : bf16 to vector<2x16x4xbf16>
      %c0_175 = arith.constant 0 : index
      %c1_176 = arith.constant 1 : index
      %c0_177 = arith.constant 0 : index
      %159 = vector.load %arg10[%c0_175, %c1_176, %c0_177] : memref<12x24x4xbf16, #tpu.memory_space<vmem>>, vector<2x16x4xbf16>
      tpu.vector_store %arg10[%c0_175, %c1_176, %c0_177], %158 {strides = array<i32>} : memref<12x24x4xbf16, #tpu.memory_space<vmem>>, vector<2x16x4xbf16>,
    } else {
    }
    %c1_i32 = arith.constant 1 : i32
    %16 = arith.cmpi eq, %arg1, %c1_i32 : i32
    %17 = arith.extui %16 : i1 to i32
    %c0_i32_24 = arith.constant 0 : i32
    %18 = arith.cmpi ne, %17, %c0_i32_24 : i32
    scf.if %18 {
      %cst_174 = arith.constant 0.000000e+00 : bf16
      %158 = vector.broadcast %cst_174 : bf16 to vector<2x16x4xbf16>
      %c10_175 = arith.constant 10 : index
      %c1_176 = arith.constant 1 : index
      %c0_177 = arith.constant 0 : index
      %159 = vector.load %arg10[%c10_175, %c1_176, %c0_177] : memref<12x24x4xbf16, #tpu.memory_space<vmem>>, vector<2x16x4xbf16>
      tpu.vector_store %arg10[%c10_175, %c1_176, %c0_177], %158 {strides = array<i32>} : memref<12x24x4xbf16, #tpu.memory_space<vmem>>, vector<2x16x4xbf16>,
    } else {
    }
    %cst_25 = arith.constant 0.000000e+00 : f32
    %19 = vector.broadcast %cst_25 : f32 to vector<160x4xf32>
    %c0_26 = arith.constant 0 : index
    %c0_27 = arith.constant 0 : index
    %c0_28 = arith.constant 0 : index
    %20 = vector.load %arg10[%c0_26, %c0_27, %c0_28] : memref<12x24x4xbf16, #tpu.memory_space<vmem>>, vector<10x16x4xbf16>
    %21 = vector.shape_cast %20 : vector<10x16x4xbf16> to vector<160x4xbf16>
    %c0_29 = arith.constant 0 : index
    %c0_30 = arith.constant 0 : index
    %c0_31 = arith.constant 0 : index
    %22 = vector.load %arg5[%c0_29, %c0_30, %c0_31] : memref<9x4x4xbf16, #tpu.memory_space<vmem>>, vector<1x4x4xbf16>
    %23 = vector.shape_cast %22 : vector<1x4x4xbf16> to vector<4x4xbf16>
    %cst_32 = arith.constant dense<0.000000e+00> : vector<160x4xf32>
    %24 = tpu.matmul %21, %23, %cst_32 {dimension_numbers = #tpu.dot_dimension_numbers<[1], [0], [0], [1], [0, 0, 1, 1], [], []>} : vector<160x4xbf16>, vector<4x4xbf16>, vector<160x4xf32> -> vector<160x4xf32>
    %25 = arith.addf %19, %24 : vector<160x4xf32>
    %c0_33 = arith.constant 0 : index
    %c1_34 = arith.constant 1 : index
    %c0_35 = arith.constant 0 : index
    %26 = vector.load %arg10[%c0_33, %c1_34, %c0_35] : memref<12x24x4xbf16, #tpu.memory_space<vmem>>, vector<10x16x4xbf16>
    %27 = vector.shape_cast %26 : vector<10x16x4xbf16> to vector<160x4xbf16>
    %c1_36 = arith.constant 1 : index
    %c0_37 = arith.constant 0 : index
    %c0_38 = arith.constant 0 : index
    %28 = vector.load %arg5[%c1_36, %c0_37, %c0_38] : memref<9x4x4xbf16, #tpu.memory_space<vmem>>, vector<1x4x4xbf16>
    %29 = vector.shape_cast %28 : vector<1x4x4xbf16> to vector<4x4xbf16>
    %cst_39 = arith.constant dense<0.000000e+00> : vector<160x4xf32>
    %30 = tpu.matmul %27, %29, %cst_39 {dimension_numbers = #tpu.dot_dimension_numbers<[1], [0], [0], [1], [0, 0, 1, 1], [], []>} : vector<160x4xbf16>, vector<4x4xbf16>, vector<160x4xf32> -> vector<160x4xf32>
    %31 = arith.addf %25, %30 : vector<160x4xf32>
    %c0_40 = arith.constant 0 : index
    %c2_41 = arith.constant 2 : index
    %c0_42 = arith.constant 0 : index
    %32 = vector.load %arg10[%c0_40, %c2_41, %c0_42] : memref<12x24x4xbf16, #tpu.memory_space<vmem>>, vector<10x16x4xbf16>
    %33 = vector.shape_cast %32 : vector<10x16x4xbf16> to vector<160x4xbf16>
    %c2_43 = arith.constant 2 : index
    %c0_44 = arith.constant 0 : index
    %c0_45 = arith.constant 0 : index
    %34 = vector.load %arg5[%c2_43, %c0_44, %c0_45] : memref<9x4x4xbf16, #tpu.memory_space<vmem>>, vector<1x4x4xbf16>
    %35 = vector.shape_cast %34 : vector<1x4x4xbf16> to vector<4x4xbf16>
    %cst_46 = arith.constant dense<0.000000e+00> : vector<160x4xf32>
    %36 = tpu.matmul %33, %35, %cst_46 {dimension_numbers = #tpu.dot_dimension_numbers<[1], [0], [0], [1], [0, 0, 1, 1], [], []>} : vector<160x4xbf16>, vector<4x4xbf16>, vector<160x4xf32> -> vector<160x4xf32>
    %37 = arith.addf %31, %36 : vector<160x4xf32>
    %c1_47 = arith.constant 1 : index
    %c0_48 = arith.constant 0 : index
    %c0_49 = arith.constant 0 : index
    %38 = vector.load %arg10[%c1_47, %c0_48, %c0_49] : memref<12x24x4xbf16, #tpu.memory_space<vmem>>, vector<10x16x4xbf16>
    %39 = vector.shape_cast %38 : vector<10x16x4xbf16> to vector<160x4xbf16>
    %c3 = arith.constant 3 : index
    %c0_50 = arith.constant 0 : index
    %c0_51 = arith.constant 0 : index
    %40 = vector.load %arg5[%c3, %c0_50, %c0_51] : memref<9x4x4xbf16, #tpu.memory_space<vmem>>, vector<1x4x4xbf16>
    %41 = vector.shape_cast %40 : vector<1x4x4xbf16> to vector<4x4xbf16>
    %cst_52 = arith.constant dense<0.000000e+00> : vector<160x4xf32>
    %42 = tpu.matmul %39, %41, %cst_52 {dimension_numbers = #tpu.dot_dimension_numbers<[1], [0], [0], [1], [0, 0, 1, 1], [], []>} : vector<160x4xbf16>, vector<4x4xbf16>, vector<160x4xf32> -> vector<160x4xf32>
    %43 = arith.addf %37, %42 : vector<160x4xf32>
    %c1_53 = arith.constant 1 : index
    %c1_54 = arith.constant 1 : index
    %c0_55 = arith.constant 0 : index
    %44 = vector.load %arg10[%c1_53, %c1_54, %c0_55] : memref<12x24x4xbf16, #tpu.memory_space<vmem>>, vector<10x16x4xbf16>
    %45 = vector.shape_cast %44 : vector<10x16x4xbf16> to vector<160x4xbf16>
    %c4 = arith.constant 4 : index
    %c0_56 = arith.constant 0 : index
    %c0_57 = arith.constant 0 : index
    %46 = vector.load %arg5[%c4, %c0_56, %c0_57] : memref<9x4x4xbf16, #tpu.memory_space<vmem>>, vector<1x4x4xbf16>
    %47 = vector.shape_cast %46 : vector<1x4x4xbf16> to vector<4x4xbf16>
    %cst_58 = arith.constant dense<0.000000e+00> : vector<160x4xf32>
    %48 = tpu.matmul %45, %47, %cst_58 {dimension_numbers = #tpu.dot_dimension_numbers<[1], [0], [0], [1], [0, 0, 1, 1], [], []>} : vector<160x4xbf16>, vector<4x4xbf16>, vector<160x4xf32> -> vector<160x4xf32>
    %49 = arith.addf %43, %48 : vector<160x4xf32>
    %c1_59 = arith.constant 1 : index
    %c2_60 = arith.constant 2 : index
    %c0_61 = arith.constant 0 : index
    %50 = vector.load %arg10[%c1_59, %c2_60, %c0_61] : memref<12x24x4xbf16, #tpu.memory_space<vmem>>, vector<10x16x4xbf16>
    %51 = vector.shape_cast %50 : vector<10x16x4xbf16> to vector<160x4xbf16>
    %c5 = arith.constant 5 : index
    %c0_62 = arith.constant 0 : index
    %c0_63 = arith.constant 0 : index
    %52 = vector.load %arg5[%c5, %c0_62, %c0_63] : memref<9x4x4xbf16, #tpu.memory_space<vmem>>, vector<1x4x4xbf16>
    %53 = vector.shape_cast %52 : vector<1x4x4xbf16> to vector<4x4xbf16>
    %cst_64 = arith.constant dense<0.000000e+00> : vector<160x4xf32>
    %54 = tpu.matmul %51, %53, %cst_64 {dimension_numbers = #tpu.dot_dimension_numbers<[1], [0], [0], [1], [0, 0, 1, 1], [], []>} : vector<160x4xbf16>, vector<4x4xbf16>, vector<160x4xf32> -> vector<160x4xf32>
    %55 = arith.addf %49, %54 : vector<160x4xf32>
    %c2_65 = arith.constant 2 : index
    %c0_66 = arith.constant 0 : index
    %c0_67 = arith.constant 0 : index
    %56 = vector.load %arg10[%c2_65, %c0_66, %c0_67] : memref<12x24x4xbf16, #tpu.memory_space<vmem>>, vector<10x16x4xbf16>
    %57 = vector.shape_cast %56 : vector<10x16x4xbf16> to vector<160x4xbf16>
    %c6 = arith.constant 6 : index
    %c0_68 = arith.constant 0 : index
    %c0_69 = arith.constant 0 : index
    %58 = vector.load %arg5[%c6, %c0_68, %c0_69] : memref<9x4x4xbf16, #tpu.memory_space<vmem>>, vector<1x4x4xbf16>
    %59 = vector.shape_cast %58 : vector<1x4x4xbf16> to vector<4x4xbf16>
    %cst_70 = arith.constant dense<0.000000e+00> : vector<160x4xf32>
    %60 = tpu.matmul %57, %59, %cst_70 {dimension_numbers = #tpu.dot_dimension_numbers<[1], [0], [0], [1], [0, 0, 1, 1], [], []>} : vector<160x4xbf16>, vector<4x4xbf16>, vector<160x4xf32> -> vector<160x4xf32>
    %61 = arith.addf %55, %60 : vector<160x4xf32>
    %c2_71 = arith.constant 2 : index
    %c1_72 = arith.constant 1 : index
    %c0_73 = arith.constant 0 : index
    %62 = vector.load %arg10[%c2_71, %c1_72, %c0_73] : memref<12x24x4xbf16, #tpu.memory_space<vmem>>, vector<10x16x4xbf16>
    %63 = vector.shape_cast %62 : vector<10x16x4xbf16> to vector<160x4xbf16>
    %c7 = arith.constant 7 : index
    %c0_74 = arith.constant 0 : index
    %c0_75 = arith.constant 0 : index
    %64 = vector.load %arg5[%c7, %c0_74, %c0_75] : memref<9x4x4xbf16, #tpu.memory_space<vmem>>, vector<1x4x4xbf16>
    %65 = vector.shape_cast %64 : vector<1x4x4xbf16> to vector<4x4xbf16>
    %cst_76 = arith.constant dense<0.000000e+00> : vector<160x4xf32>
    %66 = tpu.matmul %63, %65, %cst_76 {dimension_numbers = #tpu.dot_dimension_numbers<[1], [0], [0], [1], [0, 0, 1, 1], [], []>} : vector<160x4xbf16>, vector<4x4xbf16>, vector<160x4xf32> -> vector<160x4xf32>
    %67 = arith.addf %61, %66 : vector<160x4xf32>
    %c2_77 = arith.constant 2 : index
    %c2_78 = arith.constant 2 : index
    %c0_79 = arith.constant 0 : index
    %68 = vector.load %arg10[%c2_77, %c2_78, %c0_79] : memref<12x24x4xbf16, #tpu.memory_space<vmem>>, vector<10x16x4xbf16>
    %69 = vector.shape_cast %68 : vector<10x16x4xbf16> to vector<160x4xbf16>
    %c8 = arith.constant 8 : index
    %c0_80 = arith.constant 0 : index
    %c0_81 = arith.constant 0 : index
    %70 = vector.load %arg5[%c8, %c0_80, %c0_81] : memref<9x4x4xbf16, #tpu.memory_space<vmem>>, vector<1x4x4xbf16>
    %71 = vector.shape_cast %70 : vector<1x4x4xbf16> to vector<4x4xbf16>
    %cst_82 = arith.constant dense<0.000000e+00> : vector<160x4xf32>
    %72 = tpu.matmul %69, %71, %cst_82 {dimension_numbers = #tpu.dot_dimension_numbers<[1], [0], [0], [1], [0, 0, 1, 1], [], []>} : vector<160x4xbf16>, vector<4x4xbf16>, vector<160x4xf32> -> vector<160x4xf32>
    %73 = arith.addf %67, %72 : vector<160x4xf32>
    %c0_83 = arith.constant 0 : index
    %c0_84 = arith.constant 0 : index
    %74 = vector.load %arg6[%c0_83, %c0_84] : memref<1x4xf32, #tpu.memory_space<vmem>>, vector<1x4xf32>
    %75 = vector.broadcast %74 : vector<1x4xf32> to vector<160x4xf32>
    %76 = arith.addf %73, %75 : vector<160x4xf32>
    %cst_85 = arith.constant 0.000000e+00 : f32
    %77 = vector.broadcast %cst_85 : f32 to vector<160x4xf32>
    %78 = arith.maximumf %76, %77 : vector<160x4xf32>
    %79 = arith.truncf %78 : vector<160x4xf32> to vector<160x4xbf16>
    %80 = vector.shape_cast %79 : vector<160x4xbf16> to vector<10x16x4xbf16>
    %cst_86 = arith.constant 0.000000e+00 : bf16
    %81 = vector.broadcast %cst_86 : bf16 to vector<10x1x4xbf16>
    %c0_87 = arith.constant 0 : index
    %c0_88 = arith.constant 0 : index
    %c0_89 = arith.constant 0 : index
    %82 = vector.load %arg11[%c0_87, %c0_88, %c0_89] : memref<10x24x4xbf16, #tpu.memory_space<vmem>>, vector<10x1x4xbf16>
    tpu.vector_store %arg11[%c0_87, %c0_88, %c0_89], %81 {strides = array<i32>} : memref<10x24x4xbf16, #tpu.memory_space<vmem>>, vector<10x1x4xbf16>,
    %cst_90 = arith.constant 0.000000e+00 : bf16
    %83 = vector.broadcast %cst_90 : bf16 to vector<10x7x4xbf16>
    %c0_91 = arith.constant 0 : index
    %c17_92 = arith.constant 17 : index
    %c0_93 = arith.constant 0 : index
    %84 = vector.load %arg11[%c0_91, %c17_92, %c0_93] : memref<10x24x4xbf16, #tpu.memory_space<vmem>>, vector<10x7x4xbf16>
    tpu.vector_store %arg11[%c0_91, %c17_92, %c0_93], %83 {strides = array<i32>} : memref<10x24x4xbf16, #tpu.memory_space<vmem>>, vector<10x7x4xbf16>,
    %c0_94 = arith.constant 0 : index
    %c1_95 = arith.constant 1 : index
    %c0_96 = arith.constant 0 : index
    %85 = vector.load %arg11[%c0_94, %c1_95, %c0_96] : memref<10x24x4xbf16, #tpu.memory_space<vmem>>, vector<10x16x4xbf16>
    tpu.vector_store %arg11[%c0_94, %c1_95, %c0_96], %80 {strides = array<i32>} : memref<10x24x4xbf16, #tpu.memory_space<vmem>>, vector<10x16x4xbf16>,
    %c0_i32_97 = arith.constant 0 : i32
    %86 = arith.cmpi eq, %arg1, %c0_i32_97 : i32
    %87 = arith.extui %86 : i1 to i32
    %c0_i32_98 = arith.constant 0 : i32
    %88 = arith.cmpi ne, %87, %c0_i32_98 : i32
    scf.if %88 {
      %cst_174 = arith.constant 0.000000e+00 : bf16
      %158 = vector.broadcast %cst_174 : bf16 to vector<1x16x4xbf16>
      %c0_175 = arith.constant 0 : index
      %c1_176 = arith.constant 1 : index
      %c0_177 = arith.constant 0 : index
      %159 = vector.load %arg11[%c0_175, %c1_176, %c0_177] : memref<10x24x4xbf16, #tpu.memory_space<vmem>>, vector<1x16x4xbf16>
      tpu.vector_store %arg11[%c0_175, %c1_176, %c0_177], %158 {strides = array<i32>} : memref<10x24x4xbf16, #tpu.memory_space<vmem>>, vector<1x16x4xbf16>,
    } else {
    }
    %c1_i32_99 = arith.constant 1 : i32
    %89 = arith.cmpi eq, %arg1, %c1_i32_99 : i32
    %90 = arith.extui %89 : i1 to i32
    %c0_i32_100 = arith.constant 0 : i32
    %91 = arith.cmpi ne, %90, %c0_i32_100 : i32
    scf.if %91 {
      %cst_174 = arith.constant 0.000000e+00 : bf16
      %158 = vector.broadcast %cst_174 : bf16 to vector<1x16x4xbf16>
      %c9 = arith.constant 9 : index
      %c1_175 = arith.constant 1 : index
      %c0_176 = arith.constant 0 : index
      %159 = vector.load %arg11[%c9, %c1_175, %c0_176] : memref<10x24x4xbf16, #tpu.memory_space<vmem>>, vector<1x16x4xbf16>
      tpu.vector_store %arg11[%c9, %c1_175, %c0_176], %158 {strides = array<i32>} : memref<10x24x4xbf16, #tpu.memory_space<vmem>>, vector<1x16x4xbf16>,
    } else {
    }
    %cst_101 = arith.constant 0.000000e+00 : f32
    %92 = vector.broadcast %cst_101 : f32 to vector<128x4xf32>
    %c0_102 = arith.constant 0 : index
    %c0_103 = arith.constant 0 : index
    %c0_104 = arith.constant 0 : index
    %93 = vector.load %arg11[%c0_102, %c0_103, %c0_104] : memref<10x24x4xbf16, #tpu.memory_space<vmem>>, vector<8x16x4xbf16>
    %94 = vector.shape_cast %93 : vector<8x16x4xbf16> to vector<128x4xbf16>
    %c0_105 = arith.constant 0 : index
    %c0_106 = arith.constant 0 : index
    %c0_107 = arith.constant 0 : index
    %95 = vector.load %arg7[%c0_105, %c0_106, %c0_107] : memref<9x4x4xbf16, #tpu.memory_space<vmem>>, vector<1x4x4xbf16>
    %96 = vector.shape_cast %95 : vector<1x4x4xbf16> to vector<4x4xbf16>
    %cst_108 = arith.constant dense<0.000000e+00> : vector<128x4xf32>
    %97 = tpu.matmul %94, %96, %cst_108 {dimension_numbers = #tpu.dot_dimension_numbers<[1], [0], [0], [1], [0, 0, 1, 1], [], []>} : vector<128x4xbf16>, vector<4x4xbf16>, vector<128x4xf32> -> vector<128x4xf32>
    %98 = arith.addf %92, %97 : vector<128x4xf32>
    %c0_109 = arith.constant 0 : index
    %c1_110 = arith.constant 1 : index
    %c0_111 = arith.constant 0 : index
    %99 = vector.load %arg11[%c0_109, %c1_110, %c0_111] : memref<10x24x4xbf16, #tpu.memory_space<vmem>>, vector<8x16x4xbf16>
    %100 = vector.shape_cast %99 : vector<8x16x4xbf16> to vector<128x4xbf16>
    %c1_112 = arith.constant 1 : index
    %c0_113 = arith.constant 0 : index
    %c0_114 = arith.constant 0 : index
    %101 = vector.load %arg7[%c1_112, %c0_113, %c0_114] : memref<9x4x4xbf16, #tpu.memory_space<vmem>>, vector<1x4x4xbf16>
    %102 = vector.shape_cast %101 : vector<1x4x4xbf16> to vector<4x4xbf16>
    %cst_115 = arith.constant dense<0.000000e+00> : vector<128x4xf32>
    %103 = tpu.matmul %100, %102, %cst_115 {dimension_numbers = #tpu.dot_dimension_numbers<[1], [0], [0], [1], [0, 0, 1, 1], [], []>} : vector<128x4xbf16>, vector<4x4xbf16>, vector<128x4xf32> -> vector<128x4xf32>
    %104 = arith.addf %98, %103 : vector<128x4xf32>
    %c0_116 = arith.constant 0 : index
    %c2_117 = arith.constant 2 : index
    %c0_118 = arith.constant 0 : index
    %105 = vector.load %arg11[%c0_116, %c2_117, %c0_118] : memref<10x24x4xbf16, #tpu.memory_space<vmem>>, vector<8x16x4xbf16>
    %106 = vector.shape_cast %105 : vector<8x16x4xbf16> to vector<128x4xbf16>
    %c2_119 = arith.constant 2 : index
    %c0_120 = arith.constant 0 : index
    %c0_121 = arith.constant 0 : index
    %107 = vector.load %arg7[%c2_119, %c0_120, %c0_121] : memref<9x4x4xbf16, #tpu.memory_space<vmem>>, vector<1x4x4xbf16>
    %108 = vector.shape_cast %107 : vector<1x4x4xbf16> to vector<4x4xbf16>
    %cst_122 = arith.constant dense<0.000000e+00> : vector<128x4xf32>
    %109 = tpu.matmul %106, %108, %cst_122 {dimension_numbers = #tpu.dot_dimension_numbers<[1], [0], [0], [1], [0, 0, 1, 1], [], []>} : vector<128x4xbf16>, vector<4x4xbf16>, vector<128x4xf32> -> vector<128x4xf32>
    %110 = arith.addf %104, %109 : vector<128x4xf32>
    %c1_123 = arith.constant 1 : index
    %c0_124 = arith.constant 0 : index
    %c0_125 = arith.constant 0 : index
    %111 = vector.load %arg11[%c1_123, %c0_124, %c0_125] : memref<10x24x4xbf16, #tpu.memory_space<vmem>>, vector<8x16x4xbf16>
    %112 = vector.shape_cast %111 : vector<8x16x4xbf16> to vector<128x4xbf16>
    %c3_126 = arith.constant 3 : index
    %c0_127 = arith.constant 0 : index
    %c0_128 = arith.constant 0 : index
    %113 = vector.load %arg7[%c3_126, %c0_127, %c0_128] : memref<9x4x4xbf16, #tpu.memory_space<vmem>>, vector<1x4x4xbf16>
    %114 = vector.shape_cast %113 : vector<1x4x4xbf16> to vector<4x4xbf16>
    %cst_129 = arith.constant dense<0.000000e+00> : vector<128x4xf32>
    %115 = tpu.matmul %112, %114, %cst_129 {dimension_numbers = #tpu.dot_dimension_numbers<[1], [0], [0], [1], [0, 0, 1, 1], [], []>} : vector<128x4xbf16>, vector<4x4xbf16>, vector<128x4xf32> -> vector<128x4xf32>
    %116 = arith.addf %110, %115 : vector<128x4xf32>
    %c1_130 = arith.constant 1 : index
    %c1_131 = arith.constant 1 : index
    %c0_132 = arith.constant 0 : index
    %117 = vector.load %arg11[%c1_130, %c1_131, %c0_132] : memref<10x24x4xbf16, #tpu.memory_space<vmem>>, vector<8x16x4xbf16>
    %118 = vector.shape_cast %117 : vector<8x16x4xbf16> to vector<128x4xbf16>
    %c4_133 = arith.constant 4 : index
    %c0_134 = arith.constant 0 : index
    %c0_135 = arith.constant 0 : index
    %119 = vector.load %arg7[%c4_133, %c0_134, %c0_135] : memref<9x4x4xbf16, #tpu.memory_space<vmem>>, vector<1x4x4xbf16>
    %120 = vector.shape_cast %119 : vector<1x4x4xbf16> to vector<4x4xbf16>
    %cst_136 = arith.constant dense<0.000000e+00> : vector<128x4xf32>
    %121 = tpu.matmul %118, %120, %cst_136 {dimension_numbers = #tpu.dot_dimension_numbers<[1], [0], [0], [1], [0, 0, 1, 1], [], []>} : vector<128x4xbf16>, vector<4x4xbf16>, vector<128x4xf32> -> vector<128x4xf32>
    %122 = arith.addf %116, %121 : vector<128x4xf32>
    %c1_137 = arith.constant 1 : index
    %c2_138 = arith.constant 2 : index
    %c0_139 = arith.constant 0 : index
    %123 = vector.load %arg11[%c1_137, %c2_138, %c0_139] : memref<10x24x4xbf16, #tpu.memory_space<vmem>>, vector<8x16x4xbf16>
    %124 = vector.shape_cast %123 : vector<8x16x4xbf16> to vector<128x4xbf16>
    %c5_140 = arith.constant 5 : index
    %c0_141 = arith.constant 0 : index
    %c0_142 = arith.constant 0 : index
    %125 = vector.load %arg7[%c5_140, %c0_141, %c0_142] : memref<9x4x4xbf16, #tpu.memory_space<vmem>>, vector<1x4x4xbf16>
    %126 = vector.shape_cast %125 : vector<1x4x4xbf16> to vector<4x4xbf16>
    %cst_143 = arith.constant dense<0.000000e+00> : vector<128x4xf32>
    %127 = tpu.matmul %124, %126, %cst_143 {dimension_numbers = #tpu.dot_dimension_numbers<[1], [0], [0], [1], [0, 0, 1, 1], [], []>} : vector<128x4xbf16>, vector<4x4xbf16>, vector<128x4xf32> -> vector<128x4xf32>
    %128 = arith.addf %122, %127 : vector<128x4xf32>
    %c2_144 = arith.constant 2 : index
    %c0_145 = arith.constant 0 : index
    %c0_146 = arith.constant 0 : index
    %129 = vector.load %arg11[%c2_144, %c0_145, %c0_146] : memref<10x24x4xbf16, #tpu.memory_space<vmem>>, vector<8x16x4xbf16>
    %130 = vector.shape_cast %129 : vector<8x16x4xbf16> to vector<128x4xbf16>
    %c6_147 = arith.constant 6 : index
    %c0_148 = arith.constant 0 : index
    %c0_149 = arith.constant 0 : index
    %131 = vector.load %arg7[%c6_147, %c0_148, %c0_149] : memref<9x4x4xbf16, #tpu.memory_space<vmem>>, vector<1x4x4xbf16>
    %132 = vector.shape_cast %131 : vector<1x4x4xbf16> to vector<4x4xbf16>
    %cst_150 = arith.constant dense<0.000000e+00> : vector<128x4xf32>
    %133 = tpu.matmul %130, %132, %cst_150 {dimension_numbers = #tpu.dot_dimension_numbers<[1], [0], [0], [1], [0, 0, 1, 1], [], []>} : vector<128x4xbf16>, vector<4x4xbf16>, vector<128x4xf32> -> vector<128x4xf32>
    %134 = arith.addf %128, %133 : vector<128x4xf32>
    %c2_151 = arith.constant 2 : index
    %c1_152 = arith.constant 1 : index
    %c0_153 = arith.constant 0 : index
    %135 = vector.load %arg11[%c2_151, %c1_152, %c0_153] : memref<10x24x4xbf16, #tpu.memory_space<vmem>>, vector<8x16x4xbf16>
    %136 = vector.shape_cast %135 : vector<8x16x4xbf16> to vector<128x4xbf16>
    %c7_154 = arith.constant 7 : index
    %c0_155 = arith.constant 0 : index
    %c0_156 = arith.constant 0 : index
    %137 = vector.load %arg7[%c7_154, %c0_155, %c0_156] : memref<9x4x4xbf16, #tpu.memory_space<vmem>>, vector<1x4x4xbf16>
    %138 = vector.shape_cast %137 : vector<1x4x4xbf16> to vector<4x4xbf16>
    %cst_157 = arith.constant dense<0.000000e+00> : vector<128x4xf32>
    %139 = tpu.matmul %136, %138, %cst_157 {dimension_numbers = #tpu.dot_dimension_numbers<[1], [0], [0], [1], [0, 0, 1, 1], [], []>} : vector<128x4xbf16>, vector<4x4xbf16>, vector<128x4xf32> -> vector<128x4xf32>
    %140 = arith.addf %134, %139 : vector<128x4xf32>
    %c2_158 = arith.constant 2 : index
    %c2_159 = arith.constant 2 : index
    %c0_160 = arith.constant 0 : index
    %141 = vector.load %arg11[%c2_158, %c2_159, %c0_160] : memref<10x24x4xbf16, #tpu.memory_space<vmem>>, vector<8x16x4xbf16>
    %142 = vector.shape_cast %141 : vector<8x16x4xbf16> to vector<128x4xbf16>
    %c8_161 = arith.constant 8 : index
    %c0_162 = arith.constant 0 : index
    %c0_163 = arith.constant 0 : index
    %143 = vector.load %arg7[%c8_161, %c0_162, %c0_163] : memref<9x4x4xbf16, #tpu.memory_space<vmem>>, vector<1x4x4xbf16>
    %144 = vector.shape_cast %143 : vector<1x4x4xbf16> to vector<4x4xbf16>
    %cst_164 = arith.constant dense<0.000000e+00> : vector<128x4xf32>
    %145 = tpu.matmul %142, %144, %cst_164 {dimension_numbers = #tpu.dot_dimension_numbers<[1], [0], [0], [1], [0, 0, 1, 1], [], []>} : vector<128x4xbf16>, vector<4x4xbf16>, vector<128x4xf32> -> vector<128x4xf32>
    %146 = arith.addf %140, %145 : vector<128x4xf32>
    %c2_165 = arith.constant 2 : index
    %c1_166 = arith.constant 1 : index
    %c0_167 = arith.constant 0 : index
    %147 = vector.load %arg10[%c2_165, %c1_166, %c0_167] : memref<12x24x4xbf16, #tpu.memory_space<vmem>>, vector<8x16x4xbf16>
    %148 = arith.extf %147 : vector<8x16x4xbf16> to vector<8x16x4xf32>
    %149 = vector.shape_cast %146 : vector<128x4xf32> to vector<8x16x4xf32>
    %c0_168 = arith.constant 0 : index
    %c0_169 = arith.constant 0 : index
    %150 = vector.load %arg8[%c0_168, %c0_169] : memref<1x4xf32, #tpu.memory_space<vmem>>, vector<1x4xf32>
    %151 = vector.shape_cast %150 : vector<1x4xf32> to vector<1x1x4xf32>
    %152 = vector.broadcast %151 : vector<1x1x4xf32> to vector<8x16x4xf32>
    %153 = arith.addf %149, %152 : vector<8x16x4xf32>
    %154 = arith.addf %153, %148 : vector<8x16x4xf32>
    %c0_170 = arith.constant 0 : index
    %c0_171 = arith.constant 0 : index
    %c0_172 = arith.constant 0 : index
    %c0_173 = arith.constant 0 : index
    %155 = vector.load %arg9[%c0_170, %c0_171, %c0_172, %c0_173] : memref<1x8x16x4xf32, #tpu.memory_space<vmem>>, vector<1x8x16x4xf32>
    %156 = vector.shape_cast %155 : vector<1x8x16x4xf32> to vector<8x16x4xf32>
    %157 = vector.shape_cast %154 : vector<8x16x4xf32> to vector<1x8x16x4xf32>
    tpu.vector_store %arg9[%c0_170, %c0_171, %c0_172, %c0_173], %157 {strides = array<i32>} : memref<1x8x16x4xf32, #tpu.memory_space<vmem>>, vector<1x8x16x4xf32>,
    return
  }
  func.func @transform_0(%arg0: i32, %arg1: i32) -> (i32, i32, i32, i32) {
    %c0_i32 = arith.constant 0 : i32
    %c0_i32_0 = arith.constant 0 : i32
    %c0_i32_1 = arith.constant 0 : i32
    return %arg0, %arg1, %c0_i32, %c0_i32_0 : i32, i32, i32, i32
  }
  func.func @transform_1(%arg0: i32, %arg1: i32) -> (i32, i32, i32, i32) {
    %c4_i32 = arith.constant 4 : i32
    %0 = arith.muli %arg1, %c4_i32 : i32
    %c1_i32 = arith.constant 1 : i32
    %1 = arith.subi %0, %c1_i32 : i32
    %c0_i32 = arith.constant 0 : i32
    %2 = arith.maxsi %1, %c0_i32 : i32
    %c0_i32_0 = arith.constant 0 : i32
    %c0_i32_1 = arith.constant 0 : i32
    %c0_i32_2 = arith.constant 0 : i32
    return %arg0, %2, %c0_i32_0, %c0_i32_1 : i32, i32, i32, i32
  }
  func.func @transform_2(%arg0: i32, %arg1: i32) -> (i32, i32, i32, i32) {
    %c1_i32 = arith.constant 1 : i32
    %0 = arith.addi %arg1, %c1_i32 : i32
    %c4_i32 = arith.constant 4 : i32
    %1 = arith.muli %0, %c4_i32 : i32
    %c7_i32 = arith.constant 7 : i32
    %2 = arith.minsi %1, %c7_i32 : i32
    %c0_i32 = arith.constant 0 : i32
    %c0_i32_0 = arith.constant 0 : i32
    %c0_i32_1 = arith.constant 0 : i32
    return %arg0, %2, %c0_i32, %c0_i32_0 : i32, i32, i32, i32
  }
  func.func @transform_3(%arg0: i32, %arg1: i32) -> (i32, i32, i32) {
    %c0_i32 = arith.constant 0 : i32
    %c0_i32_0 = arith.constant 0 : i32
    %c0_i32_1 = arith.constant 0 : i32
    %c0_i32_2 = arith.constant 0 : i32
    return %c0_i32, %c0_i32_0, %c0_i32_1 : i32, i32, i32
  }
  func.func @transform_4(%arg0: i32, %arg1: i32) -> (i32, i32) {
    %c0_i32 = arith.constant 0 : i32
    %c0_i32_0 = arith.constant 0 : i32
    %c0_i32_1 = arith.constant 0 : i32
    return %c0_i32, %c0_i32_0 : i32, i32
  }
  func.func @transform_5(%arg0: i32, %arg1: i32) -> (i32, i32, i32) {
    %c0_i32 = arith.constant 0 : i32
    %c0_i32_0 = arith.constant 0 : i32
    %c0_i32_1 = arith.constant 0 : i32
    %c0_i32_2 = arith.constant 0 : i32
    return %c0_i32, %c0_i32_0, %c0_i32_1 : i32, i32, i32
  }
  func.func @transform_6(%arg0: i32, %arg1: i32) -> (i32, i32) {
    %c0_i32 = arith.constant 0 : i32
    %c0_i32_0 = arith.constant 0 : i32
    %c0_i32_1 = arith.constant 0 : i32
    return %c0_i32, %c0_i32_0 : i32, i32
  }
  func.func @transform_7(%arg0: i32, %arg1: i32) -> (i32, i32, i32, i32) {
    %c0_i32 = arith.constant 0 : i32
    %c0_i32_0 = arith.constant 0 : i32
    %c0_i32_1 = arith.constant 0 : i32
    return %arg0, %arg1, %c0_i32, %c0_i32_0 : i32, i32, i32, i32
  }
}

</mosaic_0001>

<llo_original>
// kernel: tpu_custom_call.1
$region0: #{tpu_custom_call.1}
  #allocation0 [shape = 'u32[]', space=smem, size = 0x4, offset = 0x4, fixed_abs, tag = 'smem constant byte address 0x4 - core index']
  #allocation1 [shape = 'u32[144,128]{1,0:T(1,128)}', space=vmem, size = 0x12000, scoped, tag = 'internal scratch']
  #allocation2 [shape = 'bf16[12,24,4]{2,1,0:T(8,128)(2,1)}', space=vmem, size = 0x12000, scoped, tag = 'scratch operand']
  #allocation3 [shape = 'bf16[10,24,4]{2,1,0:T(8,128)(2,1)}', space=vmem, size = 0xf000, scoped, tag = 'scratch operand']
  %s0 = inlined_call_operand.vmem [shape: bf16[2,16,16,4], index: 0, kind: input, shape index: {}]
  %s1 = inlined_call_operand.vmem [shape: bf16[2,16,16,4], index: 1, kind: input, shape index: {}]
  %s2 = inlined_call_operand.vmem [shape: bf16[2,16,16,4], index: 2, kind: input, shape index: {}]
  %s3 = inlined_call_operand.vmem [shape: bf16[9,4,4], index: 3, kind: input, shape index: {}]
  %s4 = inlined_call_operand.vmem [shape: f32[1,4], index: 4, kind: input, shape index: {}]
  %s5 = inlined_call_operand.vmem [shape: bf16[9,4,4], index: 5, kind: input, shape index: {}]
  %s6 = inlined_call_operand.vmem [shape: f32[1,4], index: 6, kind: input, shape index: {}]
  %s7 = inlined_call_operand.vmem [shape: f32[2,16,16,4], index: 7, kind: output, shape index: {}]
  %s8 = sld [smem:[#allocation0]]
  $region77: #{tpu_custom_call.1} parent=0
    _
  %s10 = ssub.s32 1, %s8
  %s11 = scalar_select 0, %s10, %s8
  loop: start=0, step=1, limit=6
  $region2: #{tpu_custom_call.1} parent=0 // loop_pre_header
    _
  $region3: #{tpu_custom_call.1} parent=0 // loop_header
    %s13 = sphi 0, %s17
    %p14 = scmp.ge.s32.totalorder %s13, 6
    %s20 = sphi 0, %s32
    %s21 = sphi 0, %s28
    %s22 = sphi 0, %s20
    %s23 = sphi 0, %s21
    %s24 = sphi 0, %s22
    %s25 = sphi 0, %s23
    %s37 = sphi 0, %s39
    %s40 = sphi 0, %s37
    %s41 = sphi 0, %s40
    %s57 = sphi 0, %s41
    %s73 = sphi 0, %s75
    %s76 = sphi 0, %s73
    %s77 = sphi 0, %s76
    %s93 = sphi 0, %s77
    %s109 = sphi 0, %s111
    %s112 = sphi 0, %s109
    %s113 = sphi 0, %s112
    %s129 = sphi 0, %s113
    %s133 = sphi 0, %s133
    %s135 = sphi 0, %s133
    %s136 = sphi 0, %s135
    %s150 = sphi 0, %s136
    %s154 = sphi 0, %s154
    %s156 = sphi 0, %s154
    %s157 = sphi 0, %s156
    %s171 = sphi 0, %s157
    %s175 = sphi 0, %s175
    %s177 = sphi 0, %s175
    %s178 = sphi 0, %s177
    %s192 = sphi 0, %s178
    %s196 = sphi 0, %s196
    %s198 = sphi 0, %s196
    %s199 = sphi 0, %s198
    %s213 = sphi 0, %s199
    %s221 = sphi 0, %s223
    %s224 = sphi 0, %s221
    %s225 = sphi 0, %s224
    %s241 = sphi 0, %s225
  $region4: #{tpu_custom_call.1} parent=0 // loop_header_branch
    %16 = sbr.rel (%p14) target = $region8
  $region5: #{tpu_custom_call.1} parent=0 // loop_body
    %s18 = ssub.s32 %s13, 1
    %s19 = ssub.s32 %s13, 2
    %s26 = sadd.s32 1, %s21
    %p27 = scmp.ge.s32.totalorder %s26, 2
    %s28 = scalar_select %p27, 0, %s26
    %s29 = sadd.s32 1, %s20
    %s30 = scalar_select %p27, %s29, %s20
    %p31 = scmp.ge.s32.totalorder %s30, 2
    %s32 = scalar_select %p31, 0, %s30
    %s33 = ssub.s32 %s20, %s32
    %s34 = ssub.s32 %s21, %s28
    %s35 = sor.u32 %s33, %s34
    %p36 = scmp.eq.s32.totalorder %s35, 0
    %s38 = sadd.s32 %s37, 1
    %s39 = scalar_select %p36, %s37, %s38
    %p42 = pneg %p36
    %p43 = scmp.eq.s32.totalorder %s13, 3
    %p44 = por %p42, %p43
    %p45 = scmp.ne.s32.totalorder %s37, %s40
    %p46 = scmp.eq.s32.totalorder %s13, 0
    %p47 = por %p45, %p46
    %p48 = scmp.ne.s32.totalorder %s37, %s40
    %p49 = scmp.eq.s32.totalorder %s18, 3
    %p50 = por %p48, %p49
    %p51 = scmp.ne.s32.totalorder %s40, %s41
    %p52 = scmp.eq.s32.totalorder %s18, 0
    %p53 = por %p51, %p52
    %p54 = scmp.ne.s32.totalorder %s40, %s41
    %p55 = scmp.eq.s32.totalorder %s19, 3
    %p56 = por %p54, %p55
    %p58 = scmp.ne.s32.totalorder %s41, %s57
    %p59 = scmp.eq.s32.totalorder %s19, 0
    %p60 = por %p58, %p59
    %s61 = smul.u32 %s21, 4
    %s62 = ssub.s32 %s61, 1
    %p63 = scmp.gt.s32.totalorder %s62, 0
    %s64 = scalar_select %p63, %s62, 0
    %s65 = smul.u32 %s28, 4
    %s66 = ssub.s32 %s65, 1
    %p67 = scmp.gt.s32.totalorder %s66, 0
    %s68 = scalar_select %p67, %s66, 0
    %s69 = ssub.s32 %s20, %s32
    %s70 = ssub.s32 %s64, %s68
    %s71 = sor.u32 %s69, %s70
    %p72 = scmp.eq.s32.totalorder %s71, 0
    %s74 = sadd.s32 %s73, 1
    %s75 = scalar_select %p72, %s73, %s74
    %p78 = pneg %p72
    %p79 = scmp.eq.s32.totalorder %s13, 3
    %p80 = por %p78, %p79
    %p81 = scmp.ne.s32.totalorder %s73, %s76
    %p82 = scmp.eq.s32.totalorder %s13, 0
    %p83 = por %p81, %p82
    %p84 = scmp.ne.s32.totalorder %s73, %s76
    %p85 = scmp.eq.s32.totalorder %s18, 3
    %p86 = por %p84, %p85
    %p87 = scmp.ne.s32.totalorder %s76, %s77
    %p88 = scmp.eq.s32.totalorder %s18, 0
    %p89 = por %p87, %p88
    %p90 = scmp.ne.s32.totalorder %s76, %s77
    %p91 = scmp.eq.s32.totalorder %s19, 3
    %p92 = por %p90, %p91
    %p94 = scmp.ne.s32.totalorder %s77, %s93
    %p95 = scmp.eq.s32.totalorder %s19, 0
    %p96 = por %p94, %p95
    %s97 = sadd.s32 %s21, 1
    %s98 = smul.u32 %s97, 4
    %p99 = scmp.lt.s32.totalorder %s98, 7
    %s100 = scalar_select %p99, %s98, 7
    %s101 = sadd.s32 %s28, 1
    %s102 = smul.u32 %s101, 4
    %p103 = scmp.lt.s32.totalorder %s102, 7
    %s104 = scalar_select %p103, %s102, 7
    %s105 = ssub.s32 %s20, %s32
    %s106 = ssub.s32 %s100, %s104
    %s107 = sor.u32 %s105, %s106
    %p108 = scmp.eq.s32.totalorder %s107, 0
    %s110 = sadd.s32 %s109, 1
    %s111 = scalar_select %p108, %s109, %s110
    %p114 = pneg %p108
    %p115 = scmp.eq.s32.totalorder %s13, 3
    %p116 = por %p114, %p115
    %p117 = scmp.ne.s32.totalorder %s109, %s112
    %p118 = scmp.eq.s32.totalorder %s13, 0
    %p119 = por %p117, %p118
    %p120 = scmp.ne.s32.totalorder %s109, %s112
    %p121 = scmp.eq.s32.totalorder %s18, 3
    %p122 = por %p120, %p121
    %p123 = scmp.ne.s32.totalorder %s112, %s113
    %p124 = scmp.eq.s32.totalorder %s18, 0
    %p125 = por %p123, %p124
    %p126 = scmp.ne.s32.totalorder %s112, %s113
    %p127 = scmp.eq.s32.totalorder %s19, 3
    %p128 = por %p126, %p127
    %p130 = scmp.ne.s32.totalorder %s113, %s129
    %p131 = scmp.eq.s32.totalorder %s19, 0
    %p132 = por %p130, %p131
    %s134 = sadd.s32 %s133, 1
    %p137 = scmp.eq.s32.totalorder %s13, 3
    %p138 = scmp.ne.s32.totalorder %s133, %s135
    %p139 = scmp.eq.s32.totalorder %s13, 0
    %p140 = por %p138, %p139
    %p141 = scmp.ne.s32.totalorder %s133, %s135
    %p142 = scmp.eq.s32.totalorder %s18, 3
    %p143 = por %p141, %p142
    %p144 = scmp.ne.s32.totalorder %s135, %s136
    %p145 = scmp.eq.s32.totalorder %s18, 0
    %p146 = por %p144, %p145
    %p147 = scmp.ne.s32.totalorder %s135, %s136
    %p148 = scmp.eq.s32.totalorder %s19, 3
    %p149 = por %p147, %p148
    %p151 = scmp.ne.s32.totalorder %s136, %s150
    %p152 = scmp.eq.s32.totalorder %s19, 0
    %p153 = por %p151, %p152
    %s155 = sadd.s32 %s154, 1
    %p158 = scmp.eq.s32.totalorder %s13, 3
    %p159 = scmp.ne.s32.totalorder %s154, %s156
    %p160 = scmp.eq.s32.totalorder %s13, 0
    %p161 = por %p159, %p160
    %p162 = scmp.ne.s32.totalorder %s154, %s156
    %p163 = scmp.eq.s32.totalorder %s18, 3
    %p164 = por %p162, %p163
    %p165 = scmp.ne.s32.totalorder %s156, %s157
    %p166 = scmp.eq.s32.totalorder %s18, 0
    %p167 = por %p165, %p166
    %p168 = scmp.ne.s32.totalorder %s156, %s157
    %p169 = scmp.eq.s32.totalorder %s19, 3
    %p170 = por %p168, %p169
    %p172 = scmp.ne.s32.totalorder %s157, %s171
    %p173 = scmp.eq.s32.totalorder %s19, 0
    %p174 = por %p172, %p173
    %s176 = sadd.s32 %s175, 1
    %p179 = scmp.eq.s32.totalorder %s13, 3
    %p180 = scmp.ne.s32.totalorder %s175, %s177
    %p181 = scmp.eq.s32.totalorder %s13, 0
    %p182 = por %p180, %p181
    %p183 = scmp.ne.s32.totalorder %s175, %s177
    %p184 = scmp.eq.s32.totalorder %s18, 3
    %p185 = por %p183, %p184
    %p186 = scmp.ne.s32.totalorder %s177, %s178
    %p187 = scmp.eq.s32.totalorder %s18, 0
    %p188 = por %p186, %p187
    %p189 = scmp.ne.s32.totalorder %s177, %s178
    %p190 = scmp.eq.s32.totalorder %s19, 3
    %p191 = por %p189, %p190
    %p193 = scmp.ne.s32.totalorder %s178, %s192
    %p194 = scmp.eq.s32.totalorder %s19, 0
    %p195 = por %p193, %p194
    %s197 = sadd.s32 %s196, 1
    %p200 = scmp.eq.s32.totalorder %s13, 3
    %p201 = scmp.ne.s32.totalorder %s196, %s198
    %p202 = scmp.eq.s32.totalorder %s13, 0
    %p203 = por %p201, %p202
    %p204 = scmp.ne.s32.totalorder %s196, %s198
    %p205 = scmp.eq.s32.totalorder %s18, 3
    %p206 = por %p204, %p205
    %p207 = scmp.ne.s32.totalorder %s198, %s199
    %p208 = scmp.eq.s32.totalorder %s18, 0
    %p209 = por %p207, %p208
    %p210 = scmp.ne.s32.totalorder %s198, %s199
    %p211 = scmp.eq.s32.totalorder %s19, 3
    %p212 = por %p210, %p211
    %p214 = scmp.ne.s32.totalorder %s199, %s213
    %p215 = scmp.eq.s32.totalorder %s19, 0
    %p216 = por %p214, %p215
    %s217 = ssub.s32 %s20, %s32
    %s218 = ssub.s32 %s21, %s28
    %s219 = sor.u32 %s217, %s218
    %p220 = scmp.eq.s32.totalorder %s219, 0
    %s222 = sadd.s32 %s221, 1
    %s223 = scalar_select %p220, %s221, %s222
    %p226 = pneg %p220
    %p227 = scmp.eq.s32.totalorder %s13, 3
    %p228 = por %p226, %p227
    %p229 = scmp.ne.s32.totalorder %s221, %s224
    %p230 = scmp.eq.s32.totalorder %s13, 0
    %p231 = por %p229, %p230
    %p232 = scmp.ne.s32.totalorder %s221, %s224
    %p233 = scmp.eq.s32.totalorder %s18, 3
    %p234 = por %p232, %p233
    %p235 = scmp.ne.s32.totalorder %s224, %s225
    %p236 = scmp.eq.s32.totalorder %s18, 0
    %p237 = por %p235, %p236
    %p238 = scmp.ne.s32.totalorder %s224, %s225
    %p239 = scmp.eq.s32.totalorder %s19, 3
    %p240 = por %p238, %p239
    %p242 = scmp.ne.s32.totalorder %s225, %s241
    %p243 = scmp.eq.s32.totalorder %s19, 0
    %p244 = por %p242, %p243
    %p245 = scmp.le.s32.totalorder 1, %s13
    %p246 = scmp.lt.s32.totalorder %s13, 5
    %p247 = pnand %p245, %p246
    %p248 = pneg %p247
    // Predicated region
    $region9: #{tpu_custom_call.1} parent=5 // pred_check
      _
    $region10: #{tpu_custom_call.1} parent=5 // pred_check_branch
      %250 = sbr.rel (%p247) target = $region12
    $region11: #{tpu_custom_call.1} parent=5 // pred_region
      %s251 = ssub.s32 %s13, 1
      // Predicated region
      $region13: #{tpu_custom_call.1} parent=11 // pred_check
        %p252 = pneg %p146
      $region14: #{tpu_custom_call.1} parent=11 // pred_check_branch
        %254 = sbr.rel (%p252) target = $region16
      $region15: #{tpu_custom_call.1} parent=11 // pred_region
        _
      $region16: #{tpu_custom_call.1} parent=11 // pred_fallthru
        _
      // Predicated region
      $region17: #{tpu_custom_call.1} parent=11 // pred_check
        %p255 = pneg %p167
      $region18: #{tpu_custom_call.1} parent=11 // pred_check_branch
        %257 = sbr.rel (%p255) target = $region20
      $region19: #{tpu_custom_call.1} parent=11 // pred_region
        _
      $region20: #{tpu_custom_call.1} parent=11 // pred_fallthru
        _
      // Predicated region
      $region21: #{tpu_custom_call.1} parent=11 // pred_check
        %p258 = pneg %p188
      $region22: #{tpu_custom_call.1} parent=11 // pred_check_branch
        %260 = sbr.rel (%p258) target = $region24
      $region23: #{tpu_custom_call.1} parent=11 // pred_region
        _
      $region24: #{tpu_custom_call.1} parent=11 // pred_fallthru
        _
      // Predicated region
      $region25: #{tpu_custom_call.1} parent=11 // pred_check
        %p261 = pneg %p209
      $region26: #{tpu_custom_call.1} parent=11 // pred_check_branch
        %263 = sbr.rel (%p261) target = $region28
      $region27: #{tpu_custom_call.1} parent=11 // pred_region
        _
      $region28: #{tpu_custom_call.1} parent=11 // pred_fallthru
        _
    $region12: #{tpu_custom_call.1} parent=5 // pred_fallthru
      _
    %p264 = scmp.lt.s32.totalorder %s13, 4
    // Predicated region
    $region29: #{tpu_custom_call.1} parent=5 // pred_check
      %p265 = pneg %p264
    $region30: #{tpu_custom_call.1} parent=5 // pred_check_branch
      %267 = sbr.rel (%p265) target = $region32
    $region31: #{tpu_custom_call.1} parent=5 // pred_region
      // Predicated region
      $region33: #{tpu_custom_call.1} parent=31 // pred_check
        %p268 = pneg %p47
      $region34: #{tpu_custom_call.1} parent=31 // pred_check_branch
        %270 = sbr.rel (%p268) target = $region36
      $region35: #{tpu_custom_call.1} parent=31 // pred_region
        %s271 = smul.u32 8, %s21
        %p272 = scmp.lt.s32.totalorder %s20, 1
        %s273 = scalar_select %p272, %s20, 1
        %p274 = scmp.lt.s32.totalorder %s271, 15
        %s275 = scalar_select %p274, %s271, 15
        %s276 = smul.addr %s275, 2
        %s277 = smul.addr %s273, 32
        %s278 = sadd.s32 %s276, %s277
        %s279 = smul.addr %s278, 4
        %s280 = scalar_lea.vmem %s0, %s279
        %s281 = smul.u32 8, %s21
      $region36: #{tpu_custom_call.1} parent=31 // pred_fallthru
        _
      // Predicated region
      $region37: #{tpu_custom_call.1} parent=31 // pred_check
        %p282 = pneg %p83
      $region38: #{tpu_custom_call.1} parent=31 // pred_check_branch
        %284 = sbr.rel (%p282) target = $region40
      $region39: #{tpu_custom_call.1} parent=31 // pred_region
        %s285 = smul.u32 %s21, 4
        %s286 = ssub.s32 %s285, 1
        %p287 = scmp.gt.s32.totalorder %s286, 0
        %s288 = scalar_select %p287, %s286, 0
        %s289 = smul.u32 2, %s288
        %p290 = scmp.lt.s32.totalorder %s20, 1
        %s291 = scalar_select %p290, %s20, 1
        %p292 = scmp.lt.s32.totalorder %s289, 15
        %s293 = scalar_select %p292, %s289, 15
        %s294 = smul.addr %s293, 2
        %s295 = smul.addr %s291, 32
        %s296 = sadd.s32 %s294, %s295
        %s297 = smul.addr %s296, 4
        %s298 = scalar_lea.vmem %s1, %s297
        %s299 = smul.u32 %s21, 4
        %s300 = ssub.s32 %s299, 1
        %p301 = scmp.gt.s32.totalorder %s300, 0
        %s302 = scalar_select %p301, %s300, 0
        %s303 = smul.u32 2, %s302
      $region40: #{tpu_custom_call.1} parent=31 // pred_fallthru
        _
      // Predicated region
      $region41: #{tpu_custom_call.1} parent=31 // pred_check
        %p304 = pneg %p119
      $region42: #{tpu_custom_call.1} parent=31 // pred_check_branch
        %306 = sbr.rel (%p304) target = $region44
      $region43: #{tpu_custom_call.1} parent=31 // pred_region
        %s307 = sadd.s32 %s21, 1
        %s308 = smul.u32 %s307, 4
        %p309 = scmp.lt.s32.totalorder %s308, 7
        %s310 = scalar_select %p309, %s308, 7
        %s311 = smul.u32 2, %s310
        %p312 = scmp.lt.s32.totalorder %s20, 1
        %s313 = scalar_select %p312, %s20, 1
        %p314 = scmp.lt.s32.totalorder %s311, 15
        %s315 = scalar_select %p314, %s311, 15
        %s316 = smul.addr %s315, 2
        %s317 = smul.addr %s313, 32
        %s318 = sadd.s32 %s316, %s317
        %s319 = smul.addr %s318, 4
        %s320 = scalar_lea.vmem %s2, %s319
        %s321 = sadd.s32 %s21, 1
        %s322 = smul.u32 %s321, 4
        %p323 = scmp.lt.s32.totalorder %s322, 7
        %s324 = scalar_select %p323, %s322, 7
        %s325 = smul.u32 2, %s324
      $region44: #{tpu_custom_call.1} parent=31 // pred_fallthru
        _
    $region32: #{tpu_custom_call.1} parent=5 // pred_fallthru
      _
    %p326 = scmp.le.s32.totalorder 1, %s13
    %p327 = scmp.lt.s32.totalorder %s13, 5
    %p328 = pnand %p326, %p327
    %p329 = pneg %p328
    // Predicated region
    $region45: #{tpu_custom_call.1} parent=5 // pred_check
      _
    $region46: #{tpu_custom_call.1} parent=5 // pred_check_branch
      %331 = sbr.rel (%p328) target = $region48
    $region47: #{tpu_custom_call.1} parent=5 // pred_region
      %s332 = ssub.s32 %s13, 1
      %s333 = smul.u32 8, %s23
      %p334 = scmp.lt.s32.totalorder %s22, 1
      %s335 = scalar_select %p334, %s22, 1
      %p336 = scmp.lt.s32.totalorder %s333, 15
      %s337 = scalar_select %p336, %s333, 15
      %s338 = smul.addr %s337, 2
      %s339 = smul.addr %s335, 32
      %s340 = sadd.s32 %s338, %s339
      %s341 = smul.addr %s340, 4
      %s342 = scalar_lea.vmem %s0, %s341
      %p343 = pneg %p53
      %p344 = pneg %p50
      %s345 = smul.u32 %s23, 4
      %s346 = ssub.s32 %s345, 1
      %p347 = scmp.gt.s32.totalorder %s346, 0
      %s348 = scalar_select %p347, %s346, 0
      %s349 = smul.u32 2, %s348
      %p350 = scmp.lt.s32.totalorder %s22, 1
      %s351 = scalar_select %p350, %s22, 1
      %p352 = scmp.lt.s32.totalorder %s349, 15
      %s353 = scalar_select %p352, %s349, 15
      %s354 = smul.addr %s353, 2
      %s355 = smul.addr %s351, 32
      %s356 = sadd.s32 %s354, %s355
      %s357 = smul.addr %s356, 4
      %s358 = scalar_lea.vmem %s1, %s357
      %p359 = pneg %p89
      %p360 = pneg %p86
      %s361 = sadd.s32 %s23, 1
      %s362 = smul.u32 %s361, 4
      %p363 = scmp.lt.s32.totalorder %s362, 7
      %s364 = scalar_select %p363, %s362, 7
      %s365 = smul.u32 2, %s364
      %p366 = scmp.lt.s32.totalorder %s22, 1
      %s367 = scalar_select %p366, %s22, 1
      %p368 = scmp.lt.s32.totalorder %s365, 15
      %s369 = scalar_select %p368, %s365, 15
      %s370 = smul.addr %s369, 2
      %s371 = smul.addr %s367, 32
      %s372 = sadd.s32 %s370, %s371
      %s373 = smul.addr %s372, 4
      %s374 = scalar_lea.vmem %s2, %s373
      %p375 = pneg %p125
      %p376 = pneg %p122
      %p377 = pneg %p146
      %p378 = pneg %p143
      %p379 = pneg %p167
      %p380 = pneg %p164
      %p381 = pneg %p188
      %p382 = pneg %p185
      %p383 = pneg %p209
      %p384 = pneg %p206
      %p385 = pneg %p237
      %p386 = pneg %p234
      %s387 = smul.u32 8, %s23
      %p388 = scmp.lt.s32.totalorder %s22, 1
      %s389 = scalar_select %p388, %s22, 1
      %p390 = scmp.lt.s32.totalorder %s387, 15
      %s391 = scalar_select %p390, %s387, 15
      %s392 = smul.addr %s391, 2
      %s393 = smul.addr %s389, 32
      %s394 = sadd.s32 %s392, %s393
      %s395 = smul.addr %s394, 8
      %s396 = scalar_lea.vmem %s7, %s395
      %s397 = smul.u32 8, %s23
      %p398 = scmp.lt.s32.totalorder %s22, 1
      %s399 = scalar_select %p398, %s22, 1
      %p400 = scmp.lt.s32.totalorder %s397, 15
      %s401 = scalar_select %p400, %s397, 15
      %s402 = smul.addr %s401, 2
      %s403 = smul.addr %s399, 32
      %s404 = sadd.s32 %s402, %s403
      %s405 = smul.addr %s404, 4
      %s406 = scalar_lea.vmem %s0, %s405
      %s407 = smul.u32 8, %s23
      %s408 = smul.u32 %s23, 4
      %s409 = ssub.s32 %s408, 1
      %p410 = scmp.gt.s32.totalorder %s409, 0
      %s411 = scalar_select %p410, %s409, 0
      %s412 = smul.u32 2, %s411
      %p413 = scmp.lt.s32.totalorder %s22, 1
      %s414 = scalar_select %p413, %s22, 1
      %p415 = scmp.lt.s32.totalorder %s412, 15
      %s416 = scalar_select %p415, %s412, 15
      %s417 = smul.addr %s416, 2
      %s418 = smul.addr %s414, 32
      %s419 = sadd.s32 %s417, %s418
      %s420 = smul.addr %s419, 4
      %s421 = scalar_lea.vmem %s1, %s420
      %s422 = smul.u32 %s23, 4
      %s423 = ssub.s32 %s422, 1
      %p424 = scmp.gt.s32.totalorder %s423, 0
      %s425 = scalar_select %p424, %s423, 0
      %s426 = smul.u32 2, %s425
      %s427 = sadd.s32 %s23, 1
      %s428 = smul.u32 %s427, 4
      %p429 = scmp.lt.s32.totalorder %s428, 7
      %s430 = scalar_select %p429, %s428, 7
      %s431 = smul.u32 2, %s430
      %p432 = scmp.lt.s32.totalorder %s22, 1
      %s433 = scalar_select %p432, %s22, 1
      %p434 = scmp.lt.s32.totalorder %s431, 15
      %s435 = scalar_select %p434, %s431, 15
      %s436 = smul.addr %s435, 2
      %s437 = smul.addr %s433, 32
      %s438 = sadd.s32 %s436, %s437
      %s439 = smul.addr %s438, 4
      %s440 = scalar_lea.vmem %s2, %s439
      %s441 = sadd.s32 %s23, 1
      %s442 = smul.u32 %s441, 4
      %p443 = scmp.lt.s32.totalorder %s442, 7
      %s444 = scalar_select %p443, %s442, 7
      %s445 = smul.u32 2, %s444
      %s446 = smul.u32 8, %s23
      %p447 = scmp.lt.s32.totalorder %s22, 1
      %s448 = scalar_select %p447, %s22, 1
      %p449 = scmp.lt.s32.totalorder %s446, 15
      %s450 = scalar_select %p449, %s446, 15
      %s451 = smul.addr %s450, 2
      %s452 = smul.addr %s448, 32
      %s453 = sadd.s32 %s451, %s452
      %s454 = smul.addr %s453, 8
      %s455 = scalar_lea.vmem %s7, %s454
      %s456 = smul.u32 8, %s23
      %vm458 = vcmask 24576
      %vm459 = vsmask.f32 256
      %vm460 = vmand %vm458, %vm459
      %v461 = vld [vmem:[#allocation2] sm:$0x1]
      %v462 = vsel %vm460, 0, %v461
      %463 = vst [vmem:[#allocation2] sm:$0x1] %v462
      %v464 = vld [vmem:[#allocation2 + $0xc] sm:$0x1]
      %v465 = vsel %vm460, 0, %v464
      %466 = vst [vmem:[#allocation2 + $0xc] sm:$0x1] %v465
      %v467 = vld [vmem:[#allocation2 + $0x18] sm:$0x1]
      %v468 = vsel %vm460, 0, %v467
      %469 = vst [vmem:[#allocation2 + $0x18] sm:$0x1] %v468
      %v470 = vld [vmem:[#allocation2 + $0x24] sm:$0x1]
      %v471 = vsel %vm460, 0, %v470
      %472 = vst [vmem:[#allocation2 + $0x24] sm:$0x1] %v471
      %v473 = vld [vmem:[#allocation2 + $0x30] sm:$0x1]
      %v474 = vsel %vm460, 0, %v473
      %475 = vst [vmem:[#allocation2 + $0x30] sm:$0x1] %v474
      %v476 = vld [vmem:[#allocation2 + $0x3c] sm:$0x1]
      %v477 = vsel %vm460, 0, %v476
      %478 = vst [vmem:[#allocation2 + $0x3c] sm:$0x1] %v477
      %v479 = vld [vmem:[#allocation2 + $0x48] sm:$0x1]
      %v480 = vsel %vm460, 0, %v479
      %481 = vst [vmem:[#allocation2 + $0x48] sm:$0x1] %v480
      %v482 = vld [vmem:[#allocation2 + $0x54] sm:$0x1]
      %v483 = vsel %vm460, 0, %v482
      %484 = vst [vmem:[#allocation2 + $0x54] sm:$0x1] %v483
      %v485 = vld [vmem:[#allocation2 + $0x60] sm:$0x1]
      %v486 = vsel %vm460, 0, %v485
      %487 = vst [vmem:[#allocation2 + $0x60] sm:$0x1] %v486
      %v488 = vld [vmem:[#allocation2 + $0x6c] sm:$0x1]
      %v489 = vsel %vm460, 0, %v488
      %490 = vst [vmem:[#allocation2 + $0x6c] sm:$0x1] %v489
      %v491 = vld [vmem:[#allocation2 + $0x78] sm:$0x1]
      %v492 = vsel %vm460, 0, %v491
      %493 = vst [vmem:[#allocation2 + $0x78] sm:$0x1] %v492
      %v494 = vld [vmem:[#allocation2 + $0x84] sm:$0x1]
      %v495 = vsel %vm460, 0, %v494
      %496 = vst [vmem:[#allocation2 + $0x84] sm:$0x1] %v495
      %vm497 = vcmask 27648
      %vm498 = vsmask.f32 7938
      %vm499 = vmand %vm497, %vm498
      %v500 = vld [vmem:[#allocation2 + $0x8] sm:$0xf]
      %v501 = vsel %vm499, 0, %v500
      %502 = vst [vmem:[#allocation2 + $0x8] sm:$0xf] %v501
      %v503 = vld [vmem:[#allocation2 + $0x14] sm:$0xf]
      %v504 = vsel %vm499, 0, %v503
      %505 = vst [vmem:[#allocation2 + $0x14] sm:$0xf] %v504
      %v506 = vld [vmem:[#allocation2 + $0x20] sm:$0xf]
      %v507 = vsel %vm499, 0, %v506
      %508 = vst [vmem:[#allocation2 + $0x20] sm:$0xf] %v507
      %v509 = vld [vmem:[#allocation2 + $0x2c] sm:$0xf]
      %v510 = vsel %vm499, 0, %v509
      %511 = vst [vmem:[#allocation2 + $0x2c] sm:$0xf] %v510
      %v512 = vld [vmem:[#allocation2 + $0x38] sm:$0xf]
      %v513 = vsel %vm499, 0, %v512
      %514 = vst [vmem:[#allocation2 + $0x38] sm:$0xf] %v513
      %v515 = vld [vmem:[#allocation2 + $0x44] sm:$0xf]
      %v516 = vsel %vm499, 0, %v515
      %517 = vst [vmem:[#allocation2 + $0x44] sm:$0xf] %v516
      %v518 = vld [vmem:[#allocation2 + $0x50] sm:$0xf]
      %v519 = vsel %vm499, 0, %v518
      %520 = vst [vmem:[#allocation2 + $0x50] sm:$0xf] %v519
      %v521 = vld [vmem:[#allocation2 + $0x5c] sm:$0xf]
      %v522 = vsel %vm499, 0, %v521
      %523 = vst [vmem:[#allocation2 + $0x5c] sm:$0xf] %v522
      %v524 = vld [vmem:[#allocation2 + $0x68] sm:$0xf]
      %v525 = vsel %vm499, 0, %v524
      %526 = vst [vmem:[#allocation2 + $0x68] sm:$0xf] %v525
      %v527 = vld [vmem:[#allocation2 + $0x74] sm:$0xf]
      %v528 = vsel %vm499, 0, %v527
      %529 = vst [vmem:[#allocation2 + $0x74] sm:$0xf] %v528
      %v530 = vld [vmem:[#allocation2 + $0x80] sm:$0xf]
      %v531 = vsel %vm499, 0, %v530
      %532 = vst [vmem:[#allocation2 + $0x80] sm:$0xf] %v531
      %v533 = vld [vmem:[#allocation2 + $0x8c] sm:$0xf]
      %v534 = vsel %vm499, 0, %v533
      %535 = vst [vmem:[#allocation2 + $0x8c] sm:$0xf] %v534
      %v536 = vld [vmem:[%s406] sm:$0xf]
      %v537 = vld [vmem:[%s406 + $0x4] sm:$0xf]
      %v538 = vld [vmem:[%s406 + $0x8] sm:$0xf]
      %v539 = vld [vmem:[%s406 + $0xc] sm:$0xf]
      %v540 = vld [vmem:[%s406 + $0x10] sm:$0xf]
      %v541 = vld [vmem:[%s406 + $0x14] sm:$0xf]
      %v542 = vld [vmem:[%s406 + $0x18] sm:$0xf]
      %v543 = vld [vmem:[%s406 + $0x1c] sm:$0xf]
      %v544 = vld [vmem:[%s406 + $0x20] sm:$0xf]
      %v545 = vld [vmem:[%s406 + $0x24] sm:$0xf]
      %v546 = vld [vmem:[%s406 + $0x28] sm:$0xf]
      %v547 = vld [vmem:[%s406 + $0x2c] sm:$0xf]
      %v548 = vld [vmem:[%s406 + $0x30] sm:$0xf]
      %v549 = vld [vmem:[%s406 + $0x34] sm:$0xf]
      %v550 = vld [vmem:[%s406 + $0x38] sm:$0xf]
      %v551 = vld [vmem:[%s406 + $0x3c] sm:$0xf]
      %vm552 = vsmask.f32 4368
      %vm553 = vmor %vm459, %vm552
      %v555 = vshrl.u32 %v536, 16
      %v557 = vrot.slane %v555, 7
      %v558 = vshll.u32 %v536, 16
      %v560 = vor.u32 %v557, %v558
      %v561 = vrot.slane %v557, 4
      %v563 = vshrl.u32 %v537, 16
      %v565 = vrot.slane %v563, 7
      %v566 = vshll.u32 %v537, 16
      %v568 = vor.u32 %v565, %v566
      %v569 = vsel %vm553, %v561, %v568
      %v570 = vrot.slane %v565, 4
      %v572 = vshrl.u32 %v538, 16
      %v574 = vrot.slane %v572, 7
      %v575 = vshll.u32 %v538, 16
      %v577 = vor.u32 %v574, %v575
      %v578 = vrot.slane %v574, 4
      %v580 = vshrl.u32 %v539, 16
      %v582 = vrot.slane %v580, 7
      %v583 = vshll.u32 %v539, 16
      %v585 = vor.u32 %v582, %v583
      %v586 = vsel %vm553, %v578, %v585
      %v587 = vrot.slane %v582, 4
      %v589 = vshrl.u32 %v540, 16
      %v591 = vrot.slane %v589, 7
      %v592 = vshll.u32 %v540, 16
      %v594 = vor.u32 %v591, %v592
      %v595 = vrot.slane %v591, 4
      %v597 = vshrl.u32 %v541, 16
      %v599 = vrot.slane %v597, 7
      %v600 = vshll.u32 %v541, 16
      %v602 = vor.u32 %v599, %v600
      %v603 = vsel %vm553, %v595, %v602
      %v604 = vrot.slane %v599, 4
      %v606 = vshrl.u32 %v542, 16
      %v608 = vrot.slane %v606, 7
      %v609 = vshll.u32 %v542, 16
      %v611 = vor.u32 %v608, %v609
      %v612 = vrot.slane %v608, 4
      %v614 = vshrl.u32 %v543, 16
      %v616 = vrot.slane %v614, 7
      %v617 = vshll.u32 %v543, 16
      %v619 = vor.u32 %v616, %v617
      %v620 = vsel %vm553, %v612, %v619
      %v621 = vrot.slane %v616, 4
      %v623 = vshrl.u32 %v544, 16
      %v625 = vrot.slane %v623, 7
      %v626 = vshll.u32 %v544, 16
      %v628 = vor.u32 %v625, %v626
      %v629 = vrot.slane %v625, 4
      %v631 = vshrl.u32 %v545, 16
      %v633 = vrot.slane %v631, 7
      %v634 = vshll.u32 %v545, 16
      %v636 = vor.u32 %v633, %v634
      %v637 = vsel %vm553, %v629, %v636
      %v638 = vrot.slane %v633, 4
      %v640 = vshrl.u32 %v546, 16
      %v642 = vrot.slane %v640, 7
      %v643 = vshll.u32 %v546, 16
      %v645 = vor.u32 %v642, %v643
      %v646 = vrot.slane %v642, 4
      %v648 = vshrl.u32 %v547, 16
      %v650 = vrot.slane %v648, 7
      %v651 = vshll.u32 %v547, 16
      %v653 = vor.u32 %v650, %v651
      %v654 = vsel %vm553, %v646, %v653
      %v655 = vrot.slane %v650, 4
      %v657 = vshrl.u32 %v548, 16
      %v659 = vrot.slane %v657, 7
      %v660 = vshll.u32 %v548, 16
      %v662 = vor.u32 %v659, %v660
      %v663 = vrot.slane %v659, 4
      %v665 = vshrl.u32 %v549, 16
      %v667 = vrot.slane %v665, 7
      %v668 = vshll.u32 %v549, 16
      %v670 = vor.u32 %v667, %v668
      %v671 = vsel %vm553, %v663, %v670
      %v672 = vrot.slane %v667, 4
      %v674 = vshrl.u32 %v550, 16
      %v676 = vrot.slane %v674, 7
      %v677 = vshll.u32 %v550, 16
      %v679 = vor.u32 %v676, %v677
      %v680 = vrot.slane %v676, 4
      %v682 = vshrl.u32 %v551, 16
      %v684 = vrot.slane %v682, 7
      %v685 = vshll.u32 %v551, 16
      %v687 = vor.u32 %v684, %v685
      %v688 = vsel %vm553, %v680, %v687
      %v689 = vrot.slane %v684, 4
      %s714 = scalar_lea.vmem [#allocation2], 24
      %v715 = vld [vmem:[%s714] sm:$0xf]
      %v716 = vsel %vm499, %v560, %v715
      %717 = vst [vmem:[%s714] sm:$0xf] %v716
      %vm718 = vcmask 27648
      %719 = vst.msk [vmem:[%s714 + $0x4] sm:$0xf] %vm718, %v569
      %v720 = vld [vmem:[%s714 + $0x8] sm:$0x1]
      %v721 = vsel %vm460, %v570, %v720
      %722 = vst [vmem:[%s714 + $0x8] sm:$0x1] %v721
      %v723 = vld [vmem:[%s714 + $0xc] sm:$0xf]
      %v724 = vsel %vm499, %v577, %v723
      %725 = vst [vmem:[%s714 + $0xc] sm:$0xf] %v724
      %726 = vst.msk [vmem:[%s714 + $0x10] sm:$0xf] %vm718, %v586
      %v727 = vld [vmem:[%s714 + $0x14] sm:$0x1]
      %v728 = vsel %vm460, %v587, %v727
      %729 = vst [vmem:[%s714 + $0x14] sm:$0x1] %v728
      %v730 = vld [vmem:[%s714 + $0x18] sm:$0xf]
      %v731 = vsel %vm499, %v594, %v730
      %732 = vst [vmem:[%s714 + $0x18] sm:$0xf] %v731
      %733 = vst.msk [vmem:[%s714 + $0x1c] sm:$0xf] %vm718, %v603
      %v734 = vld [vmem:[%s714 + $0x20] sm:$0x1]
      %v735 = vsel %vm460, %v604, %v734
      %736 = vst [vmem:[%s714 + $0x20] sm:$0x1] %v735
      %v737 = vld [vmem:[%s714 + $0x24] sm:$0xf]
      %v738 = vsel %vm499, %v611, %v737
      %739 = vst [vmem:[%s714 + $0x24] sm:$0xf] %v738
      %740 = vst.msk [vmem:[%s714 + $0x28] sm:$0xf] %vm718, %v620
      %v741 = vld [vmem:[%s714 + $0x2c] sm:$0x1]
      %v742 = vsel %vm460, %v621, %v741
      %743 = vst [vmem:[%s714 + $0x2c] sm:$0x1] %v742
      %v744 = vld [vmem:[%s714 + $0x30] sm:$0xf]
      %v745 = vsel %vm499, %v628, %v744
      %746 = vst [vmem:[%s714 + $0x30] sm:$0xf] %v745
      %747 = vst.msk [vmem:[%s714 + $0x34] sm:$0xf] %vm718, %v637
      %v748 = vld [vmem:[%s714 + $0x38] sm:$0x1]
      %v749 = vsel %vm460, %v638, %v748
      %750 = vst [vmem:[%s714 + $0x38] sm:$0x1] %v749
      %v751 = vld [vmem:[%s714 + $0x3c] sm:$0xf]
      %v752 = vsel %vm499, %v645, %v751
      %753 = vst [vmem:[%s714 + $0x3c] sm:$0xf] %v752
      %754 = vst.msk [vmem:[%s714 + $0x40] sm:$0xf] %vm718, %v654
      %v755 = vld [vmem:[%s714 + $0x44] sm:$0x1]
      %v756 = vsel %vm460, %v655, %v755
      %757 = vst [vmem:[%s714 + $0x44] sm:$0x1] %v756
      %v758 = vld [vmem:[%s714 + $0x48] sm:$0xf]
      %v759 = vsel %vm499, %v662, %v758
      %760 = vst [vmem:[%s714 + $0x48] sm:$0xf] %v759
      %761 = vst.msk [vmem:[%s714 + $0x4c] sm:$0xf] %vm718, %v671
      %v762 = vld [vmem:[%s714 + $0x50] sm:$0x1]
      %v763 = vsel %vm460, %v672, %v762
      %764 = vst [vmem:[%s714 + $0x50] sm:$0x1] %v763
      %v765 = vld [vmem:[%s714 + $0x54] sm:$0xf]
      %v766 = vsel %vm499, %v679, %v765
      %767 = vst [vmem:[%s714 + $0x54] sm:$0xf] %v766
      %768 = vst.msk [vmem:[%s714 + $0x58] sm:$0xf] %vm718, %v688
      %v769 = vld [vmem:[%s714 + $0x5c] sm:$0x1]
      %v770 = vsel %vm460, %v689, %v769
      %771 = vst [vmem:[%s714 + $0x5c] sm:$0x1] %v770
      %v772 = vld [vmem:[%s421] sm:$0xf]
      %v773 = vld [vmem:[%s421 + $0x4] sm:$0xf]
      %v774 = vld [vmem:[%s421 + $0x8] sm:$0xf]
      %v775 = vld [vmem:[%s421 + $0xc] sm:$0xf]
      %v777 = vshrl.u32 %v772, 16
      %v779 = vrot.slane %v777, 7
      %v780 = vshll.u32 %v772, 16
      %v782 = vor.u32 %v779, %v780
      %v783 = vrot.slane %v779, 4
      %v785 = vshrl.u32 %v773, 16
      %v787 = vrot.slane %v785, 7
      %v788 = vshll.u32 %v773, 16
      %v790 = vor.u32 %v787, %v788
      %v791 = vsel %vm553, %v783, %v790
      %v792 = vrot.slane %v787, 4
      %v794 = vshrl.u32 %v774, 16
      %v796 = vrot.slane %v794, 7
      %v797 = vshll.u32 %v774, 16
      %v799 = vor.u32 %v796, %v797
      %v800 = vrot.slane %v796, 4
      %v802 = vshrl.u32 %v775, 16
      %v804 = vrot.slane %v802, 7
      %v805 = vshll.u32 %v775, 16
      %v807 = vor.u32 %v804, %v805
      %v808 = vsel %vm553, %v800, %v807
      %v809 = vrot.slane %v804, 4
      %v816 = vld [vmem:[#allocation2] sm:$0xf]
      %v817 = vsel %vm499, %v782, %v816
      %818 = vst [vmem:[#allocation2] sm:$0xf] %v817
      %819 = vst.msk [vmem:[#allocation2 + $0x4] sm:$0xf] %vm718, %v791
      %v820 = vld [vmem:[#allocation2 + $0x8] sm:$0x1]
      %v821 = vsel %vm460, %v792, %v820
      %822 = vst [vmem:[#allocation2 + $0x8] sm:$0x1] %v821
      %v823 = vld [vmem:[#allocation2 + $0xc] sm:$0xf]
      %v824 = vsel %vm499, %v799, %v823
      %825 = vst [vmem:[#allocation2 + $0xc] sm:$0xf] %v824
      %826 = vst.msk [vmem:[#allocation2 + $0x10] sm:$0xf] %vm718, %v808
      %v827 = vld [vmem:[#allocation2 + $0x14] sm:$0x1]
      %v828 = vsel %vm460, %v809, %v827
      %829 = vst [vmem:[#allocation2 + $0x14] sm:$0x1] %v828
      %v830 = vld [vmem:[%s440] sm:$0xf]
      %v831 = vld [vmem:[%s440 + $0x4] sm:$0xf]
      %v832 = vld [vmem:[%s440 + $0x8] sm:$0xf]
      %v833 = vld [vmem:[%s440 + $0xc] sm:$0xf]
      %v835 = vshrl.u32 %v830, 16
      %v837 = vrot.slane %v835, 7
      %v838 = vshll.u32 %v830, 16
      %v840 = vor.u32 %v837, %v838
      %v841 = vrot.slane %v837, 4
      %v843 = vshrl.u32 %v831, 16
      %v845 = vrot.slane %v843, 7
      %v846 = vshll.u32 %v831, 16
      %v848 = vor.u32 %v845, %v846
      %v849 = vsel %vm553, %v841, %v848
      %v850 = vrot.slane %v845, 4
      %v852 = vshrl.u32 %v832, 16
      %v854 = vrot.slane %v852, 7
      %v855 = vshll.u32 %v832, 16
      %v857 = vor.u32 %v854, %v855
      %v858 = vrot.slane %v854, 4
      %v860 = vshrl.u32 %v833, 16
      %v862 = vrot.slane %v860, 7
      %v863 = vshll.u32 %v833, 16
      %v865 = vor.u32 %v862, %v863
      %v866 = vsel %vm553, %v858, %v865
      %v867 = vrot.slane %v862, 4
      %s874 = scalar_lea.vmem [#allocation2], 120
      %v875 = vld [vmem:[%s874] sm:$0xf]
      %v876 = vsel %vm499, %v840, %v875
      %877 = vst [vmem:[%s874] sm:$0xf] %v876
      %878 = vst.msk [vmem:[%s874 + $0x4] sm:$0xf] %vm718, %v849
      %v879 = vld [vmem:[%s874 + $0x8] sm:$0x1]
      %v880 = vsel %vm460, %v850, %v879
      %881 = vst [vmem:[%s874 + $0x8] sm:$0x1] %v880
      %v882 = vld [vmem:[%s874 + $0xc] sm:$0xf]
      %v883 = vsel %vm499, %v857, %v882
      %884 = vst [vmem:[%s874 + $0xc] sm:$0xf] %v883
      %885 = vst.msk [vmem:[%s874 + $0x10] sm:$0xf] %vm718, %v866
      %v886 = vld [vmem:[%s874 + $0x14] sm:$0x1]
      %v887 = vsel %vm460, %v867, %v886
      %888 = vst [vmem:[%s874 + $0x14] sm:$0x1] %v887
      %p889 = scmp.eq.s32.totalorder %s23, 0
      // Predicated region
      $region49: #{tpu_custom_call.1} parent=47 // pred_check
        %p890 = pneg %p889
      $region50: #{tpu_custom_call.1} parent=47 // pred_check_branch
        %892 = sbr.rel (%p890) target = $region52
      $region51: #{tpu_custom_call.1} parent=47 // pred_region
        %v893 = vld [vmem:[#allocation2] sm:$0xf]
        %v894 = vsel %vm499, 0, %v893
        %895 = vst [vmem:[#allocation2] sm:$0xf] %v894
        %896 = vst.msk [vmem:[#allocation2 + $0x4] sm:$0xf] %vm718, 0
        %v897 = vld [vmem:[#allocation2 + $0x8] sm:$0x1]
        %v898 = vsel %vm460, 0, %v897
        %899 = vst [vmem:[#allocation2 + $0x8] sm:$0x1] %v898
        %v900 = vld [vmem:[#allocation2 + $0xc] sm:$0xf]
        %v901 = vsel %vm499, 0, %v900
        %902 = vst [vmem:[#allocation2 + $0xc] sm:$0xf] %v901
        %903 = vst.msk [vmem:[#allocation2 + $0x10] sm:$0xf] %vm718, 0
        %v904 = vld [vmem:[#allocation2 + $0x14] sm:$0x1]
        %v905 = vsel %vm460, 0, %v904
        %906 = vst [vmem:[#allocation2 + $0x14] sm:$0x1] %v905
      $region52: #{tpu_custom_call.1} parent=47 // pred_fallthru
        _
      %p907 = scmp.eq.s32.totalorder %s23, 1
      // Predicated region
      $region53: #{tpu_custom_call.1} parent=47 // pred_check
        %p908 = pneg %p907
      $region54: #{tpu_custom_call.1} parent=47 // pred_check_branch
        %910 = sbr.rel (%p908) target = $region56
      $region55: #{tpu_custom_call.1} parent=47 // pred_region
        %v911 = vld [vmem:[%s874] sm:$0xf]
        %v912 = vsel %vm499, 0, %v911
        %913 = vst [vmem:[%s874] sm:$0xf] %v912
        %914 = vst.msk [vmem:[%s874 + $0x4] sm:$0xf] %vm718, 0
        %v915 = vld [vmem:[%s874 + $0x8] sm:$0x1]
        %v916 = vsel %vm460, 0, %v915
        %917 = vst [vmem:[%s874 + $0x8] sm:$0x1] %v916
        %v918 = vld [vmem:[%s874 + $0xc] sm:$0xf]
        %v919 = vsel %vm499, 0, %v918
        %920 = vst [vmem:[%s874 + $0xc] sm:$0xf] %v919
        %921 = vst.msk [vmem:[%s874 + $0x10] sm:$0xf] %vm718, 0
        %v922 = vld [vmem:[%s874 + $0x14] sm:$0x1]
        %v923 = vsel %vm460, 0, %v922
        %924 = vst [vmem:[%s874 + $0x14] sm:$0x1] %v923
      $region56: #{tpu_custom_call.1} parent=47 // pred_fallthru
        _
      %v925 = vld [vmem:[#allocation2] sm:$0xf]
      %v926 = vld [vmem:[#allocation2 + $0x4] sm:$0xf]
      %v927 = vld [vmem:[#allocation2 + $0xc] sm:$0xf]
      %v928 = vld [vmem:[#allocation2 + $0x10] sm:$0xf]
      %v929 = vld [vmem:[#allocation2 + $0x18] sm:$0xf]
      %v930 = vld [vmem:[#allocation2 + $0x1c] sm:$0xf]
      %v931 = vld [vmem:[#allocation2 + $0x24] sm:$0xf]
      %v932 = vld [vmem:[#allocation2 + $0x28] sm:$0xf]
      %v933 = vld [vmem:[#allocation2 + $0x30] sm:$0xf]
      %v934 = vld [vmem:[#allocation2 + $0x34] sm:$0xf]
      %v935 = vld [vmem:[#allocation2 + $0x3c] sm:$0xf]
      %v936 = vld [vmem:[#allocation2 + $0x40] sm:$0xf]
      %v937 = vld [vmem:[#allocation2 + $0x48] sm:$0xf]
      %v938 = vld [vmem:[#allocation2 + $0x4c] sm:$0xf]
      %v939 = vld [vmem:[#allocation2 + $0x54] sm:$0xf]
      %v940 = vld [vmem:[#allocation2 + $0x58] sm:$0xf]
      %v941 = vld [vmem:[#allocation2 + $0x60] sm:$0xf]
      %v942 = vld [vmem:[#allocation2 + $0x64] sm:$0xf]
      %v943 = vld [vmem:[#allocation2 + $0x6c] sm:$0xf]
      %v944 = vld [vmem:[#allocation2 + $0x70] sm:$0xf]
      %v945 = vld [vmem:[%s3] sm:$0x3]
      %v946 = vld [vmem:[#allocation2 + $0x8] sm:$0x1]
      %v947 = vld [vmem:[#allocation2 + $0x14] sm:$0x1]
      %v948 = vld [vmem:[#allocation2 + $0x20] sm:$0x1]
      %v949 = vld [vmem:[#allocation2 + $0x2c] sm:$0x1]
      %v950 = vld [vmem:[#allocation2 + $0x38] sm:$0x1]
      %v951 = vld [vmem:[#allocation2 + $0x44] sm:$0x1]
      %v952 = vld [vmem:[#allocation2 + $0x50] sm:$0x1]
      %v953 = vld [vmem:[#allocation2 + $0x5c] sm:$0x1]
      %v954 = vld [vmem:[#allocation2 + $0x68] sm:$0x1]
      %v955 = vld [vmem:[#allocation2 + $0x74] sm:$0x1]
      %vm956 = vsmask.f32 3328
      %vm957 = vsmask.f32 7440
      %vm958 = vmor %vm956, %vm957
      %v960 = vshrl.u32 %v925, 16
      %v962 = vrot.slane %v960, 4
      %v963 = vshll.u32 %v925, 16
      %v965 = vrot.slane %v963, 5
      %v966 = vor.u32 %v962, %v965
      %v967 = vrot.slane %v966, 4
      %v969 = vshll.u32 %v926, 16
      %v971 = vrot.slane %v969, 5
      %v972 = vsel %vm958, %v967, %v971
      %v973 = vshrl.u32 %v926, 16
      %v975 = vrot.slane %v973, 4
      %v976 = vor.u32 %v975, %v971
      %v977 = vrot.slane %v976, 4
      %v979 = vshll.u32 %v946, 16
      %v981 = vrot.slane %v979, 5
      %v982 = vsel %vm958, %v977, %v981
      %v984 = vshrl.u32 %v927, 16
      %v986 = vrot.slane %v984, 4
      %v987 = vshll.u32 %v927, 16
      %v989 = vrot.slane %v987, 5
      %v990 = vor.u32 %v986, %v989
      %v991 = vrot.slane %v990, 4
      %v993 = vshll.u32 %v928, 16
      %v995 = vrot.slane %v993, 5
      %v996 = vsel %vm958, %v991, %v995
      %v997 = vshrl.u32 %v928, 16
      %v999 = vrot.slane %v997, 4
      %v1000 = vor.u32 %v999, %v995
      %v1001 = vrot.slane %v1000, 4
      %v1003 = vshll.u32 %v947, 16
      %v1005 = vrot.slane %v1003, 5
      %v1006 = vsel %vm958, %v1001, %v1005
      %v1008 = vshrl.u32 %v929, 16
      %v1010 = vrot.slane %v1008, 4
      %v1011 = vshll.u32 %v929, 16
      %v1013 = vrot.slane %v1011, 5
      %v1014 = vor.u32 %v1010, %v1013
      %v1015 = vrot.slane %v1014, 4
      %v1017 = vshll.u32 %v930, 16
      %v1019 = vrot.slane %v1017, 5
      %v1020 = vsel %vm958, %v1015, %v1019
      %v1021 = vshrl.u32 %v930, 16
      %v1023 = vrot.slane %v1021, 4
      %v1024 = vor.u32 %v1023, %v1019
      %v1025 = vrot.slane %v1024, 4
      %v1027 = vshll.u32 %v948, 16
      %v1029 = vrot.slane %v1027, 5
      %v1030 = vsel %vm958, %v1025, %v1029
      %v1032 = vshrl.u32 %v931, 16
      %v1034 = vrot.slane %v1032, 4
      %v1035 = vshll.u32 %v931, 16
      %v1037 = vrot.slane %v1035, 5
      %v1038 = vor.u32 %v1034, %v1037
      %v1039 = vrot.slane %v1038, 4
      %v1041 = vshll.u32 %v932, 16
      %v1043 = vrot.slane %v1041, 5
      %v1044 = vsel %vm958, %v1039, %v1043
      %v1045 = vshrl.u32 %v932, 16
      %v1047 = vrot.slane %v1045, 4
      %v1048 = vor.u32 %v1047, %v1043
      %v1049 = vrot.slane %v1048, 4
      %v1051 = vshll.u32 %v949, 16
      %v1053 = vrot.slane %v1051, 5
      %v1054 = vsel %vm958, %v1049, %v1053
      %v1056 = vshrl.u32 %v933, 16
      %v1058 = vrot.slane %v1056, 4
      %v1059 = vshll.u32 %v933, 16
      %v1061 = vrot.slane %v1059, 5
      %v1062 = vor.u32 %v1058, %v1061
      %v1063 = vrot.slane %v1062, 4
      %v1065 = vshll.u32 %v934, 16
      %v1067 = vrot.slane %v1065, 5
      %v1068 = vsel %vm958, %v1063, %v1067
      %v1069 = vshrl.u32 %v934, 16
      %v1071 = vrot.slane %v1069, 4
      %v1072 = vor.u32 %v1071, %v1067
      %v1073 = vrot.slane %v1072, 4
      %v1075 = vshll.u32 %v950, 16
      %v1077 = vrot.slane %v1075, 5
      %v1078 = vsel %vm958, %v1073, %v1077
      %v1080 = vshrl.u32 %v935, 16
      %v1082 = vrot.slane %v1080, 4
      %v1083 = vshll.u32 %v935, 16
      %v1085 = vrot.slane %v1083, 5
      %v1086 = vor.u32 %v1082, %v1085
      %v1087 = vrot.slane %v1086, 4
      %v1089 = vshll.u32 %v936, 16
      %v1091 = vrot.slane %v1089, 5
      %v1092 = vsel %vm958, %v1087, %v1091
      %v1093 = vshrl.u32 %v936, 16
      %v1095 = vrot.slane %v1093, 4
      %v1096 = vor.u32 %v1095, %v1091
      %v1097 = vrot.slane %v1096, 4
      %v1099 = vshll.u32 %v951, 16
      %v1101 = vrot.slane %v1099, 5
      %v1102 = vsel %vm958, %v1097, %v1101
      %v1104 = vshrl.u32 %v937, 16
      %v1106 = vrot.slane %v1104, 4
      %v1107 = vshll.u32 %v937, 16
      %v1109 = vrot.slane %v1107, 5
      %v1110 = vor.u32 %v1106, %v1109
      %v1111 = vrot.slane %v1110, 4
      %v1113 = vshll.u32 %v938, 16
      %v1115 = vrot.slane %v1113, 5
      %v1116 = vsel %vm958, %v1111, %v1115
      %v1117 = vshrl.u32 %v938, 16
      %v1119 = vrot.slane %v1117, 4
      %v1120 = vor.u32 %v1119, %v1115
      %v1121 = vrot.slane %v1120, 4
      %v1123 = vshll.u32 %v952, 16
      %v1125 = vrot.slane %v1123, 5
      %v1126 = vsel %vm958, %v1121, %v1125
      %v1128 = vshrl.u32 %v939, 16
      %v1130 = vrot.slane %v1128, 4
      %v1131 = vshll.u32 %v939, 16
      %v1133 = vrot.slane %v1131, 5
      %v1134 = vor.u32 %v1130, %v1133
      %v1135 = vrot.slane %v1134, 4
      %v1137 = vshll.u32 %v940, 16
      %v1139 = vrot.slane %v1137, 5
      %v1140 = vsel %vm958, %v1135, %v1139
      %v1141 = vshrl.u32 %v940, 16
      %v1143 = vrot.slane %v1141, 4
      %v1144 = vor.u32 %v1143, %v1139
      %v1145 = vrot.slane %v1144, 4
      %v1147 = vshll.u32 %v953, 16
      %v1149 = vrot.slane %v1147, 5
      %v1150 = vsel %vm958, %v1145, %v1149
      %v1152 = vshrl.u32 %v941, 16
      %v1154 = vrot.slane %v1152, 4
      %v1155 = vshll.u32 %v941, 16
      %v1157 = vrot.slane %v1155, 5
      %v1158 = vor.u32 %v1154, %v1157
      %v1159 = vrot.slane %v1158, 4
      %v1161 = vshll.u32 %v942, 16
      %v1163 = vrot.slane %v1161, 5
      %v1164 = vsel %vm958, %v1159, %v1163
      %v1165 = vshrl.u32 %v942, 16
      %v1167 = vrot.slane %v1165, 4
      %v1168 = vor.u32 %v1167, %v1163
      %v1169 = vrot.slane %v1168, 4
      %v1171 = vshll.u32 %v954, 16
      %v1173 = vrot.slane %v1171, 5
      %v1174 = vsel %vm958, %v1169, %v1173
      %v1176 = vshrl.u32 %v943, 16
      %v1178 = vrot.slane %v1176, 4
      %v1179 = vshll.u32 %v943, 16
      %v1181 = vrot.slane %v1179, 5
      %v1182 = vor.u32 %v1178, %v1181
      %v1183 = vrot.slane %v1182, 4
      %v1185 = vshll.u32 %v944, 16
      %v1187 = vrot.slane %v1185, 5
      %v1188 = vsel %vm958, %v1183, %v1187
      %v1189 = vshrl.u32 %v944, 16
      %v1191 = vrot.slane %v1189, 4
      %v1192 = vor.u32 %v1191, %v1187
      %v1193 = vrot.slane %v1192, 4
      %v1195 = vshll.u32 %v955, 16
      %v1197 = vrot.slane %v1195, 5
      %v1198 = vsel %vm958, %v1193, %v1197
      %s1199 = scalar_lea.vmem %s3, 2
      %v1200 = vld [vmem:[%s1199] sm:$0x3]
      %v1201 = vunpack.c.l.b16 %v972
      %v1202 = vunpack.c.l.b16 %v982
      %v1203 = vunpack.c.l.b16 %v996
      %v1204 = vunpack.c.l.b16 %v1006
      %v1205 = vunpack.c.l.b16 %v1020
      %v1206 = vunpack.c.l.b16 %v1030
      %v1207 = vunpack.c.l.b16 %v1044
      %v1208 = vunpack.c.l.b16 %v1054
      %v1209 = vunpack.c.l.b16 %v1068
      %v1210 = vunpack.c.l.b16 %v1078
      %v1211 = vunpack.c.l.b16 %v1092
      %v1212 = vunpack.c.l.b16 %v1102
      %v1213 = vunpack.c.l.b16 %v1116
      %v1214 = vunpack.c.l.b16 %v1126
      %v1215 = vunpack.c.l.b16 %v1140
      %v1216 = vunpack.c.l.b16 %v1150
      %v1217 = vunpack.c.l.b16 %v1164
      %v1218 = vunpack.c.l.b16 %v1174
      %v1219 = vunpack.c.l.b16 %v1188
      %v1220 = vunpack.c.l.b16 %v1198
      %v1221 = vpack.c.b16 %v1202, %v1201
      %v1222 = vpack.c.b16 %v1204, %v1203
      %v1223 = vpack.c.b16 %v1206, %v1205
      %v1224 = vpack.c.b16 %v1208, %v1207
      %v1225 = vpack.c.b16 %v1210, %v1209
      %v1226 = vpack.c.b16 %v1212, %v1211
      %v1227 = vpack.c.b16 %v1214, %v1213
      %v1228 = vpack.c.b16 %v1216, %v1215
      %v1229 = vpack.c.b16 %v1218, %v1217
      %v1230 = vpack.c.b16 %v1220, %v1219
      %vm1231 = vcmask 31744
      %v1233 = vsel %vm1231, %v1221, 0
      %v1236 = vsel %vm1231, %v1222, 0
      %v1239 = vsel %vm1231, %v1223, 0
      %v1242 = vsel %vm1231, %v1224, 0
      %v1245 = vsel %vm1231, %v1225, 0
      %v1248 = vsel %vm1231, %v1226, 0
      %v1251 = vsel %vm1231, %v1227, 0
      %v1254 = vsel %vm1231, %v1228, 0
      %v1257 = vsel %vm1231, %v1229, 0
      %v1260 = vsel %vm1231, %v1230, 0
      %vm1262 = vcmask 1041408
      %v1264 = vsel %vm1262, %v1200, 0
      %1266 = vmatprep.subr.bf16.mxu0 0
      %1267 = vmatpush1.bf16.msra.mxu0 %v1264
      %1268 = vmatprep.subr.bf16.mxu0 0
      %1269 = vmatpush1.bf16.msra.mxu0 0
      %1270 = vmatprep.subr.bf16.mxu0 0
      %1271 = vmatpush1.bf16.msra.mxu0 0
      %1272 = vmatprep.subr.bf16.mxu0 0
      %1273 = vmatpush1.bf16.msra.mxu0 0
      %1274 = vmatprep.subr.bf16.mxu0 0
      %1275 = vmatpush1.bf16.msra.mxu0 0
      %1276 = vmatprep.subr.bf16.mxu0 0
      %1277 = vmatpush1.bf16.msra.mxu0 0
      %1278 = vmatprep.subr.bf16.mxu0 0
      %1279 = vmatpush1.bf16.msra.mxu0 0
      %1280 = vmatprep.subr.bf16.mxu0 0
      %1281 = vmatpush1.bf16.msra.mxu0 0
      %1282 = vmatprep.subr.bf16.mxu0 0
      %1283 = vmatpush1.bf16.msra.mxu0 0
      %1284 = vmatprep.subr.bf16.mxu0 0
      %1285 = vmatpush1.bf16.msra.mxu0 0
      %1286 = vmatprep.subr.bf16.mxu0 0
      %1287 = vmatpush1.bf16.msra.mxu0 0
      %1288 = vmatprep.subr.bf16.mxu0 0
      %1289 = vmatpush1.bf16.msra.mxu0 0
      %1290 = vmatprep.subr.bf16.mxu0 0
      %1291 = vmatpush1.bf16.msra.mxu0 0
      %1292 = vmatprep.subr.bf16.mxu0 0
      %1293 = vmatpush1.bf16.msra.mxu0 0
      %1294 = vmatprep.subr.bf16.mxu0 0
      %1295 = vmatpush1.bf16.msra.mxu0 0
      %1296 = vmatprep.subr.bf16.mxu0 0
      %1297 = vmatpush1.bf16.msra.mxu0 0
      %1298 = vmatprep.mubr.bf16.mxu0 0
      %1299 = vmatmul.mubr.bf16.gmra.mrb[0].mxu0 %v1233
      %v1300 = vpop.f32.mrb[0].mxu0
      %v1301 = vadd.f32 0.0, %v1300
      %v1302 = vpop.f32.mrb[0].mxu0
      %v1303 = vpop.f32.mrb[0].mxu0
      %v1304 = vadd.f32 0.0, %v1303
      %v1305 = vpop.f32.mrb[0].mxu0
      %1306 = vmatprep.mubr.bf16.mxu0 0
      %1307 = vmatmul.mubr.bf16.gmra.mrb[0].mxu0 %v1236
      %v1308 = vpop.f32.mrb[0].mxu0
      %v1309 = vadd.f32 0.0, %v1308
      %v1310 = vpop.f32.mrb[0].mxu0
      %v1311 = vpop.f32.mrb[0].mxu0
      %v1312 = vadd.f32 0.0, %v1311
      %v1313 = vpop.f32.mrb[0].mxu0
      %1314 = vmatprep.mubr.bf16.mxu0 0
      %1315 = vmatmul.mubr.bf16.gmra.mrb[0].mxu0 %v1239
      %v1316 = vpop.f32.mrb[0].mxu0
      %v1317 = vadd.f32 0.0, %v1316
      %v1318 = vpop.f32.mrb[0].mxu0
      %v1319 = vpop.f32.mrb[0].mxu0
      %v1320 = vadd.f32 0.0, %v1319
      %v1321 = vpop.f32.mrb[0].mxu0
      %1322 = vmatprep.mubr.bf16.mxu0 0
      %1323 = vmatmul.mubr.bf16.gmra.mrb[0].mxu0 %v1242
      %v1324 = vpop.f32.mrb[0].mxu0
      %v1325 = vadd.f32 0.0, %v1324
      %v1326 = vpop.f32.mrb[0].mxu0
      %v1327 = vpop.f32.mrb[0].mxu0
      %v1328 = vadd.f32 0.0, %v1327
      %v1329 = vpop.f32.mrb[0].mxu0
      %1330 = vmatprep.mubr.bf16.mxu0 0
      %1331 = vmatmul.mubr.bf16.gmra.mrb[0].mxu0 %v1245
      %v1332 = vpop.f32.mrb[0].mxu0
      %v1333 = vadd.f32 0.0, %v1332
      %v1334 = vpop.f32.mrb[0].mxu0
      %v1335 = vpop.f32.mrb[0].mxu0
      %v1336 = vadd.f32 0.0, %v1335
      %v1337 = vpop.f32.mrb[0].mxu0
      %1338 = vmatprep.mubr.bf16.mxu0 0
      %1339 = vmatmul.mubr.bf16.gmra.mrb[0].mxu0 %v1248
      %v1340 = vpop.f32.mrb[0].mxu0
      %v1341 = vadd.f32 0.0, %v1340
      %v1342 = vpop.f32.mrb[0].mxu0
      %v1343 = vpop.f32.mrb[0].mxu0
      %v1344 = vadd.f32 0.0, %v1343
      %v1345 = vpop.f32.mrb[0].mxu0
      %1346 = vmatprep.mubr.bf16.mxu0 0
      %1347 = vmatmul.mubr.bf16.gmra.mrb[0].mxu0 %v1251
      %v1348 = vpop.f32.mrb[0].mxu0
      %v1349 = vadd.f32 0.0, %v1348
      %v1350 = vpop.f32.mrb[0].mxu0
      %v1351 = vpop.f32.mrb[0].mxu0
      %v1352 = vadd.f32 0.0, %v1351
      %v1353 = vpop.f32.mrb[0].mxu0
      %1354 = vmatprep.mubr.bf16.mxu0 0
      %1355 = vmatmul.mubr.bf16.gmra.mrb[0].mxu0 %v1254
      %v1356 = vpop.f32.mrb[0].mxu0
      %v1357 = vadd.f32 0.0, %v1356
      %v1358 = vpop.f32.mrb[0].mxu0
      %v1359 = vpop.f32.mrb[0].mxu0
      %v1360 = vadd.f32 0.0, %v1359
      %v1361 = vpop.f32.mrb[0].mxu0
      %1362 = vmatprep.mubr.bf16.mxu0 0
      %1363 = vmatmul.mubr.bf16.gmra.mrb[0].mxu0 %v1257
      %v1364 = vpop.f32.mrb[0].mxu0
      %v1365 = vadd.f32 0.0, %v1364
      %v1366 = vpop.f32.mrb[0].mxu0
      %v1367 = vpop.f32.mrb[0].mxu0
      %v1368 = vadd.f32 0.0, %v1367
      %v1369 = vpop.f32.mrb[0].mxu0
      %1370 = vmatprep.mubr.bf16.mxu0 0
      %1371 = vmatmul.mubr.bf16.gmra.mrb[0].mxu0 %v1260
      %v1372 = vpop.f32.mrb[0].mxu0
      %v1373 = vadd.f32 0.0, %v1372
      %v1374 = vpop.f32.mrb[0].mxu0
      %v1375 = vpop.f32.mrb[0].mxu0
      %v1376 = vadd.f32 0.0, %v1375
      %v1377 = vpop.f32.mrb[0].mxu0
      %1378 = vdwg.mxu0
      %v1399 = vunpack.c.l.b16 %v925
      %v1400 = vunpack.c.l.b16 %v926
      %v1401 = vunpack.c.l.b16 %v927
      %v1402 = vunpack.c.l.b16 %v928
      %v1403 = vunpack.c.l.b16 %v929
      %v1404 = vunpack.c.l.b16 %v930
      %v1405 = vunpack.c.l.b16 %v931
      %v1406 = vunpack.c.l.b16 %v932
      %v1407 = vunpack.c.l.b16 %v933
      %v1408 = vunpack.c.l.b16 %v934
      %v1409 = vunpack.c.l.b16 %v935
      %v1410 = vunpack.c.l.b16 %v936
      %v1411 = vunpack.c.l.b16 %v937
      %v1412 = vunpack.c.l.b16 %v938
      %v1413 = vunpack.c.l.b16 %v939
      %v1414 = vunpack.c.l.b16 %v940
      %v1415 = vunpack.c.l.b16 %v941
      %v1416 = vunpack.c.l.b16 %v942
      %v1417 = vunpack.c.l.b16 %v943
      %v1418 = vunpack.c.l.b16 %v944
      %v1419 = vpack.c.b16 %v1400, %v1399
      %v1420 = vpack.c.b16 %v1402, %v1401
      %v1421 = vpack.c.b16 %v1404, %v1403
      %v1422 = vpack.c.b16 %v1406, %v1405
      %v1423 = vpack.c.b16 %v1408, %v1407
      %v1424 = vpack.c.b16 %v1410, %v1409
      %v1425 = vpack.c.b16 %v1412, %v1411
      %v1426 = vpack.c.b16 %v1414, %v1413
      %v1427 = vpack.c.b16 %v1416, %v1415
      %v1428 = vpack.c.b16 %v1418, %v1417
      %v1430 = vsel %vm1231, %v1419, 0
      %v1433 = vsel %vm1231, %v1420, 0
      %v1436 = vsel %vm1231, %v1421, 0
      %v1439 = vsel %vm1231, %v1422, 0
      %v1442 = vsel %vm1231, %v1423, 0
      %v1445 = vsel %vm1231, %v1424, 0
      %v1448 = vsel %vm1231, %v1425, 0
      %v1451 = vsel %vm1231, %v1426, 0
      %v1454 = vsel %vm1231, %v1427, 0
      %v1457 = vsel %vm1231, %v1428, 0
      %v1460 = vsel %vm1262, %v945, 0
      %1462 = vmatprep.subr.bf16.mxu0 0
      %1463 = vmatpush1.bf16.msra.mxu0 %v1460
      %1464 = vmatprep.subr.bf16.mxu0 0
      %1465 = vmatpush1.bf16.msra.mxu0 0
      %1466 = vmatprep.subr.bf16.mxu0 0
      %1467 = vmatpush1.bf16.msra.mxu0 0
      %1468 = vmatprep.subr.bf16.mxu0 0
      %1469 = vmatpush1.bf16.msra.mxu0 0
      %1470 = vmatprep.subr.bf16.mxu0 0
      %1471 = vmatpush1.bf16.msra.mxu0 0
      %1472 = vmatprep.subr.bf16.mxu0 0
      %1473 = vmatpush1.bf16.msra.mxu0 0
      %1474 = vmatprep.subr.bf16.mxu0 0
      %1475 = vmatpush1.bf16.msra.mxu0 0
      %1476 = vmatprep.subr.bf16.mxu0 0
      %1477 = vmatpush1.bf16.msra.mxu0 0
      %1478 = vmatprep.subr.bf16.mxu0 0
      %1479 = vmatpush1.bf16.msra.mxu0 0
      %1480 = vmatprep.subr.bf16.mxu0 0
      %1481 = vmatpush1.bf16.msra.mxu0 0
      %1482 = vmatprep.subr.bf16.mxu0 0
      %1483 = vmatpush1.bf16.msra.mxu0 0
      %1484 = vmatprep.subr.bf16.mxu0 0
      %1485 = vmatpush1.bf16.msra.mxu0 0
      %1486 = vmatprep.subr.bf16.mxu0 0
      %1487 = vmatpush1.bf16.msra.mxu0 0
      %1488 = vmatprep.subr.bf16.mxu0 0
      %1489 = vmatpush1.bf16.msra.mxu0 0
      %1490 = vmatprep.subr.bf16.mxu0 0
      %1491 = vmatpush1.bf16.msra.mxu0 0
      %1492 = vmatprep.subr.bf16.mxu0 0
      %1493 = vmatpush1.bf16.msra.mxu0 0
      %1494 = vmatprep.mubr.bf16.mxu0 0
      %1495 = vmatmul.mubr.bf16.gmra.mrb[0].mxu0 %v1430
      %v1496 = vpop.f32.mrb[0].mxu0
      %v1497 = vadd.f32 %v1301, %v1496
      %v1498 = vpop.f32.mrb[0].mxu0
      %v1499 = vpop.f32.mrb[0].mxu0
      %v1500 = vadd.f32 %v1304, %v1499
      %v1501 = vpop.f32.mrb[0].mxu0
      %1502 = vmatprep.mubr.bf16.mxu0 0
      %1503 = vmatmul.mubr.bf16.gmra.mrb[0].mxu0 %v1433
      %v1504 = vpop.f32.mrb[0].mxu0
      %v1505 = vadd.f32 %v1309, %v1504
      %v1506 = vpop.f32.mrb[0].mxu0
      %v1507 = vpop.f32.mrb[0].mxu0
      %v1508 = vadd.f32 %v1312, %v1507
      %v1509 = vpop.f32.mrb[0].mxu0
      %1510 = vmatprep.mubr.bf16.mxu0 0
      %1511 = vmatmul.mubr.bf16.gmra.mrb[0].mxu0 %v1436
      %v1512 = vpop.f32.mrb[0].mxu0
      %v1513 = vadd.f32 %v1317, %v1512
      %v1514 = vpop.f32.mrb[0].mxu0
      %v1515 = vpop.f32.mrb[0].mxu0
      %v1516 = vadd.f32 %v1320, %v1515
      %v1517 = vpop.f32.mrb[0].mxu0
      %1518 = vmatprep.mubr.bf16.mxu0 0
      %1519 = vmatmul.mubr.bf16.gmra.mrb[0].mxu0 %v1439
      %v1520 = vpop.f32.mrb[0].mxu0
      %v1521 = vadd.f32 %v1325, %v1520
      %v1522 = vpop.f32.mrb[0].mxu0
      %v1523 = vpop.f32.mrb[0].mxu0
      %v1524 = vadd.f32 %v1328, %v1523
      %v1525 = vpop.f32.mrb[0].mxu0
      %1526 = vmatprep.mubr.bf16.mxu0 0
      %1527 = vmatmul.mubr.bf16.gmra.mrb[0].mxu0 %v1442
      %v1528 = vpop.f32.mrb[0].mxu0
      %v1529 = vadd.f32 %v1333, %v1528
      %v1530 = vpop.f32.mrb[0].mxu0
      %v1531 = vpop.f32.mrb[0].mxu0
      %v1532 = vadd.f32 %v1336, %v1531
      %v1533 = vpop.f32.mrb[0].mxu0
      %1534 = vmatprep.mubr.bf16.mxu0 0
      %1535 = vmatmul.mubr.bf16.gmra.mrb[0].mxu0 %v1445
      %v1536 = vpop.f32.mrb[0].mxu0
      %v1537 = vadd.f32 %v1341, %v1536
      %v1538 = vpop.f32.mrb[0].mxu0
      %v1539 = vpop.f32.mrb[0].mxu0
      %v1540 = vadd.f32 %v1344, %v1539
      %v1541 = vpop.f32.mrb[0].mxu0
      %1542 = vmatprep.mubr.bf16.mxu0 0
      %1543 = vmatmul.mubr.bf16.gmra.mrb[0].mxu0 %v1448
      %v1544 = vpop.f32.mrb[0].mxu0
      %v1545 = vadd.f32 %v1349, %v1544
      %v1546 = vpop.f32.mrb[0].mxu0
      %v1547 = vpop.f32.mrb[0].mxu0
      %v1548 = vadd.f32 %v1352, %v1547
      %v1549 = vpop.f32.mrb[0].mxu0
      %1550 = vmatprep.mubr.bf16.mxu0 0
      %1551 = vmatmul.mubr.bf16.gmra.mrb[0].mxu0 %v1451
      %v1552 = vpop.f32.mrb[0].mxu0
      %v1553 = vadd.f32 %v1357, %v1552
      %v1554 = vpop.f32.mrb[0].mxu0
      %v1555 = vpop.f32.mrb[0].mxu0
      %v1556 = vadd.f32 %v1360, %v1555
      %v1557 = vpop.f32.mrb[0].mxu0
      %1558 = vmatprep.mubr.bf16.mxu0 0
      %1559 = vmatmul.mubr.bf16.gmra.mrb[0].mxu0 %v1454
      %v1560 = vpop.f32.mrb[0].mxu0
      %v1561 = vadd.f32 %v1365, %v1560
      %v1562 = vpop.f32.mrb[0].mxu0
      %v1563 = vpop.f32.mrb[0].mxu0
      %v1564 = vadd.f32 %v1368, %v1563
      %v1565 = vpop.f32.mrb[0].mxu0
      %1566 = vmatprep.mubr.bf16.mxu0 0
      %1567 = vmatmul.mubr.bf16.gmra.mrb[0].mxu0 %v1457
      %v1568 = vpop.f32.mrb[0].mxu0
      %v1569 = vadd.f32 %v1373, %v1568
      %v1570 = vpop.f32.mrb[0].mxu0
      %v1571 = vpop.f32.mrb[0].mxu0
      %v1572 = vadd.f32 %v1376, %v1571
      %v1573 = vpop.f32.mrb[0].mxu0
      %1574 = vdwg.mxu0
      %v1575 = vld [vmem:[#allocation2] sm:$0xe]
      %v1576 = vld [vmem:[#allocation2 + $0xc] sm:$0xe]
      %v1577 = vld [vmem:[#allocation2 + $0x18] sm:$0xe]
      %v1578 = vld [vmem:[#allocation2 + $0x24] sm:$0xe]
      %v1579 = vld [vmem:[#allocation2 + $0x30] sm:$0xe]
      %v1580 = vld [vmem:[#allocation2 + $0x3c] sm:$0xe]
      %v1581 = vld [vmem:[#allocation2 + $0x48] sm:$0xe]
      %v1582 = vld [vmem:[#allocation2 + $0x54] sm:$0xe]
      %v1583 = vld [vmem:[#allocation2 + $0x60] sm:$0xe]
      %v1584 = vld [vmem:[#allocation2 + $0x6c] sm:$0xe]
      %vm1605 = vcmask 1042432
      %vm1606 = vcmask 1046532
      %vm1607 = vmor %vm1605, %vm1606
      %v1608 = vrot.slane %v1575, 5
      %v1609 = vrot.slane %v1608, 4
      %v1610 = vrot.slane %v926, 5
      %v1611 = vsel %vm1607, %v1609, %v1610
      %v1612 = vrot.slane %v1610, 4
      %v1613 = vrot.slane %v946, 5
      %v1614 = vsel %vm1607, %v1612, %v1613
      %v1615 = vrot.slane %v1576, 5
      %v1616 = vrot.slane %v1615, 4
      %v1617 = vrot.slane %v928, 5
      %v1618 = vsel %vm1607, %v1616, %v1617
      %v1619 = vrot.slane %v1617, 4
      %v1620 = vrot.slane %v947, 5
      %v1621 = vsel %vm1607, %v1619, %v1620
      %v1622 = vrot.slane %v1577, 5
      %v1623 = vrot.slane %v1622, 4
      %v1624 = vrot.slane %v930, 5
      %v1625 = vsel %vm1607, %v1623, %v1624
      %v1626 = vrot.slane %v1624, 4
      %v1627 = vrot.slane %v948, 5
      %v1628 = vsel %vm1607, %v1626, %v1627
      %v1629 = vrot.slane %v1578, 5
      %v1630 = vrot.slane %v1629, 4
      %v1631 = vrot.slane %v932, 5
      %v1632 = vsel %vm1607, %v1630, %v1631
      %v1633 = vrot.slane %v1631, 4
      %v1634 = vrot.slane %v949, 5
      %v1635 = vsel %vm1607, %v1633, %v1634
      %v1636 = vrot.slane %v1579, 5
      %v1637 = vrot.slane %v1636, 4
      %v1638 = vrot.slane %v934, 5
      %v1639 = vsel %vm1607, %v1637, %v1638
      %v1640 = vrot.slane %v1638, 4
      %v1641 = vrot.slane %v950, 5
      %v1642 = vsel %vm1607, %v1640, %v1641
      %v1643 = vrot.slane %v1580, 5
      %v1644 = vrot.slane %v1643, 4
      %v1645 = vrot.slane %v936, 5
      %v1646 = vsel %vm1607, %v1644, %v1645
      %v1647 = vrot.slane %v1645, 4
      %v1648 = vrot.slane %v951, 5
      %v1649 = vsel %vm1607, %v1647, %v1648
      %v1650 = vrot.slane %v1581, 5
      %v1651 = vrot.slane %v1650, 4
      %v1652 = vrot.slane %v938, 5
      %v1653 = vsel %vm1607, %v1651, %v1652
      %v1654 = vrot.slane %v1652, 4
      %v1655 = vrot.slane %v952, 5
      %v1656 = vsel %vm1607, %v1654, %v1655
      %v1657 = vrot.slane %v1582, 5
      %v1658 = vrot.slane %v1657, 4
      %v1659 = vrot.slane %v940, 5
      %v1660 = vsel %vm1607, %v1658, %v1659
      %v1661 = vrot.slane %v1659, 4
      %v1662 = vrot.slane %v953, 5
      %v1663 = vsel %vm1607, %v1661, %v1662
      %v1664 = vrot.slane %v1583, 5
      %v1665 = vrot.slane %v1664, 4
      %v1666 = vrot.slane %v942, 5
      %v1667 = vsel %vm1607, %v1665, %v1666
      %v1668 = vrot.slane %v1666, 4
      %v1669 = vrot.slane %v954, 5
      %v1670 = vsel %vm1607, %v1668, %v1669
      %v1671 = vrot.slane %v1584, 5
      %v1672 = vrot.slane %v1671, 4
      %v1673 = vrot.slane %v944, 5
      %v1674 = vsel %vm1607, %v1672, %v1673
      %v1675 = vrot.slane %v1673, 4
      %v1676 = vrot.slane %v955, 5
      %v1677 = vsel %vm1607, %v1675, %v1676
      %s1678 = scalar_lea.vmem %s3, 4
      %v1679 = vld [vmem:[%s1678] sm:$0x3]
      %v1680 = vunpack.c.l.b16 %v1611
      %v1681 = vunpack.c.l.b16 %v1614
      %v1682 = vunpack.c.l.b16 %v1618
      %v1683 = vunpack.c.l.b16 %v1621
      %v1684 = vunpack.c.l.b16 %v1625
      %v1685 = vunpack.c.l.b16 %v1628
      %v1686 = vunpack.c.l.b16 %v1632
      %v1687 = vunpack.c.l.b16 %v1635
      %v1688 = vunpack.c.l.b16 %v1639
      %v1689 = vunpack.c.l.b16 %v1642
      %v1690 = vunpack.c.l.b16 %v1646
      %v1691 = vunpack.c.l.b16 %v1649
      %v1692 = vunpack.c.l.b16 %v1653
      %v1693 = vunpack.c.l.b16 %v1656
      %v1694 = vunpack.c.l.b16 %v1660
      %v1695 = vunpack.c.l.b16 %v1663
      %v1696 = vunpack.c.l.b16 %v1667
      %v1697 = vunpack.c.l.b16 %v1670
      %v1698 = vunpack.c.l.b16 %v1674
      %v1699 = vunpack.c.l.b16 %v1677
      %v1700 = vpack.c.b16 %v1681, %v1680
      %v1701 = vpack.c.b16 %v1683, %v1682
      %v1702 = vpack.c.b16 %v1685, %v1684
      %v1703 = vpack.c.b16 %v1687, %v1686
      %v1704 = vpack.c.b16 %v1689, %v1688
      %v1705 = vpack.c.b16 %v1691, %v1690
      %v1706 = vpack.c.b16 %v1693, %v1692
      %v1707 = vpack.c.b16 %v1695, %v1694
      %v1708 = vpack.c.b16 %v1697, %v1696
      %v1709 = vpack.c.b16 %v1699, %v1698
      %v1711 = vsel %vm1231, %v1700, 0
      %v1714 = vsel %vm1231, %v1701, 0
      %v1717 = vsel %vm1231, %v1702, 0
      %v1720 = vsel %vm1231, %v1703, 0
      %v1723 = vsel %vm1231, %v1704, 0
      %v1726 = vsel %vm1231, %v1705, 0
      %v1729 = vsel %vm1231, %v1706, 0
      %v1732 = vsel %vm1231, %v1707, 0
      %v1735 = vsel %vm1231, %v1708, 0
      %v1738 = vsel %vm1231, %v1709, 0
      %v1741 = vsel %vm1262, %v1679, 0
      %1743 = vmatprep.subr.bf16.mxu0 0
      %1744 = vmatpush1.bf16.msra.mxu0 %v1741
      %1745 = vmatprep.subr.bf16.mxu0 0
      %1746 = vmatpush1.bf16.msra.mxu0 0
      %1747 = vmatprep.subr.bf16.mxu0 0
      %1748 = vmatpush1.bf16.msra.mxu0 0
      %1749 = vmatprep.subr.bf16.mxu0 0
      %1750 = vmatpush1.bf16.msra.mxu0 0
      %1751 = vmatprep.subr.bf16.mxu0 0
      %1752 = vmatpush1.bf16.msra.mxu0 0
      %1753 = vmatprep.subr.bf16.mxu0 0
      %1754 = vmatpush1.bf16.msra.mxu0 0
      %1755 = vmatprep.subr.bf16.mxu0 0
      %1756 = vmatpush1.bf16.msra.mxu0 0
      %1757 = vmatprep.subr.bf16.mxu0 0
      %1758 = vmatpush1.bf16.msra.mxu0 0
      %1759 = vmatprep.subr.bf16.mxu0 0
      %1760 = vmatpush1.bf16.msra.mxu0 0
      %1761 = vmatprep.subr.bf16.mxu0 0
      %1762 = vmatpush1.bf16.msra.mxu0 0
      %1763 = vmatprep.subr.bf16.mxu0 0
      %1764 = vmatpush1.bf16.msra.mxu0 0
      %1765 = vmatprep.subr.bf16.mxu0 0
      %1766 = vmatpush1.bf16.msra.mxu0 0
      %1767 = vmatprep.subr.bf16.mxu0 0
      %1768 = vmatpush1.bf16.msra.mxu0 0
      %1769 = vmatprep.subr.bf16.mxu0 0
      %1770 = vmatpush1.bf16.msra.mxu0 0
      %1771 = vmatprep.subr.bf16.mxu0 0
      %1772 = vmatpush1.bf16.msra.mxu0 0
      %1773 = vmatprep.subr.bf16.mxu0 0
      %1774 = vmatpush1.bf16.msra.mxu0 0
      %1775 = vmatprep.mubr.bf16.mxu0 0
      %1776 = vmatmul.mubr.bf16.gmra.mrb[0].mxu0 %v1711
      %v1777 = vpop.f32.mrb[0].mxu0
      %v1778 = vadd.f32 0.0, %v1777
      %v1779 = vpop.f32.mrb[0].mxu0
      %v1780 = vpop.f32.mrb[0].mxu0
      %v1781 = vadd.f32 0.0, %v1780
      %v1782 = vpop.f32.mrb[0].mxu0
      %1783 = vmatprep.mubr.bf16.mxu0 0
      %1784 = vmatmul.mubr.bf16.gmra.mrb[0].mxu0 %v1714
      %v1785 = vpop.f32.mrb[0].mxu0
      %v1786 = vadd.f32 0.0, %v1785
      %v1787 = vpop.f32.mrb[0].mxu0
      %v1788 = vpop.f32.mrb[0].mxu0
      %v1789 = vadd.f32 0.0, %v1788
      %v1790 = vpop.f32.mrb[0].mxu0
      %1791 = vmatprep.mubr.bf16.mxu0 0
      %1792 = vmatmul.mubr.bf16.gmra.mrb[0].mxu0 %v1717
      %v1793 = vpop.f32.mrb[0].mxu0
      %v1794 = vadd.f32 0.0, %v1793
      %v1795 = vpop.f32.mrb[0].mxu0
      %v1796 = vpop.f32.mrb[0].mxu0
      %v1797 = vadd.f32 0.0, %v1796
      %v1798 = vpop.f32.mrb[0].mxu0
      %1799 = vmatprep.mubr.bf16.mxu0 0
      %1800 = vmatmul.mubr.bf16.gmra.mrb[0].mxu0 %v1720
      %v1801 = vpop.f32.mrb[0].mxu0
      %v1802 = vadd.f32 0.0, %v1801
      %v1803 = vpop.f32.mrb[0].mxu0
      %v1804 = vpop.f32.mrb[0].mxu0
      %v1805 = vadd.f32 0.0, %v1804
      %v1806 = vpop.f32.mrb[0].mxu0
      %1807 = vmatprep.mubr.bf16.mxu0 0
      %1808 = vmatmul.mubr.bf16.gmra.mrb[0].mxu0 %v1723
      %v1809 = vpop.f32.mrb[0].mxu0
      %v1810 = vadd.f32 0.0, %v1809
      %v1811 = vpop.f32.mrb[0].mxu0
      %v1812 = vpop.f32.mrb[0].mxu0
      %v1813 = vadd.f32 0.0, %v1812
      %v1814 = vpop.f32.mrb[0].mxu0
      %1815 = vmatprep.mubr.bf16.mxu0 0
      %1816 = vmatmul.mubr.bf16.gmra.mrb[0].mxu0 %v1726
      %v1817 = vpop.f32.mrb[0].mxu0
      %v1818 = vadd.f32 0.0, %v1817
      %v1819 = vpop.f32.mrb[0].mxu0
      %v1820 = vpop.f32.mrb[0].mxu0
      %v1821 = vadd.f32 0.0, %v1820
      %v1822 = vpop.f32.mrb[0].mxu0
      %1823 = vmatprep.mubr.bf16.mxu0 0
      %1824 = vmatmul.mubr.bf16.gmra.mrb[0].mxu0 %v1729
      %v1825 = vpop.f32.mrb[0].mxu0
      %v1826 = vadd.f32 0.0, %v1825
      %v1827 = vpop.f32.mrb[0].mxu0
      %v1828 = vpop.f32.mrb[0].mxu0
      %v1829 = vadd.f32 0.0, %v1828
      %v1830 = vpop.f32.mrb[0].mxu0
      %1831 = vmatprep.mubr.bf16.mxu0 0
      %1832 = vmatmul.mubr.bf16.gmra.mrb[0].mxu0 %v1732
      %v1833 = vpop.f32.mrb[0].mxu0
      %v1834 = vadd.f32 0.0, %v1833
      %v1835 = vpop.f32.mrb[0].mxu0
      %v1836 = vpop.f32.mrb[0].mxu0
      %v1837 = vadd.f32 0.0, %v1836
      %v1838 = vpop.f32.mrb[0].mxu0
      %1839 = vmatprep.mubr.bf16.mxu0 0
      %1840 = vmatmul.mubr.bf16.gmra.mrb[0].mxu0 %v1735
      %v1841 = vpop.f32.mrb[0].mxu0
      %v1842 = vadd.f32 0.0, %v1841
      %v1843 = vpop.f32.mrb[0].mxu0
      %v1844 = vpop.f32.mrb[0].mxu0
      %v1845 = vadd.f32 0.0, %v1844
      %v1846 = vpop.f32.mrb[0].mxu0
      %1847 = vmatprep.mubr.bf16.mxu0 0
      %1848 = vmatmul.mubr.bf16.gmra.mrb[0].mxu0 %v1738
      %v1849 = vpop.f32.mrb[0].mxu0
      %v1850 = vadd.f32 0.0, %v1849
      %v1851 = vpop.f32.mrb[0].mxu0
      %v1852 = vpop.f32.mrb[0].mxu0
      %v1853 = vadd.f32 0.0, %v1852
      %v1854 = vpop.f32.mrb[0].mxu0
      %1855 = vdwg.mxu0
      %v1856 = vadd.f32 %v1497, %v1778
      %v1857 = vadd.f32 %v1500, %v1781
      %v1858 = vadd.f32 %v1505, %v1786
      %v1859 = vadd.f32 %v1508, %v1789
      %v1860 = vadd.f32 %v1513, %v1794
      %v1861 = vadd.f32 %v1516, %v1797
      %v1862 = vadd.f32 %v1521, %v1802
      %v1863 = vadd.f32 %v1524, %v1805
      %v1864 = vadd.f32 %v1529, %v1810
      %v1865 = vadd.f32 %v1532, %v1813
      %v1866 = vadd.f32 %v1537, %v1818
      %v1867 = vadd.f32 %v1540, %v1821
      %v1868 = vadd.f32 %v1545, %v1826
      %v1869 = vadd.f32 %v1548, %v1829
      %v1870 = vadd.f32 %v1553, %v1834
      %v1871 = vadd.f32 %v1556, %v1837
      %v1872 = vadd.f32 %v1561, %v1842
      %v1873 = vadd.f32 %v1564, %v1845
      %v1874 = vadd.f32 %v1569, %v1850
      %v1875 = vadd.f32 %v1572, %v1853
      %s1876 = scalar_lea.vmem [#allocation2], 12
      %v1877 = vld [vmem:[%s1876] sm:$0xf]
      %v1878 = vld [vmem:[%s1876 + $0x4] sm:$0xf]
      %v1879 = vld [vmem:[%s1876 + $0xc] sm:$0xf]
      %v1880 = vld [vmem:[%s1876 + $0x10] sm:$0xf]
      %v1881 = vld [vmem:[%s1876 + $0x18] sm:$0xf]
      %v1882 = vld [vmem:[%s1876 + $0x1c] sm:$0xf]
      %v1883 = vld [vmem:[%s1876 + $0x24] sm:$0xf]
      %v1884 = vld [vmem:[%s1876 + $0x28] sm:$0xf]
      %v1885 = vld [vmem:[%s1876 + $0x30] sm:$0xf]
      %v1886 = vld [vmem:[%s1876 + $0x34] sm:$0xf]
      %v1887 = vld [vmem:[%s1876 + $0x3c] sm:$0xf]
      %v1888 = vld [vmem:[%s1876 + $0x40] sm:$0xf]
      %v1889 = vld [vmem:[%s1876 + $0x48] sm:$0xf]
      %v1890 = vld [vmem:[%s1876 + $0x4c] sm:$0xf]
      %v1891 = vld [vmem:[%s1876 + $0x54] sm:$0xf]
      %v1892 = vld [vmem:[%s1876 + $0x58] sm:$0xf]
      %v1893 = vld [vmem:[%s1876 + $0x60] sm:$0xf]
      %v1894 = vld [vmem:[%s1876 + $0x64] sm:$0xf]
      %v1895 = vld [vmem:[%s1876 + $0x6c] sm:$0xf]
      %v1896 = vld [vmem:[%s1876 + $0x70] sm:$0xf]
      %s1897 = scalar_lea.vmem %s3, 6
      %v1898 = vld [vmem:[%s1897] sm:$0x3]
      %v1919 = vunpack.c.l.b16 %v1877
      %v1920 = vunpack.c.l.b16 %v1878
      %v1921 = vunpack.c.l.b16 %v1879
      %v1922 = vunpack.c.l.b16 %v1880
      %v1923 = vunpack.c.l.b16 %v1881
      %v1924 = vunpack.c.l.b16 %v1882
      %v1925 = vunpack.c.l.b16 %v1883
      %v1926 = vunpack.c.l.b16 %v1884
      %v1927 = vunpack.c.l.b16 %v1885
      %v1928 = vunpack.c.l.b16 %v1886
      %v1929 = vunpack.c.l.b16 %v1887
      %v1930 = vunpack.c.l.b16 %v1888
      %v1931 = vunpack.c.l.b16 %v1889
      %v1932 = vunpack.c.l.b16 %v1890
      %v1933 = vunpack.c.l.b16 %v1891
      %v1934 = vunpack.c.l.b16 %v1892
      %v1935 = vunpack.c.l.b16 %v1893
      %v1936 = vunpack.c.l.b16 %v1894
      %v1937 = vunpack.c.l.b16 %v1895
      %v1938 = vunpack.c.l.b16 %v1896
      %v1939 = vpack.c.b16 %v1920, %v1919
      %v1940 = vpack.c.b16 %v1922, %v1921
      %v1941 = vpack.c.b16 %v1924, %v1923
      %v1942 = vpack.c.b16 %v1926, %v1925
      %v1943 = vpack.c.b16 %v1928, %v1927
      %v1944 = vpack.c.b16 %v1930, %v1929
      %v1945 = vpack.c.b16 %v1932, %v1931
      %v1946 = vpack.c.b16 %v1934, %v1933
      %v1947 = vpack.c.b16 %v1936, %v1935
      %v1948 = vpack.c.b16 %v1938, %v1937
      %v1950 = vsel %vm1231, %v1939, 0
      %v1953 = vsel %vm1231, %v1940, 0
      %v1956 = vsel %vm1231, %v1941, 0
      %v1959 = vsel %vm1231, %v1942, 0
      %v1962 = vsel %vm1231, %v1943, 0
      %v1965 = vsel %vm1231, %v1944, 0
      %v1968 = vsel %vm1231, %v1945, 0
      %v1971 = vsel %vm1231, %v1946, 0
      %v1974 = vsel %vm1231, %v1947, 0
      %v1977 = vsel %vm1231, %v1948, 0
      %v1980 = vsel %vm1262, %v1898, 0
      %1982 = vmatprep.subr.bf16.mxu0 0
      %1983 = vmatpush1.bf16.msra.mxu0 %v1980
      %1984 = vmatprep.subr.bf16.mxu0 0
      %1985 = vmatpush1.bf16.msra.mxu0 0
      %1986 = vmatprep.subr.bf16.mxu0 0
      %1987 = vmatpush1.bf16.msra.mxu0 0
      %1988 = vmatprep.subr.bf16.mxu0 0
      %1989 = vmatpush1.bf16.msra.mxu0 0
      %1990 = vmatprep.subr.bf16.mxu0 0
      %1991 = vmatpush1.bf16.msra.mxu0 0
      %1992 = vmatprep.subr.bf16.mxu0 0
      %1993 = vmatpush1.bf16.msra.mxu0 0
      %1994 = vmatprep.subr.bf16.mxu0 0
      %1995 = vmatpush1.bf16.msra.mxu0 0
      %1996 = vmatprep.subr.bf16.mxu0 0
      %1997 = vmatpush1.bf16.msra.mxu0 0
      %1998 = vmatprep.subr.bf16.mxu0 0
      %1999 = vmatpush1.bf16.msra.mxu0 0
      %2000 = vmatprep.subr.bf16.mxu0 0
      %2001 = vmatpush1.bf16.msra.mxu0 0
      %2002 = vmatprep.subr.bf16.mxu0 0
      %2003 = vmatpush1.bf16.msra.mxu0 0
      %2004 = vmatprep.subr.bf16.mxu0 0
      %2005 = vmatpush1.bf16.msra.mxu0 0
      %2006 = vmatprep.subr.bf16.mxu0 0
      %2007 = vmatpush1.bf16.msra.mxu0 0
      %2008 = vmatprep.subr.bf16.mxu0 0
      %2009 = vmatpush1.bf16.msra.mxu0 0
      %2010 = vmatprep.subr.bf16.mxu0 0
      %2011 = vmatpush1.bf16.msra.mxu0 0
      %2012 = vmatprep.subr.bf16.mxu0 0
      %2013 = vmatpush1.bf16.msra.mxu0 0
      %2014 = vmatprep.mubr.bf16.mxu0 0
      %2015 = vmatmul.mubr.bf16.gmra.mrb[0].mxu0 %v1950
      %v2016 = vpop.f32.mrb[0].mxu0
      %v2017 = vadd.f32 0.0, %v2016
      %v2018 = vpop.f32.mrb[0].mxu0
      %v2019 = vpop.f32.mrb[0].mxu0
      %v2020 = vadd.f32 0.0, %v2019
      %v2021 = vpop.f32.mrb[0].mxu0
      %2022 = vmatprep.mubr.bf16.mxu0 0
      %2023 = vmatmul.mubr.bf16.gmra.mrb[0].mxu0 %v1953
      %v2024 = vpop.f32.mrb[0].mxu0
      %v2025 = vadd.f32 0.0, %v2024
      %v2026 = vpop.f32.mrb[0].mxu0
      %v2027 = vpop.f32.mrb[0].mxu0
      %v2028 = vadd.f32 0.0, %v2027
      %v2029 = vpop.f32.mrb[0].mxu0
      %2030 = vmatprep.mubr.bf16.mxu0 0
      %2031 = vmatmul.mubr.bf16.gmra.mrb[0].mxu0 %v1956
      %v2032 = vpop.f32.mrb[0].mxu0
      %v2033 = vadd.f32 0.0, %v2032
      %v2034 = vpop.f32.mrb[0].mxu0
      %v2035 = vpop.f32.mrb[0].mxu0
      %v2036 = vadd.f32 0.0, %v2035
      %v2037 = vpop.f32.mrb[0].mxu0
      %2038 = vmatprep.mubr.bf16.mxu0 0
      %2039 = vmatmul.mubr.bf16.gmra.mrb[0].mxu0 %v1959
      %v2040 = vpop.f32.mrb[0].mxu0
      %v2041 = vadd.f32 0.0, %v2040
      %v2042 = vpop.f32.mrb[0].mxu0
      %v2043 = vpop.f32.mrb[0].mxu0
      %v2044 = vadd.f32 0.0, %v2043
      %v2045 = vpop.f32.mrb[0].mxu0
      %2046 = vmatprep.mubr.bf16.mxu0 0
      %2047 = vmatmul.mubr.bf16.gmra.mrb[0].mxu0 %v1962
      %v2048 = vpop.f32.mrb[0].mxu0
      %v2049 = vadd.f32 0.0, %v2048
      %v2050 = vpop.f32.mrb[0].mxu0
      %v2051 = vpop.f32.mrb[0].mxu0
      %v2052 = vadd.f32 0.0, %v2051
      %v2053 = vpop.f32.mrb[0].mxu0
      %2054 = vmatprep.mubr.bf16.mxu0 0
      %2055 = vmatmul.mubr.bf16.gmra.mrb[0].mxu0 %v1965
      %v2056 = vpop.f32.mrb[0].mxu0
      %v2057 = vadd.f32 0.0, %v2056
      %v2058 = vpop.f32.mrb[0].mxu0
      %v2059 = vpop.f32.mrb[0].mxu0
      %v2060 = vadd.f32 0.0, %v2059
      %v2061 = vpop.f32.mrb[0].mxu0
      %2062 = vmatprep.mubr.bf16.mxu0 0
      %2063 = vmatmul.mubr.bf16.gmra.mrb[0].mxu0 %v1968
      %v2064 = vpop.f32.mrb[0].mxu0
      %v2065 = vadd.f32 0.0, %v2064
      %v2066 = vpop.f32.mrb[0].mxu0
      %v2067 = vpop.f32.mrb[0].mxu0
      %v2068 = vadd.f32 0.0, %v2067
      %v2069 = vpop.f32.mrb[0].mxu0
      %2070 = vmatprep.mubr.bf16.mxu0 0
      %2071 = vmatmul.mubr.bf16.gmra.mrb[0].mxu0 %v1971
      %v2072 = vpop.f32.mrb[0].mxu0
      %v2073 = vadd.f32 0.0, %v2072
      %v2074 = vpop.f32.mrb[0].mxu0
      %v2075 = vpop.f32.mrb[0].mxu0
      %v2076 = vadd.f32 0.0, %v2075
      %v2077 = vpop.f32.mrb[0].mxu0
      %2078 = vmatprep.mubr.bf16.mxu0 0
      %2079 = vmatmul.mubr.bf16.gmra.mrb[0].mxu0 %v1974
      %v2080 = vpop.f32.mrb[0].mxu0
      %v2081 = vadd.f32 0.0, %v2080
      %v2082 = vpop.f32.mrb[0].mxu0
      %v2083 = vpop.f32.mrb[0].mxu0
      %v2084 = vadd.f32 0.0, %v2083
      %v2085 = vpop.f32.mrb[0].mxu0
      %2086 = vmatprep.mubr.bf16.mxu0 0
      %2087 = vmatmul.mubr.bf16.gmra.mrb[0].mxu0 %v1977
      %v2088 = vpop.f32.mrb[0].mxu0
      %v2089 = vadd.f32 0.0, %v2088
      %v2090 = vpop.f32.mrb[0].mxu0
      %v2091 = vpop.f32.mrb[0].mxu0
      %v2092 = vadd.f32 0.0, %v2091
      %v2093 = vpop.f32.mrb[0].mxu0
      %2094 = vdwg.mxu0
      %v2095 = vadd.f32 %v1856, %v2017
      %v2096 = vadd.f32 %v1857, %v2020
      %v2097 = vadd.f32 %v1858, %v2025
      %v2098 = vadd.f32 %v1859, %v2028
      %v2099 = vadd.f32 %v1860, %v2033
      %v2100 = vadd.f32 %v1861, %v2036
      %v2101 = vadd.f32 %v1862, %v2041
      %v2102 = vadd.f32 %v1863, %v2044
      %v2103 = vadd.f32 %v1864, %v2049
      %v2104 = vadd.f32 %v1865, %v2052
      %v2105 = vadd.f32 %v1866, %v2057
      %v2106 = vadd.f32 %v1867, %v2060
      %v2107 = vadd.f32 %v1868, %v2065
      %v2108 = vadd.f32 %v1869, %v2068
      %v2109 = vadd.f32 %v1870, %v2073
      %v2110 = vadd.f32 %v1871, %v2076
      %v2111 = vadd.f32 %v1872, %v2081
      %v2112 = vadd.f32 %v1873, %v2084
      %v2113 = vadd.f32 %v1874, %v2089
      %v2114 = vadd.f32 %v1875, %v2092
      %v2115 = vld [vmem:[%s1876] sm:$0xf]
      %v2116 = vld [vmem:[%s1876 + $0x4] sm:$0xf]
      %v2117 = vld [vmem:[%s1876 + $0x8] sm:$0x1]
      %v2118 = vld [vmem:[%s1876 + $0xc] sm:$0xf]
      %v2119 = vld [vmem:[%s1876 + $0x10] sm:$0xf]
      %v2120 = vld [vmem:[%s1876 + $0x14] sm:$0x1]
      %v2121 = vld [vmem:[%s1876 + $0x18] sm:$0xf]
      %v2122 = vld [vmem:[%s1876 + $0x1c] sm:$0xf]
      %v2123 = vld [vmem:[%s1876 + $0x20] sm:$0x1]
      %v2124 = vld [vmem:[%s1876 + $0x24] sm:$0xf]
      %v2125 = vld [vmem:[%s1876 + $0x28] sm:$0xf]
      %v2126 = vld [vmem:[%s1876 + $0x2c] sm:$0x1]
      %v2127 = vld [vmem:[%s1876 + $0x30] sm:$0xf]
      %v2128 = vld [vmem:[%s1876 + $0x34] sm:$0xf]
      %v2129 = vld [vmem:[%s1876 + $0x38] sm:$0x1]
      %v2130 = vld [vmem:[%s1876 + $0x3c] sm:$0xf]
      %v2131 = vld [vmem:[%s1876 + $0x40] sm:$0xf]
      %v2132 = vld [vmem:[%s1876 + $0x44] sm:$0x1]
      %v2133 = vld [vmem:[%s1876 + $0x48] sm:$0xf]
      %v2134 = vld [vmem:[%s1876 + $0x4c] sm:$0xf]
      %v2135 = vld [vmem:[%s1876 + $0x50] sm:$0x1]
      %v2136 = vld [vmem:[%s1876 + $0x54] sm:$0xf]
      %v2137 = vld [vmem:[%s1876 + $0x58] sm:$0xf]
      %v2138 = vld [vmem:[%s1876 + $0x5c] sm:$0x1]
      %v2139 = vld [vmem:[%s1876 + $0x60] sm:$0xf]
      %v2140 = vld [vmem:[%s1876 + $0x64] sm:$0xf]
      %v2141 = vld [vmem:[%s1876 + $0x68] sm:$0x1]
      %v2142 = vld [vmem:[%s1876 + $0x6c] sm:$0xf]
      %v2143 = vld [vmem:[%s1876 + $0x70] sm:$0xf]
      %v2144 = vld [vmem:[%s1876 + $0x74] sm:$0x1]
      %v2146 = vshrl.u32 %v2115, 16
      %v2148 = vrot.slane %v2146, 4
      %v2149 = vshll.u32 %v2115, 16
      %v2151 = vrot.slane %v2149, 5
      %v2152 = vor.u32 %v2148, %v2151
      %v2153 = vrot.slane %v2152, 4
      %v2155 = vshll.u32 %v2116, 16
      %v2157 = vrot.slane %v2155, 5
      %v2158 = vsel %vm958, %v2153, %v2157
      %v2159 = vshrl.u32 %v2116, 16
      %v2161 = vrot.slane %v2159, 4
      %v2162 = vor.u32 %v2161, %v2157
      %v2163 = vrot.slane %v2162, 4
      %v2165 = vshll.u32 %v2117, 16
      %v2167 = vrot.slane %v2165, 5
      %v2168 = vsel %vm958, %v2163, %v2167
      %v2170 = vshrl.u32 %v2118, 16
      %v2172 = vrot.slane %v2170, 4
      %v2173 = vshll.u32 %v2118, 16
      %v2175 = vrot.slane %v2173, 5
      %v2176 = vor.u32 %v2172, %v2175
      %v2177 = vrot.slane %v2176, 4
      %v2179 = vshll.u32 %v2119, 16
      %v2181 = vrot.slane %v2179, 5
      %v2182 = vsel %vm958, %v2177, %v2181
      %v2183 = vshrl.u32 %v2119, 16
      %v2185 = vrot.slane %v2183, 4
      %v2186 = vor.u32 %v2185, %v2181
      %v2187 = vrot.slane %v2186, 4
      %v2189 = vshll.u32 %v2120, 16
      %v2191 = vrot.slane %v2189, 5
      %v2192 = vsel %vm958, %v2187, %v2191
      %v2194 = vshrl.u32 %v2121, 16
      %v2196 = vrot.slane %v2194, 4
      %v2197 = vshll.u32 %v2121, 16
      %v2199 = vrot.slane %v2197, 5
      %v2200 = vor.u32 %v2196, %v2199
      %v2201 = vrot.slane %v2200, 4
      %v2203 = vshll.u32 %v2122, 16
      %v2205 = vrot.slane %v2203, 5
      %v2206 = vsel %vm958, %v2201, %v2205
      %v2207 = vshrl.u32 %v2122, 16
      %v2209 = vrot.slane %v2207, 4
      %v2210 = vor.u32 %v2209, %v2205
      %v2211 = vrot.slane %v2210, 4
      %v2213 = vshll.u32 %v2123, 16
      %v2215 = vrot.slane %v2213, 5
      %v2216 = vsel %vm958, %v2211, %v2215
      %v2218 = vshrl.u32 %v2124, 16
      %v2220 = vrot.slane %v2218, 4
      %v2221 = vshll.u32 %v2124, 16
      %v2223 = vrot.slane %v2221, 5
      %v2224 = vor.u32 %v2220, %v2223
      %v2225 = vrot.slane %v2224, 4
      %v2227 = vshll.u32 %v2125, 16
      %v2229 = vrot.slane %v2227, 5
      %v2230 = vsel %vm958, %v2225, %v2229
      %v2231 = vshrl.u32 %v2125, 16
      %v2233 = vrot.slane %v2231, 4
      %v2234 = vor.u32 %v2233, %v2229
      %v2235 = vrot.slane %v2234, 4
      %v2237 = vshll.u32 %v2126, 16
      %v2239 = vrot.slane %v2237, 5
      %v2240 = vsel %vm958, %v2235, %v2239
      %v2242 = vshrl.u32 %v2127, 16
      %v2244 = vrot.slane %v2242, 4
      %v2245 = vshll.u32 %v2127, 16
      %v2247 = vrot.slane %v2245, 5
      %v2248 = vor.u32 %v2244, %v2247
      %v2249 = vrot.slane %v2248, 4
      %v2251 = vshll.u32 %v2128, 16
      %v2253 = vrot.slane %v2251, 5
      %v2254 = vsel %vm958, %v2249, %v2253
      %v2255 = vshrl.u32 %v2128, 16
      %v2257 = vrot.slane %v2255, 4
      %v2258 = vor.u32 %v2257, %v2253
      %v2259 = vrot.slane %v2258, 4
      %v2261 = vshll.u32 %v2129, 16
      %v2263 = vrot.slane %v2261, 5
      %v2264 = vsel %vm958, %v2259, %v2263
      %v2266 = vshrl.u32 %v2130, 16
      %v2268 = vrot.slane %v2266, 4
      %v2269 = vshll.u32 %v2130, 16
      %v2271 = vrot.slane %v2269, 5
      %v2272 = vor.u32 %v2268, %v2271
      %v2273 = vrot.slane %v2272, 4
      %v2275 = vshll.u32 %v2131, 16
      %v2277 = vrot.slane %v2275, 5
      %v2278 = vsel %vm958, %v2273, %v2277
      %v2279 = vshrl.u32 %v2131, 16
      %v2281 = vrot.slane %v2279, 4
      %v2282 = vor.u32 %v2281, %v2277
      %v2283 = vrot.slane %v2282, 4
      %v2285 = vshll.u32 %v2132, 16
      %v2287 = vrot.slane %v2285, 5
      %v2288 = vsel %vm958, %v2283, %v2287
      %v2290 = vshrl.u32 %v2133, 16
      %v2292 = vrot.slane %v2290, 4
      %v2293 = vshll.u32 %v2133, 16
      %v2295 = vrot.slane %v2293, 5
      %v2296 = vor.u32 %v2292, %v2295
      %v2297 = vrot.slane %v2296, 4
      %v2299 = vshll.u32 %v2134, 16
      %v2301 = vrot.slane %v2299, 5
      %v2302 = vsel %vm958, %v2297, %v2301
      %v2303 = vshrl.u32 %v2134, 16
      %v2305 = vrot.slane %v2303, 4
      %v2306 = vor.u32 %v2305, %v2301
      %v2307 = vrot.slane %v2306, 4
      %v2309 = vshll.u32 %v2135, 16
      %v2311 = vrot.slane %v2309, 5
      %v2312 = vsel %vm958, %v2307, %v2311
      %v2314 = vshrl.u32 %v2136, 16
      %v2316 = vrot.slane %v2314, 4
      %v2317 = vshll.u32 %v2136, 16
      %v2319 = vrot.slane %v2317, 5
      %v2320 = vor.u32 %v2316, %v2319
      %v2321 = vrot.slane %v2320, 4
      %v2323 = vshll.u32 %v2137, 16
      %v2325 = vrot.slane %v2323, 5
      %v2326 = vsel %vm958, %v2321, %v2325
      %v2327 = vshrl.u32 %v2137, 16
      %v2329 = vrot.slane %v2327, 4
      %v2330 = vor.u32 %v2329, %v2325
      %v2331 = vrot.slane %v2330, 4
      %v2333 = vshll.u32 %v2138, 16
      %v2335 = vrot.slane %v2333, 5
      %v2336 = vsel %vm958, %v2331, %v2335
      %v2338 = vshrl.u32 %v2139, 16
      %v2340 = vrot.slane %v2338, 4
      %v2341 = vshll.u32 %v2139, 16
      %v2343 = vrot.slane %v2341, 5
      %v2344 = vor.u32 %v2340, %v2343
      %v2345 = vrot.slane %v2344, 4
      %v2347 = vshll.u32 %v2140, 16
      %v2349 = vrot.slane %v2347, 5
      %v2350 = vsel %vm958, %v2345, %v2349
      %v2351 = vshrl.u32 %v2140, 16
      %v2353 = vrot.slane %v2351, 4
      %v2354 = vor.u32 %v2353, %v2349
      %v2355 = vrot.slane %v2354, 4
      %v2357 = vshll.u32 %v2141, 16
      %v2359 = vrot.slane %v2357, 5
      %v2360 = vsel %vm958, %v2355, %v2359
      %v2362 = vshrl.u32 %v2142, 16
      %v2364 = vrot.slane %v2362, 4
      %v2365 = vshll.u32 %v2142, 16
      %v2367 = vrot.slane %v2365, 5
      %v2368 = vor.u32 %v2364, %v2367
      %v2369 = vrot.slane %v2368, 4
      %v2371 = vshll.u32 %v2143, 16
      %v2373 = vrot.slane %v2371, 5
      %v2374 = vsel %vm958, %v2369, %v2373
      %v2375 = vshrl.u32 %v2143, 16
      %v2377 = vrot.slane %v2375, 4
      %v2378 = vor.u32 %v2377, %v2373
      %v2379 = vrot.slane %v2378, 4
      %v2381 = vshll.u32 %v2144, 16
      %v2383 = vrot.slane %v2381, 5
      %v2384 = vsel %vm958, %v2379, %v2383
      %s2385 = scalar_lea.vmem %s3, 8
      %v2386 = vld [vmem:[%s2385] sm:$0x3]
      %v2387 = vunpack.c.l.b16 %v2158
      %v2388 = vunpack.c.l.b16 %v2168
      %v2389 = vunpack.c.l.b16 %v2182
      %v2390 = vunpack.c.l.b16 %v2192
      %v2391 = vunpack.c.l.b16 %v2206
      %v2392 = vunpack.c.l.b16 %v2216
      %v2393 = vunpack.c.l.b16 %v2230
      %v2394 = vunpack.c.l.b16 %v2240
      %v2395 = vunpack.c.l.b16 %v2254
      %v2396 = vunpack.c.l.b16 %v2264
      %v2397 = vunpack.c.l.b16 %v2278
      %v2398 = vunpack.c.l.b16 %v2288
      %v2399 = vunpack.c.l.b16 %v2302
      %v2400 = vunpack.c.l.b16 %v2312
      %v2401 = vunpack.c.l.b16 %v2326
      %v2402 = vunpack.c.l.b16 %v2336
      %v2403 = vunpack.c.l.b16 %v2350
      %v2404 = vunpack.c.l.b16 %v2360
      %v2405 = vunpack.c.l.b16 %v2374
      %v2406 = vunpack.c.l.b16 %v2384
      %v2407 = vpack.c.b16 %v2388, %v2387
      %v2408 = vpack.c.b16 %v2390, %v2389
      %v2409 = vpack.c.b16 %v2392, %v2391
      %v2410 = vpack.c.b16 %v2394, %v2393
      %v2411 = vpack.c.b16 %v2396, %v2395
      %v2412 = vpack.c.b16 %v2398, %v2397
      %v2413 = vpack.c.b16 %v2400, %v2399
      %v2414 = vpack.c.b16 %v2402, %v2401
      %v2415 = vpack.c.b16 %v2404, %v2403
      %v2416 = vpack.c.b16 %v2406, %v2405
      %v2418 = vsel %vm1231, %v2407, 0
      %v2421 = vsel %vm1231, %v2408, 0
      %v2424 = vsel %vm1231, %v2409, 0
      %v2427 = vsel %vm1231, %v2410, 0
      %v2430 = vsel %vm1231, %v2411, 0
      %v2433 = vsel %vm1231, %v2412, 0
      %v2436 = vsel %vm1231, %v2413, 0
      %v2439 = vsel %vm1231, %v2414, 0
      %v2442 = vsel %vm1231, %v2415, 0
      %v2445 = vsel %vm1231, %v2416, 0
      %v2448 = vsel %vm1262, %v2386, 0
      %2450 = vmatprep.subr.bf16.mxu0 0
      %2451 = vmatpush1.bf16.msra.mxu0 %v2448
      %2452 = vmatprep.subr.bf16.mxu0 0
      %2453 = vmatpush1.bf16.msra.mxu0 0
      %2454 = vmatprep.subr.bf16.mxu0 0
      %2455 = vmatpush1.bf16.msra.mxu0 0
      %2456 = vmatprep.subr.bf16.mxu0 0
      %2457 = vmatpush1.bf16.msra.mxu0 0
      %2458 = vmatprep.subr.bf16.mxu0 0
      %2459 = vmatpush1.bf16.msra.mxu0 0
      %2460 = vmatprep.subr.bf16.mxu0 0
      %2461 = vmatpush1.bf16.msra.mxu0 0
      %2462 = vmatprep.subr.bf16.mxu0 0
      %2463 = vmatpush1.bf16.msra.mxu0 0
      %2464 = vmatprep.subr.bf16.mxu0 0
      %2465 = vmatpush1.bf16.msra.mxu0 0
      %2466 = vmatprep.subr.bf16.mxu0 0
      %2467 = vmatpush1.bf16.msra.mxu0 0
      %2468 = vmatprep.subr.bf16.mxu0 0
      %2469 = vmatpush1.bf16.msra.mxu0 0
      %2470 = vmatprep.subr.bf16.mxu0 0
      %2471 = vmatpush1.bf16.msra.mxu0 0
      %2472 = vmatprep.subr.bf16.mxu0 0
      %2473 = vmatpush1.bf16.msra.mxu0 0
      %2474 = vmatprep.subr.bf16.mxu0 0
      %2475 = vmatpush1.bf16.msra.mxu0 0
      %2476 = vmatprep.subr.bf16.mxu0 0
      %2477 = vmatpush1.bf16.msra.mxu0 0
      %2478 = vmatprep.subr.bf16.mxu0 0
      %2479 = vmatpush1.bf16.msra.mxu0 0
      %2480 = vmatprep.subr.bf16.mxu0 0
      %2481 = vmatpush1.bf16.msra.mxu0 0
      %2482 = vmatprep.mubr.bf16.mxu0 0
      %2483 = vmatmul.mubr.bf16.gmra.mrb[0].mxu0 %v2418
      %v2484 = vpop.f32.mrb[0].mxu0
      %v2485 = vadd.f32 0.0, %v2484
      %v2486 = vpop.f32.mrb[0].mxu0
      %v2487 = vpop.f32.mrb[0].mxu0
      %v2488 = vadd.f32 0.0, %v2487
      %v2489 = vpop.f32.mrb[0].mxu0
      %2490 = vmatprep.mubr.bf16.mxu0 0
      %2491 = vmatmul.mubr.bf16.gmra.mrb[0].mxu0 %v2421
      %v2492 = vpop.f32.mrb[0].mxu0
      %v2493 = vadd.f32 0.0, %v2492
      %v2494 = vpop.f32.mrb[0].mxu0
      %v2495 = vpop.f32.mrb[0].mxu0
      %v2496 = vadd.f32 0.0, %v2495
      %v2497 = vpop.f32.mrb[0].mxu0
      %2498 = vmatprep.mubr.bf16.mxu0 0
      %2499 = vmatmul.mubr.bf16.gmra.mrb[0].mxu0 %v2424
      %v2500 = vpop.f32.mrb[0].mxu0
      %v2501 = vadd.f32 0.0, %v2500
      %v2502 = vpop.f32.mrb[0].mxu0
      %v2503 = vpop.f32.mrb[0].mxu0
      %v2504 = vadd.f32 0.0, %v2503
      %v2505 = vpop.f32.mrb[0].mxu0
      %2506 = vmatprep.mubr.bf16.mxu0 0
      %2507 = vmatmul.mubr.bf16.gmra.mrb[0].mxu0 %v2427
      %v2508 = vpop.f32.mrb[0].mxu0
      %v2509 = vadd.f32 0.0, %v2508
      %v2510 = vpop.f32.mrb[0].mxu0
      %v2511 = vpop.f32.mrb[0].mxu0
      %v2512 = vadd.f32 0.0, %v2511
      %v2513 = vpop.f32.mrb[0].mxu0
      %2514 = vmatprep.mubr.bf16.mxu0 0
      %2515 = vmatmul.mubr.bf16.gmra.mrb[0].mxu0 %v2430
      %v2516 = vpop.f32.mrb[0].mxu0
      %v2517 = vadd.f32 0.0, %v2516
      %v2518 = vpop.f32.mrb[0].mxu0
      %v2519 = vpop.f32.mrb[0].mxu0
      %v2520 = vadd.f32 0.0, %v2519
      %v2521 = vpop.f32.mrb[0].mxu0
      %2522 = vmatprep.mubr.bf16.mxu0 0
      %2523 = vmatmul.mubr.bf16.gmra.mrb[0].mxu0 %v2433
      %v2524 = vpop.f32.mrb[0].mxu0
      %v2525 = vadd.f32 0.0, %v2524
      %v2526 = vpop.f32.mrb[0].mxu0
      %v2527 = vpop.f32.mrb[0].mxu0
      %v2528 = vadd.f32 0.0, %v2527
      %v2529 = vpop.f32.mrb[0].mxu0
      %2530 = vmatprep.mubr.bf16.mxu0 0
      %2531 = vmatmul.mubr.bf16.gmra.mrb[0].mxu0 %v2436
      %v2532 = vpop.f32.mrb[0].mxu0
      %v2533 = vadd.f32 0.0, %v2532
      %v2534 = vpop.f32.mrb[0].mxu0
      %v2535 = vpop.f32.mrb[0].mxu0
      %v2536 = vadd.f32 0.0, %v2535
      %v2537 = vpop.f32.mrb[0].mxu0
      %2538 = vmatprep.mubr.bf16.mxu0 0
      %2539 = vmatmul.mubr.bf16.gmra.mrb[0].mxu0 %v2439
      %v2540 = vpop.f32.mrb[0].mxu0
      %v2541 = vadd.f32 0.0, %v2540
      %v2542 = vpop.f32.mrb[0].mxu0
      %v2543 = vpop.f32.mrb[0].mxu0
      %v2544 = vadd.f32 0.0, %v2543
      %v2545 = vpop.f32.mrb[0].mxu0
      %2546 = vmatprep.mubr.bf16.mxu0 0
      %2547 = vmatmul.mubr.bf16.gmra.mrb[0].mxu0 %v2442
      %v2548 = vpop.f32.mrb[0].mxu0
      %v2549 = vadd.f32 0.0, %v2548
      %v2550 = vpop.f32.mrb[0].mxu0
      %v2551 = vpop.f32.mrb[0].mxu0
      %v2552 = vadd.f32 0.0, %v2551
      %v2553 = vpop.f32.mrb[0].mxu0
      %2554 = vmatprep.mubr.bf16.mxu0 0
      %2555 = vmatmul.mubr.bf16.gmra.mrb[0].mxu0 %v2445
      %v2556 = vpop.f32.mrb[0].mxu0
      %v2557 = vadd.f32 0.0, %v2556
      %v2558 = vpop.f32.mrb[0].mxu0
      %v2559 = vpop.f32.mrb[0].mxu0
      %v2560 = vadd.f32 0.0, %v2559
      %v2561 = vpop.f32.mrb[0].mxu0
      %2562 = vdwg.mxu0
      %v2563 = vadd.f32 %v2095, %v2485
      %v2564 = vadd.f32 %v2096, %v2488
      %v2565 = vadd.f32 %v2097, %v2493
      %v2566 = vadd.f32 %v2098, %v2496
      %v2567 = vadd.f32 %v2099, %v2501
      %v2568 = vadd.f32 %v2100, %v2504
      %v2569 = vadd.f32 %v2101, %v2509
      %v2570 = vadd.f32 %v2102, %v2512
      %v2571 = vadd.f32 %v2103, %v2517
      %v2572 = vadd.f32 %v2104, %v2520
      %v2573 = vadd.f32 %v2105, %v2525
      %v2574 = vadd.f32 %v2106, %v2528
      %v2575 = vadd.f32 %v2107, %v2533
      %v2576 = vadd.f32 %v2108, %v2536
      %v2577 = vadd.f32 %v2109, %v2541
      %v2578 = vadd.f32 %v2110, %v2544
      %v2579 = vadd.f32 %v2111, %v2549
      %v2580 = vadd.f32 %v2112, %v2552
      %v2581 = vadd.f32 %v2113, %v2557
      %v2582 = vadd.f32 %v2114, %v2560
      %v2583 = vld [vmem:[%s1876] sm:$0xe]
      %v2584 = vld [vmem:[%s1876 + $0xc] sm:$0xe]
      %v2585 = vld [vmem:[%s1876 + $0x18] sm:$0xe]
      %v2586 = vld [vmem:[%s1876 + $0x24] sm:$0xe]
      %v2587 = vld [vmem:[%s1876 + $0x30] sm:$0xe]
      %v2588 = vld [vmem:[%s1876 + $0x3c] sm:$0xe]
      %v2589 = vld [vmem:[%s1876 + $0x48] sm:$0xe]
      %v2590 = vld [vmem:[%s1876 + $0x54] sm:$0xe]
      %v2591 = vld [vmem:[%s1876 + $0x60] sm:$0xe]
      %v2592 = vld [vmem:[%s1876 + $0x6c] sm:$0xe]
      %v2623 = vrot.slane %v2583, 5
      %v2624 = vrot.slane %v2623, 4
      %v2625 = vrot.slane %v2116, 5
      %v2626 = vsel %vm1607, %v2624, %v2625
      %v2627 = vrot.slane %v2625, 4
      %v2628 = vrot.slane %v2117, 5
      %v2629 = vsel %vm1607, %v2627, %v2628
      %v2630 = vrot.slane %v2584, 5
      %v2631 = vrot.slane %v2630, 4
      %v2632 = vrot.slane %v2119, 5
      %v2633 = vsel %vm1607, %v2631, %v2632
      %v2634 = vrot.slane %v2632, 4
      %v2635 = vrot.slane %v2120, 5
      %v2636 = vsel %vm1607, %v2634, %v2635
      %v2637 = vrot.slane %v2585, 5
      %v2638 = vrot.slane %v2637, 4
      %v2639 = vrot.slane %v2122, 5
      %v2640 = vsel %vm1607, %v2638, %v2639
      %v2641 = vrot.slane %v2639, 4
      %v2642 = vrot.slane %v2123, 5
      %v2643 = vsel %vm1607, %v2641, %v2642
      %v2644 = vrot.slane %v2586, 5
      %v2645 = vrot.slane %v2644, 4
      %v2646 = vrot.slane %v2125, 5
      %v2647 = vsel %vm1607, %v2645, %v2646
      %v2648 = vrot.slane %v2646, 4
      %v2649 = vrot.slane %v2126, 5
      %v2650 = vsel %vm1607, %v2648, %v2649
      %v2651 = vrot.slane %v2587, 5
      %v2652 = vrot.slane %v2651, 4
      %v2653 = vrot.slane %v2128, 5
      %v2654 = vsel %vm1607, %v2652, %v2653
      %v2655 = vrot.slane %v2653, 4
      %v2656 = vrot.slane %v2129, 5
      %v2657 = vsel %vm1607, %v2655, %v2656
      %v2658 = vrot.slane %v2588, 5
      %v2659 = vrot.slane %v2658, 4
      %v2660 = vrot.slane %v2131, 5
      %v2661 = vsel %vm1607, %v2659, %v2660
      %v2662 = vrot.slane %v2660, 4
      %v2663 = vrot.slane %v2132, 5
      %v2664 = vsel %vm1607, %v2662, %v2663
      %v2665 = vrot.slane %v2589, 5
      %v2666 = vrot.slane %v2665, 4
      %v2667 = vrot.slane %v2134, 5
      %v2668 = vsel %vm1607, %v2666, %v2667
      %v2669 = vrot.slane %v2667, 4
      %v2670 = vrot.slane %v2135, 5
      %v2671 = vsel %vm1607, %v2669, %v2670
      %v2672 = vrot.slane %v2590, 5
      %v2673 = vrot.slane %v2672, 4
      %v2674 = vrot.slane %v2137, 5
      %v2675 = vsel %vm1607, %v2673, %v2674
      %v2676 = vrot.slane %v2674, 4
      %v2677 = vrot.slane %v2138, 5
      %v2678 = vsel %vm1607, %v2676, %v2677
      %v2679 = vrot.slane %v2591, 5
      %v2680 = vrot.slane %v2679, 4
      %v2681 = vrot.slane %v2140, 5
      %v2682 = vsel %vm1607, %v2680, %v2681
      %v2683 = vrot.slane %v2681, 4
      %v2684 = vrot.slane %v2141, 5
      %v2685 = vsel %vm1607, %v2683, %v2684
      %v2686 = vrot.slane %v2592, 5
      %v2687 = vrot.slane %v2686, 4
      %v2688 = vrot.slane %v2143, 5
      %v2689 = vsel %vm1607, %v2687, %v2688
      %v2690 = vrot.slane %v2688, 4
      %v2691 = vrot.slane %v2144, 5
      %v2692 = vsel %vm1607, %v2690, %v2691
      %s2693 = scalar_lea.vmem %s3, 10
      %v2694 = vld [vmem:[%s2693] sm:$0x3]
      %v2695 = vunpack.c.l.b16 %v2626
      %v2696 = vunpack.c.l.b16 %v2629
      %v2697 = vunpack.c.l.b16 %v2633
      %v2698 = vunpack.c.l.b16 %v2636
      %v2699 = vunpack.c.l.b16 %v2640
      %v2700 = vunpack.c.l.b16 %v2643
      %v2701 = vunpack.c.l.b16 %v2647
      %v2702 = vunpack.c.l.b16 %v2650
      %v2703 = vunpack.c.l.b16 %v2654
      %v2704 = vunpack.c.l.b16 %v2657
      %v2705 = vunpack.c.l.b16 %v2661
      %v2706 = vunpack.c.l.b16 %v2664
      %v2707 = vunpack.c.l.b16 %v2668
      %v2708 = vunpack.c.l.b16 %v2671
      %v2709 = vunpack.c.l.b16 %v2675
      %v2710 = vunpack.c.l.b16 %v2678
      %v2711 = vunpack.c.l.b16 %v2682
      %v2712 = vunpack.c.l.b16 %v2685
      %v2713 = vunpack.c.l.b16 %v2689
      %v2714 = vunpack.c.l.b16 %v2692
      %v2715 = vpack.c.b16 %v2696, %v2695
      %v2716 = vpack.c.b16 %v2698, %v2697
      %v2717 = vpack.c.b16 %v2700, %v2699
      %v2718 = vpack.c.b16 %v2702, %v2701
      %v2719 = vpack.c.b16 %v2704, %v2703
      %v2720 = vpack.c.b16 %v2706, %v2705
      %v2721 = vpack.c.b16 %v2708, %v2707
      %v2722 = vpack.c.b16 %v2710, %v2709
      %v2723 = vpack.c.b16 %v2712, %v2711
      %v2724 = vpack.c.b16 %v2714, %v2713
      %v2726 = vsel %vm1231, %v2715, 0
      %v2729 = vsel %vm1231, %v2716, 0
      %v2732 = vsel %vm1231, %v2717, 0
      %v2735 = vsel %vm1231, %v2718, 0
      %v2738 = vsel %vm1231, %v2719, 0
      %v2741 = vsel %vm1231, %v2720, 0
      %v2744 = vsel %vm1231, %v2721, 0
      %v2747 = vsel %vm1231, %v2722, 0
      %v2750 = vsel %vm1231, %v2723, 0
      %v2753 = vsel %vm1231, %v2724, 0
      %v2756 = vsel %vm1262, %v2694, 0
      %2758 = vmatprep.subr.bf16.mxu0 0
      %2759 = vmatpush1.bf16.msra.mxu0 %v2756
      %2760 = vmatprep.subr.bf16.mxu0 0
      %2761 = vmatpush1.bf16.msra.mxu0 0
      %2762 = vmatprep.subr.bf16.mxu0 0
      %2763 = vmatpush1.bf16.msra.mxu0 0
      %2764 = vmatprep.subr.bf16.mxu0 0
      %2765 = vmatpush1.bf16.msra.mxu0 0
      %2766 = vmatprep.subr.bf16.mxu0 0
      %2767 = vmatpush1.bf16.msra.mxu0 0
      %2768 = vmatprep.subr.bf16.mxu0 0
      %2769 = vmatpush1.bf16.msra.mxu0 0
      %2770 = vmatprep.subr.bf16.mxu0 0
      %2771 = vmatpush1.bf16.msra.mxu0 0
      %2772 = vmatprep.subr.bf16.mxu0 0
      %2773 = vmatpush1.bf16.msra.mxu0 0
      %2774 = vmatprep.subr.bf16.mxu0 0
      %2775 = vmatpush1.bf16.msra.mxu0 0
      %2776 = vmatprep.subr.bf16.mxu0 0
      %2777 = vmatpush1.bf16.msra.mxu0 0
      %2778 = vmatprep.subr.bf16.mxu0 0
      %2779 = vmatpush1.bf16.msra.mxu0 0
      %2780 = vmatprep.subr.bf16.mxu0 0
      %2781 = vmatpush1.bf16.msra.mxu0 0
      %2782 = vmatprep.subr.bf16.mxu0 0
      %2783 = vmatpush1.bf16.msra.mxu0 0
      %2784 = vmatprep.subr.bf16.mxu0 0
      %2785 = vmatpush1.bf16.msra.mxu0 0
      %2786 = vmatprep.subr.bf16.mxu0 0
      %2787 = vmatpush1.bf16.msra.mxu0 0
      %2788 = vmatprep.subr.bf16.mxu0 0
      %2789 = vmatpush1.bf16.msra.mxu0 0
      %2790 = vmatprep.mubr.bf16.mxu0 0
      %2791 = vmatmul.mubr.bf16.gmra.mrb[0].mxu0 %v2726
      %v2792 = vpop.f32.mrb[0].mxu0
      %v2793 = vadd.f32 0.0, %v2792
      %v2794 = vpop.f32.mrb[0].mxu0
      %v2795 = vpop.f32.mrb[0].mxu0
      %v2796 = vadd.f32 0.0, %v2795
      %v2797 = vpop.f32.mrb[0].mxu0
      %2798 = vmatprep.mubr.bf16.mxu0 0
      %2799 = vmatmul.mubr.bf16.gmra.mrb[0].mxu0 %v2729
      %v2800 = vpop.f32.mrb[0].mxu0
      %v2801 = vadd.f32 0.0, %v2800
      %v2802 = vpop.f32.mrb[0].mxu0
      %v2803 = vpop.f32.mrb[0].mxu0
      %v2804 = vadd.f32 0.0, %v2803
      %v2805 = vpop.f32.mrb[0].mxu0
      %2806 = vmatprep.mubr.bf16.mxu0 0
      %2807 = vmatmul.mubr.bf16.gmra.mrb[0].mxu0 %v2732
      %v2808 = vpop.f32.mrb[0].mxu0
      %v2809 = vadd.f32 0.0, %v2808
      %v2810 = vpop.f32.mrb[0].mxu0
      %v2811 = vpop.f32.mrb[0].mxu0
      %v2812 = vadd.f32 0.0, %v2811
      %v2813 = vpop.f32.mrb[0].mxu0
      %2814 = vmatprep.mubr.bf16.mxu0 0
      %2815 = vmatmul.mubr.bf16.gmra.mrb[0].mxu0 %v2735
      %v2816 = vpop.f32.mrb[0].mxu0
      %v2817 = vadd.f32 0.0, %v2816
      %v2818 = vpop.f32.mrb[0].mxu0
      %v2819 = vpop.f32.mrb[0].mxu0
      %v2820 = vadd.f32 0.0, %v2819
      %v2821 = vpop.f32.mrb[0].mxu0
      %2822 = vmatprep.mubr.bf16.mxu0 0
      %2823 = vmatmul.mubr.bf16.gmra.mrb[0].mxu0 %v2738
      %v2824 = vpop.f32.mrb[0].mxu0
      %v2825 = vadd.f32 0.0, %v2824
      %v2826 = vpop.f32.mrb[0].mxu0
      %v2827 = vpop.f32.mrb[0].mxu0
      %v2828 = vadd.f32 0.0, %v2827
      %v2829 = vpop.f32.mrb[0].mxu0
      %2830 = vmatprep.mubr.bf16.mxu0 0
      %2831 = vmatmul.mubr.bf16.gmra.mrb[0].mxu0 %v2741
      %v2832 = vpop.f32.mrb[0].mxu0
      %v2833 = vadd.f32 0.0, %v2832
      %v2834 = vpop.f32.mrb[0].mxu0
      %v2835 = vpop.f32.mrb[0].mxu0
      %v2836 = vadd.f32 0.0, %v2835
      %v2837 = vpop.f32.mrb[0].mxu0
      %2838 = vmatprep.mubr.bf16.mxu0 0
      %2839 = vmatmul.mubr.bf16.gmra.mrb[0].mxu0 %v2744
      %v2840 = vpop.f32.mrb[0].mxu0
      %v2841 = vadd.f32 0.0, %v2840
      %v2842 = vpop.f32.mrb[0].mxu0
      %v2843 = vpop.f32.mrb[0].mxu0
      %v2844 = vadd.f32 0.0, %v2843
      %v2845 = vpop.f32.mrb[0].mxu0
      %2846 = vmatprep.mubr.bf16.mxu0 0
      %2847 = vmatmul.mubr.bf16.gmra.mrb[0].mxu0 %v2747
      %v2848 = vpop.f32.mrb[0].mxu0
      %v2849 = vadd.f32 0.0, %v2848
      %v2850 = vpop.f32.mrb[0].mxu0
      %v2851 = vpop.f32.mrb[0].mxu0
      %v2852 = vadd.f32 0.0, %v2851
      %v2853 = vpop.f32.mrb[0].mxu0
      %2854 = vmatprep.mubr.bf16.mxu0 0
      %2855 = vmatmul.mubr.bf16.gmra.mrb[0].mxu0 %v2750
      %v2856 = vpop.f32.mrb[0].mxu0
      %v2857 = vadd.f32 0.0, %v2856
      %v2858 = vpop.f32.mrb[0].mxu0
      %v2859 = vpop.f32.mrb[0].mxu0
      %v2860 = vadd.f32 0.0, %v2859
      %v2861 = vpop.f32.mrb[0].mxu0
      %2862 = vmatprep.mubr.bf16.mxu0 0
      %2863 = vmatmul.mubr.bf16.gmra.mrb[0].mxu0 %v2753
      %v2864 = vpop.f32.mrb[0].mxu0
      %v2865 = vadd.f32 0.0, %v2864
      %v2866 = vpop.f32.mrb[0].mxu0
      %v2867 = vpop.f32.mrb[0].mxu0
      %v2868 = vadd.f32 0.0, %v2867
      %v2869 = vpop.f32.mrb[0].mxu0
      %2870 = vdwg.mxu0
      %v2871 = vadd.f32 %v2563, %v2793
      %v2872 = vadd.f32 %v2564, %v2796
      %v2873 = vadd.f32 %v2565, %v2801
      %v2874 = vadd.f32 %v2566, %v2804
      %v2875 = vadd.f32 %v2567, %v2809
      %v2876 = vadd.f32 %v2568, %v2812
      %v2877 = vadd.f32 %v2569, %v2817
      %v2878 = vadd.f32 %v2570, %v2820
      %v2879 = vadd.f32 %v2571, %v2825
      %v2880 = vadd.f32 %v2572, %v2828
      %v2881 = vadd.f32 %v2573, %v2833
      %v2882 = vadd.f32 %v2574, %v2836
      %v2883 = vadd.f32 %v2575, %v2841
      %v2884 = vadd.f32 %v2576, %v2844
      %v2885 = vadd.f32 %v2577, %v2849
      %v2886 = vadd.f32 %v2578, %v2852
      %v2887 = vadd.f32 %v2579, %v2857
      %v2888 = vadd.f32 %v2580, %v2860
      %v2889 = vadd.f32 %v2581, %v2865
      %v2890 = vadd.f32 %v2582, %v2868
      %v2891 = vld [vmem:[%s714] sm:$0xf]
      %v2892 = vld [vmem:[%s714 + $0x4] sm:$0xf]
      %v2893 = vld [vmem:[%s714 + $0xc] sm:$0xf]
      %v2894 = vld [vmem:[%s714 + $0x10] sm:$0xf]
      %v2895 = vld [vmem:[%s714 + $0x18] sm:$0xf]
      %v2896 = vld [vmem:[%s714 + $0x1c] sm:$0xf]
      %v2897 = vld [vmem:[%s714 + $0x24] sm:$0xf]
      %v2898 = vld [vmem:[%s714 + $0x28] sm:$0xf]
      %v2899 = vld [vmem:[%s714 + $0x30] sm:$0xf]
      %v2900 = vld [vmem:[%s714 + $0x34] sm:$0xf]
      %v2901 = vld [vmem:[%s714 + $0x3c] sm:$0xf]
      %v2902 = vld [vmem:[%s714 + $0x40] sm:$0xf]
      %v2903 = vld [vmem:[%s714 + $0x48] sm:$0xf]
      %v2904 = vld [vmem:[%s714 + $0x4c] sm:$0xf]
      %v2905 = vld [vmem:[%s714 + $0x54] sm:$0xf]
      %v2906 = vld [vmem:[%s714 + $0x58] sm:$0xf]
      %v2907 = vld [vmem:[%s714 + $0x60] sm:$0xf]
      %v2908 = vld [vmem:[%s714 + $0x64] sm:$0xf]
      %v2909 = vld [vmem:[%s714 + $0x6c] sm:$0xf]
      %v2910 = vld [vmem:[%s714 + $0x70] sm:$0xf]
      %s2911 = scalar_lea.vmem %s3, 12
      %v2912 = vld [vmem:[%s2911] sm:$0x3]
      %v2933 = vunpack.c.l.b16 %v2891
      %v2934 = vunpack.c.l.b16 %v2892
      %v2935 = vunpack.c.l.b16 %v2893
      %v2936 = vunpack.c.l.b16 %v2894
      %v2937 = vunpack.c.l.b16 %v2895
      %v2938 = vunpack.c.l.b16 %v2896
      %v2939 = vunpack.c.l.b16 %v2897
      %v2940 = vunpack.c.l.b16 %v2898
      %v2941 = vunpack.c.l.b16 %v2899
      %v2942 = vunpack.c.l.b16 %v2900
      %v2943 = vunpack.c.l.b16 %v2901
      %v2944 = vunpack.c.l.b16 %v2902
      %v2945 = vunpack.c.l.b16 %v2903
      %v2946 = vunpack.c.l.b16 %v2904
      %v2947 = vunpack.c.l.b16 %v2905
      %v2948 = vunpack.c.l.b16 %v2906
      %v2949 = vunpack.c.l.b16 %v2907
      %v2950 = vunpack.c.l.b16 %v2908
      %v2951 = vunpack.c.l.b16 %v2909
      %v2952 = vunpack.c.l.b16 %v2910
      %v2953 = vpack.c.b16 %v2934, %v2933
      %v2954 = vpack.c.b16 %v2936, %v2935
      %v2955 = vpack.c.b16 %v2938, %v2937
      %v2956 = vpack.c.b16 %v2940, %v2939
      %v2957 = vpack.c.b16 %v2942, %v2941
      %v2958 = vpack.c.b16 %v2944, %v2943
      %v2959 = vpack.c.b16 %v2946, %v2945
      %v2960 = vpack.c.b16 %v2948, %v2947
      %v2961 = vpack.c.b16 %v2950, %v2949
      %v2962 = vpack.c.b16 %v2952, %v2951
      %v2964 = vsel %vm1231, %v2953, 0
      %v2967 = vsel %vm1231, %v2954, 0
      %v2970 = vsel %vm1231, %v2955, 0
      %v2973 = vsel %vm1231, %v2956, 0
      %v2976 = vsel %vm1231, %v2957, 0
      %v2979 = vsel %vm1231, %v2958, 0
      %v2982 = vsel %vm1231, %v2959, 0
      %v2985 = vsel %vm1231, %v2960, 0
      %v2988 = vsel %vm1231, %v2961, 0
      %v2991 = vsel %vm1231, %v2962, 0
      %v2994 = vsel %vm1262, %v2912, 0
      %2996 = vmatprep.subr.bf16.mxu0 0
      %2997 = vmatpush1.bf16.msra.mxu0 %v2994
      %2998 = vmatprep.subr.bf16.mxu0 0
      %2999 = vmatpush1.bf16.msra.mxu0 0
      %3000 = vmatprep.subr.bf16.mxu0 0
      %3001 = vmatpush1.bf16.msra.mxu0 0
      %3002 = vmatprep.subr.bf16.mxu0 0
      %3003 = vmatpush1.bf16.msra.mxu0 0
      %3004 = vmatprep.subr.bf16.mxu0 0
      %3005 = vmatpush1.bf16.msra.mxu0 0
      %3006 = vmatprep.subr.bf16.mxu0 0
      %3007 = vmatpush1.bf16.msra.mxu0 0
      %3008 = vmatprep.subr.bf16.mxu0 0
      %3009 = vmatpush1.bf16.msra.mxu0 0
      %3010 = vmatprep.subr.bf16.mxu0 0
      %3011 = vmatpush1.bf16.msra.mxu0 0
      %3012 = vmatprep.subr.bf16.mxu0 0
      %3013 = vmatpush1.bf16.msra.mxu0 0
      %3014 = vmatprep.subr.bf16.mxu0 0
      %3015 = vmatpush1.bf16.msra.mxu0 0
      %3016 = vmatprep.subr.bf16.mxu0 0
      %3017 = vmatpush1.bf16.msra.mxu0 0
      %3018 = vmatprep.subr.bf16.mxu0 0
      %3019 = vmatpush1.bf16.msra.mxu0 0
      %3020 = vmatprep.subr.bf16.mxu0 0
      %3021 = vmatpush1.bf16.msra.mxu0 0
      %3022 = vmatprep.subr.bf16.mxu0 0
      %3023 = vmatpush1.bf16.msra.mxu0 0
      %3024 = vmatprep.subr.bf16.mxu0 0
      %3025 = vmatpush1.bf16.msra.mxu0 0
      %3026 = vmatprep.subr.bf16.mxu0 0
      %3027 = vmatpush1.bf16.msra.mxu0 0
      %3028 = vmatprep.mubr.bf16.mxu0 0
      %3029 = vmatmul.mubr.bf16.gmra.mrb[0].mxu0 %v2964
      %v3030 = vpop.f32.mrb[0].mxu0
      %v3031 = vadd.f32 0.0, %v3030
      %v3032 = vpop.f32.mrb[0].mxu0
      %v3033 = vpop.f32.mrb[0].mxu0
      %v3034 = vadd.f32 0.0, %v3033
      %v3035 = vpop.f32.mrb[0].mxu0
      %3036 = vmatprep.mubr.bf16.mxu0 0
      %3037 = vmatmul.mubr.bf16.gmra.mrb[0].mxu0 %v2967
      %v3038 = vpop.f32.mrb[0].mxu0
      %v3039 = vadd.f32 0.0, %v3038
      %v3040 = vpop.f32.mrb[0].mxu0
      %v3041 = vpop.f32.mrb[0].mxu0
      %v3042 = vadd.f32 0.0, %v3041
      %v3043 = vpop.f32.mrb[0].mxu0
      %3044 = vmatprep.mubr.bf16.mxu0 0
      %3045 = vmatmul.mubr.bf16.gmra.mrb[0].mxu0 %v2970
      %v3046 = vpop.f32.mrb[0].mxu0
      %v3047 = vadd.f32 0.0, %v3046
      %v3048 = vpop.f32.mrb[0].mxu0
      %v3049 = vpop.f32.mrb[0].mxu0
      %v3050 = vadd.f32 0.0, %v3049
      %v3051 = vpop.f32.mrb[0].mxu0
      %3052 = vmatprep.mubr.bf16.mxu0 0
      %3053 = vmatmul.mubr.bf16.gmra.mrb[0].mxu0 %v2973
      %v3054 = vpop.f32.mrb[0].mxu0
      %v3055 = vadd.f32 0.0, %v3054
      %v3056 = vpop.f32.mrb[0].mxu0
      %v3057 = vpop.f32.mrb[0].mxu0
      %v3058 = vadd.f32 0.0, %v3057
      %v3059 = vpop.f32.mrb[0].mxu0
      %3060 = vmatprep.mubr.bf16.mxu0 0
      %3061 = vmatmul.mubr.bf16.gmra.mrb[0].mxu0 %v2976
      %v3062 = vpop.f32.mrb[0].mxu0
      %v3063 = vadd.f32 0.0, %v3062
      %v3064 = vpop.f32.mrb[0].mxu0
      %v3065 = vpop.f32.mrb[0].mxu0
      %v3066 = vadd.f32 0.0, %v3065
      %v3067 = vpop.f32.mrb[0].mxu0
      %3068 = vmatprep.mubr.bf16.mxu0 0
      %3069 = vmatmul.mubr.bf16.gmra.mrb[0].mxu0 %v2979
      %v3070 = vpop.f32.mrb[0].mxu0
      %v3071 = vadd.f32 0.0, %v3070
      %v3072 = vpop.f32.mrb[0].mxu0
      %v3073 = vpop.f32.mrb[0].mxu0
      %v3074 = vadd.f32 0.0, %v3073
      %v3075 = vpop.f32.mrb[0].mxu0
      %3076 = vmatprep.mubr.bf16.mxu0 0
      %3077 = vmatmul.mubr.bf16.gmra.mrb[0].mxu0 %v2982
      %v3078 = vpop.f32.mrb[0].mxu0
      %v3079 = vadd.f32 0.0, %v3078
      %v3080 = vpop.f32.mrb[0].mxu0
      %v3081 = vpop.f32.mrb[0].mxu0
      %v3082 = vadd.f32 0.0, %v3081
      %v3083 = vpop.f32.mrb[0].mxu0
      %3084 = vmatprep.mubr.bf16.mxu0 0
      %3085 = vmatmul.mubr.bf16.gmra.mrb[0].mxu0 %v2985
      %v3086 = vpop.f32.mrb[0].mxu0
      %v3087 = vadd.f32 0.0, %v3086
      %v3088 = vpop.f32.mrb[0].mxu0
      %v3089 = vpop.f32.mrb[0].mxu0
      %v3090 = vadd.f32 0.0, %v3089
      %v3091 = vpop.f32.mrb[0].mxu0
      %3092 = vmatprep.mubr.bf16.mxu0 0
      %3093 = vmatmul.mubr.bf16.gmra.mrb[0].mxu0 %v2988
      %v3094 = vpop.f32.mrb[0].mxu0
      %v3095 = vadd.f32 0.0, %v3094
      %v3096 = vpop.f32.mrb[0].mxu0
      %v3097 = vpop.f32.mrb[0].mxu0
      %v3098 = vadd.f32 0.0, %v3097
      %v3099 = vpop.f32.mrb[0].mxu0
      %3100 = vmatprep.mubr.bf16.mxu0 0
      %3101 = vmatmul.mubr.bf16.gmra.mrb[0].mxu0 %v2991
      %v3102 = vpop.f32.mrb[0].mxu0
      %v3103 = vadd.f32 0.0, %v3102
      %v3104 = vpop.f32.mrb[0].mxu0
      %v3105 = vpop.f32.mrb[0].mxu0
      %v3106 = vadd.f32 0.0, %v3105
      %v3107 = vpop.f32.mrb[0].mxu0
      %3108 = vdwg.mxu0
      %v3109 = vadd.f32 %v2871, %v3031
      %v3110 = vadd.f32 %v2872, %v3034
      %v3111 = vadd.f32 %v2873, %v3039
      %v3112 = vadd.f32 %v2874, %v3042
      %v3113 = vadd.f32 %v2875, %v3047
      %v3114 = vadd.f32 %v2876, %v3050
      %v3115 = vadd.f32 %v2877, %v3055
      %v3116 = vadd.f32 %v2878, %v3058
      %v3117 = vadd.f32 %v2879, %v3063
      %v3118 = vadd.f32 %v2880, %v3066
      %v3119 = vadd.f32 %v2881, %v3071
      %v3120 = vadd.f32 %v2882, %v3074
      %v3121 = vadd.f32 %v2883, %v3079
      %v3122 = vadd.f32 %v2884, %v3082
      %v3123 = vadd.f32 %v2885, %v3087
      %v3124 = vadd.f32 %v2886, %v3090
      %v3125 = vadd.f32 %v2887, %v3095
      %v3126 = vadd.f32 %v2888, %v3098
      %v3127 = vadd.f32 %v2889, %v3103
      %v3128 = vadd.f32 %v2890, %v3106
      %v3129 = vld [vmem:[%s714] sm:$0xf]
      %v3130 = vld [vmem:[%s714 + $0x4] sm:$0xf]
      %v3131 = vld [vmem:[%s714 + $0x8] sm:$0x1]
      %v3132 = vld [vmem:[%s714 + $0xc] sm:$0xf]
      %v3133 = vld [vmem:[%s714 + $0x10] sm:$0xf]
      %v3134 = vld [vmem:[%s714 + $0x14] sm:$0x1]
      %v3135 = vld [vmem:[%s714 + $0x18] sm:$0xf]
      %v3136 = vld [vmem:[%s714 + $0x1c] sm:$0xf]
      %v3137 = vld [vmem:[%s714 + $0x20] sm:$0x1]
      %v3138 = vld [vmem:[%s714 + $0x24] sm:$0xf]
      %v3139 = vld [vmem:[%s714 + $0x28] sm:$0xf]
      %v3140 = vld [vmem:[%s714 + $0x2c] sm:$0x1]
      %v3141 = vld [vmem:[%s714 + $0x30] sm:$0xf]
      %v3142 = vld [vmem:[%s714 + $0x34] sm:$0xf]
      %v3143 = vld [vmem:[%s714 + $0x38] sm:$0x1]
      %v3144 = vld [vmem:[%s714 + $0x3c] sm:$0xf]
      %v3145 = vld [vmem:[%s714 + $0x40] sm:$0xf]
      %v3146 = vld [vmem:[%s714 + $0x44] sm:$0x1]
      %v3147 = vld [vmem:[%s714 + $0x48] sm:$0xf]
      %v3148 = vld [vmem:[%s714 + $0x4c] sm:$0xf]
      %v3149 = vld [vmem:[%s714 + $0x50] sm:$0x1]
      %v3150 = vld [vmem:[%s714 + $0x54] sm:$0xf]
      %v3151 = vld [vmem:[%s714 + $0x58] sm:$0xf]
      %v3152 = vld [vmem:[%s714 + $0x5c] sm:$0x1]
      %v3153 = vld [vmem:[%s714 + $0x60] sm:$0xf]
      %v3154 = vld [vmem:[%s714 + $0x64] sm:$0xf]
      %v3155 = vld [vmem:[%s714 + $0x68] sm:$0x1]
      %v3156 = vld [vmem:[%s714 + $0x6c] sm:$0xf]
      %v3157 = vld [vmem:[%s714 + $0x70] sm:$0xf]
      %v3158 = vld [vmem:[%s714 + $0x74] sm:$0x1]
      %v3160 = vshrl.u32 %v3129, 16
      %v3162 = vrot.slane %v3160, 4
      %v3163 = vshll.u32 %v3129, 16
      %v3165 = vrot.slane %v3163, 5
      %v3166 = vor.u32 %v3162, %v3165
      %v3167 = vrot.slane %v3166, 4
      %v3169 = vshll.u32 %v3130, 16
      %v3171 = vrot.slane %v3169, 5
      %v3172 = vsel %vm958, %v3167, %v3171
      %v3173 = vshrl.u32 %v3130, 16
      %v3175 = vrot.slane %v3173, 4
      %v3176 = vor.u32 %v3175, %v3171
      %v3177 = vrot.slane %v3176, 4
      %v3179 = vshll.u32 %v3131, 16
      %v3181 = vrot.slane %v3179, 5
      %v3182 = vsel %vm958, %v3177, %v3181
      %v3184 = vshrl.u32 %v3132, 16
      %v3186 = vrot.slane %v3184, 4
      %v3187 = vshll.u32 %v3132, 16
      %v3189 = vrot.slane %v3187, 5
      %v3190 = vor.u32 %v3186, %v3189
      %v3191 = vrot.slane %v3190, 4
      %v3193 = vshll.u32 %v3133, 16
      %v3195 = vrot.slane %v3193, 5
      %v3196 = vsel %vm958, %v3191, %v3195
      %v3197 = vshrl.u32 %v3133, 16
      %v3199 = vrot.slane %v3197, 4
      %v3200 = vor.u32 %v3199, %v3195
      %v3201 = vrot.slane %v3200, 4
      %v3203 = vshll.u32 %v3134, 16
      %v3205 = vrot.slane %v3203, 5
      %v3206 = vsel %vm958, %v3201, %v3205
      %v3208 = vshrl.u32 %v3135, 16
      %v3210 = vrot.slane %v3208, 4
      %v3211 = vshll.u32 %v3135, 16
      %v3213 = vrot.slane %v3211, 5
      %v3214 = vor.u32 %v3210, %v3213
      %v3215 = vrot.slane %v3214, 4
      %v3217 = vshll.u32 %v3136, 16
      %v3219 = vrot.slane %v3217, 5
      %v3220 = vsel %vm958, %v3215, %v3219
      %v3221 = vshrl.u32 %v3136, 16
      %v3223 = vrot.slane %v3221, 4
      %v3224 = vor.u32 %v3223, %v3219
      %v3225 = vrot.slane %v3224, 4
      %v3227 = vshll.u32 %v3137, 16
      %v3229 = vrot.slane %v3227, 5
      %v3230 = vsel %vm958, %v3225, %v3229
      %v3232 = vshrl.u32 %v3138, 16
      %v3234 = vrot.slane %v3232, 4
      %v3235 = vshll.u32 %v3138, 16
      %v3237 = vrot.slane %v3235, 5
      %v3238 = vor.u32 %v3234, %v3237
      %v3239 = vrot.slane %v3238, 4
      %v3241 = vshll.u32 %v3139, 16
      %v3243 = vrot.slane %v3241, 5
      %v3244 = vsel %vm958, %v3239, %v3243
      %v3245 = vshrl.u32 %v3139, 16
      %v3247 = vrot.slane %v3245, 4
      %v3248 = vor.u32 %v3247, %v3243
      %v3249 = vrot.slane %v3248, 4
      %v3251 = vshll.u32 %v3140, 16
      %v3253 = vrot.slane %v3251, 5
      %v3254 = vsel %vm958, %v3249, %v3253
      %v3256 = vshrl.u32 %v3141, 16
      %v3258 = vrot.slane %v3256, 4
      %v3259 = vshll.u32 %v3141, 16
      %v3261 = vrot.slane %v3259, 5
      %v3262 = vor.u32 %v3258, %v3261
      %v3263 = vrot.slane %v3262, 4
      %v3265 = vshll.u32 %v3142, 16
      %v3267 = vrot.slane %v3265, 5
      %v3268 = vsel %vm958, %v3263, %v3267
      %v3269 = vshrl.u32 %v3142, 16
      %v3271 = vrot.slane %v3269, 4
      %v3272 = vor.u32 %v3271, %v3267
      %v3273 = vrot.slane %v3272, 4
      %v3275 = vshll.u32 %v3143, 16
      %v3277 = vrot.slane %v3275, 5
      %v3278 = vsel %vm958, %v3273, %v3277
      %v3280 = vshrl.u32 %v3144, 16
      %v3282 = vrot.slane %v3280, 4
      %v3283 = vshll.u32 %v3144, 16
      %v3285 = vrot.slane %v3283, 5
      %v3286 = vor.u32 %v3282, %v3285
      %v3287 = vrot.slane %v3286, 4
      %v3289 = vshll.u32 %v3145, 16
      %v3291 = vrot.slane %v3289, 5
      %v3292 = vsel %vm958, %v3287, %v3291
      %v3293 = vshrl.u32 %v3145, 16
      %v3295 = vrot.slane %v3293, 4
      %v3296 = vor.u32 %v3295, %v3291
      %v3297 = vrot.slane %v3296, 4
      %v3299 = vshll.u32 %v3146, 16
      %v3301 = vrot.slane %v3299, 5
      %v3302 = vsel %vm958, %v3297, %v3301
      %v3304 = vshrl.u32 %v3147, 16
      %v3306 = vrot.slane %v3304, 4
      %v3307 = vshll.u32 %v3147, 16
      %v3309 = vrot.slane %v3307, 5
      %v3310 = vor.u32 %v3306, %v3309
      %v3311 = vrot.slane %v3310, 4
      %v3313 = vshll.u32 %v3148, 16
      %v3315 = vrot.slane %v3313, 5
      %v3316 = vsel %vm958, %v3311, %v3315
      %v3317 = vshrl.u32 %v3148, 16
      %v3319 = vrot.slane %v3317, 4
      %v3320 = vor.u32 %v3319, %v3315
      %v3321 = vrot.slane %v3320, 4
      %v3323 = vshll.u32 %v3149, 16
      %v3325 = vrot.slane %v3323, 5
      %v3326 = vsel %vm958, %v3321, %v3325
      %v3328 = vshrl.u32 %v3150, 16
      %v3330 = vrot.slane %v3328, 4
      %v3331 = vshll.u32 %v3150, 16
      %v3333 = vrot.slane %v3331, 5
      %v3334 = vor.u32 %v3330, %v3333
      %v3335 = vrot.slane %v3334, 4
      %v3337 = vshll.u32 %v3151, 16
      %v3339 = vrot.slane %v3337, 5
      %v3340 = vsel %vm958, %v3335, %v3339
      %v3341 = vshrl.u32 %v3151, 16
      %v3343 = vrot.slane %v3341, 4
      %v3344 = vor.u32 %v3343, %v3339
      %v3345 = vrot.slane %v3344, 4
      %v3347 = vshll.u32 %v3152, 16
      %v3349 = vrot.slane %v3347, 5
      %v3350 = vsel %vm958, %v3345, %v3349
      %v3352 = vshrl.u32 %v3153, 16
      %v3354 = vrot.slane %v3352, 4
      %v3355 = vshll.u32 %v3153, 16
      %v3357 = vrot.slane %v3355, 5
      %v3358 = vor.u32 %v3354, %v3357
      %v3359 = vrot.slane %v3358, 4
      %v3361 = vshll.u32 %v3154, 16
      %v3363 = vrot.slane %v3361, 5
      %v3364 = vsel %vm958, %v3359, %v3363
      %v3365 = vshrl.u32 %v3154, 16
      %v3367 = vrot.slane %v3365, 4
      %v3368 = vor.u32 %v3367, %v3363
      %v3369 = vrot.slane %v3368, 4
      %v3371 = vshll.u32 %v3155, 16
      %v3373 = vrot.slane %v3371, 5
      %v3374 = vsel %vm958, %v3369, %v3373
      %v3376 = vshrl.u32 %v3156, 16
      %v3378 = vrot.slane %v3376, 4
      %v3379 = vshll.u32 %v3156, 16
      %v3381 = vrot.slane %v3379, 5
      %v3382 = vor.u32 %v3378, %v3381
      %v3383 = vrot.slane %v3382, 4
      %v3385 = vshll.u32 %v3157, 16
      %v3387 = vrot.slane %v3385, 5
      %v3388 = vsel %vm958, %v3383, %v3387
      %v3389 = vshrl.u32 %v3157, 16
      %v3391 = vrot.slane %v3389, 4
      %v3392 = vor.u32 %v3391, %v3387
      %v3393 = vrot.slane %v3392, 4
      %v3395 = vshll.u32 %v3158, 16
      %v3397 = vrot.slane %v3395, 5
      %v3398 = vsel %vm958, %v3393, %v3397
      %s3399 = scalar_lea.vmem %s3, 14
      %v3400 = vld [vmem:[%s3399] sm:$0x3]
      %v3401 = vunpack.c.l.b16 %v3172
      %v3402 = vunpack.c.l.b16 %v3182
      %v3403 = vunpack.c.l.b16 %v3196
      %v3404 = vunpack.c.l.b16 %v3206
      %v3405 = vunpack.c.l.b16 %v3220
      %v3406 = vunpack.c.l.b16 %v3230
      %v3407 = vunpack.c.l.b16 %v3244
      %v3408 = vunpack.c.l.b16 %v3254
      %v3409 = vunpack.c.l.b16 %v3268
      %v3410 = vunpack.c.l.b16 %v3278
      %v3411 = vunpack.c.l.b16 %v3292
      %v3412 = vunpack.c.l.b16 %v3302
      %v3413 = vunpack.c.l.b16 %v3316
      %v3414 = vunpack.c.l.b16 %v3326
      %v3415 = vunpack.c.l.b16 %v3340
      %v3416 = vunpack.c.l.b16 %v3350
      %v3417 = vunpack.c.l.b16 %v3364
      %v3418 = vunpack.c.l.b16 %v3374
      %v3419 = vunpack.c.l.b16 %v3388
      %v3420 = vunpack.c.l.b16 %v3398
      %v3421 = vpack.c.b16 %v3402, %v3401
      %v3422 = vpack.c.b16 %v3404, %v3403
      %v3423 = vpack.c.b16 %v3406, %v3405
      %v3424 = vpack.c.b16 %v3408, %v3407
      %v3425 = vpack.c.b16 %v3410, %v3409
      %v3426 = vpack.c.b16 %v3412, %v3411
      %v3427 = vpack.c.b16 %v3414, %v3413
      %v3428 = vpack.c.b16 %v3416, %v3415
      %v3429 = vpack.c.b16 %v3418, %v3417
      %v3430 = vpack.c.b16 %v3420, %v3419
      %v3432 = vsel %vm1231, %v3421, 0
      %v3435 = vsel %vm1231, %v3422, 0
      %v3438 = vsel %vm1231, %v3423, 0
      %v3441 = vsel %vm1231, %v3424, 0
      %v3444 = vsel %vm1231, %v3425, 0
      %v3447 = vsel %vm1231, %v3426, 0
      %v3450 = vsel %vm1231, %v3427, 0
      %v3453 = vsel %vm1231, %v3428, 0
      %v3456 = vsel %vm1231, %v3429, 0
      %v3459 = vsel %vm1231, %v3430, 0
      %v3462 = vsel %vm1262, %v3400, 0
      %3464 = vmatprep.subr.bf16.mxu0 0
      %3465 = vmatpush1.bf16.msra.mxu0 %v3462
      %3466 = vmatprep.subr.bf16.mxu0 0
      %3467 = vmatpush1.bf16.msra.mxu0 0
      %3468 = vmatprep.subr.bf16.mxu0 0
      %3469 = vmatpush1.bf16.msra.mxu0 0
      %3470 = vmatprep.subr.bf16.mxu0 0
      %3471 = vmatpush1.bf16.msra.mxu0 0
      %3472 = vmatprep.subr.bf16.mxu0 0
      %3473 = vmatpush1.bf16.msra.mxu0 0
      %3474 = vmatprep.subr.bf16.mxu0 0
      %3475 = vmatpush1.bf16.msra.mxu0 0
      %3476 = vmatprep.subr.bf16.mxu0 0
      %3477 = vmatpush1.bf16.msra.mxu0 0
      %3478 = vmatprep.subr.bf16.mxu0 0
      %3479 = vmatpush1.bf16.msra.mxu0 0
      %3480 = vmatprep.subr.bf16.mxu0 0
      %3481 = vmatpush1.bf16.msra.mxu0 0
      %3482 = vmatprep.subr.bf16.mxu0 0
      %3483 = vmatpush1.bf16.msra.mxu0 0
      %3484 = vmatprep.subr.bf16.mxu0 0
      %3485 = vmatpush1.bf16.msra.mxu0 0
      %3486 = vmatprep.subr.bf16.mxu0 0
      %3487 = vmatpush1.bf16.msra.mxu0 0
      %3488 = vmatprep.subr.bf16.mxu0 0
      %3489 = vmatpush1.bf16.msra.mxu0 0
      %3490 = vmatprep.subr.bf16.mxu0 0
      %3491 = vmatpush1.bf16.msra.mxu0 0
      %3492 = vmatprep.subr.bf16.mxu0 0
      %3493 = vmatpush1.bf16.msra.mxu0 0
      %3494 = vmatprep.subr.bf16.mxu0 0
      %3495 = vmatpush1.bf16.msra.mxu0 0
      %3496 = vmatprep.mubr.bf16.mxu0 0
      %3497 = vmatmul.mubr.bf16.gmra.mrb[0].mxu0 %v3432
      %v3498 = vpop.f32.mrb[0].mxu0
      %v3499 = vadd.f32 0.0, %v3498
      %v3500 = vpop.f32.mrb[0].mxu0
      %v3501 = vpop.f32.mrb[0].mxu0
      %v3502 = vadd.f32 0.0, %v3501
      %v3503 = vpop.f32.mrb[0].mxu0
      %3504 = vmatprep.mubr.bf16.mxu0 0
      %3505 = vmatmul.mubr.bf16.gmra.mrb[0].mxu0 %v3435
      %v3506 = vpop.f32.mrb[0].mxu0
      %v3507 = vadd.f32 0.0, %v3506
      %v3508 = vpop.f32.mrb[0].mxu0
      %v3509 = vpop.f32.mrb[0].mxu0
      %v3510 = vadd.f32 0.0, %v3509
      %v3511 = vpop.f32.mrb[0].mxu0
      %3512 = vmatprep.mubr.bf16.mxu0 0
      %3513 = vmatmul.mubr.bf16.gmra.mrb[0].mxu0 %v3438
      %v3514 = vpop.f32.mrb[0].mxu0
      %v3515 = vadd.f32 0.0, %v3514
      %v3516 = vpop.f32.mrb[0].mxu0
      %v3517 = vpop.f32.mrb[0].mxu0
      %v3518 = vadd.f32 0.0, %v3517
      %v3519 = vpop.f32.mrb[0].mxu0
      %3520 = vmatprep.mubr.bf16.mxu0 0
      %3521 = vmatmul.mubr.bf16.gmra.mrb[0].mxu0 %v3441
      %v3522 = vpop.f32.mrb[0].mxu0
      %v3523 = vadd.f32 0.0, %v3522
      %v3524 = vpop.f32.mrb[0].mxu0
      %v3525 = vpop.f32.mrb[0].mxu0
      %v3526 = vadd.f32 0.0, %v3525
      %v3527 = vpop.f32.mrb[0].mxu0
      %3528 = vmatprep.mubr.bf16.mxu0 0
      %3529 = vmatmul.mubr.bf16.gmra.mrb[0].mxu0 %v3444
      %v3530 = vpop.f32.mrb[0].mxu0
      %v3531 = vadd.f32 0.0, %v3530
      %v3532 = vpop.f32.mrb[0].mxu0
      %v3533 = vpop.f32.mrb[0].mxu0
      %v3534 = vadd.f32 0.0, %v3533
      %v3535 = vpop.f32.mrb[0].mxu0
      %3536 = vmatprep.mubr.bf16.mxu0 0
      %3537 = vmatmul.mubr.bf16.gmra.mrb[0].mxu0 %v3447
      %v3538 = vpop.f32.mrb[0].mxu0
      %v3539 = vadd.f32 0.0, %v3538
      %v3540 = vpop.f32.mrb[0].mxu0
      %v3541 = vpop.f32.mrb[0].mxu0
      %v3542 = vadd.f32 0.0, %v3541
      %v3543 = vpop.f32.mrb[0].mxu0
      %3544 = vmatprep.mubr.bf16.mxu0 0
      %3545 = vmatmul.mubr.bf16.gmra.mrb[0].mxu0 %v3450
      %v3546 = vpop.f32.mrb[0].mxu0
      %v3547 = vadd.f32 0.0, %v3546
      %v3548 = vpop.f32.mrb[0].mxu0
      %v3549 = vpop.f32.mrb[0].mxu0
      %v3550 = vadd.f32 0.0, %v3549
      %v3551 = vpop.f32.mrb[0].mxu0
      %3552 = vmatprep.mubr.bf16.mxu0 0
      %3553 = vmatmul.mubr.bf16.gmra.mrb[0].mxu0 %v3453
      %v3554 = vpop.f32.mrb[0].mxu0
      %v3555 = vadd.f32 0.0, %v3554
      %v3556 = vpop.f32.mrb[0].mxu0
      %v3557 = vpop.f32.mrb[0].mxu0
      %v3558 = vadd.f32 0.0, %v3557
      %v3559 = vpop.f32.mrb[0].mxu0
      %3560 = vmatprep.mubr.bf16.mxu0 0
      %3561 = vmatmul.mubr.bf16.gmra.mrb[0].mxu0 %v3456
      %v3562 = vpop.f32.mrb[0].mxu0
      %v3563 = vadd.f32 0.0, %v3562
      %v3564 = vpop.f32.mrb[0].mxu0
      %v3565 = vpop.f32.mrb[0].mxu0
      %v3566 = vadd.f32 0.0, %v3565
      %v3567 = vpop.f32.mrb[0].mxu0
      %3568 = vmatprep.mubr.bf16.mxu0 0
      %3569 = vmatmul.mubr.bf16.gmra.mrb[0].mxu0 %v3459
      %v3570 = vpop.f32.mrb[0].mxu0
      %v3571 = vadd.f32 0.0, %v3570
      %v3572 = vpop.f32.mrb[0].mxu0
      %v3573 = vpop.f32.mrb[0].mxu0
      %v3574 = vadd.f32 0.0, %v3573
      %v3575 = vpop.f32.mrb[0].mxu0
      %3576 = vdwg.mxu0
      %v3577 = vadd.f32 %v3109, %v3499
      %v3578 = vadd.f32 %v3110, %v3502
      %v3579 = vadd.f32 %v3111, %v3507
      %v3580 = vadd.f32 %v3112, %v3510
      %v3581 = vadd.f32 %v3113, %v3515
      %v3582 = vadd.f32 %v3114, %v3518
      %v3583 = vadd.f32 %v3115, %v3523
      %v3584 = vadd.f32 %v3116, %v3526
      %v3585 = vadd.f32 %v3117, %v3531
      %v3586 = vadd.f32 %v3118, %v3534
      %v3587 = vadd.f32 %v3119, %v3539
      %v3588 = vadd.f32 %v3120, %v3542
      %v3589 = vadd.f32 %v3121, %v3547
      %v3590 = vadd.f32 %v3122, %v3550
      %v3591 = vadd.f32 %v3123, %v3555
      %v3592 = vadd.f32 %v3124, %v3558
      %v3593 = vadd.f32 %v3125, %v3563
      %v3594 = vadd.f32 %v3126, %v3566
      %v3595 = vadd.f32 %v3127, %v3571
      %v3596 = vadd.f32 %v3128, %v3574
      %v3597 = vld [vmem:[%s714] sm:$0xe]
      %v3598 = vld [vmem:[%s714 + $0xc] sm:$0xe]
      %v3599 = vld [vmem:[%s714 + $0x18] sm:$0xe]
      %v3600 = vld [vmem:[%s714 + $0x24] sm:$0xe]
      %v3601 = vld [vmem:[%s714 + $0x30] sm:$0xe]
      %v3602 = vld [vmem:[%s714 + $0x3c] sm:$0xe]
      %v3603 = vld [vmem:[%s714 + $0x48] sm:$0xe]
      %v3604 = vld [vmem:[%s714 + $0x54] sm:$0xe]
      %v3605 = vld [vmem:[%s714 + $0x60] sm:$0xe]
      %v3606 = vld [vmem:[%s714 + $0x6c] sm:$0xe]
      %v3637 = vrot.slane %v3597, 5
      %v3638 = vrot.slane %v3637, 4
      %v3639 = vrot.slane %v3130, 5
      %v3640 = vsel %vm1607, %v3638, %v3639
      %v3641 = vrot.slane %v3639, 4
      %v3642 = vrot.slane %v3131, 5
      %v3643 = vsel %vm1607, %v3641, %v3642
      %v3644 = vrot.slane %v3598, 5
      %v3645 = vrot.slane %v3644, 4
      %v3646 = vrot.slane %v3133, 5
      %v3647 = vsel %vm1607, %v3645, %v3646
      %v3648 = vrot.slane %v3646, 4
      %v3649 = vrot.slane %v3134, 5
      %v3650 = vsel %vm1607, %v3648, %v3649
      %v3651 = vrot.slane %v3599, 5
      %v3652 = vrot.slane %v3651, 4
      %v3653 = vrot.slane %v3136, 5
      %v3654 = vsel %vm1607, %v3652, %v3653
      %v3655 = vrot.slane %v3653, 4
      %v3656 = vrot.slane %v3137, 5
      %v3657 = vsel %vm1607, %v3655, %v3656
      %v3658 = vrot.slane %v3600, 5
      %v3659 = vrot.slane %v3658, 4
      %v3660 = vrot.slane %v3139, 5
      %v3661 = vsel %vm1607, %v3659, %v3660
      %v3662 = vrot.slane %v3660, 4
      %v3663 = vrot.slane %v3140, 5
      %v3664 = vsel %vm1607, %v3662, %v3663
      %v3665 = vrot.slane %v3601, 5
      %v3666 = vrot.slane %v3665, 4
      %v3667 = vrot.slane %v3142, 5
      %v3668 = vsel %vm1607, %v3666, %v3667
      %v3669 = vrot.slane %v3667, 4
      %v3670 = vrot.slane %v3143, 5
      %v3671 = vsel %vm1607, %v3669, %v3670
      %v3672 = vrot.slane %v3602, 5
      %v3673 = vrot.slane %v3672, 4
      %v3674 = vrot.slane %v3145, 5
      %v3675 = vsel %vm1607, %v3673, %v3674
      %v3676 = vrot.slane %v3674, 4
      %v3677 = vrot.slane %v3146, 5
      %v3678 = vsel %vm1607, %v3676, %v3677
      %v3679 = vrot.slane %v3603, 5
      %v3680 = vrot.slane %v3679, 4
      %v3681 = vrot.slane %v3148, 5
      %v3682 = vsel %vm1607, %v3680, %v3681
      %v3683 = vrot.slane %v3681, 4
      %v3684 = vrot.slane %v3149, 5
      %v3685 = vsel %vm1607, %v3683, %v3684
      %v3686 = vrot.slane %v3604, 5
      %v3687 = vrot.slane %v3686, 4
      %v3688 = vrot.slane %v3151, 5
      %v3689 = vsel %vm1607, %v3687, %v3688
      %v3690 = vrot.slane %v3688, 4
      %v3691 = vrot.slane %v3152, 5
      %v3692 = vsel %vm1607, %v3690, %v3691
      %v3693 = vrot.slane %v3605, 5
      %v3694 = vrot.slane %v3693, 4
      %v3695 = vrot.slane %v3154, 5
      %v3696 = vsel %vm1607, %v3694, %v3695
      %v3697 = vrot.slane %v3695, 4
      %v3698 = vrot.slane %v3155, 5
      %v3699 = vsel %vm1607, %v3697, %v3698
      %v3700 = vrot.slane %v3606, 5
      %v3701 = vrot.slane %v3700, 4
      %v3702 = vrot.slane %v3157, 5
      %v3703 = vsel %vm1607, %v3701, %v3702
      %v3704 = vrot.slane %v3702, 4
      %v3705 = vrot.slane %v3158, 5
      %v3706 = vsel %vm1607, %v3704, %v3705
      %s3707 = scalar_lea.vmem %s3, 16
      %v3708 = vld [vmem:[%s3707] sm:$0x3]
      %v3709 = vunpack.c.l.b16 %v3640
      %v3710 = vunpack.c.l.b16 %v3643
      %v3711 = vunpack.c.l.b16 %v3647
      %v3712 = vunpack.c.l.b16 %v3650
      %v3713 = vunpack.c.l.b16 %v3654
      %v3714 = vunpack.c.l.b16 %v3657
      %v3715 = vunpack.c.l.b16 %v3661
      %v3716 = vunpack.c.l.b16 %v3664
      %v3717 = vunpack.c.l.b16 %v3668
      %v3718 = vunpack.c.l.b16 %v3671
      %v3719 = vunpack.c.l.b16 %v3675
      %v3720 = vunpack.c.l.b16 %v3678
      %v3721 = vunpack.c.l.b16 %v3682
      %v3722 = vunpack.c.l.b16 %v3685
      %v3723 = vunpack.c.l.b16 %v3689
      %v3724 = vunpack.c.l.b16 %v3692
      %v3725 = vunpack.c.l.b16 %v3696
      %v3726 = vunpack.c.l.b16 %v3699
      %v3727 = vunpack.c.l.b16 %v3703
      %v3728 = vunpack.c.l.b16 %v3706
      %v3729 = vpack.c.b16 %v3710, %v3709
      %v3730 = vpack.c.b16 %v3712, %v3711
      %v3731 = vpack.c.b16 %v3714, %v3713
      %v3732 = vpack.c.b16 %v3716, %v3715
      %v3733 = vpack.c.b16 %v3718, %v3717
      %v3734 = vpack.c.b16 %v3720, %v3719
      %v3735 = vpack.c.b16 %v3722, %v3721
      %v3736 = vpack.c.b16 %v3724, %v3723
      %v3737 = vpack.c.b16 %v3726, %v3725
      %v3738 = vpack.c.b16 %v3728, %v3727
      %v3740 = vsel %vm1231, %v3729, 0
      %v3743 = vsel %vm1231, %v3730, 0
      %v3746 = vsel %vm1231, %v3731, 0
      %v3749 = vsel %vm1231, %v3732, 0
      %v3752 = vsel %vm1231, %v3733, 0
      %v3755 = vsel %vm1231, %v3734, 0
      %v3758 = vsel %vm1231, %v3735, 0
      %v3761 = vsel %vm1231, %v3736, 0
      %v3764 = vsel %vm1231, %v3737, 0
      %v3767 = vsel %vm1231, %v3738, 0
      %v3770 = vsel %vm1262, %v3708, 0
      %3772 = vmatprep.subr.bf16.mxu0 0
      %3773 = vmatpush1.bf16.msra.mxu0 %v3770
      %3774 = vmatprep.subr.bf16.mxu0 0
      %3775 = vmatpush1.bf16.msra.mxu0 0
      %3776 = vmatprep.subr.bf16.mxu0 0
      %3777 = vmatpush1.bf16.msra.mxu0 0
      %3778 = vmatprep.subr.bf16.mxu0 0
      %3779 = vmatpush1.bf16.msra.mxu0 0
      %3780 = vmatprep.subr.bf16.mxu0 0
      %3781 = vmatpush1.bf16.msra.mxu0 0
      %3782 = vmatprep.subr.bf16.mxu0 0
      %3783 = vmatpush1.bf16.msra.mxu0 0
      %3784 = vmatprep.subr.bf16.mxu0 0
      %3785 = vmatpush1.bf16.msra.mxu0 0
      %3786 = vmatprep.subr.bf16.mxu0 0
      %3787 = vmatpush1.bf16.msra.mxu0 0
      %3788 = vmatprep.subr.bf16.mxu0 0
      %3789 = vmatpush1.bf16.msra.mxu0 0
      %3790 = vmatprep.subr.bf16.mxu0 0
      %3791 = vmatpush1.bf16.msra.mxu0 0
      %3792 = vmatprep.subr.bf16.mxu0 0
      %3793 = vmatpush1.bf16.msra.mxu0 0
      %3794 = vmatprep.subr.bf16.mxu0 0
      %3795 = vmatpush1.bf16.msra.mxu0 0
      %3796 = vmatprep.subr.bf16.mxu0 0
      %3797 = vmatpush1.bf16.msra.mxu0 0
      %3798 = vmatprep.subr.bf16.mxu0 0
      %3799 = vmatpush1.bf16.msra.mxu0 0
      %3800 = vmatprep.subr.bf16.mxu0 0
      %3801 = vmatpush1.bf16.msra.mxu0 0
      %3802 = vmatprep.subr.bf16.mxu0 0
      %3803 = vmatpush1.bf16.msra.mxu0 0
      %3804 = vmatprep.mubr.bf16.mxu0 0
      %3805 = vmatmul.mubr.bf16.gmra.mrb[0].mxu0 %v3740
      %v3806 = vpop.f32.mrb[0].mxu0
      %v3807 = vadd.f32 0.0, %v3806
      %v3808 = vpop.f32.mrb[0].mxu0
      %v3809 = vpop.f32.mrb[0].mxu0
      %v3810 = vadd.f32 0.0, %v3809
      %v3811 = vpop.f32.mrb[0].mxu0
      %3812 = vmatprep.mubr.bf16.mxu0 0
      %3813 = vmatmul.mubr.bf16.gmra.mrb[0].mxu0 %v3743
      %v3814 = vpop.f32.mrb[0].mxu0
      %v3815 = vadd.f32 0.0, %v3814
      %v3816 = vpop.f32.mrb[0].mxu0
      %v3817 = vpop.f32.mrb[0].mxu0
      %v3818 = vadd.f32 0.0, %v3817
      %v3819 = vpop.f32.mrb[0].mxu0
      %3820 = vmatprep.mubr.bf16.mxu0 0
      %3821 = vmatmul.mubr.bf16.gmra.mrb[0].mxu0 %v3746
      %v3822 = vpop.f32.mrb[0].mxu0
      %v3823 = vadd.f32 0.0, %v3822
      %v3824 = vpop.f32.mrb[0].mxu0
      %v3825 = vpop.f32.mrb[0].mxu0
      %v3826 = vadd.f32 0.0, %v3825
      %v3827 = vpop.f32.mrb[0].mxu0
      %3828 = vmatprep.mubr.bf16.mxu0 0
      %3829 = vmatmul.mubr.bf16.gmra.mrb[0].mxu0 %v3749
      %v3830 = vpop.f32.mrb[0].mxu0
      %v3831 = vadd.f32 0.0, %v3830
      %v3832 = vpop.f32.mrb[0].mxu0
      %v3833 = vpop.f32.mrb[0].mxu0
      %v3834 = vadd.f32 0.0, %v3833
      %v3835 = vpop.f32.mrb[0].mxu0
      %3836 = vmatprep.mubr.bf16.mxu0 0
      %3837 = vmatmul.mubr.bf16.gmra.mrb[0].mxu0 %v3752
      %v3838 = vpop.f32.mrb[0].mxu0
      %v3839 = vadd.f32 0.0, %v3838
      %v3840 = vpop.f32.mrb[0].mxu0
      %v3841 = vpop.f32.mrb[0].mxu0
      %v3842 = vadd.f32 0.0, %v3841
      %v3843 = vpop.f32.mrb[0].mxu0
      %3844 = vmatprep.mubr.bf16.mxu0 0
      %3845 = vmatmul.mubr.bf16.gmra.mrb[0].mxu0 %v3755
      %v3846 = vpop.f32.mrb[0].mxu0
      %v3847 = vadd.f32 0.0, %v3846
      %v3848 = vpop.f32.mrb[0].mxu0
      %v3849 = vpop.f32.mrb[0].mxu0
      %v3850 = vadd.f32 0.0, %v3849
      %v3851 = vpop.f32.mrb[0].mxu0
      %3852 = vmatprep.mubr.bf16.mxu0 0
      %3853 = vmatmul.mubr.bf16.gmra.mrb[0].mxu0 %v3758
      %v3854 = vpop.f32.mrb[0].mxu0
      %v3855 = vadd.f32 0.0, %v3854
      %v3856 = vpop.f32.mrb[0].mxu0
      %v3857 = vpop.f32.mrb[0].mxu0
      %v3858 = vadd.f32 0.0, %v3857
      %v3859 = vpop.f32.mrb[0].mxu0
      %3860 = vmatprep.mubr.bf16.mxu0 0
      %3861 = vmatmul.mubr.bf16.gmra.mrb[0].mxu0 %v3761
      %v3862 = vpop.f32.mrb[0].mxu0
      %v3863 = vadd.f32 0.0, %v3862
      %v3864 = vpop.f32.mrb[0].mxu0
      %v3865 = vpop.f32.mrb[0].mxu0
      %v3866 = vadd.f32 0.0, %v3865
      %v3867 = vpop.f32.mrb[0].mxu0
      %3868 = vmatprep.mubr.bf16.mxu0 0
      %3869 = vmatmul.mubr.bf16.gmra.mrb[0].mxu0 %v3764
      %v3870 = vpop.f32.mrb[0].mxu0
      %v3871 = vadd.f32 0.0, %v3870
      %v3872 = vpop.f32.mrb[0].mxu0
      %v3873 = vpop.f32.mrb[0].mxu0
      %v3874 = vadd.f32 0.0, %v3873
      %v3875 = vpop.f32.mrb[0].mxu0
      %3876 = vmatprep.mubr.bf16.mxu0 0
      %3877 = vmatmul.mubr.bf16.gmra.mrb[0].mxu0 %v3767
      %v3878 = vpop.f32.mrb[0].mxu0
      %v3879 = vadd.f32 0.0, %v3878
      %v3880 = vpop.f32.mrb[0].mxu0
      %v3881 = vpop.f32.mrb[0].mxu0
      %v3882 = vadd.f32 0.0, %v3881
      %v3883 = vpop.f32.mrb[0].mxu0
      %3884 = vdwg.mxu0
      %v3885 = vadd.f32 %v3577, %v3807
      %v3886 = vadd.f32 %v3578, %v3810
      %v3887 = vadd.f32 %v3579, %v3815
      %v3888 = vadd.f32 %v3580, %v3818
      %v3889 = vadd.f32 %v3581, %v3823
      %v3890 = vadd.f32 %v3582, %v3826
      %v3891 = vadd.f32 %v3583, %v3831
      %v3892 = vadd.f32 %v3584, %v3834
      %v3893 = vadd.f32 %v3585, %v3839
      %v3894 = vadd.f32 %v3586, %v3842
      %v3895 = vadd.f32 %v3587, %v3847
      %v3896 = vadd.f32 %v3588, %v3850
      %v3897 = vadd.f32 %v3589, %v3855
      %v3898 = vadd.f32 %v3590, %v3858
      %v3899 = vadd.f32 %v3591, %v3863
      %v3900 = vadd.f32 %v3592, %v3866
      %v3901 = vadd.f32 %v3593, %v3871
      %v3902 = vadd.f32 %v3594, %v3874
      %v3903 = vadd.f32 %v3595, %v3879
      %v3904 = vadd.f32 %v3596, %v3882
      %v3905 = vld [vmem:[%s4] sm:$0x1]
      %v3907 = vlaneseq
      %v3908 = vshrl.u32 %v3907, 7
      %v3909 = vsub.s32 0, %v3908
      %v3910 = vrot.slane %v3905, %v3909
      %v3912 = vadd.f32 %v3885, %v3910
      %v3913 = vadd.f32 %v3886, %v3910
      %v3914 = vadd.f32 %v3887, %v3910
      %v3915 = vadd.f32 %v3888, %v3910
      %v3916 = vadd.f32 %v3889, %v3910
      %v3917 = vadd.f32 %v3890, %v3910
      %v3918 = vadd.f32 %v3891, %v3910
      %v3919 = vadd.f32 %v3892, %v3910
      %v3920 = vadd.f32 %v3893, %v3910
      %v3921 = vadd.f32 %v3894, %v3910
      %v3922 = vadd.f32 %v3895, %v3910
      %v3923 = vadd.f32 %v3896, %v3910
      %v3924 = vadd.f32 %v3897, %v3910
      %v3925 = vadd.f32 %v3898, %v3910
      %v3926 = vadd.f32 %v3899, %v3910
      %v3927 = vadd.f32 %v3900, %v3910
      %v3928 = vadd.f32 %v3901, %v3910
      %v3929 = vadd.f32 %v3902, %v3910
      %v3930 = vadd.f32 %v3903, %v3910
      %v3931 = vadd.f32 %v3904, %v3910
      %v3932 = vmax.f32 %v3912, 0.0
      %v3933 = vmax.f32 %v3913, 0.0
      %v3934 = vmax.f32 %v3914, 0.0
      %v3935 = vmax.f32 %v3915, 0.0
      %v3936 = vmax.f32 %v3916, 0.0
      %v3937 = vmax.f32 %v3917, 0.0
      %v3938 = vmax.f32 %v3918, 0.0
      %v3939 = vmax.f32 %v3919, 0.0
      %v3940 = vmax.f32 %v3920, 0.0
      %v3941 = vmax.f32 %v3921, 0.0
      %v3942 = vmax.f32 %v3922, 0.0
      %v3943 = vmax.f32 %v3923, 0.0
      %v3944 = vmax.f32 %v3924, 0.0
      %v3945 = vmax.f32 %v3925, 0.0
      %v3946 = vmax.f32 %v3926, 0.0
      %v3947 = vmax.f32 %v3927, 0.0
      %v3948 = vmax.f32 %v3928, 0.0
      %v3949 = vmax.f32 %v3929, 0.0
      %v3950 = vmax.f32 %v3930, 0.0
      %v3951 = vmax.f32 %v3931, 0.0
      %v3952 = vpack.c.bf16 %v3933, %v3932
      %v3953 = vpack.c.bf16 %v3935, %v3934
      %v3954 = vpack.c.bf16 %v3937, %v3936
      %v3955 = vpack.c.bf16 %v3939, %v3938
      %v3956 = vpack.c.bf16 %v3941, %v3940
      %v3957 = vpack.c.bf16 %v3943, %v3942
      %v3958 = vpack.c.bf16 %v3945, %v3944
      %v3959 = vpack.c.bf16 %v3947, %v3946
      %v3960 = vpack.c.bf16 %v3949, %v3948
      %v3961 = vpack.c.bf16 %v3951, %v3950
      %v3962 = vld [vmem:[#allocation3] sm:$0x1]
      %v3963 = vsel %vm460, 0, %v3962
      %3964 = vst [vmem:[#allocation3] sm:$0x1] %v3963
      %v3965 = vld [vmem:[#allocation3 + $0xc] sm:$0x1]
      %v3966 = vsel %vm460, 0, %v3965
      %3967 = vst [vmem:[#allocation3 + $0xc] sm:$0x1] %v3966
      %v3968 = vld [vmem:[#allocation3 + $0x18] sm:$0x1]
      %v3969 = vsel %vm460, 0, %v3968
      %3970 = vst [vmem:[#allocation3 + $0x18] sm:$0x1] %v3969
      %v3971 = vld [vmem:[#allocation3 + $0x24] sm:$0x1]
      %v3972 = vsel %vm460, 0, %v3971
      %3973 = vst [vmem:[#allocation3 + $0x24] sm:$0x1] %v3972
      %v3974 = vld [vmem:[#allocation3 + $0x30] sm:$0x1]
      %v3975 = vsel %vm460, 0, %v3974
      %3976 = vst [vmem:[#allocation3 + $0x30] sm:$0x1] %v3975
      %v3977 = vld [vmem:[#allocation3 + $0x3c] sm:$0x1]
      %v3978 = vsel %vm460, 0, %v3977
      %3979 = vst [vmem:[#allocation3 + $0x3c] sm:$0x1] %v3978
      %v3980 = vld [vmem:[#allocation3 + $0x48] sm:$0x1]
      %v3981 = vsel %vm460, 0, %v3980
      %3982 = vst [vmem:[#allocation3 + $0x48] sm:$0x1] %v3981
      %v3983 = vld [vmem:[#allocation3 + $0x54] sm:$0x1]
      %v3984 = vsel %vm460, 0, %v3983
      %3985 = vst [vmem:[#allocation3 + $0x54] sm:$0x1] %v3984
      %v3986 = vld [vmem:[#allocation3 + $0x60] sm:$0x1]
      %v3987 = vsel %vm460, 0, %v3986
      %3988 = vst [vmem:[#allocation3 + $0x60] sm:$0x1] %v3987
      %v3989 = vld [vmem:[#allocation3 + $0x6c] sm:$0x1]
      %v3990 = vsel %vm460, 0, %v3989
      %3991 = vst [vmem:[#allocation3 + $0x6c] sm:$0x1] %v3990
      %v3992 = vld [vmem:[#allocation3 + $0x8] sm:$0xf]
      %v3993 = vsel %vm499, 0, %v3992
      %3994 = vst [vmem:[#allocation3 + $0x8] sm:$0xf] %v3993
      %v3995 = vld [vmem:[#allocation3 + $0x14] sm:$0xf]
      %v3996 = vsel %vm499, 0, %v3995
      %3997 = vst [vmem:[#allocation3 + $0x14] sm:$0xf] %v3996
      %v3998 = vld [vmem:[#allocation3 + $0x20] sm:$0xf]
      %v3999 = vsel %vm499, 0, %v3998
      %4000 = vst [vmem:[#allocation3 + $0x20] sm:$0xf] %v3999
      %v4001 = vld [vmem:[#allocation3 + $0x2c] sm:$0xf]
      %v4002 = vsel %vm499, 0, %v4001
      %4003 = vst [vmem:[#allocation3 + $0x2c] sm:$0xf] %v4002
      %v4004 = vld [vmem:[#allocation3 + $0x38] sm:$0xf]
      %v4005 = vsel %vm499, 0, %v4004
      %4006 = vst [vmem:[#allocation3 + $0x38] sm:$0xf] %v4005
      %v4007 = vld [vmem:[#allocation3 + $0x44] sm:$0xf]
      %v4008 = vsel %vm499, 0, %v4007
      %4009 = vst [vmem:[#allocation3 + $0x44] sm:$0xf] %v4008
      %v4010 = vld [vmem:[#allocation3 + $0x50] sm:$0xf]
      %v4011 = vsel %vm499, 0, %v4010
      %4012 = vst [vmem:[#allocation3 + $0x50] sm:$0xf] %v4011
      %v4013 = vld [vmem:[#allocation3 + $0x5c] sm:$0xf]
      %v4014 = vsel %vm499, 0, %v4013
      %4015 = vst [vmem:[#allocation3 + $0x5c] sm:$0xf] %v4014
      %v4016 = vld [vmem:[#allocation3 + $0x68] sm:$0xf]
      %v4017 = vsel %vm499, 0, %v4016
      %4018 = vst [vmem:[#allocation3 + $0x68] sm:$0xf] %v4017
      %v4019 = vld [vmem:[#allocation3 + $0x74] sm:$0xf]
      %v4020 = vsel %vm499, 0, %v4019
      %4021 = vst [vmem:[#allocation3 + $0x74] sm:$0xf] %v4020
      %v4032 = vunpack.c.l.b16 %v3952
      %v4033 = vunpack.c.h.b16 %v3952
      %v4034 = vunpack.c.l.b16 %v3953
      %v4035 = vunpack.c.h.b16 %v3953
      %v4036 = vunpack.c.l.b16 %v3954
      %v4037 = vunpack.c.h.b16 %v3954
      %v4038 = vunpack.c.l.b16 %v3955
      %v4039 = vunpack.c.h.b16 %v3955
      %v4040 = vunpack.c.l.b16 %v3956
      %v4041 = vunpack.c.h.b16 %v3956
      %v4042 = vunpack.c.l.b16 %v3957
      %v4043 = vunpack.c.h.b16 %v3957
      %v4044 = vunpack.c.l.b16 %v3958
      %v4045 = vunpack.c.h.b16 %v3958
      %v4046 = vunpack.c.l.b16 %v3959
      %v4047 = vunpack.c.h.b16 %v3959
      %v4048 = vunpack.c.l.b16 %v3960
      %v4049 = vunpack.c.h.b16 %v3960
      %v4050 = vunpack.c.l.b16 %v3961
      %v4051 = vunpack.c.h.b16 %v3961
      %v4052 = vpack.c.b16 %v4032, %v4032
      %v4053 = vpack.c.b16 %v4033, %v4033
      %v4054 = vpack.c.b16 %v4034, %v4034
      %v4055 = vpack.c.b16 %v4035, %v4035
      %v4056 = vpack.c.b16 %v4036, %v4036
      %v4057 = vpack.c.b16 %v4037, %v4037
      %v4058 = vpack.c.b16 %v4038, %v4038
      %v4059 = vpack.c.b16 %v4039, %v4039
      %v4060 = vpack.c.b16 %v4040, %v4040
      %v4061 = vpack.c.b16 %v4041, %v4041
      %v4062 = vpack.c.b16 %v4042, %v4042
      %v4063 = vpack.c.b16 %v4043, %v4043
      %v4064 = vpack.c.b16 %v4044, %v4044
      %v4065 = vpack.c.b16 %v4045, %v4045
      %v4066 = vpack.c.b16 %v4046, %v4046
      %v4067 = vpack.c.b16 %v4047, %v4047
      %v4068 = vpack.c.b16 %v4048, %v4048
      %v4069 = vpack.c.b16 %v4049, %v4049
      %v4070 = vpack.c.b16 %v4050, %v4050
      %v4071 = vpack.c.b16 %v4051, %v4051
      %v4073 = vshrl.u32 %v4052, 16
      %v4075 = vrot.slane %v4073, 7
      %v4076 = vshll.u32 %v4052, 16
      %v4078 = vor.u32 %v4075, %v4076
      %v4079 = vrot.slane %v4075, 4
      %v4081 = vshrl.u32 %v4053, 16
      %v4083 = vrot.slane %v4081, 7
      %v4084 = vshll.u32 %v4053, 16
      %v4086 = vor.u32 %v4083, %v4084
      %v4087 = vsel %vm553, %v4079, %v4086
      %v4088 = vrot.slane %v4083, 4
      %v4090 = vshrl.u32 %v4054, 16
      %v4092 = vrot.slane %v4090, 7
      %v4093 = vshll.u32 %v4054, 16
      %v4095 = vor.u32 %v4092, %v4093
      %v4096 = vrot.slane %v4092, 4
      %v4098 = vshrl.u32 %v4055, 16
      %v4100 = vrot.slane %v4098, 7
      %v4101 = vshll.u32 %v4055, 16
      %v4103 = vor.u32 %v4100, %v4101
      %v4104 = vsel %vm553, %v4096, %v4103
      %v4105 = vrot.slane %v4100, 4
      %v4107 = vshrl.u32 %v4056, 16
      %v4109 = vrot.slane %v4107, 7
      %v4110 = vshll.u32 %v4056, 16
      %v4112 = vor.u32 %v4109, %v4110
      %v4113 = vrot.slane %v4109, 4
      %v4115 = vshrl.u32 %v4057, 16
      %v4117 = vrot.slane %v4115, 7
      %v4118 = vshll.u32 %v4057, 16
      %v4120 = vor.u32 %v4117, %v4118
      %v4121 = vsel %vm553, %v4113, %v4120
      %v4122 = vrot.slane %v4117, 4
      %v4124 = vshrl.u32 %v4058, 16
      %v4126 = vrot.slane %v4124, 7
      %v4127 = vshll.u32 %v4058, 16
      %v4129 = vor.u32 %v4126, %v4127
      %v4130 = vrot.slane %v4126, 4
      %v4132 = vshrl.u32 %v4059, 16
      %v4134 = vrot.slane %v4132, 7
      %v4135 = vshll.u32 %v4059, 16
      %v4137 = vor.u32 %v4134, %v4135
      %v4138 = vsel %vm553, %v4130, %v4137
      %v4139 = vrot.slane %v4134, 4
      %v4141 = vshrl.u32 %v4060, 16
      %v4143 = vrot.slane %v4141, 7
      %v4144 = vshll.u32 %v4060, 16
      %v4146 = vor.u32 %v4143, %v4144
      %v4147 = vrot.slane %v4143, 4
      %v4149 = vshrl.u32 %v4061, 16
      %v4151 = vrot.slane %v4149, 7
      %v4152 = vshll.u32 %v4061, 16
      %v4154 = vor.u32 %v4151, %v4152
      %v4155 = vsel %vm553, %v4147, %v4154
      %v4156 = vrot.slane %v4151, 4
      %v4158 = vshrl.u32 %v4062, 16
      %v4160 = vrot.slane %v4158, 7
      %v4161 = vshll.u32 %v4062, 16
      %v4163 = vor.u32 %v4160, %v4161
      %v4164 = vrot.slane %v4160, 4
      %v4166 = vshrl.u32 %v4063, 16
      %v4168 = vrot.slane %v4166, 7
      %v4169 = vshll.u32 %v4063, 16
      %v4171 = vor.u32 %v4168, %v4169
      %v4172 = vsel %vm553, %v4164, %v4171
      %v4173 = vrot.slane %v4168, 4
      %v4175 = vshrl.u32 %v4064, 16
      %v4177 = vrot.slane %v4175, 7
      %v4178 = vshll.u32 %v4064, 16
      %v4180 = vor.u32 %v4177, %v4178
      %v4181 = vrot.slane %v4177, 4
      %v4183 = vshrl.u32 %v4065, 16
      %v4185 = vrot.slane %v4183, 7
      %v4186 = vshll.u32 %v4065, 16
      %v4188 = vor.u32 %v4185, %v4186
      %v4189 = vsel %vm553, %v4181, %v4188
      %v4190 = vrot.slane %v4185, 4
      %v4192 = vshrl.u32 %v4066, 16
      %v4194 = vrot.slane %v4192, 7
      %v4195 = vshll.u32 %v4066, 16
      %v4197 = vor.u32 %v4194, %v4195
      %v4198 = vrot.slane %v4194, 4
      %v4200 = vshrl.u32 %v4067, 16
      %v4202 = vrot.slane %v4200, 7
      %v4203 = vshll.u32 %v4067, 16
      %v4205 = vor.u32 %v4202, %v4203
      %v4206 = vsel %vm553, %v4198, %v4205
      %v4207 = vrot.slane %v4202, 4
      %v4209 = vshrl.u32 %v4068, 16
      %v4211 = vrot.slane %v4209, 7
      %v4212 = vshll.u32 %v4068, 16
      %v4214 = vor.u32 %v4211, %v4212
      %v4215 = vrot.slane %v4211, 4
      %v4217 = vshrl.u32 %v4069, 16
      %v4219 = vrot.slane %v4217, 7
      %v4220 = vshll.u32 %v4069, 16
      %v4222 = vor.u32 %v4219, %v4220
      %v4223 = vsel %vm553, %v4215, %v4222
      %v4224 = vrot.slane %v4219, 4
      %v4226 = vshrl.u32 %v4070, 16
      %v4228 = vrot.slane %v4226, 7
      %v4229 = vshll.u32 %v4070, 16
      %v4231 = vor.u32 %v4228, %v4229
      %v4232 = vrot.slane %v4228, 4
      %v4234 = vshrl.u32 %v4071, 16
      %v4236 = vrot.slane %v4234, 7
      %v4237 = vshll.u32 %v4071, 16
      %v4239 = vor.u32 %v4236, %v4237
      %v4240 = vsel %vm553, %v4232, %v4239
      %v4241 = vrot.slane %v4236, 4
      %v4272 = vld [vmem:[#allocation3] sm:$0xf]
      %v4273 = vsel %vm499, %v4078, %v4272
      %4274 = vst [vmem:[#allocation3] sm:$0xf] %v4273
      %4275 = vst.msk [vmem:[#allocation3 + $0x4] sm:$0xf] %vm718, %v4087
      %v4276 = vld [vmem:[#allocation3 + $0x8] sm:$0x1]
      %v4277 = vsel %vm460, %v4088, %v4276
      %4278 = vst [vmem:[#allocation3 + $0x8] sm:$0x1] %v4277
      %v4279 = vld [vmem:[#allocation3 + $0xc] sm:$0xf]
      %v4280 = vsel %vm499, %v4095, %v4279
      %4281 = vst [vmem:[#allocation3 + $0xc] sm:$0xf] %v4280
      %4282 = vst.msk [vmem:[#allocation3 + $0x10] sm:$0xf] %vm718, %v4104
      %v4283 = vld [vmem:[#allocation3 + $0x14] sm:$0x1]
      %v4284 = vsel %vm460, %v4105, %v4283
      %4285 = vst [vmem:[#allocation3 + $0x14] sm:$0x1] %v4284
      %v4286 = vld [vmem:[#allocation3 + $0x18] sm:$0xf]
      %v4287 = vsel %vm499, %v4112, %v4286
      %4288 = vst [vmem:[#allocation3 + $0x18] sm:$0xf] %v4287
      %4289 = vst.msk [vmem:[#allocation3 + $0x1c] sm:$0xf] %vm718, %v4121
      %v4290 = vld [vmem:[#allocation3 + $0x20] sm:$0x1]
      %v4291 = vsel %vm460, %v4122, %v4290
      %4292 = vst [vmem:[#allocation3 + $0x20] sm:$0x1] %v4291
      %v4293 = vld [vmem:[#allocation3 + $0x24] sm:$0xf]
      %v4294 = vsel %vm499, %v4129, %v4293
      %4295 = vst [vmem:[#allocation3 + $0x24] sm:$0xf] %v4294
      %4296 = vst.msk [vmem:[#allocation3 + $0x28] sm:$0xf] %vm718, %v4138
      %v4297 = vld [vmem:[#allocation3 + $0x2c] sm:$0x1]
      %v4298 = vsel %vm460, %v4139, %v4297
      %4299 = vst [vmem:[#allocation3 + $0x2c] sm:$0x1] %v4298
      %v4300 = vld [vmem:[#allocation3 + $0x30] sm:$0xf]
      %v4301 = vsel %vm499, %v4146, %v4300
      %4302 = vst [vmem:[#allocation3 + $0x30] sm:$0xf] %v4301
      %4303 = vst.msk [vmem:[#allocation3 + $0x34] sm:$0xf] %vm718, %v4155
      %v4304 = vld [vmem:[#allocation3 + $0x38] sm:$0x1]
      %v4305 = vsel %vm460, %v4156, %v4304
      %4306 = vst [vmem:[#allocation3 + $0x38] sm:$0x1] %v4305
      %v4307 = vld [vmem:[#allocation3 + $0x3c] sm:$0xf]
      %v4308 = vsel %vm499, %v4163, %v4307
      %4309 = vst [vmem:[#allocation3 + $0x3c] sm:$0xf] %v4308
      %4310 = vst.msk [vmem:[#allocation3 + $0x40] sm:$0xf] %vm718, %v4172
      %v4311 = vld [vmem:[#allocation3 + $0x44] sm:$0x1]
      %v4312 = vsel %vm460, %v4173, %v4311
      %4313 = vst [vmem:[#allocation3 + $0x44] sm:$0x1] %v4312
      %v4314 = vld [vmem:[#allocation3 + $0x48] sm:$0xf]
      %v4315 = vsel %vm499, %v4180, %v4314
      %4316 = vst [vmem:[#allocation3 + $0x48] sm:$0xf] %v4315
      %4317 = vst.msk [vmem:[#allocation3 + $0x4c] sm:$0xf] %vm718, %v4189
      %v4318 = vld [vmem:[#allocation3 + $0x50] sm:$0x1]
      %v4319 = vsel %vm460, %v4190, %v4318
      %4320 = vst [vmem:[#allocation3 + $0x50] sm:$0x1] %v4319
      %v4321 = vld [vmem:[#allocation3 + $0x54] sm:$0xf]
      %v4322 = vsel %vm499, %v4197, %v4321
      %4323 = vst [vmem:[#allocation3 + $0x54] sm:$0xf] %v4322
      %4324 = vst.msk [vmem:[#allocation3 + $0x58] sm:$0xf] %vm718, %v4206
      %v4325 = vld [vmem:[#allocation3 + $0x5c] sm:$0x1]
      %v4326 = vsel %vm460, %v4207, %v4325
      %4327 = vst [vmem:[#allocation3 + $0x5c] sm:$0x1] %v4326
      %v4328 = vld [vmem:[#allocation3 + $0x60] sm:$0xf]
      %v4329 = vsel %vm499, %v4214, %v4328
      %4330 = vst [vmem:[#allocation3 + $0x60] sm:$0xf] %v4329
      %4331 = vst.msk [vmem:[#allocation3 + $0x64] sm:$0xf] %vm718, %v4223
      %v4332 = vld [vmem:[#allocation3 + $0x68] sm:$0x1]
      %v4333 = vsel %vm460, %v4224, %v4332
      %4334 = vst [vmem:[#allocation3 + $0x68] sm:$0x1] %v4333
      %v4335 = vld [vmem:[#allocation3 + $0x6c] sm:$0xf]
      %v4336 = vsel %vm499, %v4231, %v4335
      %4337 = vst [vmem:[#allocation3 + $0x6c] sm:$0xf] %v4336
      %4338 = vst.msk [vmem:[#allocation3 + $0x70] sm:$0xf] %vm718, %v4240
      %v4339 = vld [vmem:[#allocation3 + $0x74] sm:$0x1]
      %v4340 = vsel %vm460, %v4241, %v4339
      %4341 = vst [vmem:[#allocation3 + $0x74] sm:$0x1] %v4340
      // Predicated region
      $region57: #{tpu_custom_call.1} parent=47 // pred_check
        %p4342 = pneg %p889
      $region58: #{tpu_custom_call.1} parent=47 // pred_check_branch
        %4344 = sbr.rel (%p4342) target = $region60
      $region59: #{tpu_custom_call.1} parent=47 // pred_region
        %v4345 = vld [vmem:[#allocation3] sm:$0xf]
        %v4346 = vsel %vm499, 0, %v4345
        %4347 = vst [vmem:[#allocation3] sm:$0xf] %v4346
        %4348 = vst.msk [vmem:[#allocation3 + $0x4] sm:$0xf] %vm718, 0
        %v4349 = vld [vmem:[#allocation3 + $0x8] sm:$0x1]
        %v4350 = vsel %vm460, 0, %v4349
        %4351 = vst [vmem:[#allocation3 + $0x8] sm:$0x1] %v4350
      $region60: #{tpu_custom_call.1} parent=47 // pred_fallthru
        _
      // Predicated region
      $region61: #{tpu_custom_call.1} parent=47 // pred_check
        %p4352 = pneg %p907
      $region62: #{tpu_custom_call.1} parent=47 // pred_check_branch
        %4354 = sbr.rel (%p4352) target = $region64
      $region63: #{tpu_custom_call.1} parent=47 // pred_region
        %s4355 = scalar_lea.vmem [#allocation3], 108
        %v4356 = vld [vmem:[%s4355] sm:$0xf]
        %v4357 = vsel %vm499, 0, %v4356
        %4358 = vst [vmem:[%s4355] sm:$0xf] %v4357
        %4359 = vst.msk [vmem:[%s4355 + $0x4] sm:$0xf] %vm718, 0
        %v4360 = vld [vmem:[%s4355 + $0x8] sm:$0x1]
        %v4361 = vsel %vm460, 0, %v4360
        %4362 = vst [vmem:[%s4355 + $0x8] sm:$0x1] %v4361
      $region64: #{tpu_custom_call.1} parent=47 // pred_fallthru
        _
      %v4363 = vld [vmem:[#allocation3] sm:$0xf]
      %v4364 = vld [vmem:[#allocation3 + $0x4] sm:$0xf]
      %v4365 = vld [vmem:[#allocation3 + $0xc] sm:$0xf]
      %v4366 = vld [vmem:[#allocation3 + $0x10] sm:$0xf]
      %v4367 = vld [vmem:[#allocation3 + $0x18] sm:$0xf]
      %v4368 = vld [vmem:[#allocation3 + $0x1c] sm:$0xf]
      %v4369 = vld [vmem:[#allocation3 + $0x24] sm:$0xf]
      %v4370 = vld [vmem:[#allocation3 + $0x28] sm:$0xf]
      %v4371 = vld [vmem:[#allocation3 + $0x30] sm:$0xf]
      %v4372 = vld [vmem:[#allocation3 + $0x34] sm:$0xf]
      %v4373 = vld [vmem:[#allocation3 + $0x3c] sm:$0xf]
      %v4374 = vld [vmem:[#allocation3 + $0x40] sm:$0xf]
      %v4375 = vld [vmem:[#allocation3 + $0x48] sm:$0xf]
      %v4376 = vld [vmem:[#allocation3 + $0x4c] sm:$0xf]
      %v4377 = vld [vmem:[#allocation3 + $0x54] sm:$0xf]
      %v4378 = vld [vmem:[#allocation3 + $0x58] sm:$0xf]
      %v4379 = vld [vmem:[%s5] sm:$0x3]
      %v4380 = vld [vmem:[#allocation3 + $0x8] sm:$0x1]
      %v4381 = vld [vmem:[#allocation3 + $0x14] sm:$0x1]
      %v4382 = vld [vmem:[#allocation3 + $0x20] sm:$0x1]
      %v4383 = vld [vmem:[#allocation3 + $0x2c] sm:$0x1]
      %v4384 = vld [vmem:[#allocation3 + $0x38] sm:$0x1]
      %v4385 = vld [vmem:[#allocation3 + $0x44] sm:$0x1]
      %v4386 = vld [vmem:[#allocation3 + $0x50] sm:$0x1]
      %v4387 = vld [vmem:[#allocation3 + $0x5c] sm:$0x1]
      %v4389 = vshrl.u32 %v4363, 16
      %v4391 = vrot.slane %v4389, 4
      %v4392 = vshll.u32 %v4363, 16
      %v4394 = vrot.slane %v4392, 5
      %v4395 = vor.u32 %v4391, %v4394
      %v4396 = vrot.slane %v4395, 4
      %v4398 = vshll.u32 %v4364, 16
      %v4400 = vrot.slane %v4398, 5
      %v4401 = vsel %vm958, %v4396, %v4400
      %v4402 = vshrl.u32 %v4364, 16
      %v4404 = vrot.slane %v4402, 4
      %v4405 = vor.u32 %v4404, %v4400
      %v4406 = vrot.slane %v4405, 4
      %v4408 = vshll.u32 %v4380, 16
      %v4410 = vrot.slane %v4408, 5
      %v4411 = vsel %vm958, %v4406, %v4410
      %v4413 = vshrl.u32 %v4365, 16
      %v4415 = vrot.slane %v4413, 4
      %v4416 = vshll.u32 %v4365, 16
      %v4418 = vrot.slane %v4416, 5
      %v4419 = vor.u32 %v4415, %v4418
      %v4420 = vrot.slane %v4419, 4
      %v4422 = vshll.u32 %v4366, 16
      %v4424 = vrot.slane %v4422, 5
      %v4425 = vsel %vm958, %v4420, %v4424
      %v4426 = vshrl.u32 %v4366, 16
      %v4428 = vrot.slane %v4426, 4
      %v4429 = vor.u32 %v4428, %v4424
      %v4430 = vrot.slane %v4429, 4
      %v4432 = vshll.u32 %v4381, 16
      %v4434 = vrot.slane %v4432, 5
      %v4435 = vsel %vm958, %v4430, %v4434
      %v4437 = vshrl.u32 %v4367, 16
      %v4439 = vrot.slane %v4437, 4
      %v4440 = vshll.u32 %v4367, 16
      %v4442 = vrot.slane %v4440, 5
      %v4443 = vor.u32 %v4439, %v4442
      %v4444 = vrot.slane %v4443, 4
      %v4446 = vshll.u32 %v4368, 16
      %v4448 = vrot.slane %v4446, 5
      %v4449 = vsel %vm958, %v4444, %v4448
      %v4450 = vshrl.u32 %v4368, 16
      %v4452 = vrot.slane %v4450, 4
      %v4453 = vor.u32 %v4452, %v4448
      %v4454 = vrot.slane %v4453, 4
      %v4456 = vshll.u32 %v4382, 16
      %v4458 = vrot.slane %v4456, 5
      %v4459 = vsel %vm958, %v4454, %v4458
      %v4461 = vshrl.u32 %v4369, 16
      %v4463 = vrot.slane %v4461, 4
      %v4464 = vshll.u32 %v4369, 16
      %v4466 = vrot.slane %v4464, 5
      %v4467 = vor.u32 %v4463, %v4466
      %v4468 = vrot.slane %v4467, 4
      %v4470 = vshll.u32 %v4370, 16
      %v4472 = vrot.slane %v4470, 5
      %v4473 = vsel %vm958, %v4468, %v4472
      %v4474 = vshrl.u32 %v4370, 16
      %v4476 = vrot.slane %v4474, 4
      %v4477 = vor.u32 %v4476, %v4472
      %v4478 = vrot.slane %v4477, 4
      %v4480 = vshll.u32 %v4383, 16
      %v4482 = vrot.slane %v4480, 5
      %v4483 = vsel %vm958, %v4478, %v4482
      %v4485 = vshrl.u32 %v4371, 16
      %v4487 = vrot.slane %v4485, 4
      %v4488 = vshll.u32 %v4371, 16
      %v4490 = vrot.slane %v4488, 5
      %v4491 = vor.u32 %v4487, %v4490
      %v4492 = vrot.slane %v4491, 4
      %v4494 = vshll.u32 %v4372, 16
      %v4496 = vrot.slane %v4494, 5
      %v4497 = vsel %vm958, %v4492, %v4496
      %v4498 = vshrl.u32 %v4372, 16
      %v4500 = vrot.slane %v4498, 4
      %v4501 = vor.u32 %v4500, %v4496
      %v4502 = vrot.slane %v4501, 4
      %v4504 = vshll.u32 %v4384, 16
      %v4506 = vrot.slane %v4504, 5
      %v4507 = vsel %vm958, %v4502, %v4506
      %v4509 = vshrl.u32 %v4373, 16
      %v4511 = vrot.slane %v4509, 4
      %v4512 = vshll.u32 %v4373, 16
      %v4514 = vrot.slane %v4512, 5
      %v4515 = vor.u32 %v4511, %v4514
      %v4516 = vrot.slane %v4515, 4
      %v4518 = vshll.u32 %v4374, 16
      %v4520 = vrot.slane %v4518, 5
      %v4521 = vsel %vm958, %v4516, %v4520
      %v4522 = vshrl.u32 %v4374, 16
      %v4524 = vrot.slane %v4522, 4
      %v4525 = vor.u32 %v4524, %v4520
      %v4526 = vrot.slane %v4525, 4
      %v4528 = vshll.u32 %v4385, 16
      %v4530 = vrot.slane %v4528, 5
      %v4531 = vsel %vm958, %v4526, %v4530
      %v4533 = vshrl.u32 %v4375, 16
      %v4535 = vrot.slane %v4533, 4
      %v4536 = vshll.u32 %v4375, 16
      %v4538 = vrot.slane %v4536, 5
      %v4539 = vor.u32 %v4535, %v4538
      %v4540 = vrot.slane %v4539, 4
      %v4542 = vshll.u32 %v4376, 16
      %v4544 = vrot.slane %v4542, 5
      %v4545 = vsel %vm958, %v4540, %v4544
      %v4546 = vshrl.u32 %v4376, 16
      %v4548 = vrot.slane %v4546, 4
      %v4549 = vor.u32 %v4548, %v4544
      %v4550 = vrot.slane %v4549, 4
      %v4552 = vshll.u32 %v4386, 16
      %v4554 = vrot.slane %v4552, 5
      %v4555 = vsel %vm958, %v4550, %v4554
      %v4557 = vshrl.u32 %v4377, 16
      %v4559 = vrot.slane %v4557, 4
      %v4560 = vshll.u32 %v4377, 16
      %v4562 = vrot.slane %v4560, 5
      %v4563 = vor.u32 %v4559, %v4562
      %v4564 = vrot.slane %v4563, 4
      %v4566 = vshll.u32 %v4378, 16
      %v4568 = vrot.slane %v4566, 5
      %v4569 = vsel %vm958, %v4564, %v4568
      %v4570 = vshrl.u32 %v4378, 16
      %v4572 = vrot.slane %v4570, 4
      %v4573 = vor.u32 %v4572, %v4568
      %v4574 = vrot.slane %v4573, 4
      %v4576 = vshll.u32 %v4387, 16
      %v4578 = vrot.slane %v4576, 5
      %v4579 = vsel %vm958, %v4574, %v4578
      %s4580 = scalar_lea.vmem %s5, 2
      %v4581 = vld [vmem:[%s4580] sm:$0x3]
      %v4582 = vunpack.c.l.b16 %v4401
      %v4583 = vunpack.c.l.b16 %v4411
      %v4584 = vunpack.c.l.b16 %v4425
      %v4585 = vunpack.c.l.b16 %v4435
      %v4586 = vunpack.c.l.b16 %v4449
      %v4587 = vunpack.c.l.b16 %v4459
      %v4588 = vunpack.c.l.b16 %v4473
      %v4589 = vunpack.c.l.b16 %v4483
      %v4590 = vunpack.c.l.b16 %v4497
      %v4591 = vunpack.c.l.b16 %v4507
      %v4592 = vunpack.c.l.b16 %v4521
      %v4593 = vunpack.c.l.b16 %v4531
      %v4594 = vunpack.c.l.b16 %v4545
      %v4595 = vunpack.c.l.b16 %v4555
      %v4596 = vunpack.c.l.b16 %v4569
      %v4597 = vunpack.c.l.b16 %v4579
      %v4598 = vpack.c.b16 %v4583, %v4582
      %v4599 = vpack.c.b16 %v4585, %v4584
      %v4600 = vpack.c.b16 %v4587, %v4586
      %v4601 = vpack.c.b16 %v4589, %v4588
      %v4602 = vpack.c.b16 %v4591, %v4590
      %v4603 = vpack.c.b16 %v4593, %v4592
      %v4604 = vpack.c.b16 %v4595, %v4594
      %v4605 = vpack.c.b16 %v4597, %v4596
      %v4607 = vsel %vm1231, %v4598, 0
      %v4610 = vsel %vm1231, %v4599, 0
      %v4613 = vsel %vm1231, %v4600, 0
      %v4616 = vsel %vm1231, %v4601, 0
      %v4619 = vsel %vm1231, %v4602, 0
      %v4622 = vsel %vm1231, %v4603, 0
      %v4625 = vsel %vm1231, %v4604, 0
      %v4628 = vsel %vm1231, %v4605, 0
      %v4631 = vsel %vm1262, %v4581, 0
      %4633 = vmatprep.subr.bf16.mxu0 0
      %4634 = vmatpush1.bf16.msra.mxu0 %v4631
      %4635 = vmatprep.subr.bf16.mxu0 0
      %4636 = vmatpush1.bf16.msra.mxu0 0
      %4637 = vmatprep.subr.bf16.mxu0 0
      %4638 = vmatpush1.bf16.msra.mxu0 0
      %4639 = vmatprep.subr.bf16.mxu0 0
      %4640 = vmatpush1.bf16.msra.mxu0 0
      %4641 = vmatprep.subr.bf16.mxu0 0
      %4642 = vmatpush1.bf16.msra.mxu0 0
      %4643 = vmatprep.subr.bf16.mxu0 0
      %4644 = vmatpush1.bf16.msra.mxu0 0
      %4645 = vmatprep.subr.bf16.mxu0 0
      %4646 = vmatpush1.bf16.msra.mxu0 0
      %4647 = vmatprep.subr.bf16.mxu0 0
      %4648 = vmatpush1.bf16.msra.mxu0 0
      %4649 = vmatprep.subr.bf16.mxu0 0
      %4650 = vmatpush1.bf16.msra.mxu0 0
      %4651 = vmatprep.subr.bf16.mxu0 0
      %4652 = vmatpush1.bf16.msra.mxu0 0
      %4653 = vmatprep.subr.bf16.mxu0 0
      %4654 = vmatpush1.bf16.msra.mxu0 0
      %4655 = vmatprep.subr.bf16.mxu0 0
      %4656 = vmatpush1.bf16.msra.mxu0 0
      %4657 = vmatprep.subr.bf16.mxu0 0
      %4658 = vmatpush1.bf16.msra.mxu0 0
      %4659 = vmatprep.subr.bf16.mxu0 0
      %4660 = vmatpush1.bf16.msra.mxu0 0
      %4661 = vmatprep.subr.bf16.mxu0 0
      %4662 = vmatpush1.bf16.msra.mxu0 0
      %4663 = vmatprep.subr.bf16.mxu0 0
      %4664 = vmatpush1.bf16.msra.mxu0 0
      %4665 = vmatprep.mubr.bf16.mxu0 0
      %4666 = vmatmul.mubr.bf16.gmra.mrb[0].mxu0 %v4607
      %v4667 = vpop.f32.mrb[0].mxu0
      %v4668 = vadd.f32 0.0, %v4667
      %v4669 = vpop.f32.mrb[0].mxu0
      %v4670 = vpop.f32.mrb[0].mxu0
      %v4671 = vadd.f32 0.0, %v4670
      %v4672 = vpop.f32.mrb[0].mxu0
      %4673 = vmatprep.mubr.bf16.mxu0 0
      %4674 = vmatmul.mubr.bf16.gmra.mrb[0].mxu0 %v4610
      %v4675 = vpop.f32.mrb[0].mxu0
      %v4676 = vadd.f32 0.0, %v4675
      %v4677 = vpop.f32.mrb[0].mxu0
      %v4678 = vpop.f32.mrb[0].mxu0
      %v4679 = vadd.f32 0.0, %v4678
      %v4680 = vpop.f32.mrb[0].mxu0
      %4681 = vmatprep.mubr.bf16.mxu0 0
      %4682 = vmatmul.mubr.bf16.gmra.mrb[0].mxu0 %v4613
      %v4683 = vpop.f32.mrb[0].mxu0
      %v4684 = vadd.f32 0.0, %v4683
      %v4685 = vpop.f32.mrb[0].mxu0
      %v4686 = vpop.f32.mrb[0].mxu0
      %v4687 = vadd.f32 0.0, %v4686
      %v4688 = vpop.f32.mrb[0].mxu0
      %4689 = vmatprep.mubr.bf16.mxu0 0
      %4690 = vmatmul.mubr.bf16.gmra.mrb[0].mxu0 %v4616
      %v4691 = vpop.f32.mrb[0].mxu0
      %v4692 = vadd.f32 0.0, %v4691
      %v4693 = vpop.f32.mrb[0].mxu0
      %v4694 = vpop.f32.mrb[0].mxu0
      %v4695 = vadd.f32 0.0, %v4694
      %v4696 = vpop.f32.mrb[0].mxu0
      %4697 = vmatprep.mubr.bf16.mxu0 0
      %4698 = vmatmul.mubr.bf16.gmra.mrb[0].mxu0 %v4619
      %v4699 = vpop.f32.mrb[0].mxu0
      %v4700 = vadd.f32 0.0, %v4699
      %v4701 = vpop.f32.mrb[0].mxu0
      %v4702 = vpop.f32.mrb[0].mxu0
      %v4703 = vadd.f32 0.0, %v4702
      %v4704 = vpop.f32.mrb[0].mxu0
      %4705 = vmatprep.mubr.bf16.mxu0 0
      %4706 = vmatmul.mubr.bf16.gmra.mrb[0].mxu0 %v4622
      %v4707 = vpop.f32.mrb[0].mxu0
      %v4708 = vadd.f32 0.0, %v4707
      %v4709 = vpop.f32.mrb[0].mxu0
      %v4710 = vpop.f32.mrb[0].mxu0
      %v4711 = vadd.f32 0.0, %v4710
      %v4712 = vpop.f32.mrb[0].mxu0
      %4713 = vmatprep.mubr.bf16.mxu0 0
      %4714 = vmatmul.mubr.bf16.gmra.mrb[0].mxu0 %v4625
      %v4715 = vpop.f32.mrb[0].mxu0
      %v4716 = vadd.f32 0.0, %v4715
      %v4717 = vpop.f32.mrb[0].mxu0
      %v4718 = vpop.f32.mrb[0].mxu0
      %v4719 = vadd.f32 0.0, %v4718
      %v4720 = vpop.f32.mrb[0].mxu0
      %4721 = vmatprep.mubr.bf16.mxu0 0
      %4722 = vmatmul.mubr.bf16.gmra.mrb[0].mxu0 %v4628
      %v4723 = vpop.f32.mrb[0].mxu0
      %v4724 = vadd.f32 0.0, %v4723
      %v4725 = vpop.f32.mrb[0].mxu0
      %v4726 = vpop.f32.mrb[0].mxu0
      %v4727 = vadd.f32 0.0, %v4726
      %v4728 = vpop.f32.mrb[0].mxu0
      %4729 = vdwg.mxu0
      %v4746 = vunpack.c.l.b16 %v4363
      %v4747 = vunpack.c.l.b16 %v4364
      %v4748 = vunpack.c.l.b16 %v4365
      %v4749 = vunpack.c.l.b16 %v4366
      %v4750 = vunpack.c.l.b16 %v4367
      %v4751 = vunpack.c.l.b16 %v4368
      %v4752 = vunpack.c.l.b16 %v4369
      %v4753 = vunpack.c.l.b16 %v4370
      %v4754 = vunpack.c.l.b16 %v4371
      %v4755 = vunpack.c.l.b16 %v4372
      %v4756 = vunpack.c.l.b16 %v4373
      %v4757 = vunpack.c.l.b16 %v4374
      %v4758 = vunpack.c.l.b16 %v4375
      %v4759 = vunpack.c.l.b16 %v4376
      %v4760 = vunpack.c.l.b16 %v4377
      %v4761 = vunpack.c.l.b16 %v4378
      %v4762 = vpack.c.b16 %v4747, %v4746
      %v4763 = vpack.c.b16 %v4749, %v4748
      %v4764 = vpack.c.b16 %v4751, %v4750
      %v4765 = vpack.c.b16 %v4753, %v4752
      %v4766 = vpack.c.b16 %v4755, %v4754
      %v4767 = vpack.c.b16 %v4757, %v4756
      %v4768 = vpack.c.b16 %v4759, %v4758
      %v4769 = vpack.c.b16 %v4761, %v4760
      %v4771 = vsel %vm1231, %v4762, 0
      %v4774 = vsel %vm1231, %v4763, 0
      %v4777 = vsel %vm1231, %v4764, 0
      %v4780 = vsel %vm1231, %v4765, 0
      %v4783 = vsel %vm1231, %v4766, 0
      %v4786 = vsel %vm1231, %v4767, 0
      %v4789 = vsel %vm1231, %v4768, 0
      %v4792 = vsel %vm1231, %v4769, 0
      %v4795 = vsel %vm1262, %v4379, 0
      %4797 = vmatprep.subr.bf16.mxu0 0
      %4798 = vmatpush1.bf16.msra.mxu0 %v4795
      %4799 = vmatprep.subr.bf16.mxu0 0
      %4800 = vmatpush1.bf16.msra.mxu0 0
      %4801 = vmatprep.subr.bf16.mxu0 0
      %4802 = vmatpush1.bf16.msra.mxu0 0
      %4803 = vmatprep.subr.bf16.mxu0 0
      %4804 = vmatpush1.bf16.msra.mxu0 0
      %4805 = vmatprep.subr.bf16.mxu0 0
      %4806 = vmatpush1.bf16.msra.mxu0 0
      %4807 = vmatprep.subr.bf16.mxu0 0
      %4808 = vmatpush1.bf16.msra.mxu0 0
      %4809 = vmatprep.subr.bf16.mxu0 0
      %4810 = vmatpush1.bf16.msra.mxu0 0
      %4811 = vmatprep.subr.bf16.mxu0 0
      %4812 = vmatpush1.bf16.msra.mxu0 0
      %4813 = vmatprep.subr.bf16.mxu0 0
      %4814 = vmatpush1.bf16.msra.mxu0 0
      %4815 = vmatprep.subr.bf16.mxu0 0
      %4816 = vmatpush1.bf16.msra.mxu0 0
      %4817 = vmatprep.subr.bf16.mxu0 0
      %4818 = vmatpush1.bf16.msra.mxu0 0
      %4819 = vmatprep.subr.bf16.mxu0 0
      %4820 = vmatpush1.bf16.msra.mxu0 0
      %4821 = vmatprep.subr.bf16.mxu0 0
      %4822 = vmatpush1.bf16.msra.mxu0 0
      %4823 = vmatprep.subr.bf16.mxu0 0
      %4824 = vmatpush1.bf16.msra.mxu0 0
      %4825 = vmatprep.subr.bf16.mxu0 0
      %4826 = vmatpush1.bf16.msra.mxu0 0
      %4827 = vmatprep.subr.bf16.mxu0 0
      %4828 = vmatpush1.bf16.msra.mxu0 0
      %4829 = vmatprep.mubr.bf16.mxu0 0
      %4830 = vmatmul.mubr.bf16.gmra.mrb[0].mxu0 %v4771
      %v4831 = vpop.f32.mrb[0].mxu0
      %v4832 = vadd.f32 %v4668, %v4831
      %v4833 = vpop.f32.mrb[0].mxu0
      %v4834 = vpop.f32.mrb[0].mxu0
      %v4835 = vadd.f32 %v4671, %v4834
      %v4836 = vpop.f32.mrb[0].mxu0
      %4837 = vmatprep.mubr.bf16.mxu0 0
      %4838 = vmatmul.mubr.bf16.gmra.mrb[0].mxu0 %v4774
      %v4839 = vpop.f32.mrb[0].mxu0
      %v4840 = vadd.f32 %v4676, %v4839
      %v4841 = vpop.f32.mrb[0].mxu0
      %v4842 = vpop.f32.mrb[0].mxu0
      %v4843 = vadd.f32 %v4679, %v4842
      %v4844 = vpop.f32.mrb[0].mxu0
      %4845 = vmatprep.mubr.bf16.mxu0 0
      %4846 = vmatmul.mubr.bf16.gmra.mrb[0].mxu0 %v4777
      %v4847 = vpop.f32.mrb[0].mxu0
      %v4848 = vadd.f32 %v4684, %v4847
      %v4849 = vpop.f32.mrb[0].mxu0
      %v4850 = vpop.f32.mrb[0].mxu0
      %v4851 = vadd.f32 %v4687, %v4850
      %v4852 = vpop.f32.mrb[0].mxu0
      %4853 = vmatprep.mubr.bf16.mxu0 0
      %4854 = vmatmul.mubr.bf16.gmra.mrb[0].mxu0 %v4780
      %v4855 = vpop.f32.mrb[0].mxu0
      %v4856 = vadd.f32 %v4692, %v4855
      %v4857 = vpop.f32.mrb[0].mxu0
      %v4858 = vpop.f32.mrb[0].mxu0
      %v4859 = vadd.f32 %v4695, %v4858
      %v4860 = vpop.f32.mrb[0].mxu0
      %4861 = vmatprep.mubr.bf16.mxu0 0
      %4862 = vmatmul.mubr.bf16.gmra.mrb[0].mxu0 %v4783
      %v4863 = vpop.f32.mrb[0].mxu0
      %v4864 = vadd.f32 %v4700, %v4863
      %v4865 = vpop.f32.mrb[0].mxu0
      %v4866 = vpop.f32.mrb[0].mxu0
      %v4867 = vadd.f32 %v4703, %v4866
      %v4868 = vpop.f32.mrb[0].mxu0
      %4869 = vmatprep.mubr.bf16.mxu0 0
      %4870 = vmatmul.mubr.bf16.gmra.mrb[0].mxu0 %v4786
      %v4871 = vpop.f32.mrb[0].mxu0
      %v4872 = vadd.f32 %v4708, %v4871
      %v4873 = vpop.f32.mrb[0].mxu0
      %v4874 = vpop.f32.mrb[0].mxu0
      %v4875 = vadd.f32 %v4711, %v4874
      %v4876 = vpop.f32.mrb[0].mxu0
      %4877 = vmatprep.mubr.bf16.mxu0 0
      %4878 = vmatmul.mubr.bf16.gmra.mrb[0].mxu0 %v4789
      %v4879 = vpop.f32.mrb[0].mxu0
      %v4880 = vadd.f32 %v4716, %v4879
      %v4881 = vpop.f32.mrb[0].mxu0
      %v4882 = vpop.f32.mrb[0].mxu0
      %v4883 = vadd.f32 %v4719, %v4882
      %v4884 = vpop.f32.mrb[0].mxu0
      %4885 = vmatprep.mubr.bf16.mxu0 0
      %4886 = vmatmul.mubr.bf16.gmra.mrb[0].mxu0 %v4792
      %v4887 = vpop.f32.mrb[0].mxu0
      %v4888 = vadd.f32 %v4724, %v4887
      %v4889 = vpop.f32.mrb[0].mxu0
      %v4890 = vpop.f32.mrb[0].mxu0
      %v4891 = vadd.f32 %v4727, %v4890
      %v4892 = vpop.f32.mrb[0].mxu0
      %4893 = vdwg.mxu0
      %v4894 = vld [vmem:[#allocation3] sm:$0xe]
      %v4895 = vld [vmem:[#allocation3 + $0xc] sm:$0xe]
      %v4896 = vld [vmem:[#allocation3 + $0x18] sm:$0xe]
      %v4897 = vld [vmem:[#allocation3 + $0x24] sm:$0xe]
      %v4898 = vld [vmem:[#allocation3 + $0x30] sm:$0xe]
      %v4899 = vld [vmem:[#allocation3 + $0x3c] sm:$0xe]
      %v4900 = vld [vmem:[#allocation3 + $0x48] sm:$0xe]
      %v4901 = vld [vmem:[#allocation3 + $0x54] sm:$0xe]
      %v4918 = vrot.slane %v4894, 5
      %v4919 = vrot.slane %v4918, 4
      %v4920 = vrot.slane %v4364, 5
      %v4921 = vsel %vm1607, %v4919, %v4920
      %v4922 = vrot.slane %v4920, 4
      %v4923 = vrot.slane %v4380, 5
      %v4924 = vsel %vm1607, %v4922, %v4923
      %v4925 = vrot.slane %v4895, 5
      %v4926 = vrot.slane %v4925, 4
      %v4927 = vrot.slane %v4366, 5
      %v4928 = vsel %vm1607, %v4926, %v4927
      %v4929 = vrot.slane %v4927, 4
      %v4930 = vrot.slane %v4381, 5
      %v4931 = vsel %vm1607, %v4929, %v4930
      %v4932 = vrot.slane %v4896, 5
      %v4933 = vrot.slane %v4932, 4
      %v4934 = vrot.slane %v4368, 5
      %v4935 = vsel %vm1607, %v4933, %v4934
      %v4936 = vrot.slane %v4934, 4
      %v4937 = vrot.slane %v4382, 5
      %v4938 = vsel %vm1607, %v4936, %v4937
      %v4939 = vrot.slane %v4897, 5
      %v4940 = vrot.slane %v4939, 4
      %v4941 = vrot.slane %v4370, 5
      %v4942 = vsel %vm1607, %v4940, %v4941
      %v4943 = vrot.slane %v4941, 4
      %v4944 = vrot.slane %v4383, 5
      %v4945 = vsel %vm1607, %v4943, %v4944
      %v4946 = vrot.slane %v4898, 5
      %v4947 = vrot.slane %v4946, 4
      %v4948 = vrot.slane %v4372, 5
      %v4949 = vsel %vm1607, %v4947, %v4948
      %v4950 = vrot.slane %v4948, 4
      %v4951 = vrot.slane %v4384, 5
      %v4952 = vsel %vm1607, %v4950, %v4951
      %v4953 = vrot.slane %v4899, 5
      %v4954 = vrot.slane %v4953, 4
      %v4955 = vrot.slane %v4374, 5
      %v4956 = vsel %vm1607, %v4954, %v4955
      %v4957 = vrot.slane %v4955, 4
      %v4958 = vrot.slane %v4385, 5
      %v4959 = vsel %vm1607, %v4957, %v4958
      %v4960 = vrot.slane %v4900, 5
      %v4961 = vrot.slane %v4960, 4
      %v4962 = vrot.slane %v4376, 5
      %v4963 = vsel %vm1607, %v4961, %v4962
      %v4964 = vrot.slane %v4962, 4
      %v4965 = vrot.slane %v4386, 5
      %v4966 = vsel %vm1607, %v4964, %v4965
      %v4967 = vrot.slane %v4901, 5
      %v4968 = vrot.slane %v4967, 4
      %v4969 = vrot.slane %v4378, 5
      %v4970 = vsel %vm1607, %v4968, %v4969
      %v4971 = vrot.slane %v4969, 4
      %v4972 = vrot.slane %v4387, 5
      %v4973 = vsel %vm1607, %v4971, %v4972
      %s4974 = scalar_lea.vmem %s5, 4
      %v4975 = vld [vmem:[%s4974] sm:$0x3]
      %v4976 = vunpack.c.l.b16 %v4921
      %v4977 = vunpack.c.l.b16 %v4924
      %v4978 = vunpack.c.l.b16 %v4928
      %v4979 = vunpack.c.l.b16 %v4931
      %v4980 = vunpack.c.l.b16 %v4935
      %v4981 = vunpack.c.l.b16 %v4938
      %v4982 = vunpack.c.l.b16 %v4942
      %v4983 = vunpack.c.l.b16 %v4945
      %v4984 = vunpack.c.l.b16 %v4949
      %v4985 = vunpack.c.l.b16 %v4952
      %v4986 = vunpack.c.l.b16 %v4956
      %v4987 = vunpack.c.l.b16 %v4959
      %v4988 = vunpack.c.l.b16 %v4963
      %v4989 = vunpack.c.l.b16 %v4966
      %v4990 = vunpack.c.l.b16 %v4970
      %v4991 = vunpack.c.l.b16 %v4973
      %v4992 = vpack.c.b16 %v4977, %v4976
      %v4993 = vpack.c.b16 %v4979, %v4978
      %v4994 = vpack.c.b16 %v4981, %v4980
      %v4995 = vpack.c.b16 %v4983, %v4982
      %v4996 = vpack.c.b16 %v4985, %v4984
      %v4997 = vpack.c.b16 %v4987, %v4986
      %v4998 = vpack.c.b16 %v4989, %v4988
      %v4999 = vpack.c.b16 %v4991, %v4990
      %v5001 = vsel %vm1231, %v4992, 0
      %v5004 = vsel %vm1231, %v4993, 0
      %v5007 = vsel %vm1231, %v4994, 0
      %v5010 = vsel %vm1231, %v4995, 0
      %v5013 = vsel %vm1231, %v4996, 0
      %v5016 = vsel %vm1231, %v4997, 0
      %v5019 = vsel %vm1231, %v4998, 0
      %v5022 = vsel %vm1231, %v4999, 0
      %v5025 = vsel %vm1262, %v4975, 0
      %5027 = vmatprep.subr.bf16.mxu0 0
      %5028 = vmatpush1.bf16.msra.mxu0 %v5025
      %5029 = vmatprep.subr.bf16.mxu0 0
      %5030 = vmatpush1.bf16.msra.mxu0 0
      %5031 = vmatprep.subr.bf16.mxu0 0
      %5032 = vmatpush1.bf16.msra.mxu0 0
      %5033 = vmatprep.subr.bf16.mxu0 0
      %5034 = vmatpush1.bf16.msra.mxu0 0
      %5035 = vmatprep.subr.bf16.mxu0 0
      %5036 = vmatpush1.bf16.msra.mxu0 0
      %5037 = vmatprep.subr.bf16.mxu0 0
      %5038 = vmatpush1.bf16.msra.mxu0 0
      %5039 = vmatprep.subr.bf16.mxu0 0
      %5040 = vmatpush1.bf16.msra.mxu0 0
      %5041 = vmatprep.subr.bf16.mxu0 0
      %5042 = vmatpush1.bf16.msra.mxu0 0
      %5043 = vmatprep.subr.bf16.mxu0 0
      %5044 = vmatpush1.bf16.msra.mxu0 0
      %5045 = vmatprep.subr.bf16.mxu0 0
      %5046 = vmatpush1.bf16.msra.mxu0 0
      %5047 = vmatprep.subr.bf16.mxu0 0
      %5048 = vmatpush1.bf16.msra.mxu0 0
      %5049 = vmatprep.subr.bf16.mxu0 0
      %5050 = vmatpush1.bf16.msra.mxu0 0
      %5051 = vmatprep.subr.bf16.mxu0 0
      %5052 = vmatpush1.bf16.msra.mxu0 0
      %5053 = vmatprep.subr.bf16.mxu0 0
      %5054 = vmatpush1.bf16.msra.mxu0 0
      %5055 = vmatprep.subr.bf16.mxu0 0
      %5056 = vmatpush1.bf16.msra.mxu0 0
      %5057 = vmatprep.subr.bf16.mxu0 0
      %5058 = vmatpush1.bf16.msra.mxu0 0
      %5059 = vmatprep.mubr.bf16.mxu0 0
      %5060 = vmatmul.mubr.bf16.gmra.mrb[0].mxu0 %v5001
      %v5061 = vpop.f32.mrb[0].mxu0
      %v5062 = vadd.f32 0.0, %v5061
      %v5063 = vpop.f32.mrb[0].mxu0
      %v5064 = vpop.f32.mrb[0].mxu0
      %v5065 = vadd.f32 0.0, %v5064
      %v5066 = vpop.f32.mrb[0].mxu0
      %5067 = vmatprep.mubr.bf16.mxu0 0
      %5068 = vmatmul.mubr.bf16.gmra.mrb[0].mxu0 %v5004
      %v5069 = vpop.f32.mrb[0].mxu0
      %v5070 = vadd.f32 0.0, %v5069
      %v5071 = vpop.f32.mrb[0].mxu0
      %v5072 = vpop.f32.mrb[0].mxu0
      %v5073 = vadd.f32 0.0, %v5072
      %v5074 = vpop.f32.mrb[0].mxu0
      %5075 = vmatprep.mubr.bf16.mxu0 0
      %5076 = vmatmul.mubr.bf16.gmra.mrb[0].mxu0 %v5007
      %v5077 = vpop.f32.mrb[0].mxu0
      %v5078 = vadd.f32 0.0, %v5077
      %v5079 = vpop.f32.mrb[0].mxu0
      %v5080 = vpop.f32.mrb[0].mxu0
      %v5081 = vadd.f32 0.0, %v5080
      %v5082 = vpop.f32.mrb[0].mxu0
      %5083 = vmatprep.mubr.bf16.mxu0 0
      %5084 = vmatmul.mubr.bf16.gmra.mrb[0].mxu0 %v5010
      %v5085 = vpop.f32.mrb[0].mxu0
      %v5086 = vadd.f32 0.0, %v5085
      %v5087 = vpop.f32.mrb[0].mxu0
      %v5088 = vpop.f32.mrb[0].mxu0
      %v5089 = vadd.f32 0.0, %v5088
      %v5090 = vpop.f32.mrb[0].mxu0
      %5091 = vmatprep.mubr.bf16.mxu0 0
      %5092 = vmatmul.mubr.bf16.gmra.mrb[0].mxu0 %v5013
      %v5093 = vpop.f32.mrb[0].mxu0
      %v5094 = vadd.f32 0.0, %v5093
      %v5095 = vpop.f32.mrb[0].mxu0
      %v5096 = vpop.f32.mrb[0].mxu0
      %v5097 = vadd.f32 0.0, %v5096
      %v5098 = vpop.f32.mrb[0].mxu0
      %5099 = vmatprep.mubr.bf16.mxu0 0
      %5100 = vmatmul.mubr.bf16.gmra.mrb[0].mxu0 %v5016
      %v5101 = vpop.f32.mrb[0].mxu0
      %v5102 = vadd.f32 0.0, %v5101
      %v5103 = vpop.f32.mrb[0].mxu0
      %v5104 = vpop.f32.mrb[0].mxu0
      %v5105 = vadd.f32 0.0, %v5104
      %v5106 = vpop.f32.mrb[0].mxu0
      %5107 = vmatprep.mubr.bf16.mxu0 0
      %5108 = vmatmul.mubr.bf16.gmra.mrb[0].mxu0 %v5019
      %v5109 = vpop.f32.mrb[0].mxu0
      %v5110 = vadd.f32 0.0, %v5109
      %v5111 = vpop.f32.mrb[0].mxu0
      %v5112 = vpop.f32.mrb[0].mxu0
      %v5113 = vadd.f32 0.0, %v5112
      %v5114 = vpop.f32.mrb[0].mxu0
      %5115 = vmatprep.mubr.bf16.mxu0 0
      %5116 = vmatmul.mubr.bf16.gmra.mrb[0].mxu0 %v5022
      %v5117 = vpop.f32.mrb[0].mxu0
      %v5118 = vadd.f32 0.0, %v5117
      %v5119 = vpop.f32.mrb[0].mxu0
      %v5120 = vpop.f32.mrb[0].mxu0
      %v5121 = vadd.f32 0.0, %v5120
      %v5122 = vpop.f32.mrb[0].mxu0
      %5123 = vdwg.mxu0
      %v5124 = vadd.f32 %v4832, %v5062
      %v5125 = vadd.f32 %v4835, %v5065
      %v5126 = vadd.f32 %v4840, %v5070
      %v5127 = vadd.f32 %v4843, %v5073
      %v5128 = vadd.f32 %v4848, %v5078
      %v5129 = vadd.f32 %v4851, %v5081
      %v5130 = vadd.f32 %v4856, %v5086
      %v5131 = vadd.f32 %v4859, %v5089
      %v5132 = vadd.f32 %v4864, %v5094
      %v5133 = vadd.f32 %v4867, %v5097
      %v5134 = vadd.f32 %v4872, %v5102
      %v5135 = vadd.f32 %v4875, %v5105
      %v5136 = vadd.f32 %v4880, %v5110
      %v5137 = vadd.f32 %v4883, %v5113
      %v5138 = vadd.f32 %v4888, %v5118
      %v5139 = vadd.f32 %v4891, %v5121
      %s5140 = scalar_lea.vmem [#allocation3], 12
      %v5141 = vld [vmem:[%s5140] sm:$0xf]
      %v5142 = vld [vmem:[%s5140 + $0x4] sm:$0xf]
      %v5143 = vld [vmem:[%s5140 + $0xc] sm:$0xf]
      %v5144 = vld [vmem:[%s5140 + $0x10] sm:$0xf]
      %v5145 = vld [vmem:[%s5140 + $0x18] sm:$0xf]
      %v5146 = vld [vmem:[%s5140 + $0x1c] sm:$0xf]
      %v5147 = vld [vmem:[%s5140 + $0x24] sm:$0xf]
      %v5148 = vld [vmem:[%s5140 + $0x28] sm:$0xf]
      %v5149 = vld [vmem:[%s5140 + $0x30] sm:$0xf]
      %v5150 = vld [vmem:[%s5140 + $0x34] sm:$0xf]
      %v5151 = vld [vmem:[%s5140 + $0x3c] sm:$0xf]
      %v5152 = vld [vmem:[%s5140 + $0x40] sm:$0xf]
      %v5153 = vld [vmem:[%s5140 + $0x48] sm:$0xf]
      %v5154 = vld [vmem:[%s5140 + $0x4c] sm:$0xf]
      %v5155 = vld [vmem:[%s5140 + $0x54] sm:$0xf]
      %v5156 = vld [vmem:[%s5140 + $0x58] sm:$0xf]
      %s5157 = scalar_lea.vmem %s5, 6
      %v5158 = vld [vmem:[%s5157] sm:$0x3]
      %v5175 = vunpack.c.l.b16 %v5141
      %v5176 = vunpack.c.l.b16 %v5142
      %v5177 = vunpack.c.l.b16 %v5143
      %v5178 = vunpack.c.l.b16 %v5144
      %v5179 = vunpack.c.l.b16 %v5145
      %v5180 = vunpack.c.l.b16 %v5146
      %v5181 = vunpack.c.l.b16 %v5147
      %v5182 = vunpack.c.l.b16 %v5148
      %v5183 = vunpack.c.l.b16 %v5149
      %v5184 = vunpack.c.l.b16 %v5150
      %v5185 = vunpack.c.l.b16 %v5151
      %v5186 = vunpack.c.l.b16 %v5152
      %v5187 = vunpack.c.l.b16 %v5153
      %v5188 = vunpack.c.l.b16 %v5154
      %v5189 = vunpack.c.l.b16 %v5155
      %v5190 = vunpack.c.l.b16 %v5156
      %v5191 = vpack.c.b16 %v5176, %v5175
      %v5192 = vpack.c.b16 %v5178, %v5177
      %v5193 = vpack.c.b16 %v5180, %v5179
      %v5194 = vpack.c.b16 %v5182, %v5181
      %v5195 = vpack.c.b16 %v5184, %v5183
      %v5196 = vpack.c.b16 %v5186, %v5185
      %v5197 = vpack.c.b16 %v5188, %v5187
      %v5198 = vpack.c.b16 %v5190, %v5189
      %v5200 = vsel %vm1231, %v5191, 0
      %v5203 = vsel %vm1231, %v5192, 0
      %v5206 = vsel %vm1231, %v5193, 0
      %v5209 = vsel %vm1231, %v5194, 0
      %v5212 = vsel %vm1231, %v5195, 0
      %v5215 = vsel %vm1231, %v5196, 0
      %v5218 = vsel %vm1231, %v5197, 0
      %v5221 = vsel %vm1231, %v5198, 0
      %v5224 = vsel %vm1262, %v5158, 0
      %5226 = vmatprep.subr.bf16.mxu0 0
      %5227 = vmatpush1.bf16.msra.mxu0 %v5224
      %5228 = vmatprep.subr.bf16.mxu0 0
      %5229 = vmatpush1.bf16.msra.mxu0 0
      %5230 = vmatprep.subr.bf16.mxu0 0
      %5231 = vmatpush1.bf16.msra.mxu0 0
      %5232 = vmatprep.subr.bf16.mxu0 0
      %5233 = vmatpush1.bf16.msra.mxu0 0
      %5234 = vmatprep.subr.bf16.mxu0 0
      %5235 = vmatpush1.bf16.msra.mxu0 0
      %5236 = vmatprep.subr.bf16.mxu0 0
      %5237 = vmatpush1.bf16.msra.mxu0 0
      %5238 = vmatprep.subr.bf16.mxu0 0
      %5239 = vmatpush1.bf16.msra.mxu0 0
      %5240 = vmatprep.subr.bf16.mxu0 0
      %5241 = vmatpush1.bf16.msra.mxu0 0
      %5242 = vmatprep.subr.bf16.mxu0 0
      %5243 = vmatpush1.bf16.msra.mxu0 0
      %5244 = vmatprep.subr.bf16.mxu0 0
      %5245 = vmatpush1.bf16.msra.mxu0 0
      %5246 = vmatprep.subr.bf16.mxu0 0
      %5247 = vmatpush1.bf16.msra.mxu0 0
      %5248 = vmatprep.subr.bf16.mxu0 0
      %5249 = vmatpush1.bf16.msra.mxu0 0
      %5250 = vmatprep.subr.bf16.mxu0 0
      %5251 = vmatpush1.bf16.msra.mxu0 0
      %5252 = vmatprep.subr.bf16.mxu0 0
      %5253 = vmatpush1.bf16.msra.mxu0 0
      %5254 = vmatprep.subr.bf16.mxu0 0
      %5255 = vmatpush1.bf16.msra.mxu0 0
      %5256 = vmatprep.subr.bf16.mxu0 0
      %5257 = vmatpush1.bf16.msra.mxu0 0
      %5258 = vmatprep.mubr.bf16.mxu0 0
      %5259 = vmatmul.mubr.bf16.gmra.mrb[0].mxu0 %v5200
      %v5260 = vpop.f32.mrb[0].mxu0
      %v5261 = vadd.f32 0.0, %v5260
      %v5262 = vpop.f32.mrb[0].mxu0
      %v5263 = vpop.f32.mrb[0].mxu0
      %v5264 = vadd.f32 0.0, %v5263
      %v5265 = vpop.f32.mrb[0].mxu0
      %5266 = vmatprep.mubr.bf16.mxu0 0
      %5267 = vmatmul.mubr.bf16.gmra.mrb[0].mxu0 %v5203
      %v5268 = vpop.f32.mrb[0].mxu0
      %v5269 = vadd.f32 0.0, %v5268
      %v5270 = vpop.f32.mrb[0].mxu0
      %v5271 = vpop.f32.mrb[0].mxu0
      %v5272 = vadd.f32 0.0, %v5271
      %v5273 = vpop.f32.mrb[0].mxu0
      %5274 = vmatprep.mubr.bf16.mxu0 0
      %5275 = vmatmul.mubr.bf16.gmra.mrb[0].mxu0 %v5206
      %v5276 = vpop.f32.mrb[0].mxu0
      %v5277 = vadd.f32 0.0, %v5276
      %v5278 = vpop.f32.mrb[0].mxu0
      %v5279 = vpop.f32.mrb[0].mxu0
      %v5280 = vadd.f32 0.0, %v5279
      %v5281 = vpop.f32.mrb[0].mxu0
      %5282 = vmatprep.mubr.bf16.mxu0 0
      %5283 = vmatmul.mubr.bf16.gmra.mrb[0].mxu0 %v5209
      %v5284 = vpop.f32.mrb[0].mxu0
      %v5285 = vadd.f32 0.0, %v5284
      %v5286 = vpop.f32.mrb[0].mxu0
      %v5287 = vpop.f32.mrb[0].mxu0
      %v5288 = vadd.f32 0.0, %v5287
      %v5289 = vpop.f32.mrb[0].mxu0
      %5290 = vmatprep.mubr.bf16.mxu0 0
      %5291 = vmatmul.mubr.bf16.gmra.mrb[0].mxu0 %v5212
      %v5292 = vpop.f32.mrb[0].mxu0
      %v5293 = vadd.f32 0.0, %v5292
      %v5294 = vpop.f32.mrb[0].mxu0
      %v5295 = vpop.f32.mrb[0].mxu0
      %v5296 = vadd.f32 0.0, %v5295
      %v5297 = vpop.f32.mrb[0].mxu0
      %5298 = vmatprep.mubr.bf16.mxu0 0
      %5299 = vmatmul.mubr.bf16.gmra.mrb[0].mxu0 %v5215
      %v5300 = vpop.f32.mrb[0].mxu0
      %v5301 = vadd.f32 0.0, %v5300
      %v5302 = vpop.f32.mrb[0].mxu0
      %v5303 = vpop.f32.mrb[0].mxu0
      %v5304 = vadd.f32 0.0, %v5303
      %v5305 = vpop.f32.mrb[0].mxu0
      %5306 = vmatprep.mubr.bf16.mxu0 0
      %5307 = vmatmul.mubr.bf16.gmra.mrb[0].mxu0 %v5218
      %v5308 = vpop.f32.mrb[0].mxu0
      %v5309 = vadd.f32 0.0, %v5308
      %v5310 = vpop.f32.mrb[0].mxu0
      %v5311 = vpop.f32.mrb[0].mxu0
      %v5312 = vadd.f32 0.0, %v5311
      %v5313 = vpop.f32.mrb[0].mxu0
      %5314 = vmatprep.mubr.bf16.mxu0 0
      %5315 = vmatmul.mubr.bf16.gmra.mrb[0].mxu0 %v5221
      %v5316 = vpop.f32.mrb[0].mxu0
      %v5317 = vadd.f32 0.0, %v5316
      %v5318 = vpop.f32.mrb[0].mxu0
      %v5319 = vpop.f32.mrb[0].mxu0
      %v5320 = vadd.f32 0.0, %v5319
      %v5321 = vpop.f32.mrb[0].mxu0
      %5322 = vdwg.mxu0
      %v5323 = vadd.f32 %v5124, %v5261
      %v5324 = vadd.f32 %v5125, %v5264
      %v5325 = vadd.f32 %v5126, %v5269
      %v5326 = vadd.f32 %v5127, %v5272
      %v5327 = vadd.f32 %v5128, %v5277
      %v5328 = vadd.f32 %v5129, %v5280
      %v5329 = vadd.f32 %v5130, %v5285
      %v5330 = vadd.f32 %v5131, %v5288
      %v5331 = vadd.f32 %v5132, %v5293
      %v5332 = vadd.f32 %v5133, %v5296
      %v5333 = vadd.f32 %v5134, %v5301
      %v5334 = vadd.f32 %v5135, %v5304
      %v5335 = vadd.f32 %v5136, %v5309
      %v5336 = vadd.f32 %v5137, %v5312
      %v5337 = vadd.f32 %v5138, %v5317
      %v5338 = vadd.f32 %v5139, %v5320
      %v5339 = vld [vmem:[%s5140] sm:$0xf]
      %v5340 = vld [vmem:[%s5140 + $0x4] sm:$0xf]
      %v5341 = vld [vmem:[%s5140 + $0x8] sm:$0x1]
      %v5342 = vld [vmem:[%s5140 + $0xc] sm:$0xf]
      %v5343 = vld [vmem:[%s5140 + $0x10] sm:$0xf]
      %v5344 = vld [vmem:[%s5140 + $0x14] sm:$0x1]
      %v5345 = vld [vmem:[%s5140 + $0x18] sm:$0xf]
      %v5346 = vld [vmem:[%s5140 + $0x1c] sm:$0xf]
      %v5347 = vld [vmem:[%s5140 + $0x20] sm:$0x1]
      %v5348 = vld [vmem:[%s5140 + $0x24] sm:$0xf]
      %v5349 = vld [vmem:[%s5140 + $0x28] sm:$0xf]
      %v5350 = vld [vmem:[%s5140 + $0x2c] sm:$0x1]
      %v5351 = vld [vmem:[%s5140 + $0x30] sm:$0xf]
      %v5352 = vld [vmem:[%s5140 + $0x34] sm:$0xf]
      %v5353 = vld [vmem:[%s5140 + $0x38] sm:$0x1]
      %v5354 = vld [vmem:[%s5140 + $0x3c] sm:$0xf]
      %v5355 = vld [vmem:[%s5140 + $0x40] sm:$0xf]
      %v5356 = vld [vmem:[%s5140 + $0x44] sm:$0x1]
      %v5357 = vld [vmem:[%s5140 + $0x48] sm:$0xf]
      %v5358 = vld [vmem:[%s5140 + $0x4c] sm:$0xf]
      %v5359 = vld [vmem:[%s5140 + $0x50] sm:$0x1]
      %v5360 = vld [vmem:[%s5140 + $0x54] sm:$0xf]
      %v5361 = vld [vmem:[%s5140 + $0x58] sm:$0xf]
      %v5362 = vld [vmem:[%s5140 + $0x5c] sm:$0x1]
      %v5364 = vshrl.u32 %v5339, 16
      %v5366 = vrot.slane %v5364, 4
      %v5367 = vshll.u32 %v5339, 16
      %v5369 = vrot.slane %v5367, 5
      %v5370 = vor.u32 %v5366, %v5369
      %v5371 = vrot.slane %v5370, 4
      %v5373 = vshll.u32 %v5340, 16
      %v5375 = vrot.slane %v5373, 5
      %v5376 = vsel %vm958, %v5371, %v5375
      %v5377 = vshrl.u32 %v5340, 16
      %v5379 = vrot.slane %v5377, 4
      %v5380 = vor.u32 %v5379, %v5375
      %v5381 = vrot.slane %v5380, 4
      %v5383 = vshll.u32 %v5341, 16
      %v5385 = vrot.slane %v5383, 5
      %v5386 = vsel %vm958, %v5381, %v5385
      %v5388 = vshrl.u32 %v5342, 16
      %v5390 = vrot.slane %v5388, 4
      %v5391 = vshll.u32 %v5342, 16
      %v5393 = vrot.slane %v5391, 5
      %v5394 = vor.u32 %v5390, %v5393
      %v5395 = vrot.slane %v5394, 4
      %v5397 = vshll.u32 %v5343, 16
      %v5399 = vrot.slane %v5397, 5
      %v5400 = vsel %vm958, %v5395, %v5399
      %v5401 = vshrl.u32 %v5343, 16
      %v5403 = vrot.slane %v5401, 4
      %v5404 = vor.u32 %v5403, %v5399
      %v5405 = vrot.slane %v5404, 4
      %v5407 = vshll.u32 %v5344, 16
      %v5409 = vrot.slane %v5407, 5
      %v5410 = vsel %vm958, %v5405, %v5409
      %v5412 = vshrl.u32 %v5345, 16
      %v5414 = vrot.slane %v5412, 4
      %v5415 = vshll.u32 %v5345, 16
      %v5417 = vrot.slane %v5415, 5
      %v5418 = vor.u32 %v5414, %v5417
      %v5419 = vrot.slane %v5418, 4
      %v5421 = vshll.u32 %v5346, 16
      %v5423 = vrot.slane %v5421, 5
      %v5424 = vsel %vm958, %v5419, %v5423
      %v5425 = vshrl.u32 %v5346, 16
      %v5427 = vrot.slane %v5425, 4
      %v5428 = vor.u32 %v5427, %v5423
      %v5429 = vrot.slane %v5428, 4
      %v5431 = vshll.u32 %v5347, 16
      %v5433 = vrot.slane %v5431, 5
      %v5434 = vsel %vm958, %v5429, %v5433
      %v5436 = vshrl.u32 %v5348, 16
      %v5438 = vrot.slane %v5436, 4
      %v5439 = vshll.u32 %v5348, 16
      %v5441 = vrot.slane %v5439, 5
      %v5442 = vor.u32 %v5438, %v5441
      %v5443 = vrot.slane %v5442, 4
      %v5445 = vshll.u32 %v5349, 16
      %v5447 = vrot.slane %v5445, 5
      %v5448 = vsel %vm958, %v5443, %v5447
      %v5449 = vshrl.u32 %v5349, 16
      %v5451 = vrot.slane %v5449, 4
      %v5452 = vor.u32 %v5451, %v5447
      %v5453 = vrot.slane %v5452, 4
      %v5455 = vshll.u32 %v5350, 16
      %v5457 = vrot.slane %v5455, 5
      %v5458 = vsel %vm958, %v5453, %v5457
      %v5460 = vshrl.u32 %v5351, 16
      %v5462 = vrot.slane %v5460, 4
      %v5463 = vshll.u32 %v5351, 16
      %v5465 = vrot.slane %v5463, 5
      %v5466 = vor.u32 %v5462, %v5465
      %v5467 = vrot.slane %v5466, 4
      %v5469 = vshll.u32 %v5352, 16
      %v5471 = vrot.slane %v5469, 5
      %v5472 = vsel %vm958, %v5467, %v5471
      %v5473 = vshrl.u32 %v5352, 16
      %v5475 = vrot.slane %v5473, 4
      %v5476 = vor.u32 %v5475, %v5471
      %v5477 = vrot.slane %v5476, 4
      %v5479 = vshll.u32 %v5353, 16
      %v5481 = vrot.slane %v5479, 5
      %v5482 = vsel %vm958, %v5477, %v5481
      %v5484 = vshrl.u32 %v5354, 16
      %v5486 = vrot.slane %v5484, 4
      %v5487 = vshll.u32 %v5354, 16
      %v5489 = vrot.slane %v5487, 5
      %v5490 = vor.u32 %v5486, %v5489
      %v5491 = vrot.slane %v5490, 4
      %v5493 = vshll.u32 %v5355, 16
      %v5495 = vrot.slane %v5493, 5
      %v5496 = vsel %vm958, %v5491, %v5495
      %v5497 = vshrl.u32 %v5355, 16
      %v5499 = vrot.slane %v5497, 4
      %v5500 = vor.u32 %v5499, %v5495
      %v5501 = vrot.slane %v5500, 4
      %v5503 = vshll.u32 %v5356, 16
      %v5505 = vrot.slane %v5503, 5
      %v5506 = vsel %vm958, %v5501, %v5505
      %v5508 = vshrl.u32 %v5357, 16
      %v5510 = vrot.slane %v5508, 4
      %v5511 = vshll.u32 %v5357, 16
      %v5513 = vrot.slane %v5511, 5
      %v5514 = vor.u32 %v5510, %v5513
      %v5515 = vrot.slane %v5514, 4
      %v5517 = vshll.u32 %v5358, 16
      %v5519 = vrot.slane %v5517, 5
      %v5520 = vsel %vm958, %v5515, %v5519
      %v5521 = vshrl.u32 %v5358, 16
      %v5523 = vrot.slane %v5521, 4
      %v5524 = vor.u32 %v5523, %v5519
      %v5525 = vrot.slane %v5524, 4
      %v5527 = vshll.u32 %v5359, 16
      %v5529 = vrot.slane %v5527, 5
      %v5530 = vsel %vm958, %v5525, %v5529
      %v5532 = vshrl.u32 %v5360, 16
      %v5534 = vrot.slane %v5532, 4
      %v5535 = vshll.u32 %v5360, 16
      %v5537 = vrot.slane %v5535, 5
      %v5538 = vor.u32 %v5534, %v5537
      %v5539 = vrot.slane %v5538, 4
      %v5541 = vshll.u32 %v5361, 16
      %v5543 = vrot.slane %v5541, 5
      %v5544 = vsel %vm958, %v5539, %v5543
      %v5545 = vshrl.u32 %v5361, 16
      %v5547 = vrot.slane %v5545, 4
      %v5548 = vor.u32 %v5547, %v5543
      %v5549 = vrot.slane %v5548, 4
      %v5551 = vshll.u32 %v5362, 16
      %v5553 = vrot.slane %v5551, 5
      %v5554 = vsel %vm958, %v5549, %v5553
      %s5555 = scalar_lea.vmem %s5, 8
      %v5556 = vld [vmem:[%s5555] sm:$0x3]
      %v5557 = vunpack.c.l.b16 %v5376
      %v5558 = vunpack.c.l.b16 %v5386
      %v5559 = vunpack.c.l.b16 %v5400
      %v5560 = vunpack.c.l.b16 %v5410
      %v5561 = vunpack.c.l.b16 %v5424
      %v5562 = vunpack.c.l.b16 %v5434
      %v5563 = vunpack.c.l.b16 %v5448
      %v5564 = vunpack.c.l.b16 %v5458
      %v5565 = vunpack.c.l.b16 %v5472
      %v5566 = vunpack.c.l.b16 %v5482
      %v5567 = vunpack.c.l.b16 %v5496
      %v5568 = vunpack.c.l.b16 %v5506
      %v5569 = vunpack.c.l.b16 %v5520
      %v5570 = vunpack.c.l.b16 %v5530
      %v5571 = vunpack.c.l.b16 %v5544
      %v5572 = vunpack.c.l.b16 %v5554
      %v5573 = vpack.c.b16 %v5558, %v5557
      %v5574 = vpack.c.b16 %v5560, %v5559
      %v5575 = vpack.c.b16 %v5562, %v5561
      %v5576 = vpack.c.b16 %v5564, %v5563
      %v5577 = vpack.c.b16 %v5566, %v5565
      %v5578 = vpack.c.b16 %v5568, %v5567
      %v5579 = vpack.c.b16 %v5570, %v5569
      %v5580 = vpack.c.b16 %v5572, %v5571
      %v5582 = vsel %vm1231, %v5573, 0
      %v5585 = vsel %vm1231, %v5574, 0
      %v5588 = vsel %vm1231, %v5575, 0
      %v5591 = vsel %vm1231, %v5576, 0
      %v5594 = vsel %vm1231, %v5577, 0
      %v5597 = vsel %vm1231, %v5578, 0
      %v5600 = vsel %vm1231, %v5579, 0
      %v5603 = vsel %vm1231, %v5580, 0
      %v5606 = vsel %vm1262, %v5556, 0
      %5608 = vmatprep.subr.bf16.mxu0 0
      %5609 = vmatpush1.bf16.msra.mxu0 %v5606
      %5610 = vmatprep.subr.bf16.mxu0 0
      %5611 = vmatpush1.bf16.msra.mxu0 0
      %5612 = vmatprep.subr.bf16.mxu0 0
      %5613 = vmatpush1.bf16.msra.mxu0 0
      %5614 = vmatprep.subr.bf16.mxu0 0
      %5615 = vmatpush1.bf16.msra.mxu0 0
      %5616 = vmatprep.subr.bf16.mxu0 0
      %5617 = vmatpush1.bf16.msra.mxu0 0
      %5618 = vmatprep.subr.bf16.mxu0 0
      %5619 = vmatpush1.bf16.msra.mxu0 0
      %5620 = vmatprep.subr.bf16.mxu0 0
      %5621 = vmatpush1.bf16.msra.mxu0 0
      %5622 = vmatprep.subr.bf16.mxu0 0
      %5623 = vmatpush1.bf16.msra.mxu0 0
      %5624 = vmatprep.subr.bf16.mxu0 0
      %5625 = vmatpush1.bf16.msra.mxu0 0
      %5626 = vmatprep.subr.bf16.mxu0 0
      %5627 = vmatpush1.bf16.msra.mxu0 0
      %5628 = vmatprep.subr.bf16.mxu0 0
      %5629 = vmatpush1.bf16.msra.mxu0 0
      %5630 = vmatprep.subr.bf16.mxu0 0
      %5631 = vmatpush1.bf16.msra.mxu0 0
      %5632 = vmatprep.subr.bf16.mxu0 0
      %5633 = vmatpush1.bf16.msra.mxu0 0
      %5634 = vmatprep.subr.bf16.mxu0 0
      %5635 = vmatpush1.bf16.msra.mxu0 0
      %5636 = vmatprep.subr.bf16.mxu0 0
      %5637 = vmatpush1.bf16.msra.mxu0 0
      %5638 = vmatprep.subr.bf16.mxu0 0
      %5639 = vmatpush1.bf16.msra.mxu0 0
      %5640 = vmatprep.mubr.bf16.mxu0 0
      %5641 = vmatmul.mubr.bf16.gmra.mrb[0].mxu0 %v5582
      %v5642 = vpop.f32.mrb[0].mxu0
      %v5643 = vadd.f32 0.0, %v5642
      %v5644 = vpop.f32.mrb[0].mxu0
      %v5645 = vpop.f32.mrb[0].mxu0
      %v5646 = vadd.f32 0.0, %v5645
      %v5647 = vpop.f32.mrb[0].mxu0
      %5648 = vmatprep.mubr.bf16.mxu0 0
      %5649 = vmatmul.mubr.bf16.gmra.mrb[0].mxu0 %v5585
      %v5650 = vpop.f32.mrb[0].mxu0
      %v5651 = vadd.f32 0.0, %v5650
      %v5652 = vpop.f32.mrb[0].mxu0
      %v5653 = vpop.f32.mrb[0].mxu0
      %v5654 = vadd.f32 0.0, %v5653
      %v5655 = vpop.f32.mrb[0].mxu0
      %5656 = vmatprep.mubr.bf16.mxu0 0
      %5657 = vmatmul.mubr.bf16.gmra.mrb[0].mxu0 %v5588
      %v5658 = vpop.f32.mrb[0].mxu0
      %v5659 = vadd.f32 0.0, %v5658
      %v5660 = vpop.f32.mrb[0].mxu0
      %v5661 = vpop.f32.mrb[0].mxu0
      %v5662 = vadd.f32 0.0, %v5661
      %v5663 = vpop.f32.mrb[0].mxu0
      %5664 = vmatprep.mubr.bf16.mxu0 0
      %5665 = vmatmul.mubr.bf16.gmra.mrb[0].mxu0 %v5591
      %v5666 = vpop.f32.mrb[0].mxu0
      %v5667 = vadd.f32 0.0, %v5666
      %v5668 = vpop.f32.mrb[0].mxu0
      %v5669 = vpop.f32.mrb[0].mxu0
      %v5670 = vadd.f32 0.0, %v5669
      %v5671 = vpop.f32.mrb[0].mxu0
      %5672 = vmatprep.mubr.bf16.mxu0 0
      %5673 = vmatmul.mubr.bf16.gmra.mrb[0].mxu0 %v5594
      %v5674 = vpop.f32.mrb[0].mxu0
      %v5675 = vadd.f32 0.0, %v5674
      %v5676 = vpop.f32.mrb[0].mxu0
      %v5677 = vpop.f32.mrb[0].mxu0
      %v5678 = vadd.f32 0.0, %v5677
      %v5679 = vpop.f32.mrb[0].mxu0
      %5680 = vmatprep.mubr.bf16.mxu0 0
      %5681 = vmatmul.mubr.bf16.gmra.mrb[0].mxu0 %v5597
      %v5682 = vpop.f32.mrb[0].mxu0
      %v5683 = vadd.f32 0.0, %v5682
      %v5684 = vpop.f32.mrb[0].mxu0
      %v5685 = vpop.f32.mrb[0].mxu0
      %v5686 = vadd.f32 0.0, %v5685
      %v5687 = vpop.f32.mrb[0].mxu0
      %5688 = vmatprep.mubr.bf16.mxu0 0
      %5689 = vmatmul.mubr.bf16.gmra.mrb[0].mxu0 %v5600
      %v5690 = vpop.f32.mrb[0].mxu0
      %v5691 = vadd.f32 0.0, %v5690
      %v5692 = vpop.f32.mrb[0].mxu0
      %v5693 = vpop.f32.mrb[0].mxu0
      %v5694 = vadd.f32 0.0, %v5693
      %v5695 = vpop.f32.mrb[0].mxu0
      %5696 = vmatprep.mubr.bf16.mxu0 0
      %5697 = vmatmul.mubr.bf16.gmra.mrb[0].mxu0 %v5603
      %v5698 = vpop.f32.mrb[0].mxu0
      %v5699 = vadd.f32 0.0, %v5698
      %v5700 = vpop.f32.mrb[0].mxu0
      %v5701 = vpop.f32.mrb[0].mxu0
      %v5702 = vadd.f32 0.0, %v5701
      %v5703 = vpop.f32.mrb[0].mxu0
      %5704 = vdwg.mxu0
      %v5705 = vadd.f32 %v5323, %v5643
      %v5706 = vadd.f32 %v5324, %v5646
      %v5707 = vadd.f32 %v5325, %v5651
      %v5708 = vadd.f32 %v5326, %v5654
      %v5709 = vadd.f32 %v5327, %v5659
      %v5710 = vadd.f32 %v5328, %v5662
      %v5711 = vadd.f32 %v5329, %v5667
      %v5712 = vadd.f32 %v5330, %v5670
      %v5713 = vadd.f32 %v5331, %v5675
      %v5714 = vadd.f32 %v5332, %v5678
      %v5715 = vadd.f32 %v5333, %v5683
      %v5716 = vadd.f32 %v5334, %v5686
      %v5717 = vadd.f32 %v5335, %v5691
      %v5718 = vadd.f32 %v5336, %v5694
      %v5719 = vadd.f32 %v5337, %v5699
      %v5720 = vadd.f32 %v5338, %v5702
      %v5721 = vld [vmem:[%s5140] sm:$0xe]
      %v5722 = vld [vmem:[%s5140 + $0xc] sm:$0xe]
      %v5723 = vld [vmem:[%s5140 + $0x18] sm:$0xe]
      %v5724 = vld [vmem:[%s5140 + $0x24] sm:$0xe]
      %v5725 = vld [vmem:[%s5140 + $0x30] sm:$0xe]
      %v5726 = vld [vmem:[%s5140 + $0x3c] sm:$0xe]
      %v5727 = vld [vmem:[%s5140 + $0x48] sm:$0xe]
      %v5728 = vld [vmem:[%s5140 + $0x54] sm:$0xe]
      %v5753 = vrot.slane %v5721, 5
      %v5754 = vrot.slane %v5753, 4
      %v5755 = vrot.slane %v5340, 5
      %v5756 = vsel %vm1607, %v5754, %v5755
      %v5757 = vrot.slane %v5755, 4
      %v5758 = vrot.slane %v5341, 5
      %v5759 = vsel %vm1607, %v5757, %v5758
      %v5760 = vrot.slane %v5722, 5
      %v5761 = vrot.slane %v5760, 4
      %v5762 = vrot.slane %v5343, 5
      %v5763 = vsel %vm1607, %v5761, %v5762
      %v5764 = vrot.slane %v5762, 4
      %v5765 = vrot.slane %v5344, 5
      %v5766 = vsel %vm1607, %v5764, %v5765
      %v5767 = vrot.slane %v5723, 5
      %v5768 = vrot.slane %v5767, 4
      %v5769 = vrot.slane %v5346, 5
      %v5770 = vsel %vm1607, %v5768, %v5769
      %v5771 = vrot.slane %v5769, 4
      %v5772 = vrot.slane %v5347, 5
      %v5773 = vsel %vm1607, %v5771, %v5772
      %v5774 = vrot.slane %v5724, 5
      %v5775 = vrot.slane %v5774, 4
      %v5776 = vrot.slane %v5349, 5
      %v5777 = vsel %vm1607, %v5775, %v5776
      %v5778 = vrot.slane %v5776, 4
      %v5779 = vrot.slane %v5350, 5
      %v5780 = vsel %vm1607, %v5778, %v5779
      %v5781 = vrot.slane %v5725, 5
      %v5782 = vrot.slane %v5781, 4
      %v5783 = vrot.slane %v5352, 5
      %v5784 = vsel %vm1607, %v5782, %v5783
      %v5785 = vrot.slane %v5783, 4
      %v5786 = vrot.slane %v5353, 5
      %v5787 = vsel %vm1607, %v5785, %v5786
      %v5788 = vrot.slane %v5726, 5
      %v5789 = vrot.slane %v5788, 4
      %v5790 = vrot.slane %v5355, 5
      %v5791 = vsel %vm1607, %v5789, %v5790
      %v5792 = vrot.slane %v5790, 4
      %v5793 = vrot.slane %v5356, 5
      %v5794 = vsel %vm1607, %v5792, %v5793
      %v5795 = vrot.slane %v5727, 5
      %v5796 = vrot.slane %v5795, 4
      %v5797 = vrot.slane %v5358, 5
      %v5798 = vsel %vm1607, %v5796, %v5797
      %v5799 = vrot.slane %v5797, 4
      %v5800 = vrot.slane %v5359, 5
      %v5801 = vsel %vm1607, %v5799, %v5800
      %v5802 = vrot.slane %v5728, 5
      %v5803 = vrot.slane %v5802, 4
      %v5804 = vrot.slane %v5361, 5
      %v5805 = vsel %vm1607, %v5803, %v5804
      %v5806 = vrot.slane %v5804, 4
      %v5807 = vrot.slane %v5362, 5
      %v5808 = vsel %vm1607, %v5806, %v5807
      %s5809 = scalar_lea.vmem %s5, 10
      %v5810 = vld [vmem:[%s5809] sm:$0x3]
      %v5811 = vunpack.c.l.b16 %v5756
      %v5812 = vunpack.c.l.b16 %v5759
      %v5813 = vunpack.c.l.b16 %v5763
      %v5814 = vunpack.c.l.b16 %v5766
      %v5815 = vunpack.c.l.b16 %v5770
      %v5816 = vunpack.c.l.b16 %v5773
      %v5817 = vunpack.c.l.b16 %v5777
      %v5818 = vunpack.c.l.b16 %v5780
      %v5819 = vunpack.c.l.b16 %v5784
      %v5820 = vunpack.c.l.b16 %v5787
      %v5821 = vunpack.c.l.b16 %v5791
      %v5822 = vunpack.c.l.b16 %v5794
      %v5823 = vunpack.c.l.b16 %v5798
      %v5824 = vunpack.c.l.b16 %v5801
      %v5825 = vunpack.c.l.b16 %v5805
      %v5826 = vunpack.c.l.b16 %v5808
      %v5827 = vpack.c.b16 %v5812, %v5811
      %v5828 = vpack.c.b16 %v5814, %v5813
      %v5829 = vpack.c.b16 %v5816, %v5815
      %v5830 = vpack.c.b16 %v5818, %v5817
      %v5831 = vpack.c.b16 %v5820, %v5819
      %v5832 = vpack.c.b16 %v5822, %v5821
      %v5833 = vpack.c.b16 %v5824, %v5823
      %v5834 = vpack.c.b16 %v5826, %v5825
      %v5836 = vsel %vm1231, %v5827, 0
      %v5839 = vsel %vm1231, %v5828, 0
      %v5842 = vsel %vm1231, %v5829, 0
      %v5845 = vsel %vm1231, %v5830, 0
      %v5848 = vsel %vm1231, %v5831, 0
      %v5851 = vsel %vm1231, %v5832, 0
      %v5854 = vsel %vm1231, %v5833, 0
      %v5857 = vsel %vm1231, %v5834, 0
      %v5860 = vsel %vm1262, %v5810, 0
      %5862 = vmatprep.subr.bf16.mxu0 0
      %5863 = vmatpush1.bf16.msra.mxu0 %v5860
      %5864 = vmatprep.subr.bf16.mxu0 0
      %5865 = vmatpush1.bf16.msra.mxu0 0
      %5866 = vmatprep.subr.bf16.mxu0 0
      %5867 = vmatpush1.bf16.msra.mxu0 0
      %5868 = vmatprep.subr.bf16.mxu0 0
      %5869 = vmatpush1.bf16.msra.mxu0 0
      %5870 = vmatprep.subr.bf16.mxu0 0
      %5871 = vmatpush1.bf16.msra.mxu0 0
      %5872 = vmatprep.subr.bf16.mxu0 0
      %5873 = vmatpush1.bf16.msra.mxu0 0
      %5874 = vmatprep.subr.bf16.mxu0 0
      %5875 = vmatpush1.bf16.msra.mxu0 0
      %5876 = vmatprep.subr.bf16.mxu0 0
      %5877 = vmatpush1.bf16.msra.mxu0 0
      %5878 = vmatprep.subr.bf16.mxu0 0
      %5879 = vmatpush1.bf16.msra.mxu0 0
      %5880 = vmatprep.subr.bf16.mxu0 0
      %5881 = vmatpush1.bf16.msra.mxu0 0
      %5882 = vmatprep.subr.bf16.mxu0 0
      %5883 = vmatpush1.bf16.msra.mxu0 0
      %5884 = vmatprep.subr.bf16.mxu0 0
      %5885 = vmatpush1.bf16.msra.mxu0 0
      %5886 = vmatprep.subr.bf16.mxu0 0
      %5887 = vmatpush1.bf16.msra.mxu0 0
      %5888 = vmatprep.subr.bf16.mxu0 0
      %5889 = vmatpush1.bf16.msra.mxu0 0
      %5890 = vmatprep.subr.bf16.mxu0 0
      %5891 = vmatpush1.bf16.msra.mxu0 0
      %5892 = vmatprep.subr.bf16.mxu0 0
      %5893 = vmatpush1.bf16.msra.mxu0 0
      %5894 = vmatprep.mubr.bf16.mxu0 0
      %5895 = vmatmul.mubr.bf16.gmra.mrb[0].mxu0 %v5836
      %v5896 = vpop.f32.mrb[0].mxu0
      %v5897 = vadd.f32 0.0, %v5896
      %v5898 = vpop.f32.mrb[0].mxu0
      %v5899 = vpop.f32.mrb[0].mxu0
      %v5900 = vadd.f32 0.0, %v5899
      %v5901 = vpop.f32.mrb[0].mxu0
      %5902 = vmatprep.mubr.bf16.mxu0 0
      %5903 = vmatmul.mubr.bf16.gmra.mrb[0].mxu0 %v5839
      %v5904 = vpop.f32.mrb[0].mxu0
      %v5905 = vadd.f32 0.0, %v5904
      %v5906 = vpop.f32.mrb[0].mxu0
      %v5907 = vpop.f32.mrb[0].mxu0
      %v5908 = vadd.f32 0.0, %v5907
      %v5909 = vpop.f32.mrb[0].mxu0
      %5910 = vmatprep.mubr.bf16.mxu0 0
      %5911 = vmatmul.mubr.bf16.gmra.mrb[0].mxu0 %v5842
      %v5912 = vpop.f32.mrb[0].mxu0
      %v5913 = vadd.f32 0.0, %v5912
      %v5914 = vpop.f32.mrb[0].mxu0
      %v5915 = vpop.f32.mrb[0].mxu0
      %v5916 = vadd.f32 0.0, %v5915
      %v5917 = vpop.f32.mrb[0].mxu0
      %5918 = vmatprep.mubr.bf16.mxu0 0
      %5919 = vmatmul.mubr.bf16.gmra.mrb[0].mxu0 %v5845
      %v5920 = vpop.f32.mrb[0].mxu0
      %v5921 = vadd.f32 0.0, %v5920
      %v5922 = vpop.f32.mrb[0].mxu0
      %v5923 = vpop.f32.mrb[0].mxu0
      %v5924 = vadd.f32 0.0, %v5923
      %v5925 = vpop.f32.mrb[0].mxu0
      %5926 = vmatprep.mubr.bf16.mxu0 0
      %5927 = vmatmul.mubr.bf16.gmra.mrb[0].mxu0 %v5848
      %v5928 = vpop.f32.mrb[0].mxu0
      %v5929 = vadd.f32 0.0, %v5928
      %v5930 = vpop.f32.mrb[0].mxu0
      %v5931 = vpop.f32.mrb[0].mxu0
      %v5932 = vadd.f32 0.0, %v5931
      %v5933 = vpop.f32.mrb[0].mxu0
      %5934 = vmatprep.mubr.bf16.mxu0 0
      %5935 = vmatmul.mubr.bf16.gmra.mrb[0].mxu0 %v5851
      %v5936 = vpop.f32.mrb[0].mxu0
      %v5937 = vadd.f32 0.0, %v5936
      %v5938 = vpop.f32.mrb[0].mxu0
      %v5939 = vpop.f32.mrb[0].mxu0
      %v5940 = vadd.f32 0.0, %v5939
      %v5941 = vpop.f32.mrb[0].mxu0
      %5942 = vmatprep.mubr.bf16.mxu0 0
      %5943 = vmatmul.mubr.bf16.gmra.mrb[0].mxu0 %v5854
      %v5944 = vpop.f32.mrb[0].mxu0
      %v5945 = vadd.f32 0.0, %v5944
      %v5946 = vpop.f32.mrb[0].mxu0
      %v5947 = vpop.f32.mrb[0].mxu0
      %v5948 = vadd.f32 0.0, %v5947
      %v5949 = vpop.f32.mrb[0].mxu0
      %5950 = vmatprep.mubr.bf16.mxu0 0
      %5951 = vmatmul.mubr.bf16.gmra.mrb[0].mxu0 %v5857
      %v5952 = vpop.f32.mrb[0].mxu0
      %v5953 = vadd.f32 0.0, %v5952
      %v5954 = vpop.f32.mrb[0].mxu0
      %v5955 = vpop.f32.mrb[0].mxu0
      %v5956 = vadd.f32 0.0, %v5955
      %v5957 = vpop.f32.mrb[0].mxu0
      %5958 = vdwg.mxu0
      %v5959 = vadd.f32 %v5705, %v5897
      %v5960 = vadd.f32 %v5706, %v5900
      %v5961 = vadd.f32 %v5707, %v5905
      %v5962 = vadd.f32 %v5708, %v5908
      %v5963 = vadd.f32 %v5709, %v5913
      %v5964 = vadd.f32 %v5710, %v5916
      %v5965 = vadd.f32 %v5711, %v5921
      %v5966 = vadd.f32 %v5712, %v5924
      %v5967 = vadd.f32 %v5713, %v5929
      %v5968 = vadd.f32 %v5714, %v5932
      %v5969 = vadd.f32 %v5715, %v5937
      %v5970 = vadd.f32 %v5716, %v5940
      %v5971 = vadd.f32 %v5717, %v5945
      %v5972 = vadd.f32 %v5718, %v5948
      %v5973 = vadd.f32 %v5719, %v5953
      %v5974 = vadd.f32 %v5720, %v5956
      %s5975 = scalar_lea.vmem [#allocation3], 24
      %v5976 = vld [vmem:[%s5975] sm:$0xf]
      %v5977 = vld [vmem:[%s5975 + $0x4] sm:$0xf]
      %v5978 = vld [vmem:[%s5975 + $0xc] sm:$0xf]
      %v5979 = vld [vmem:[%s5975 + $0x10] sm:$0xf]
      %v5980 = vld [vmem:[%s5975 + $0x18] sm:$0xf]
      %v5981 = vld [vmem:[%s5975 + $0x1c] sm:$0xf]
      %v5982 = vld [vmem:[%s5975 + $0x24] sm:$0xf]
      %v5983 = vld [vmem:[%s5975 + $0x28] sm:$0xf]
      %v5984 = vld [vmem:[%s5975 + $0x30] sm:$0xf]
      %v5985 = vld [vmem:[%s5975 + $0x34] sm:$0xf]
      %v5986 = vld [vmem:[%s5975 + $0x3c] sm:$0xf]
      %v5987 = vld [vmem:[%s5975 + $0x40] sm:$0xf]
      %v5988 = vld [vmem:[%s5975 + $0x48] sm:$0xf]
      %v5989 = vld [vmem:[%s5975 + $0x4c] sm:$0xf]
      %v5990 = vld [vmem:[%s5975 + $0x54] sm:$0xf]
      %v5991 = vld [vmem:[%s5975 + $0x58] sm:$0xf]
      %s5992 = scalar_lea.vmem %s5, 12
      %v5993 = vld [vmem:[%s5992] sm:$0x3]
      %v6010 = vunpack.c.l.b16 %v5976
      %v6011 = vunpack.c.l.b16 %v5977
      %v6012 = vunpack.c.l.b16 %v5978
      %v6013 = vunpack.c.l.b16 %v5979
      %v6014 = vunpack.c.l.b16 %v5980
      %v6015 = vunpack.c.l.b16 %v5981
      %v6016 = vunpack.c.l.b16 %v5982
      %v6017 = vunpack.c.l.b16 %v5983
      %v6018 = vunpack.c.l.b16 %v5984
      %v6019 = vunpack.c.l.b16 %v5985
      %v6020 = vunpack.c.l.b16 %v5986
      %v6021 = vunpack.c.l.b16 %v5987
      %v6022 = vunpack.c.l.b16 %v5988
      %v6023 = vunpack.c.l.b16 %v5989
      %v6024 = vunpack.c.l.b16 %v5990
      %v6025 = vunpack.c.l.b16 %v5991
      %v6026 = vpack.c.b16 %v6011, %v6010
      %v6027 = vpack.c.b16 %v6013, %v6012
      %v6028 = vpack.c.b16 %v6015, %v6014
      %v6029 = vpack.c.b16 %v6017, %v6016
      %v6030 = vpack.c.b16 %v6019, %v6018
      %v6031 = vpack.c.b16 %v6021, %v6020
      %v6032 = vpack.c.b16 %v6023, %v6022
      %v6033 = vpack.c.b16 %v6025, %v6024
      %v6035 = vsel %vm1231, %v6026, 0
      %v6038 = vsel %vm1231, %v6027, 0
      %v6041 = vsel %vm1231, %v6028, 0
      %v6044 = vsel %vm1231, %v6029, 0
      %v6047 = vsel %vm1231, %v6030, 0
      %v6050 = vsel %vm1231, %v6031, 0
      %v6053 = vsel %vm1231, %v6032, 0
      %v6056 = vsel %vm1231, %v6033, 0
      %v6059 = vsel %vm1262, %v5993, 0
      %6061 = vmatprep.subr.bf16.mxu0 0
      %6062 = vmatpush1.bf16.msra.mxu0 %v6059
      %6063 = vmatprep.subr.bf16.mxu0 0
      %6064 = vmatpush1.bf16.msra.mxu0 0
      %6065 = vmatprep.subr.bf16.mxu0 0
      %6066 = vmatpush1.bf16.msra.mxu0 0
      %6067 = vmatprep.subr.bf16.mxu0 0
      %6068 = vmatpush1.bf16.msra.mxu0 0
      %6069 = vmatprep.subr.bf16.mxu0 0
      %6070 = vmatpush1.bf16.msra.mxu0 0
      %6071 = vmatprep.subr.bf16.mxu0 0
      %6072 = vmatpush1.bf16.msra.mxu0 0
      %6073 = vmatprep.subr.bf16.mxu0 0
      %6074 = vmatpush1.bf16.msra.mxu0 0
      %6075 = vmatprep.subr.bf16.mxu0 0
      %6076 = vmatpush1.bf16.msra.mxu0 0
      %6077 = vmatprep.subr.bf16.mxu0 0
      %6078 = vmatpush1.bf16.msra.mxu0 0
      %6079 = vmatprep.subr.bf16.mxu0 0
      %6080 = vmatpush1.bf16.msra.mxu0 0
      %6081 = vmatprep.subr.bf16.mxu0 0
      %6082 = vmatpush1.bf16.msra.mxu0 0
      %6083 = vmatprep.subr.bf16.mxu0 0
      %6084 = vmatpush1.bf16.msra.mxu0 0
      %6085 = vmatprep.subr.bf16.mxu0 0
      %6086 = vmatpush1.bf16.msra.mxu0 0
      %6087 = vmatprep.subr.bf16.mxu0 0
      %6088 = vmatpush1.bf16.msra.mxu0 0
      %6089 = vmatprep.subr.bf16.mxu0 0
      %6090 = vmatpush1.bf16.msra.mxu0 0
      %6091 = vmatprep.subr.bf16.mxu0 0
      %6092 = vmatpush1.bf16.msra.mxu0 0
      %6093 = vmatprep.mubr.bf16.mxu0 0
      %6094 = vmatmul.mubr.bf16.gmra.mrb[0].mxu0 %v6035
      %v6095 = vpop.f32.mrb[0].mxu0
      %v6096 = vadd.f32 0.0, %v6095
      %v6097 = vpop.f32.mrb[0].mxu0
      %v6098 = vpop.f32.mrb[0].mxu0
      %v6099 = vadd.f32 0.0, %v6098
      %v6100 = vpop.f32.mrb[0].mxu0
      %6101 = vmatprep.mubr.bf16.mxu0 0
      %6102 = vmatmul.mubr.bf16.gmra.mrb[0].mxu0 %v6038
      %v6103 = vpop.f32.mrb[0].mxu0
      %v6104 = vadd.f32 0.0, %v6103
      %v6105 = vpop.f32.mrb[0].mxu0
      %v6106 = vpop.f32.mrb[0].mxu0
      %v6107 = vadd.f32 0.0, %v6106
      %v6108 = vpop.f32.mrb[0].mxu0
      %6109 = vmatprep.mubr.bf16.mxu0 0
      %6110 = vmatmul.mubr.bf16.gmra.mrb[0].mxu0 %v6041
      %v6111 = vpop.f32.mrb[0].mxu0
      %v6112 = vadd.f32 0.0, %v6111
      %v6113 = vpop.f32.mrb[0].mxu0
      %v6114 = vpop.f32.mrb[0].mxu0
      %v6115 = vadd.f32 0.0, %v6114
      %v6116 = vpop.f32.mrb[0].mxu0
      %6117 = vmatprep.mubr.bf16.mxu0 0
      %6118 = vmatmul.mubr.bf16.gmra.mrb[0].mxu0 %v6044
      %v6119 = vpop.f32.mrb[0].mxu0
      %v6120 = vadd.f32 0.0, %v6119
      %v6121 = vpop.f32.mrb[0].mxu0
      %v6122 = vpop.f32.mrb[0].mxu0
      %v6123 = vadd.f32 0.0, %v6122
      %v6124 = vpop.f32.mrb[0].mxu0
      %6125 = vmatprep.mubr.bf16.mxu0 0
      %6126 = vmatmul.mubr.bf16.gmra.mrb[0].mxu0 %v6047
      %v6127 = vpop.f32.mrb[0].mxu0
      %v6128 = vadd.f32 0.0, %v6127
      %v6129 = vpop.f32.mrb[0].mxu0
      %v6130 = vpop.f32.mrb[0].mxu0
      %v6131 = vadd.f32 0.0, %v6130
      %v6132 = vpop.f32.mrb[0].mxu0
      %6133 = vmatprep.mubr.bf16.mxu0 0
      %6134 = vmatmul.mubr.bf16.gmra.mrb[0].mxu0 %v6050
      %v6135 = vpop.f32.mrb[0].mxu0
      %v6136 = vadd.f32 0.0, %v6135
      %v6137 = vpop.f32.mrb[0].mxu0
      %v6138 = vpop.f32.mrb[0].mxu0
      %v6139 = vadd.f32 0.0, %v6138
      %v6140 = vpop.f32.mrb[0].mxu0
      %6141 = vmatprep.mubr.bf16.mxu0 0
      %6142 = vmatmul.mubr.bf16.gmra.mrb[0].mxu0 %v6053
      %v6143 = vpop.f32.mrb[0].mxu0
      %v6144 = vadd.f32 0.0, %v6143
      %v6145 = vpop.f32.mrb[0].mxu0
      %v6146 = vpop.f32.mrb[0].mxu0
      %v6147 = vadd.f32 0.0, %v6146
      %v6148 = vpop.f32.mrb[0].mxu0
      %6149 = vmatprep.mubr.bf16.mxu0 0
      %6150 = vmatmul.mubr.bf16.gmra.mrb[0].mxu0 %v6056
      %v6151 = vpop.f32.mrb[0].mxu0
      %v6152 = vadd.f32 0.0, %v6151
      %v6153 = vpop.f32.mrb[0].mxu0
      %v6154 = vpop.f32.mrb[0].mxu0
      %v6155 = vadd.f32 0.0, %v6154
      %v6156 = vpop.f32.mrb[0].mxu0
      %6157 = vdwg.mxu0
      %v6158 = vadd.f32 %v5959, %v6096
      %v6159 = vadd.f32 %v5960, %v6099
      %v6160 = vadd.f32 %v5961, %v6104
      %v6161 = vadd.f32 %v5962, %v6107
      %v6162 = vadd.f32 %v5963, %v6112
      %v6163 = vadd.f32 %v5964, %v6115
      %v6164 = vadd.f32 %v5965, %v6120
      %v6165 = vadd.f32 %v5966, %v6123
      %v6166 = vadd.f32 %v5967, %v6128
      %v6167 = vadd.f32 %v5968, %v6131
      %v6168 = vadd.f32 %v5969, %v6136
      %v6169 = vadd.f32 %v5970, %v6139
      %v6170 = vadd.f32 %v5971, %v6144
      %v6171 = vadd.f32 %v5972, %v6147
      %v6172 = vadd.f32 %v5973, %v6152
      %v6173 = vadd.f32 %v5974, %v6155
      %v6174 = vld [vmem:[%s5975] sm:$0xf]
      %v6175 = vld [vmem:[%s5975 + $0x4] sm:$0xf]
      %v6176 = vld [vmem:[%s5975 + $0x8] sm:$0x1]
      %v6177 = vld [vmem:[%s5975 + $0xc] sm:$0xf]
      %v6178 = vld [vmem:[%s5975 + $0x10] sm:$0xf]
      %v6179 = vld [vmem:[%s5975 + $0x14] sm:$0x1]
      %v6180 = vld [vmem:[%s5975 + $0x18] sm:$0xf]
      %v6181 = vld [vmem:[%s5975 + $0x1c] sm:$0xf]
      %v6182 = vld [vmem:[%s5975 + $0x20] sm:$0x1]
      %v6183 = vld [vmem:[%s5975 + $0x24] sm:$0xf]
      %v6184 = vld [vmem:[%s5975 + $0x28] sm:$0xf]
      %v6185 = vld [vmem:[%s5975 + $0x2c] sm:$0x1]
      %v6186 = vld [vmem:[%s5975 + $0x30] sm:$0xf]
      %v6187 = vld [vmem:[%s5975 + $0x34] sm:$0xf]
      %v6188 = vld [vmem:[%s5975 + $0x38] sm:$0x1]
      %v6189 = vld [vmem:[%s5975 + $0x3c] sm:$0xf]
      %v6190 = vld [vmem:[%s5975 + $0x40] sm:$0xf]
      %v6191 = vld [vmem:[%s5975 + $0x44] sm:$0x1]
      %v6192 = vld [vmem:[%s5975 + $0x48] sm:$0xf]
      %v6193 = vld [vmem:[%s5975 + $0x4c] sm:$0xf]
      %v6194 = vld [vmem:[%s5975 + $0x50] sm:$0x1]
      %v6195 = vld [vmem:[%s5975 + $0x54] sm:$0xf]
      %v6196 = vld [vmem:[%s5975 + $0x58] sm:$0xf]
      %v6197 = vld [vmem:[%s5975 + $0x5c] sm:$0x1]
      %v6199 = vshrl.u32 %v6174, 16
      %v6201 = vrot.slane %v6199, 4
      %v6202 = vshll.u32 %v6174, 16
      %v6204 = vrot.slane %v6202, 5
      %v6205 = vor.u32 %v6201, %v6204
      %v6206 = vrot.slane %v6205, 4
      %v6208 = vshll.u32 %v6175, 16
      %v6210 = vrot.slane %v6208, 5
      %v6211 = vsel %vm958, %v6206, %v6210
      %v6212 = vshrl.u32 %v6175, 16
      %v6214 = vrot.slane %v6212, 4
      %v6215 = vor.u32 %v6214, %v6210
      %v6216 = vrot.slane %v6215, 4
      %v6218 = vshll.u32 %v6176, 16
      %v6220 = vrot.slane %v6218, 5
      %v6221 = vsel %vm958, %v6216, %v6220
      %v6223 = vshrl.u32 %v6177, 16
      %v6225 = vrot.slane %v6223, 4
      %v6226 = vshll.u32 %v6177, 16
      %v6228 = vrot.slane %v6226, 5
      %v6229 = vor.u32 %v6225, %v6228
      %v6230 = vrot.slane %v6229, 4
      %v6232 = vshll.u32 %v6178, 16
      %v6234 = vrot.slane %v6232, 5
      %v6235 = vsel %vm958, %v6230, %v6234
      %v6236 = vshrl.u32 %v6178, 16
      %v6238 = vrot.slane %v6236, 4
      %v6239 = vor.u32 %v6238, %v6234
      %v6240 = vrot.slane %v6239, 4
      %v6242 = vshll.u32 %v6179, 16
      %v6244 = vrot.slane %v6242, 5
      %v6245 = vsel %vm958, %v6240, %v6244
      %v6247 = vshrl.u32 %v6180, 16
      %v6249 = vrot.slane %v6247, 4
      %v6250 = vshll.u32 %v6180, 16
      %v6252 = vrot.slane %v6250, 5
      %v6253 = vor.u32 %v6249, %v6252
      %v6254 = vrot.slane %v6253, 4
      %v6256 = vshll.u32 %v6181, 16
      %v6258 = vrot.slane %v6256, 5
      %v6259 = vsel %vm958, %v6254, %v6258
      %v6260 = vshrl.u32 %v6181, 16
      %v6262 = vrot.slane %v6260, 4
      %v6263 = vor.u32 %v6262, %v6258
      %v6264 = vrot.slane %v6263, 4
      %v6266 = vshll.u32 %v6182, 16
      %v6268 = vrot.slane %v6266, 5
      %v6269 = vsel %vm958, %v6264, %v6268
      %v6271 = vshrl.u32 %v6183, 16
      %v6273 = vrot.slane %v6271, 4
      %v6274 = vshll.u32 %v6183, 16
      %v6276 = vrot.slane %v6274, 5
      %v6277 = vor.u32 %v6273, %v6276
      %v6278 = vrot.slane %v6277, 4
      %v6280 = vshll.u32 %v6184, 16
      %v6282 = vrot.slane %v6280, 5
      %v6283 = vsel %vm958, %v6278, %v6282
      %v6284 = vshrl.u32 %v6184, 16
      %v6286 = vrot.slane %v6284, 4
      %v6287 = vor.u32 %v6286, %v6282
      %v6288 = vrot.slane %v6287, 4
      %v6290 = vshll.u32 %v6185, 16
      %v6292 = vrot.slane %v6290, 5
      %v6293 = vsel %vm958, %v6288, %v6292
      %v6295 = vshrl.u32 %v6186, 16
      %v6297 = vrot.slane %v6295, 4
      %v6298 = vshll.u32 %v6186, 16
      %v6300 = vrot.slane %v6298, 5
      %v6301 = vor.u32 %v6297, %v6300
      %v6302 = vrot.slane %v6301, 4
      %v6304 = vshll.u32 %v6187, 16
      %v6306 = vrot.slane %v6304, 5
      %v6307 = vsel %vm958, %v6302, %v6306
      %v6308 = vshrl.u32 %v6187, 16
      %v6310 = vrot.slane %v6308, 4
      %v6311 = vor.u32 %v6310, %v6306
      %v6312 = vrot.slane %v6311, 4
      %v6314 = vshll.u32 %v6188, 16
      %v6316 = vrot.slane %v6314, 5
      %v6317 = vsel %vm958, %v6312, %v6316
      %v6319 = vshrl.u32 %v6189, 16
      %v6321 = vrot.slane %v6319, 4
      %v6322 = vshll.u32 %v6189, 16
      %v6324 = vrot.slane %v6322, 5
      %v6325 = vor.u32 %v6321, %v6324
      %v6326 = vrot.slane %v6325, 4
      %v6328 = vshll.u32 %v6190, 16
      %v6330 = vrot.slane %v6328, 5
      %v6331 = vsel %vm958, %v6326, %v6330
      %v6332 = vshrl.u32 %v6190, 16
      %v6334 = vrot.slane %v6332, 4
      %v6335 = vor.u32 %v6334, %v6330
      %v6336 = vrot.slane %v6335, 4
      %v6338 = vshll.u32 %v6191, 16
      %v6340 = vrot.slane %v6338, 5
      %v6341 = vsel %vm958, %v6336, %v6340
      %v6343 = vshrl.u32 %v6192, 16
      %v6345 = vrot.slane %v6343, 4
      %v6346 = vshll.u32 %v6192, 16
      %v6348 = vrot.slane %v6346, 5
      %v6349 = vor.u32 %v6345, %v6348
      %v6350 = vrot.slane %v6349, 4
      %v6352 = vshll.u32 %v6193, 16
      %v6354 = vrot.slane %v6352, 5
      %v6355 = vsel %vm958, %v6350, %v6354
      %v6356 = vshrl.u32 %v6193, 16
      %v6358 = vrot.slane %v6356, 4
      %v6359 = vor.u32 %v6358, %v6354
      %v6360 = vrot.slane %v6359, 4
      %v6362 = vshll.u32 %v6194, 16
      %v6364 = vrot.slane %v6362, 5
      %v6365 = vsel %vm958, %v6360, %v6364
      %v6367 = vshrl.u32 %v6195, 16
      %v6369 = vrot.slane %v6367, 4
      %v6370 = vshll.u32 %v6195, 16
      %v6372 = vrot.slane %v6370, 5
      %v6373 = vor.u32 %v6369, %v6372
      %v6374 = vrot.slane %v6373, 4
      %v6376 = vshll.u32 %v6196, 16
      %v6378 = vrot.slane %v6376, 5
      %v6379 = vsel %vm958, %v6374, %v6378
      %v6380 = vshrl.u32 %v6196, 16
      %v6382 = vrot.slane %v6380, 4
      %v6383 = vor.u32 %v6382, %v6378
      %v6384 = vrot.slane %v6383, 4
      %v6386 = vshll.u32 %v6197, 16
      %v6388 = vrot.slane %v6386, 5
      %v6389 = vsel %vm958, %v6384, %v6388
      %s6390 = scalar_lea.vmem %s5, 14
      %v6391 = vld [vmem:[%s6390] sm:$0x3]
      %v6392 = vunpack.c.l.b16 %v6211
      %v6393 = vunpack.c.l.b16 %v6221
      %v6394 = vunpack.c.l.b16 %v6235
      %v6395 = vunpack.c.l.b16 %v6245
      %v6396 = vunpack.c.l.b16 %v6259
      %v6397 = vunpack.c.l.b16 %v6269
      %v6398 = vunpack.c.l.b16 %v6283
      %v6399 = vunpack.c.l.b16 %v6293
      %v6400 = vunpack.c.l.b16 %v6307
      %v6401 = vunpack.c.l.b16 %v6317
      %v6402 = vunpack.c.l.b16 %v6331
      %v6403 = vunpack.c.l.b16 %v6341
      %v6404 = vunpack.c.l.b16 %v6355
      %v6405 = vunpack.c.l.b16 %v6365
      %v6406 = vunpack.c.l.b16 %v6379
      %v6407 = vunpack.c.l.b16 %v6389
      %v6408 = vpack.c.b16 %v6393, %v6392
      %v6409 = vpack.c.b16 %v6395, %v6394
      %v6410 = vpack.c.b16 %v6397, %v6396
      %v6411 = vpack.c.b16 %v6399, %v6398
      %v6412 = vpack.c.b16 %v6401, %v6400
      %v6413 = vpack.c.b16 %v6403, %v6402
      %v6414 = vpack.c.b16 %v6405, %v6404
      %v6415 = vpack.c.b16 %v6407, %v6406
      %v6417 = vsel %vm1231, %v6408, 0
      %v6420 = vsel %vm1231, %v6409, 0
      %v6423 = vsel %vm1231, %v6410, 0
      %v6426 = vsel %vm1231, %v6411, 0
      %v6429 = vsel %vm1231, %v6412, 0
      %v6432 = vsel %vm1231, %v6413, 0
      %v6435 = vsel %vm1231, %v6414, 0
      %v6438 = vsel %vm1231, %v6415, 0
      %v6441 = vsel %vm1262, %v6391, 0
      %6443 = vmatprep.subr.bf16.mxu0 0
      %6444 = vmatpush1.bf16.msra.mxu0 %v6441
      %6445 = vmatprep.subr.bf16.mxu0 0
      %6446 = vmatpush1.bf16.msra.mxu0 0
      %6447 = vmatprep.subr.bf16.mxu0 0
      %6448 = vmatpush1.bf16.msra.mxu0 0
      %6449 = vmatprep.subr.bf16.mxu0 0
      %6450 = vmatpush1.bf16.msra.mxu0 0
      %6451 = vmatprep.subr.bf16.mxu0 0
      %6452 = vmatpush1.bf16.msra.mxu0 0
      %6453 = vmatprep.subr.bf16.mxu0 0
      %6454 = vmatpush1.bf16.msra.mxu0 0
      %6455 = vmatprep.subr.bf16.mxu0 0
      %6456 = vmatpush1.bf16.msra.mxu0 0
      %6457 = vmatprep.subr.bf16.mxu0 0
      %6458 = vmatpush1.bf16.msra.mxu0 0
      %6459 = vmatprep.subr.bf16.mxu0 0
      %6460 = vmatpush1.bf16.msra.mxu0 0
      %6461 = vmatprep.subr.bf16.mxu0 0
      %6462 = vmatpush1.bf16.msra.mxu0 0
      %6463 = vmatprep.subr.bf16.mxu0 0
      %6464 = vmatpush1.bf16.msra.mxu0 0
      %6465 = vmatprep.subr.bf16.mxu0 0
      %6466 = vmatpush1.bf16.msra.mxu0 0
      %6467 = vmatprep.subr.bf16.mxu0 0
      %6468 = vmatpush1.bf16.msra.mxu0 0
      %6469 = vmatprep.subr.bf16.mxu0 0
      %6470 = vmatpush1.bf16.msra.mxu0 0
      %6471 = vmatprep.subr.bf16.mxu0 0
      %6472 = vmatpush1.bf16.msra.mxu0 0
      %6473 = vmatprep.subr.bf16.mxu0 0
      %6474 = vmatpush1.bf16.msra.mxu0 0
      %6475 = vmatprep.mubr.bf16.mxu0 0
      %6476 = vmatmul.mubr.bf16.gmra.mrb[0].mxu0 %v6417
      %v6477 = vpop.f32.mrb[0].mxu0
      %v6478 = vadd.f32 0.0, %v6477
      %v6479 = vpop.f32.mrb[0].mxu0
      %v6480 = vpop.f32.mrb[0].mxu0
      %v6481 = vadd.f32 0.0, %v6480
      %v6482 = vpop.f32.mrb[0].mxu0
      %6483 = vmatprep.mubr.bf16.mxu0 0
      %6484 = vmatmul.mubr.bf16.gmra.mrb[0].mxu0 %v6420
      %v6485 = vpop.f32.mrb[0].mxu0
      %v6486 = vadd.f32 0.0, %v6485
      %v6487 = vpop.f32.mrb[0].mxu0
      %v6488 = vpop.f32.mrb[0].mxu0
      %v6489 = vadd.f32 0.0, %v6488
      %v6490 = vpop.f32.mrb[0].mxu0
      %6491 = vmatprep.mubr.bf16.mxu0 0
      %6492 = vmatmul.mubr.bf16.gmra.mrb[0].mxu0 %v6423
      %v6493 = vpop.f32.mrb[0].mxu0
      %v6494 = vadd.f32 0.0, %v6493
      %v6495 = vpop.f32.mrb[0].mxu0
      %v6496 = vpop.f32.mrb[0].mxu0
      %v6497 = vadd.f32 0.0, %v6496
      %v6498 = vpop.f32.mrb[0].mxu0
      %6499 = vmatprep.mubr.bf16.mxu0 0
      %6500 = vmatmul.mubr.bf16.gmra.mrb[0].mxu0 %v6426
      %v6501 = vpop.f32.mrb[0].mxu0
      %v6502 = vadd.f32 0.0, %v6501
      %v6503 = vpop.f32.mrb[0].mxu0
      %v6504 = vpop.f32.mrb[0].mxu0
      %v6505 = vadd.f32 0.0, %v6504
      %v6506 = vpop.f32.mrb[0].mxu0
      %6507 = vmatprep.mubr.bf16.mxu0 0
      %6508 = vmatmul.mubr.bf16.gmra.mrb[0].mxu0 %v6429
      %v6509 = vpop.f32.mrb[0].mxu0
      %v6510 = vadd.f32 0.0, %v6509
      %v6511 = vpop.f32.mrb[0].mxu0
      %v6512 = vpop.f32.mrb[0].mxu0
      %v6513 = vadd.f32 0.0, %v6512
      %v6514 = vpop.f32.mrb[0].mxu0
      %6515 = vmatprep.mubr.bf16.mxu0 0
      %6516 = vmatmul.mubr.bf16.gmra.mrb[0].mxu0 %v6432
      %v6517 = vpop.f32.mrb[0].mxu0
      %v6518 = vadd.f32 0.0, %v6517
      %v6519 = vpop.f32.mrb[0].mxu0
      %v6520 = vpop.f32.mrb[0].mxu0
      %v6521 = vadd.f32 0.0, %v6520
      %v6522 = vpop.f32.mrb[0].mxu0
      %6523 = vmatprep.mubr.bf16.mxu0 0
      %6524 = vmatmul.mubr.bf16.gmra.mrb[0].mxu0 %v6435
      %v6525 = vpop.f32.mrb[0].mxu0
      %v6526 = vadd.f32 0.0, %v6525
      %v6527 = vpop.f32.mrb[0].mxu0
      %v6528 = vpop.f32.mrb[0].mxu0
      %v6529 = vadd.f32 0.0, %v6528
      %v6530 = vpop.f32.mrb[0].mxu0
      %6531 = vmatprep.mubr.bf16.mxu0 0
      %6532 = vmatmul.mubr.bf16.gmra.mrb[0].mxu0 %v6438
      %v6533 = vpop.f32.mrb[0].mxu0
      %v6534 = vadd.f32 0.0, %v6533
      %v6535 = vpop.f32.mrb[0].mxu0
      %v6536 = vpop.f32.mrb[0].mxu0
      %v6537 = vadd.f32 0.0, %v6536
      %v6538 = vpop.f32.mrb[0].mxu0
      %6539 = vdwg.mxu0
      %v6540 = vadd.f32 %v6158, %v6478
      %v6541 = vadd.f32 %v6159, %v6481
      %v6542 = vadd.f32 %v6160, %v6486
      %v6543 = vadd.f32 %v6161, %v6489
      %v6544 = vadd.f32 %v6162, %v6494
      %v6545 = vadd.f32 %v6163, %v6497
      %v6546 = vadd.f32 %v6164, %v6502
      %v6547 = vadd.f32 %v6165, %v6505
      %v6548 = vadd.f32 %v6166, %v6510
      %v6549 = vadd.f32 %v6167, %v6513
      %v6550 = vadd.f32 %v6168, %v6518
      %v6551 = vadd.f32 %v6169, %v6521
      %v6552 = vadd.f32 %v6170, %v6526
      %v6553 = vadd.f32 %v6171, %v6529
      %v6554 = vadd.f32 %v6172, %v6534
      %v6555 = vadd.f32 %v6173, %v6537
      %v6556 = vld [vmem:[%s5975] sm:$0xe]
      %v6557 = vld [vmem:[%s5975 + $0xc] sm:$0xe]
      %v6558 = vld [vmem:[%s5975 + $0x18] sm:$0xe]
      %v6559 = vld [vmem:[%s5975 + $0x24] sm:$0xe]
      %v6560 = vld [vmem:[%s5975 + $0x30] sm:$0xe]
      %v6561 = vld [vmem:[%s5975 + $0x3c] sm:$0xe]
      %v6562 = vld [vmem:[%s5975 + $0x48] sm:$0xe]
      %v6563 = vld [vmem:[%s5975 + $0x54] sm:$0xe]
      %v6588 = vrot.slane %v6556, 5
      %v6589 = vrot.slane %v6588, 4
      %v6590 = vrot.slane %v6175, 5
      %v6591 = vsel %vm1607, %v6589, %v6590
      %v6592 = vrot.slane %v6590, 4
      %v6593 = vrot.slane %v6176, 5
      %v6594 = vsel %vm1607, %v6592, %v6593
      %v6595 = vrot.slane %v6557, 5
      %v6596 = vrot.slane %v6595, 4
      %v6597 = vrot.slane %v6178, 5
      %v6598 = vsel %vm1607, %v6596, %v6597
      %v6599 = vrot.slane %v6597, 4
      %v6600 = vrot.slane %v6179, 5
      %v6601 = vsel %vm1607, %v6599, %v6600
      %v6602 = vrot.slane %v6558, 5
      %v6603 = vrot.slane %v6602, 4
      %v6604 = vrot.slane %v6181, 5
      %v6605 = vsel %vm1607, %v6603, %v6604
      %v6606 = vrot.slane %v6604, 4
      %v6607 = vrot.slane %v6182, 5
      %v6608 = vsel %vm1607, %v6606, %v6607
      %v6609 = vrot.slane %v6559, 5
      %v6610 = vrot.slane %v6609, 4
      %v6611 = vrot.slane %v6184, 5
      %v6612 = vsel %vm1607, %v6610, %v6611
      %v6613 = vrot.slane %v6611, 4
      %v6614 = vrot.slane %v6185, 5
      %v6615 = vsel %vm1607, %v6613, %v6614
      %v6616 = vrot.slane %v6560, 5
      %v6617 = vrot.slane %v6616, 4
      %v6618 = vrot.slane %v6187, 5
      %v6619 = vsel %vm1607, %v6617, %v6618
      %v6620 = vrot.slane %v6618, 4
      %v6621 = vrot.slane %v6188, 5
      %v6622 = vsel %vm1607, %v6620, %v6621
      %v6623 = vrot.slane %v6561, 5
      %v6624 = vrot.slane %v6623, 4
      %v6625 = vrot.slane %v6190, 5
      %v6626 = vsel %vm1607, %v6624, %v6625
      %v6627 = vrot.slane %v6625, 4
      %v6628 = vrot.slane %v6191, 5
      %v6629 = vsel %vm1607, %v6627, %v6628
      %v6630 = vrot.slane %v6562, 5
      %v6631 = vrot.slane %v6630, 4
      %v6632 = vrot.slane %v6193, 5
      %v6633 = vsel %vm1607, %v6631, %v6632
      %v6634 = vrot.slane %v6632, 4
      %v6635 = vrot.slane %v6194, 5
      %v6636 = vsel %vm1607, %v6634, %v6635
      %v6637 = vrot.slane %v6563, 5
      %v6638 = vrot.slane %v6637, 4
      %v6639 = vrot.slane %v6196, 5
      %v6640 = vsel %vm1607, %v6638, %v6639
      %v6641 = vrot.slane %v6639, 4
      %v6642 = vrot.slane %v6197, 5
      %v6643 = vsel %vm1607, %v6641, %v6642
      %s6644 = scalar_lea.vmem %s5, 16
      %v6645 = vld [vmem:[%s6644] sm:$0x3]
      %v6646 = vunpack.c.l.b16 %v6591
      %v6647 = vunpack.c.l.b16 %v6594
      %v6648 = vunpack.c.l.b16 %v6598
      %v6649 = vunpack.c.l.b16 %v6601
      %v6650 = vunpack.c.l.b16 %v6605
      %v6651 = vunpack.c.l.b16 %v6608
      %v6652 = vunpack.c.l.b16 %v6612
      %v6653 = vunpack.c.l.b16 %v6615
      %v6654 = vunpack.c.l.b16 %v6619
      %v6655 = vunpack.c.l.b16 %v6622
      %v6656 = vunpack.c.l.b16 %v6626
      %v6657 = vunpack.c.l.b16 %v6629
      %v6658 = vunpack.c.l.b16 %v6633
      %v6659 = vunpack.c.l.b16 %v6636
      %v6660 = vunpack.c.l.b16 %v6640
      %v6661 = vunpack.c.l.b16 %v6643
      %v6662 = vpack.c.b16 %v6647, %v6646
      %v6663 = vpack.c.b16 %v6649, %v6648
      %v6664 = vpack.c.b16 %v6651, %v6650
      %v6665 = vpack.c.b16 %v6653, %v6652
      %v6666 = vpack.c.b16 %v6655, %v6654
      %v6667 = vpack.c.b16 %v6657, %v6656
      %v6668 = vpack.c.b16 %v6659, %v6658
      %v6669 = vpack.c.b16 %v6661, %v6660
      %v6671 = vsel %vm1231, %v6662, 0
      %v6674 = vsel %vm1231, %v6663, 0
      %v6677 = vsel %vm1231, %v6664, 0
      %v6680 = vsel %vm1231, %v6665, 0
      %v6683 = vsel %vm1231, %v6666, 0
      %v6686 = vsel %vm1231, %v6667, 0
      %v6689 = vsel %vm1231, %v6668, 0
      %v6692 = vsel %vm1231, %v6669, 0
      %v6695 = vsel %vm1262, %v6645, 0
      %6697 = vmatprep.subr.bf16.mxu0 0
      %6698 = vmatpush1.bf16.msra.mxu0 %v6695
      %6699 = vmatprep.subr.bf16.mxu0 0
      %6700 = vmatpush1.bf16.msra.mxu0 0
      %6701 = vmatprep.subr.bf16.mxu0 0
      %6702 = vmatpush1.bf16.msra.mxu0 0
      %6703 = vmatprep.subr.bf16.mxu0 0
      %6704 = vmatpush1.bf16.msra.mxu0 0
      %6705 = vmatprep.subr.bf16.mxu0 0
      %6706 = vmatpush1.bf16.msra.mxu0 0
      %6707 = vmatprep.subr.bf16.mxu0 0
      %6708 = vmatpush1.bf16.msra.mxu0 0
      %6709 = vmatprep.subr.bf16.mxu0 0
      %6710 = vmatpush1.bf16.msra.mxu0 0
      %6711 = vmatprep.subr.bf16.mxu0 0
      %6712 = vmatpush1.bf16.msra.mxu0 0
      %6713 = vmatprep.subr.bf16.mxu0 0
      %6714 = vmatpush1.bf16.msra.mxu0 0
      %6715 = vmatprep.subr.bf16.mxu0 0
      %6716 = vmatpush1.bf16.msra.mxu0 0
      %6717 = vmatprep.subr.bf16.mxu0 0
      %6718 = vmatpush1.bf16.msra.mxu0 0
      %6719 = vmatprep.subr.bf16.mxu0 0
      %6720 = vmatpush1.bf16.msra.mxu0 0
      %6721 = vmatprep.subr.bf16.mxu0 0
      %6722 = vmatpush1.bf16.msra.mxu0 0
      %6723 = vmatprep.subr.bf16.mxu0 0
      %6724 = vmatpush1.bf16.msra.mxu0 0
      %6725 = vmatprep.subr.bf16.mxu0 0
      %6726 = vmatpush1.bf16.msra.mxu0 0
      %6727 = vmatprep.subr.bf16.mxu0 0
      %6728 = vmatpush1.bf16.msra.mxu0 0
      %6729 = vmatprep.mubr.bf16.mxu0 0
      %6730 = vmatmul.mubr.bf16.gmra.mrb[0].mxu0 %v6671
      %v6731 = vpop.f32.mrb[0].mxu0
      %v6732 = vadd.f32 0.0, %v6731
      %v6733 = vpop.f32.mrb[0].mxu0
      %v6734 = vpop.f32.mrb[0].mxu0
      %v6735 = vadd.f32 0.0, %v6734
      %v6736 = vpop.f32.mrb[0].mxu0
      %6737 = vmatprep.mubr.bf16.mxu0 0
      %6738 = vmatmul.mubr.bf16.gmra.mrb[0].mxu0 %v6674
      %v6739 = vpop.f32.mrb[0].mxu0
      %v6740 = vadd.f32 0.0, %v6739
      %v6741 = vpop.f32.mrb[0].mxu0
      %v6742 = vpop.f32.mrb[0].mxu0
      %v6743 = vadd.f32 0.0, %v6742
      %v6744 = vpop.f32.mrb[0].mxu0
      %6745 = vmatprep.mubr.bf16.mxu0 0
      %6746 = vmatmul.mubr.bf16.gmra.mrb[0].mxu0 %v6677
      %v6747 = vpop.f32.mrb[0].mxu0
      %v6748 = vadd.f32 0.0, %v6747
      %v6749 = vpop.f32.mrb[0].mxu0
      %v6750 = vpop.f32.mrb[0].mxu0
      %v6751 = vadd.f32 0.0, %v6750
      %v6752 = vpop.f32.mrb[0].mxu0
      %6753 = vmatprep.mubr.bf16.mxu0 0
      %6754 = vmatmul.mubr.bf16.gmra.mrb[0].mxu0 %v6680
      %v6755 = vpop.f32.mrb[0].mxu0
      %v6756 = vadd.f32 0.0, %v6755
      %v6757 = vpop.f32.mrb[0].mxu0
      %v6758 = vpop.f32.mrb[0].mxu0
      %v6759 = vadd.f32 0.0, %v6758
      %v6760 = vpop.f32.mrb[0].mxu0
      %6761 = vmatprep.mubr.bf16.mxu0 0
      %6762 = vmatmul.mubr.bf16.gmra.mrb[0].mxu0 %v6683
      %v6763 = vpop.f32.mrb[0].mxu0
      %v6764 = vadd.f32 0.0, %v6763
      %v6765 = vpop.f32.mrb[0].mxu0
      %v6766 = vpop.f32.mrb[0].mxu0
      %v6767 = vadd.f32 0.0, %v6766
      %v6768 = vpop.f32.mrb[0].mxu0
      %6769 = vmatprep.mubr.bf16.mxu0 0
      %6770 = vmatmul.mubr.bf16.gmra.mrb[0].mxu0 %v6686
      %v6771 = vpop.f32.mrb[0].mxu0
      %v6772 = vadd.f32 0.0, %v6771
      %v6773 = vpop.f32.mrb[0].mxu0
      %v6774 = vpop.f32.mrb[0].mxu0
      %v6775 = vadd.f32 0.0, %v6774
      %v6776 = vpop.f32.mrb[0].mxu0
      %6777 = vmatprep.mubr.bf16.mxu0 0
      %6778 = vmatmul.mubr.bf16.gmra.mrb[0].mxu0 %v6689
      %v6779 = vpop.f32.mrb[0].mxu0
      %v6780 = vadd.f32 0.0, %v6779
      %v6781 = vpop.f32.mrb[0].mxu0
      %v6782 = vpop.f32.mrb[0].mxu0
      %v6783 = vadd.f32 0.0, %v6782
      %v6784 = vpop.f32.mrb[0].mxu0
      %6785 = vmatprep.mubr.bf16.mxu0 0
      %6786 = vmatmul.mubr.bf16.gmra.mrb[0].mxu0 %v6692
      %v6787 = vpop.f32.mrb[0].mxu0
      %v6788 = vadd.f32 0.0, %v6787
      %v6789 = vpop.f32.mrb[0].mxu0
      %v6790 = vpop.f32.mrb[0].mxu0
      %v6791 = vadd.f32 0.0, %v6790
      %v6792 = vpop.f32.mrb[0].mxu0
      %6793 = vdwg.mxu0
      %v6794 = vadd.f32 %v6540, %v6732
      %v6795 = vadd.f32 %v6541, %v6735
      %v6796 = vadd.f32 %v6542, %v6740
      %v6797 = vadd.f32 %v6543, %v6743
      %v6798 = vadd.f32 %v6544, %v6748
      %v6799 = vadd.f32 %v6545, %v6751
      %v6800 = vadd.f32 %v6546, %v6756
      %v6801 = vadd.f32 %v6547, %v6759
      %v6802 = vadd.f32 %v6548, %v6764
      %v6803 = vadd.f32 %v6549, %v6767
      %v6804 = vadd.f32 %v6550, %v6772
      %v6805 = vadd.f32 %v6551, %v6775
      %v6806 = vadd.f32 %v6552, %v6780
      %v6807 = vadd.f32 %v6553, %v6783
      %v6808 = vadd.f32 %v6554, %v6788
      %v6809 = vadd.f32 %v6555, %v6791
      %v6810 = vld [vmem:[%s714] sm:$0xf]
      %v6811 = vld [vmem:[%s714 + $0x4] sm:$0xf]
      %v6812 = vld [vmem:[%s714 + $0x8] sm:$0x1]
      %v6813 = vld [vmem:[%s714 + $0xc] sm:$0xf]
      %v6814 = vld [vmem:[%s714 + $0x10] sm:$0xf]
      %v6815 = vld [vmem:[%s714 + $0x14] sm:$0x1]
      %v6816 = vld [vmem:[%s714 + $0x18] sm:$0xf]
      %v6817 = vld [vmem:[%s714 + $0x1c] sm:$0xf]
      %v6818 = vld [vmem:[%s714 + $0x20] sm:$0x1]
      %v6819 = vld [vmem:[%s714 + $0x24] sm:$0xf]
      %v6820 = vld [vmem:[%s714 + $0x28] sm:$0xf]
      %v6821 = vld [vmem:[%s714 + $0x2c] sm:$0x1]
      %v6822 = vld [vmem:[%s714 + $0x30] sm:$0xf]
      %v6823 = vld [vmem:[%s714 + $0x34] sm:$0xf]
      %v6824 = vld [vmem:[%s714 + $0x38] sm:$0x1]
      %v6825 = vld [vmem:[%s714 + $0x3c] sm:$0xf]
      %v6826 = vld [vmem:[%s714 + $0x40] sm:$0xf]
      %v6827 = vld [vmem:[%s714 + $0x44] sm:$0x1]
      %v6828 = vld [vmem:[%s714 + $0x48] sm:$0xf]
      %v6829 = vld [vmem:[%s714 + $0x4c] sm:$0xf]
      %v6830 = vld [vmem:[%s714 + $0x50] sm:$0x1]
      %v6831 = vld [vmem:[%s714 + $0x54] sm:$0xf]
      %v6832 = vld [vmem:[%s714 + $0x58] sm:$0xf]
      %v6833 = vld [vmem:[%s714 + $0x5c] sm:$0x1]
      %v6834 = vunpack.c.l.bf16 %v6810
      %v6835 = vunpack.c.l.bf16 %v6811
      %v6836 = vunpack.c.l.bf16 %v6812
      %v6837 = vunpack.c.l.bf16 %v6813
      %v6838 = vunpack.c.l.bf16 %v6814
      %v6839 = vunpack.c.l.bf16 %v6815
      %v6840 = vunpack.c.l.bf16 %v6816
      %v6841 = vunpack.c.l.bf16 %v6817
      %v6842 = vunpack.c.l.bf16 %v6818
      %v6843 = vunpack.c.l.bf16 %v6819
      %v6844 = vunpack.c.l.bf16 %v6820
      %v6845 = vunpack.c.l.bf16 %v6821
      %v6846 = vunpack.c.l.bf16 %v6822
      %v6847 = vunpack.c.l.bf16 %v6823
      %v6848 = vunpack.c.l.bf16 %v6824
      %v6849 = vunpack.c.l.bf16 %v6825
      %v6850 = vunpack.c.l.bf16 %v6826
      %v6851 = vunpack.c.l.bf16 %v6827
      %v6852 = vunpack.c.l.bf16 %v6828
      %v6853 = vunpack.c.l.bf16 %v6829
      %v6854 = vunpack.c.l.bf16 %v6830
      %v6855 = vunpack.c.l.bf16 %v6831
      %v6856 = vunpack.c.l.bf16 %v6832
      %v6857 = vunpack.c.l.bf16 %v6833
      %v6858 = vld [vmem:[%s6] sm:$0x1]
      %v6860 = vlaneseq
      %v6861 = vshrl.u32 %v6860, 7
      %v6862 = vsub.s32 0, %v6861
      %v6863 = vrot.slane %v6858, %v6862
      %v6865 = vadd.f32 %v6794, %v6863
      %v6866 = vadd.f32 %v6795, %v6863
      %v6867 = vadd.f32 %v6796, %v6863
      %v6868 = vadd.f32 %v6797, %v6863
      %v6869 = vadd.f32 %v6798, %v6863
      %v6870 = vadd.f32 %v6799, %v6863
      %v6871 = vadd.f32 %v6800, %v6863
      %v6872 = vadd.f32 %v6801, %v6863
      %v6873 = vadd.f32 %v6802, %v6863
      %v6874 = vadd.f32 %v6803, %v6863
      %v6875 = vadd.f32 %v6804, %v6863
      %v6876 = vadd.f32 %v6805, %v6863
      %v6877 = vadd.f32 %v6806, %v6863
      %v6878 = vadd.f32 %v6807, %v6863
      %v6879 = vadd.f32 %v6808, %v6863
      %v6880 = vadd.f32 %v6809, %v6863
      %vm6905 = vcmask 1046528
      %v6906 = vrot.slane %v6834, 1
      %v6907 = vrot.slane %v6835, 1
      %v6908 = vsel %vm6905, %v6906, %v6907
      %v6909 = vrot.slane %v6836, 1
      %v6910 = vsel %vm6905, %v6907, %v6909
      %v6911 = vrot.slane %v6837, 1
      %v6912 = vrot.slane %v6838, 1
      %v6913 = vsel %vm6905, %v6911, %v6912
      %v6914 = vrot.slane %v6839, 1
      %v6915 = vsel %vm6905, %v6912, %v6914
      %v6916 = vrot.slane %v6840, 1
      %v6917 = vrot.slane %v6841, 1
      %v6918 = vsel %vm6905, %v6916, %v6917
      %v6919 = vrot.slane %v6842, 1
      %v6920 = vsel %vm6905, %v6917, %v6919
      %v6921 = vrot.slane %v6843, 1
      %v6922 = vrot.slane %v6844, 1
      %v6923 = vsel %vm6905, %v6921, %v6922
      %v6924 = vrot.slane %v6845, 1
      %v6925 = vsel %vm6905, %v6922, %v6924
      %v6926 = vrot.slane %v6846, 1
      %v6927 = vrot.slane %v6847, 1
      %v6928 = vsel %vm6905, %v6926, %v6927
      %v6929 = vrot.slane %v6848, 1
      %v6930 = vsel %vm6905, %v6927, %v6929
      %v6931 = vrot.slane %v6849, 1
      %v6932 = vrot.slane %v6850, 1
      %v6933 = vsel %vm6905, %v6931, %v6932
      %v6934 = vrot.slane %v6851, 1
      %v6935 = vsel %vm6905, %v6932, %v6934
      %v6936 = vrot.slane %v6852, 1
      %v6937 = vrot.slane %v6853, 1
      %v6938 = vsel %vm6905, %v6936, %v6937
      %v6939 = vrot.slane %v6854, 1
      %v6940 = vsel %vm6905, %v6937, %v6939
      %v6941 = vrot.slane %v6855, 1
      %v6942 = vrot.slane %v6856, 1
      %v6943 = vsel %vm6905, %v6941, %v6942
      %v6944 = vrot.slane %v6857, 1
      %v6945 = vsel %vm6905, %v6942, %v6944
      %v6962 = vadd.f32 %v6865, %v6908
      %v6963 = vadd.f32 %v6866, %v6910
      %v6964 = vadd.f32 %v6867, %v6913
      %v6965 = vadd.f32 %v6868, %v6915
      %v6966 = vadd.f32 %v6869, %v6918
      %v6967 = vadd.f32 %v6870, %v6920
      %v6968 = vadd.f32 %v6871, %v6923
      %v6969 = vadd.f32 %v6872, %v6925
      %v6970 = vadd.f32 %v6873, %v6928
      %v6971 = vadd.f32 %v6874, %v6930
      %v6972 = vadd.f32 %v6875, %v6933
      %v6973 = vadd.f32 %v6876, %v6935
      %v6974 = vadd.f32 %v6877, %v6938
      %v6975 = vadd.f32 %v6878, %v6940
      %v6976 = vadd.f32 %v6879, %v6943
      %v6977 = vadd.f32 %v6880, %v6945
      %6978 = vst.msk [vmem:[%s455] sm:$0xff] %vm1231, %v6962
      %6979 = vst.msk [vmem:[%s455 + $0x8] sm:$0xff] %vm1231, %v6963
      %6980 = vst.msk [vmem:[%s455 + $0x10] sm:$0xff] %vm1231, %v6964
      %6981 = vst.msk [vmem:[%s455 + $0x18] sm:$0xff] %vm1231, %v6965
      %6982 = vst.msk [vmem:[%s455 + $0x20] sm:$0xff] %vm1231, %v6966
      %6983 = vst.msk [vmem:[%s455 + $0x28] sm:$0xff] %vm1231, %v6967
      %6984 = vst.msk [vmem:[%s455 + $0x30] sm:$0xff] %vm1231, %v6968
      %6985 = vst.msk [vmem:[%s455 + $0x38] sm:$0xff] %vm1231, %v6969
      %6986 = vst.msk [vmem:[%s455 + $0x40] sm:$0xff] %vm1231, %v6970
      %6987 = vst.msk [vmem:[%s455 + $0x48] sm:$0xff] %vm1231, %v6971
      %6988 = vst.msk [vmem:[%s455 + $0x50] sm:$0xff] %vm1231, %v6972
      %6989 = vst.msk [vmem:[%s455 + $0x58] sm:$0xff] %vm1231, %v6973
      %6990 = vst.msk [vmem:[%s455 + $0x60] sm:$0xff] %vm1231, %v6974
      %6991 = vst.msk [vmem:[%s455 + $0x68] sm:$0xff] %vm1231, %v6975
      %6992 = vst.msk [vmem:[%s455 + $0x70] sm:$0xff] %vm1231, %v6976
      %6993 = vst.msk [vmem:[%s455 + $0x78] sm:$0xff] %vm1231, %v6977
      %s6994 = smul.u32 8, %s23
      %p6995 = scmp.lt.s32.totalorder %s22, 1
      %s6996 = scalar_select %p6995, %s22, 1
      %p6997 = scmp.lt.s32.totalorder %s6994, 15
      %s6998 = scalar_select %p6997, %s6994, 15
      %s6999 = smul.addr %s6998, 2
      %s7000 = smul.addr %s6996, 32
      %s7001 = sadd.s32 %s6999, %s7000
      %s7002 = smul.addr %s7001, 8
      %s7003 = scalar_lea.vmem %s7, %s7002
      // Predicated region
      $region65: #{tpu_custom_call.1} parent=47 // pred_check
        %p7004 = pneg %p234
      $region66: #{tpu_custom_call.1} parent=47 // pred_check_branch
        %7006 = sbr.rel (%p7004) target = $region68
      $region67: #{tpu_custom_call.1} parent=47 // pred_region
        %s7007 = smul.u32 8, %s23
      $region68: #{tpu_custom_call.1} parent=47 // pred_fallthru
        _
    $region48: #{tpu_custom_call.1} parent=5 // pred_fallthru
      _
    %p7008 = scmp.le.s32.totalorder 2, %s13
    // Predicated region
    $region69: #{tpu_custom_call.1} parent=5 // pred_check
      %p7009 = pneg %p7008
    $region70: #{tpu_custom_call.1} parent=5 // pred_check_branch
      %7011 = sbr.rel (%p7009) target = $region72
    $region71: #{tpu_custom_call.1} parent=5 // pred_region
      %s7012 = ssub.s32 %s13, 2
      // Predicated region
      $region73: #{tpu_custom_call.1} parent=71 // pred_check
        %p7013 = pneg %p240
      $region74: #{tpu_custom_call.1} parent=71 // pred_check_branch
        %7015 = sbr.rel (%p7013) target = $region76
      $region75: #{tpu_custom_call.1} parent=71 // pred_region
        %s7016 = smul.u32 8, %s25
        %p7017 = scmp.lt.s32.totalorder %s24, 1
        %s7018 = scalar_select %p7017, %s24, 1
        %p7019 = scmp.lt.s32.totalorder %s7016, 15
        %s7020 = scalar_select %p7019, %s7016, 15
        %s7021 = smul.addr %s7020, 2
        %s7022 = smul.addr %s7018, 32
        %s7023 = sadd.s32 %s7021, %s7022
        %s7024 = smul.addr %s7023, 8
        %s7025 = scalar_lea.vmem %s7, %s7024
      $region76: #{tpu_custom_call.1} parent=71 // pred_fallthru
        _
    $region72: #{tpu_custom_call.1} parent=5 // pred_fallthru
      _
  $region6: #{tpu_custom_call.1} parent=0 // loop_footer
    %s17 = sadd.s32 1, %s13
  $region7: #{tpu_custom_call.1} parent=0 // loop_footer_branch
    %12 = sbr.rel target = $region3
  $region8: #{tpu_custom_call.1} parent=0 // loop_exit
    _

</llo_original>
